<compile_context>
chip_gen: v5e
topology: v5e:2x2
jax: 0.10.0
libtpu: 0.0.40
codegen_flags: <defaults>
</compile_context>

<pallas_src>
import functools

import jax
import jax.numpy as jnp
from jax import lax
from jax.experimental import pallas as pl
from jax.experimental.pallas import tpu as pltpu

LANE = 128      # lane width / padded channel count for intermediates
_WOFF = 8       # sublane-aligned column offset of the depthwise scratch interior


def _tree_sum(parts):
    """Pairwise (tree) accumulation — shorter dependent-add chain than serial."""
    while len(parts) > 1:
        nxt = [parts[i] + parts[i + 1] for i in range(0, len(parts) - 1, 2)]
        if len(parts) % 2:
            nxt.append(parts[-1])
        parts = nxt
    return parts[0]


def _depthwise5x5(p_ref, nrows, w_out, wd_ref, bd_ref):
    """5x5 depthwise conv + folded-BN bias over a zero-bordered scratch.

    p_ref holds the input band at columns [_WOFF, _WOFF+w_out); the two halo
    columns on each side of the interior are zero.  For every row offset di we
    do ONE aligned full-width band load and derive the 5 column offsets with
    pltpu.roll along the sublane (W) axis, then a fixed aligned interior slice
    — no sublane-unaligned window slices.  Returns (nrows, w_out, LANE) f32.
    """
    wp = p_ref.shape[1]
    row_terms = []
    for di in range(5):                                  # static, unrolled
        band = p_ref[di:di + nrows, :, :]                # aligned band load
        taps = []
        for dj in range(5):
            s = (2 - dj) % wp
            shifted = band if s == 0 else pltpu.roll(band, s, axis=1)
            win = shifted[:, _WOFF:_WOFF + w_out, :]      # aligned slice
            taps.append(win * wd_ref[5 * di + dj, :])
        row_terms.append(_tree_sum(taps))
    return _tree_sum(row_terms) + bd_ref[...]


def _gsbottleneck_kernel(x_ref, w1_ref, b1_ref, wd1_ref, bd1_ref,
                         w2_ref, b2_ref, wd2_ref, bd2_ref,
                         o_ref, p1_ref, p2_ref, cat_ref, *, shift):
    """One (batch, row-tile) step of the fused GSBottleneck.conv_lighting.

    x_ref  : (1, H+8, W, C)  bf16  full-height NHWC input (4 zero rows top/bot),
                                   resident across the row-tile grid axis
    w1_ref : (C, P)          bf16  GSConv#1 1x1 weight (BN folded)
    b1_ref : (1, P)          f32
    wd1_ref: (32, P)         f32   GSConv#1 5x5 depthwise taps (rows 0..24)
    bd1_ref: (1, P)          f32
    w2_ref : (2P, P)         bf16  GSConv#2 1x1 weight; GSConv#1's shuffle folded
                                   into its ROW order, GSConv#2's (final) shuffle
                                   folded into its COLUMN order (pi_x)
    b2_ref : (1, P)          f32
    wd2_ref: (32, P)         f32   GSConv#2 depthwise taps (lanes permuted by pi_x)
    bd2_ref: (1, P)          f32
    o_ref  : (1, TH, W, P)   f32   final rows; shuffle already applied, real
                                   channels on lanes [0, c2)
    p1_ref : (TH+8, W+16, P) f32   zero-bordered scratch for depthwise #1
    p2_ref : (TH+4, W+16, P) f32   zero-bordered scratch for depthwise #2
    cat_ref: ((TH+4)*W, 2P)  bf16  x1|d1 staging for the single K=256 GEMM
    shift  : int                   ch2//2 — lane roll realizing the final shuffle
    """
    TH, W, P = o_ref.shape[1], o_ref.shape[2], o_ref.shape[3]
    H = x_ref.shape[1] - 8               # true image height
    C = x_ref.shape[3]
    E1, E2 = TH + 8, TH + 4              # x1 band / (d1, x2) band row extents
    r0 = pl.multiple_of(pl.program_id(1) * TH, TH)   # first output row of tile

    def silu(v):
        return v * jax.nn.sigmoid(v)

    # Re-zero ONLY the W-halo strips (aligned stores); interiors are fully
    # rewritten below.  Done every step so a megacore "parallel" grid is safe.
    p1_ref[:, :_WOFF, :] = jnp.zeros((E1, _WOFF, P), jnp.float32)
    p1_ref[:, _WOFF + W:, :] = jnp.zeros((E1, _WOFF, P), jnp.float32)
    p2_ref[:, :_WOFF, :] = jnp.zeros((E2, _WOFF, P), jnp.float32)
    p2_ref[:, _WOFF + W:, :] = jnp.zeros((E2, _WOFF, P), jnp.float32)

    # ---- GSConv #1 (act = SiLU) --------------------------------------------
    # cv1: 1x1 conv == MXU GEMM over the E1 row band (output rows + 4-row halo).
    xin = x_ref[0, pl.ds(r0, E1), :, :]                        # (E1, W, C) bf16
    x1 = jnp.dot(xin.reshape(E1 * W, C), w1_ref[...],
                 preferred_element_type=jnp.float32) + b1_ref[...]
    x1 = silu(x1).reshape(E1, W, P)
    # Rows outside the true image must be ZERO (they are cv2's zero padding),
    # not SiLU(bias): mask them before they enter the depthwise scratch.
    g1 = r0 - 4 + lax.broadcasted_iota(jnp.int32, (E1, 1, 1), 0)
    x1 = jnp.where((g1 >= 0) & (g1 < H), x1, 0.0)
    p1_ref[:, _WOFF:_WOFF + W, :] = x1

    # cv2: 5x5 depthwise + folded BN + SiLU over the E2 band (out rows + 2-row halo).
    d1 = silu(_depthwise5x5(p1_ref, E2, W, wd1_ref, bd1_ref))   # (E2, W, P)

    # ---- GSConv #2 (act = Identity) ------------------------------------------
    # cv1 over shuffle1(concat(x1, d1)): shuffle folded into w2's rows; single
    # K = 2P GEMM through the 256-lane bf16 concat scratch.
    n2 = E2 * W
    cat_ref[:, :P] = x1[2:2 + E2].reshape(n2, P).astype(jnp.bfloat16)
    cat_ref[:, P:] = d1.reshape(n2, P).astype(jnp.bfloat16)
    x2 = jnp.dot(cat_ref[...], w2_ref[...],
                 preferred_element_type=jnp.float32) + b2_ref[...]
    x2 = x2.reshape(E2, W, P)
    g2 = r0 - 2 + lax.broadcasted_iota(jnp.int32, (E2, 1, 1), 0)
    x2 = jnp.where((g2 >= 0) & (g2 < H), x2, 0.0)
    p2_ref[:, _WOFF:_WOFF + W, :] = x2

    # cv2: 5x5 depthwise (no activation) over the TH output rows.
    d2 = _depthwise5x5(p2_ref, TH, W, wd2_ref, bd2_ref)          # (TH, W, P)

    # Final channel shuffle, folded: x2 channel j was computed on lane pi_x(j)
    # (w2 column permutation), d2 follows the same lanes, and the shuffled
    # layout is exactly pi_x(j) for x2 and pi_x(j)+ch2//2 for d2 -> one XLU roll.
    d2s = pltpu.roll(d2, shift, axis=2) if shift else d2
    o_ref[0] = (x2[2:2 + TH] + d2s).astype(o_ref.dtype)


# ----------------------------------------------------------------------------
# Parameter construction (Conv2d bias=False + BatchNorm2d, eval-mode statistics)
# ----------------------------------------------------------------------------
def _init_conv_bn(key, c_out, c_in_per_group, k):
    kw, kg, kb, km, kv = jax.random.split(key, 5)
    fan_in = c_in_per_group * k * k
    return dict(
        w=jax.random.normal(kw, (c_out, c_in_per_group, k, k), jnp.float32)
          / jnp.sqrt(float(fan_in)),
        gamma=1.0 + 0.1 * jax.random.normal(kg, (c_out,), jnp.float32),
        beta=0.1 * jax.random.normal(kb, (c_out,), jnp.float32),
        mean=0.1 * jax.random.normal(km, (c_out,), jnp.float32),
        var=1.0 + jax.random.uniform(kv, (c_out,), jnp.float32),
    )


class GSBottleneckPallas:
    """Pallas TPU implementation of GSBottleneck.forward (the conv_lighting path)."""

    def __init__(self, key, c1, c2, k=3, s=1, eps=1e-5, row_tile=None):
        # forward() only uses conv_lighting = GSConv(c1,c2//2,1,1) -> GSConv(c2//2,c2,1,1,act=False)
        # TODO(synk): self.conv (the 3x3 GSConv branch parameterized by k/s) and
        # self.shortcut are built by the PyTorch module but never used by
        # forward(); they are intentionally not materialized here.
        del k, s
        c_ = c2 // 2
        assert c_ % 2 == 0, "c2 must be a multiple of 4"
        assert c2 <= LANE, "c2 above 128 needs extra output-lane tiling"
        ch1, ch2 = c_ // 2, c2 // 2
        self.c1, self.c2, self.c_, self.ch1, self.ch2, self.eps = c1, c2, c_, ch1, ch2, eps
        self.row_tile = row_tile

        k1, k2, k3, k4 = jax.random.split(key, 4)
        self.g1_pw = _init_conv_bn(k1, ch1, c1, 1)   # GSConv#1.cv1 : 1x1,  c1 -> ch1
        self.g1_dw = _init_conv_bn(k2, ch1, 1, 5)    # GSConv#1.cv2 : 5x5 depthwise
        self.g2_pw = _init_conv_bn(k3, ch2, c_, 1)   # GSConv#2.cv1 : 1x1,  c_ -> ch2
        self.g2_dw = _init_conv_bn(k4, ch2, 1, 5)    # GSConv#2.cv2 : 5x5 depthwise

        self._pack_params()
        self._forward = jax.jit(self._forward_impl)

    # -- fold BN (eval mode), place channels on lanes, fold both GSConv shuffles
    #    into weight row/column order so the kernel needs no gather -------------
    def _pack_params(self):
        P, eps = LANE, self.eps

        def fold(p):
            scale = p["gamma"] / jnp.sqrt(p["var"] + eps)
            return p["w"] * scale[:, None, None, None], p["beta"] - p["mean"] * scale

        def shuffle_slots(ch):
            # GSConv shuffled channel s -> lane index in the un-shuffled
            # [pw | dw] 2P-lane layout (pw at lanes [0,P), dw at lanes [P,2P)).
            s = jnp.arange(2 * ch)
            m = jnp.where(s < ch, 2 * s, 2 * (s - ch) + 1)   # torch reshape/permute shuffle
            return jnp.where(m < ch, m, P + (m - ch))

        def pack_pw(wf, bias, in_slots, out_slots, kdim):
            wt = wf[:, :, 0, 0].T                              # (c_in, c_out)
            wm = jnp.zeros((kdim, P), jnp.float32)
            wm = wm.at[in_slots[:, None], out_slots[None, :]].set(wt)
            bm = jnp.zeros((1, P), jnp.float32).at[0, out_slots].set(bias)
            return wm.astype(jnp.bfloat16), bm

        def pack_dw(wf, bias, slots):
            c = wf.shape[0]
            wm = jnp.zeros((32, P), jnp.float32).at[:25, slots].set(
                wf[:, 0].reshape(c, 25).T)
            bm = jnp.zeros((1, P), jnp.float32).at[0, slots].set(bias)
            return wm, bm

        w1f, b1f = fold(self.g1_pw)
        wd1f, bd1f = fold(self.g1_dw)
        w2f, b2f = fold(self.g2_pw)
        wd2f, bd2f = fold(self.g2_dw)

        # Final (GSConv#2) shuffle folded into lane placement: x2 channel j is
        # computed on lane pi_x(j); d2 follows the same lanes; rolling d2 by
        # ch2//2 lands its channels on their shuffled lanes, so the wrapper only
        # slices [..., :c2].
        jj = jnp.arange(self.ch2)
        pi_x = jnp.where(jj % 2 == 0, jj // 2, (jj - 1) // 2 + self.ch2)

        self.w1, self.b1 = pack_pw(w1f, b1f, jnp.arange(self.c1),
                                   jnp.arange(self.ch1), self.c1)
        self.wd1, self.bd1 = pack_dw(wd1f, bd1f, jnp.arange(self.ch1))
        # GSConv#1's shuffle -> ROW order of GSConv#2's 1x1 weight (K = 2*P lanes).
        self.w2, self.b2 = pack_pw(w2f, b2f, shuffle_slots(self.ch1), pi_x, 2 * P)
        self.wd2, self.bd2 = pack_dw(wd2f, bd2f, pi_x)
        self.shift = int(self.ch2 // 2)

    # -- row-tile selection -----------------------------------------------------
    def _pick_row_tile(self, H, W):
        if self.row_tile is not None:
            th = int(self.row_tile)
            assert H % th == 0, "row_tile must divide H"
            return th
        # Rough per-row VMEM footprint (scratches + double-buffered output +
        # live temporaries); target ~8 MiB/step so even v5e's 16 MiB default
        # scoped VMEM is comfortable.  TODO(synk): per-generation target via
        # pltpu.get_tpu_info().
        bytes_per_row = W * LANE * 4 * 12
        th = max(4, (8 << 20) // max(bytes_per_row, 1))
        th = min(th, H)
        while H % th:
            th -= 1
        return max(th, 1)

    # -- forward ------------------------------------------------------------------
    def _forward_impl(self, x_nchw):
        P = LANE
        B, C, H, W = x_nchw.shape
        assert C == self.c1
        assert W % 8 == 0, "W must be a multiple of 8"
        # TODO(synk): W not a multiple of 8 would need wrapper-side W padding to
        # keep the in-kernel reshapes / interior stores layout-preserving.
        TH = self._pick_row_tile(H, W)

        # NHWC, TRUE channel count, bf16 (the MXU operands are bf16 anyway), and
        # a 4-row zero halo top/bottom so every row tile slices its halo from the
        # resident input block without overlapping BlockSpecs.
        x = jnp.transpose(x_nchw, (0, 2, 3, 1)).astype(jnp.bfloat16)
        xp = jnp.pad(x, ((0, 0), (4, 4), (0, 0), (0, 0)))

        kernel = functools.partial(_gsbottleneck_kernel, shift=self.shift)
        out = pl.pallas_call(
            kernel,
            out_shape=jax.ShapeDtypeStruct((B, H, W, P), jnp.float32),
            grid=(B, H // TH),
            in_specs=[
                pl.BlockSpec((1, H + 8, W, C), lambda b, t: (b, 0, 0, 0)),
                pl.BlockSpec((C, P), lambda b, t: (0, 0)),
                pl.BlockSpec((1, P), lambda b, t: (0, 0)),
                pl.BlockSpec((32, P), lambda b, t: (0, 0)),
                pl.BlockSpec((1, P), lambda b, t: (0, 0)),
                pl.BlockSpec((2 * P, P), lambda b, t: (0, 0)),
                pl.BlockSpec((1, P), lambda b, t: (0, 0)),
                pl.BlockSpec((32, P), lambda b, t: (0, 0)),
                pl.BlockSpec((1, P), lambda b, t: (0, 0)),
            ],
            out_specs=pl.BlockSpec((1, TH, W, P), lambda b, t: (b, t, 0, 0)),
            scratch_shapes=[
                pltpu.VMEM((TH + 8, W + 16, P), jnp.float32),       # depthwise #1
                pltpu.VMEM((TH + 4, W + 16, P), jnp.float32),       # depthwise #2
                pltpu.VMEM(((TH + 4) * W, 2 * P), jnp.bfloat16),    # x1|d1 concat
            ],
            compiler_params=pltpu.CompilerParams(
                dimension_semantics=("parallel", "parallel")),
        )(xp, self.w1, self.b1, self.wd1, self.bd1,
          self.w2, self.b2, self.wd2, self.bd2)

        # Shuffle already folded in-kernel: real channels are lanes [0, c2).
        y = out[..., :self.c2]
        return jnp.transpose(y, (0, 3, 1, 2))          # back to NCHW

    def forward(self, x):
        return self._forward(x)

    __call__ = forward


# ----------------------------------------------------------------------------
# Pure-JAX (XLA) reference of the exact PyTorch forward — for validation only
# ----------------------------------------------------------------------------
def _conv_bn_ref(x, p, eps, *, pad, groups, act):
    y = lax.conv_general_dilated(
        x, p["w"], window_strides=(1, 1), padding=[(pad, pad), (pad, pad)],
        dimension_numbers=("NCHW", "OIHW", "NCHW"), feature_group_count=groups)
    scale = p["gamma"] / jnp.sqrt(p["var"] + eps)
    y = y * scale[None, :, None, None] + (p["beta"] - p["mean"] * scale)[None, :, None, None]
    return y * jax.nn.sigmoid(y) if act else y


def _gsconv_ref(x, pw, dw, eps, act):
    x1 = _conv_bn_ref(x, pw, eps, pad=0, groups=1, act=act)
    x2 = _conv_bn_ref(x1, dw, eps, pad=2, groups=x1.shape[1], act=act)
    cat = jnp.concatenate([x1, x2], axis=1)
    b, n, h, w = cat.shape
    y = cat.reshape(b * n // 2, 2, h * w)
    y = jnp.transpose(y, (1, 0, 2)).reshape(2, -1, n // 2, h, w)
    return jnp.concatenate([y[0], y[1]], axis=1)


def gsbottleneck_ref(model, x):
    y = _gsconv_ref(x, model.g1_pw, model.g1_dw, model.eps, act=True)
    return _gsconv_ref(y, model.g2_pw, model.g2_dw, model.eps, act=False)


# ----------------------------------------------------------------------------
if __name__ == "__main__":
    key = jax.random.PRNGKey(0)
    k_param, k_img = jax.random.split(key)

    c1, c2 = 4, 32
    # row_tile=8 -> two row tiles per image: exercises the halo/masking path.
    model = GSBottleneckPallas(k_param, c1, c2, k=3, s=1, row_tile=8)

    x = jax.random.uniform(k_img, (2, c1, 16, 16), dtype=jnp.float32)

    y = jax.block_until_ready(model(x))
    assert y.shape == (2, c2, 16, 16), y.shape
    assert bool(jnp.all(jnp.isfinite(y)))

    # validate against the exact (eval-mode BN) reference; bf16 MXU operands ->
    # small tolerance
    y_ref = jax.block_until_ready(gsbottleneck_ref(model, x))
    err = float(jnp.max(jnp.abs(y - y_ref)))
    assert err < 5e-2, f"max abs err vs reference = {err}"

    print("KERNEL_OK")
</pallas_src>

<mosaic_0001>
module attributes {stable_mosaic.version = 11 : i64} {
  func.func @_gsbottleneck_kernel(%arg0: i32, %arg1: i32, %arg2: memref<1x24x16x4xbf16, #tpu.memory_space<vmem>>, %arg3: memref<4x128xbf16, #tpu.memory_space<vmem>>, %arg4: memref<1x128xf32, #tpu.memory_space<vmem>>, %arg5: memref<32x128xf32, #tpu.memory_space<vmem>>, %arg6: memref<1x128xf32, #tpu.memory_space<vmem>>, %arg7: memref<256x128xbf16, #tpu.memory_space<vmem>>, %arg8: memref<1x128xf32, #tpu.memory_space<vmem>>, %arg9: memref<32x128xf32, #tpu.memory_space<vmem>>, %arg10: memref<1x128xf32, #tpu.memory_space<vmem>>, %arg11: memref<1x8x16x128xf32, #tpu.memory_space<vmem>>, %arg12: memref<16x32x128xf32, #tpu.memory_space<vmem>>, %arg13: memref<12x32x128xf32, #tpu.memory_space<vmem>>, %arg14: memref<192x256xbf16, #tpu.memory_space<vmem>>) attributes {dimension_semantics = [#tpu.dimension_semantics<parallel>, #tpu.dimension_semantics<parallel>], iteration_bounds = array<i64: 2, 2>, scalar_prefetch = 0 : i64, scratch_operands = 3 : i64, tpu.core_type = #tpu.core_type<tc>, window_params = [{transform_indices = @transform_0, window_bounds = array<i64: 1, 24, 16, 4>}, {pipeline_mode = #tpu.pipeline_mode<synchronous>, transform_indices = @transform_1, window_bounds = array<i64: 4, 128>}, {pipeline_mode = #tpu.pipeline_mode<synchronous>, transform_indices = @transform_2, window_bounds = array<i64: 1, 128>}, {pipeline_mode = #tpu.pipeline_mode<synchronous>, transform_indices = @transform_3, window_bounds = array<i64: 32, 128>}, {pipeline_mode = #tpu.pipeline_mode<synchronous>, transform_indices = @transform_4, window_bounds = array<i64: 1, 128>}, {pipeline_mode = #tpu.pipeline_mode<synchronous>, transform_indices = @transform_5, window_bounds = array<i64: 256, 128>}, {pipeline_mode = #tpu.pipeline_mode<synchronous>, transform_indices = @transform_6, window_bounds = array<i64: 1, 128>}, {pipeline_mode = #tpu.pipeline_mode<synchronous>, transform_indices = @transform_7, window_bounds = array<i64: 32, 128>}, {pipeline_mode = #tpu.pipeline_mode<synchronous>, transform_indices = @transform_8, window_bounds = array<i64: 1, 128>}, {transform_indices = @transform_9, window_bounds = array<i64: 1, 8, 16, 128>}]} {
    %c8_i32 = arith.constant 8 : i32
    %0 = arith.muli %arg1, %c8_i32 : i32
    %1 = tpu.assume_multiple %0, 8 : i32
    %cst = arith.constant 0.000000e+00 : f32
    %2 = vector.broadcast %cst : f32 to vector<16x8x128xf32>
    %c0 = arith.constant 0 : index
    %c0_0 = arith.constant 0 : index
    %c0_1 = arith.constant 0 : index
    %3 = vector.load %arg12[%c0, %c0_0, %c0_1] : memref<16x32x128xf32, #tpu.memory_space<vmem>>, vector<16x8x128xf32>
    tpu.vector_store %arg12[%c0, %c0_0, %c0_1], %2 {strides = array<i32>} : memref<16x32x128xf32, #tpu.memory_space<vmem>>, vector<16x8x128xf32>,
    %cst_2 = arith.constant 0.000000e+00 : f32
    %4 = vector.broadcast %cst_2 : f32 to vector<16x8x128xf32>
    %c0_3 = arith.constant 0 : index
    %c24 = arith.constant 24 : index
    %c0_4 = arith.constant 0 : index
    %5 = vector.load %arg12[%c0_3, %c24, %c0_4] : memref<16x32x128xf32, #tpu.memory_space<vmem>>, vector<16x8x128xf32>
    tpu.vector_store %arg12[%c0_3, %c24, %c0_4], %4 {strides = array<i32>} : memref<16x32x128xf32, #tpu.memory_space<vmem>>, vector<16x8x128xf32>,
    %cst_5 = arith.constant 0.000000e+00 : f32
    %6 = vector.broadcast %cst_5 : f32 to vector<12x8x128xf32>
    %c0_6 = arith.constant 0 : index
    %c0_7 = arith.constant 0 : index
    %c0_8 = arith.constant 0 : index
    %7 = vector.load %arg13[%c0_6, %c0_7, %c0_8] : memref<12x32x128xf32, #tpu.memory_space<vmem>>, vector<12x8x128xf32>
    tpu.vector_store %arg13[%c0_6, %c0_7, %c0_8], %6 {strides = array<i32>} : memref<12x32x128xf32, #tpu.memory_space<vmem>>, vector<12x8x128xf32>,
    %cst_9 = arith.constant 0.000000e+00 : f32
    %8 = vector.broadcast %cst_9 : f32 to vector<12x8x128xf32>
    %c0_10 = arith.constant 0 : index
    %c24_11 = arith.constant 24 : index
    %c0_12 = arith.constant 0 : index
    %9 = vector.load %arg13[%c0_10, %c24_11, %c0_12] : memref<12x32x128xf32, #tpu.memory_space<vmem>>, vector<12x8x128xf32>
    tpu.vector_store %arg13[%c0_10, %c24_11, %c0_12], %8 {strides = array<i32>} : memref<12x32x128xf32, #tpu.memory_space<vmem>>, vector<12x8x128xf32>,
    %c0_13 = arith.constant 0 : index
    %10 = arith.index_cast %1 : i32 to index
    %c0_14 = arith.constant 0 : index
    %c0_15 = arith.constant 0 : index
    %11 = vector.load %arg2[%c0_13, %10, %c0_14, %c0_15] : memref<1x24x16x4xbf16, #tpu.memory_space<vmem>>, vector<1x16x16x4xbf16>
    %12 = vector.shape_cast %11 : vector<1x16x16x4xbf16> to vector<16x16x4xbf16>
    %13 = vector.shape_cast %12 : vector<16x16x4xbf16> to vector<256x4xbf16>
    %c0_16 = arith.constant 0 : index
    %c0_17 = arith.constant 0 : index
    %14 = vector.load %arg3[%c0_16, %c0_17] : memref<4x128xbf16, #tpu.memory_space<vmem>>, vector<4x128xbf16>
    %cst_18 = arith.constant dense<0.000000e+00> : vector<256x128xf32>
    %15 = tpu.matmul %13, %14, %cst_18 {dimension_numbers = #tpu.dot_dimension_numbers<[1], [0], [0], [1], [0, 0, 1, 1], [], []>} : vector<256x4xbf16>, vector<4x128xbf16>, vector<256x128xf32> -> vector<256x128xf32>
    %c0_19 = arith.constant 0 : index
    %c0_20 = arith.constant 0 : index
    %16 = vector.load %arg4[%c0_19, %c0_20] : memref<1x128xf32, #tpu.memory_space<vmem>>, vector<1x128xf32>
    %17 = vector.broadcast %16 : vector<1x128xf32> to vector<256x128xf32>
    %18 = arith.addf %15, %17 : vector<256x128xf32>
    %19 = arith.negf %18 : vector<256x128xf32>
    %20 = math.exp %19 : vector<256x128xf32>
    %cst_21 = arith.constant 1.000000e+00 : f32
    %21 = vector.broadcast %cst_21 : f32 to vector<256x128xf32>
    %22 = arith.addf %21, %20 : vector<256x128xf32>
    %23 = arith.divf %21, %22 : vector<256x128xf32>
    %24 = arith.mulf %18, %23 : vector<256x128xf32>
    %25 = vector.shape_cast %24 : vector<256x128xf32> to vector<16x16x128xf32>
    %c4_i32 = arith.constant 4 : i32
    %26 = arith.subi %1, %c4_i32 : i32
    %27 = tpu.iota {dimensions = array<i32: 0>} : vector<16x1x1xi32>
    %28 = vector.broadcast %26 : i32 to vector<16x1x1xi32>
    %29 = arith.addi %28, %27 : vector<16x1x1xi32>
    %c0_i32 = arith.constant 0 : i32
    %30 = vector.broadcast %c0_i32 : i32 to vector<16x1x1xi32>
    %31 = arith.cmpi sge, %29, %30 : vector<16x1x1xi32>
    %c16_i32 = arith.constant 16 : i32
    %32 = vector.broadcast %c16_i32 : i32 to vector<16x1x1xi32>
    %33 = arith.cmpi slt, %29, %32 : vector<16x1x1xi32>
    %34 = arith.andi %31, %33 : vector<16x1x1xi1>
    %cst_22 = arith.constant 0.000000e+00 : f32
    %35 = vector.shape_cast %34 : vector<16x1x1xi1> to vector<16x1x1xi1>
    %36 = vector.broadcast %35 : vector<16x1x1xi1> to vector<16x16x128xi1>
    %37 = vector.broadcast %cst_22 : f32 to vector<16x16x128xf32>
    %38 = arith.select %36, %25, %37 : vector<16x16x128xi1>, vector<16x16x128xf32>
    %c0_23 = arith.constant 0 : index
    %c8 = arith.constant 8 : index
    %c0_24 = arith.constant 0 : index
    %39 = vector.load %arg12[%c0_23, %c8, %c0_24] : memref<16x32x128xf32, #tpu.memory_space<vmem>>, vector<16x16x128xf32>
    tpu.vector_store %arg12[%c0_23, %c8, %c0_24], %38 {strides = array<i32>} : memref<16x32x128xf32, #tpu.memory_space<vmem>>, vector<16x16x128xf32>,
    %c0_25 = arith.constant 0 : index
    %c0_26 = arith.constant 0 : index
    %c0_27 = arith.constant 0 : index
    %40 = vector.load %arg12[%c0_25, %c0_26, %c0_27] : memref<16x32x128xf32, #tpu.memory_space<vmem>>, vector<12x32x128xf32>
    %c2_i32 = arith.constant 2 : i32
    %41 = tpu.dynamic_rotate %40 by %c2_i32 dim 1 : vector<12x32x128xf32>, i32 -> vector<12x32x128xf32>
    %42 = vector.extract_strided_slice %41 {offsets = [0, 8, 0], sizes = [12, 16, 128], strides = [1, 1, 1]} : vector<12x32x128xf32> to vector<12x16x128xf32>
    %c0_28 = arith.constant 0 : index
    %c0_29 = arith.constant 0 : index
    %43 = vector.load %arg5[%c0_28, %c0_29] : memref<32x128xf32, #tpu.memory_space<vmem>>, vector<1x128xf32>
    %44 = vector.shape_cast %43 : vector<1x128xf32> to vector<128xf32>
    %45 = vector.shape_cast %44 : vector<128xf32> to vector<1x1x128xf32>
    %46 = vector.broadcast %45 : vector<1x1x128xf32> to vector<12x16x128xf32>
    %47 = arith.mulf %42, %46 : vector<12x16x128xf32>
    %c1_i32 = arith.constant 1 : i32
    %48 = tpu.dynamic_rotate %40 by %c1_i32 dim 1 : vector<12x32x128xf32>, i32 -> vector<12x32x128xf32>
    %49 = vector.extract_strided_slice %48 {offsets = [0, 8, 0], sizes = [12, 16, 128], strides = [1, 1, 1]} : vector<12x32x128xf32> to vector<12x16x128xf32>
    %c1 = arith.constant 1 : index
    %c0_30 = arith.constant 0 : index
    %50 = vector.load %arg5[%c1, %c0_30] : memref<32x128xf32, #tpu.memory_space<vmem>>, vector<1x128xf32>
    %51 = vector.shape_cast %50 : vector<1x128xf32> to vector<128xf32>
    %52 = vector.shape_cast %51 : vector<128xf32> to vector<1x1x128xf32>
    %53 = vector.broadcast %52 : vector<1x1x128xf32> to vector<12x16x128xf32>
    %54 = arith.mulf %49, %53 : vector<12x16x128xf32>
    %55 = vector.extract_strided_slice %40 {offsets = [0, 8, 0], sizes = [12, 16, 128], strides = [1, 1, 1]} : vector<12x32x128xf32> to vector<12x16x128xf32>
    %c2 = arith.constant 2 : index
    %c0_31 = arith.constant 0 : index
    %56 = vector.load %arg5[%c2, %c0_31] : memref<32x128xf32, #tpu.memory_space<vmem>>, vector<1x128xf32>
    %57 = vector.shape_cast %56 : vector<1x128xf32> to vector<128xf32>
    %58 = vector.shape_cast %57 : vector<128xf32> to vector<1x1x128xf32>
    %59 = vector.broadcast %58 : vector<1x1x128xf32> to vector<12x16x128xf32>
    %60 = arith.mulf %55, %59 : vector<12x16x128xf32>
    %c31_i32 = arith.constant 31 : i32
    %61 = tpu.dynamic_rotate %40 by %c31_i32 dim 1 : vector<12x32x128xf32>, i32 -> vector<12x32x128xf32>
    %62 = vector.extract_strided_slice %61 {offsets = [0, 8, 0], sizes = [12, 16, 128], strides = [1, 1, 1]} : vector<12x32x128xf32> to vector<12x16x128xf32>
    %c3 = arith.constant 3 : index
    %c0_32 = arith.constant 0 : index
    %63 = vector.load %arg5[%c3, %c0_32] : memref<32x128xf32, #tpu.memory_space<vmem>>, vector<1x128xf32>
    %64 = vector.shape_cast %63 : vector<1x128xf32> to vector<128xf32>
    %65 = vector.shape_cast %64 : vector<128xf32> to vector<1x1x128xf32>
    %66 = vector.broadcast %65 : vector<1x1x128xf32> to vector<12x16x128xf32>
    %67 = arith.mulf %62, %66 : vector<12x16x128xf32>
    %c30_i32 = arith.constant 30 : i32
    %68 = tpu.dynamic_rotate %40 by %c30_i32 dim 1 : vector<12x32x128xf32>, i32 -> vector<12x32x128xf32>
    %69 = vector.extract_strided_slice %68 {offsets = [0, 8, 0], sizes = [12, 16, 128], strides = [1, 1, 1]} : vector<12x32x128xf32> to vector<12x16x128xf32>
    %c4 = arith.constant 4 : index
    %c0_33 = arith.constant 0 : index
    %70 = vector.load %arg5[%c4, %c0_33] : memref<32x128xf32, #tpu.memory_space<vmem>>, vector<1x128xf32>
    %71 = vector.shape_cast %70 : vector<1x128xf32> to vector<128xf32>
    %72 = vector.shape_cast %71 : vector<128xf32> to vector<1x1x128xf32>
    %73 = vector.broadcast %72 : vector<1x1x128xf32> to vector<12x16x128xf32>
    %74 = arith.mulf %69, %73 : vector<12x16x128xf32>
    %75 = arith.addf %47, %54 : vector<12x16x128xf32>
    %76 = arith.addf %60, %67 : vector<12x16x128xf32>
    %77 = arith.addf %75, %76 : vector<12x16x128xf32>
    %78 = arith.addf %77, %74 : vector<12x16x128xf32>
    %c1_34 = arith.constant 1 : index
    %c0_35 = arith.constant 0 : index
    %c0_36 = arith.constant 0 : index
    %79 = vector.load %arg12[%c1_34, %c0_35, %c0_36] : memref<16x32x128xf32, #tpu.memory_space<vmem>>, vector<12x32x128xf32>
    %c2_i32_37 = arith.constant 2 : i32
    %80 = tpu.dynamic_rotate %79 by %c2_i32_37 dim 1 : vector<12x32x128xf32>, i32 -> vector<12x32x128xf32>
    %81 = vector.extract_strided_slice %80 {offsets = [0, 8, 0], sizes = [12, 16, 128], strides = [1, 1, 1]} : vector<12x32x128xf32> to vector<12x16x128xf32>
    %c5 = arith.constant 5 : index
    %c0_38 = arith.constant 0 : index
    %82 = vector.load %arg5[%c5, %c0_38] : memref<32x128xf32, #tpu.memory_space<vmem>>, vector<1x128xf32>
    %83 = vector.shape_cast %82 : vector<1x128xf32> to vector<128xf32>
    %84 = vector.shape_cast %83 : vector<128xf32> to vector<1x1x128xf32>
    %85 = vector.broadcast %84 : vector<1x1x128xf32> to vector<12x16x128xf32>
    %86 = arith.mulf %81, %85 : vector<12x16x128xf32>
    %c1_i32_39 = arith.constant 1 : i32
    %87 = tpu.dynamic_rotate %79 by %c1_i32_39 dim 1 : vector<12x32x128xf32>, i32 -> vector<12x32x128xf32>
    %88 = vector.extract_strided_slice %87 {offsets = [0, 8, 0], sizes = [12, 16, 128], strides = [1, 1, 1]} : vector<12x32x128xf32> to vector<12x16x128xf32>
    %c6 = arith.constant 6 : index
    %c0_40 = arith.constant 0 : index
    %89 = vector.load %arg5[%c6, %c0_40] : memref<32x128xf32, #tpu.memory_space<vmem>>, vector<1x128xf32>
    %90 = vector.shape_cast %89 : vector<1x128xf32> to vector<128xf32>
    %91 = vector.shape_cast %90 : vector<128xf32> to vector<1x1x128xf32>
    %92 = vector.broadcast %91 : vector<1x1x128xf32> to vector<12x16x128xf32>
    %93 = arith.mulf %88, %92 : vector<12x16x128xf32>
    %94 = vector.extract_strided_slice %79 {offsets = [0, 8, 0], sizes = [12, 16, 128], strides = [1, 1, 1]} : vector<12x32x128xf32> to vector<12x16x128xf32>
    %c7 = arith.constant 7 : index
    %c0_41 = arith.constant 0 : index
    %95 = vector.load %arg5[%c7, %c0_41] : memref<32x128xf32, #tpu.memory_space<vmem>>, vector<1x128xf32>
    %96 = vector.shape_cast %95 : vector<1x128xf32> to vector<128xf32>
    %97 = vector.shape_cast %96 : vector<128xf32> to vector<1x1x128xf32>
    %98 = vector.broadcast %97 : vector<1x1x128xf32> to vector<12x16x128xf32>
    %99 = arith.mulf %94, %98 : vector<12x16x128xf32>
    %c31_i32_42 = arith.constant 31 : i32
    %100 = tpu.dynamic_rotate %79 by %c31_i32_42 dim 1 : vector<12x32x128xf32>, i32 -> vector<12x32x128xf32>
    %101 = vector.extract_strided_slice %100 {offsets = [0, 8, 0], sizes = [12, 16, 128], strides = [1, 1, 1]} : vector<12x32x128xf32> to vector<12x16x128xf32>
    %c8_43 = arith.constant 8 : index
    %c0_44 = arith.constant 0 : index
    %102 = vector.load %arg5[%c8_43, %c0_44] : memref<32x128xf32, #tpu.memory_space<vmem>>, vector<1x128xf32>
    %103 = vector.shape_cast %102 : vector<1x128xf32> to vector<128xf32>
    %104 = vector.shape_cast %103 : vector<128xf32> to vector<1x1x128xf32>
    %105 = vector.broadcast %104 : vector<1x1x128xf32> to vector<12x16x128xf32>
    %106 = arith.mulf %101, %105 : vector<12x16x128xf32>
    %c30_i32_45 = arith.constant 30 : i32
    %107 = tpu.dynamic_rotate %79 by %c30_i32_45 dim 1 : vector<12x32x128xf32>, i32 -> vector<12x32x128xf32>
    %108 = vector.extract_strided_slice %107 {offsets = [0, 8, 0], sizes = [12, 16, 128], strides = [1, 1, 1]} : vector<12x32x128xf32> to vector<12x16x128xf32>
    %c9 = arith.constant 9 : index
    %c0_46 = arith.constant 0 : index
    %109 = vector.load %arg5[%c9, %c0_46] : memref<32x128xf32, #tpu.memory_space<vmem>>, vector<1x128xf32>
    %110 = vector.shape_cast %109 : vector<1x128xf32> to vector<128xf32>
    %111 = vector.shape_cast %110 : vector<128xf32> to vector<1x1x128xf32>
    %112 = vector.broadcast %111 : vector<1x1x128xf32> to vector<12x16x128xf32>
    %113 = arith.mulf %108, %112 : vector<12x16x128xf32>
    %114 = arith.addf %86, %93 : vector<12x16x128xf32>
    %115 = arith.addf %99, %106 : vector<12x16x128xf32>
    %116 = arith.addf %114, %115 : vector<12x16x128xf32>
    %117 = arith.addf %116, %113 : vector<12x16x128xf32>
    %c2_47 = arith.constant 2 : index
    %c0_48 = arith.constant 0 : index
    %c0_49 = arith.constant 0 : index
    %118 = vector.load %arg12[%c2_47, %c0_48, %c0_49] : memref<16x32x128xf32, #tpu.memory_space<vmem>>, vector<12x32x128xf32>
    %c2_i32_50 = arith.constant 2 : i32
    %119 = tpu.dynamic_rotate %118 by %c2_i32_50 dim 1 : vector<12x32x128xf32>, i32 -> vector<12x32x128xf32>
    %120 = vector.extract_strided_slice %119 {offsets = [0, 8, 0], sizes = [12, 16, 128], strides = [1, 1, 1]} : vector<12x32x128xf32> to vector<12x16x128xf32>
    %c10 = arith.constant 10 : index
    %c0_51 = arith.constant 0 : index
    %121 = vector.load %arg5[%c10, %c0_51] : memref<32x128xf32, #tpu.memory_space<vmem>>, vector<1x128xf32>
    %122 = vector.shape_cast %121 : vector<1x128xf32> to vector<128xf32>
    %123 = vector.shape_cast %122 : vector<128xf32> to vector<1x1x128xf32>
    %124 = vector.broadcast %123 : vector<1x1x128xf32> to vector<12x16x128xf32>
    %125 = arith.mulf %120, %124 : vector<12x16x128xf32>
    %c1_i32_52 = arith.constant 1 : i32
    %126 = tpu.dynamic_rotate %118 by %c1_i32_52 dim 1 : vector<12x32x128xf32>, i32 -> vector<12x32x128xf32>
    %127 = vector.extract_strided_slice %126 {offsets = [0, 8, 0], sizes = [12, 16, 128], strides = [1, 1, 1]} : vector<12x32x128xf32> to vector<12x16x128xf32>
    %c11 = arith.constant 11 : index
    %c0_53 = arith.constant 0 : index
    %128 = vector.load %arg5[%c11, %c0_53] : memref<32x128xf32, #tpu.memory_space<vmem>>, vector<1x128xf32>
    %129 = vector.shape_cast %128 : vector<1x128xf32> to vector<128xf32>
    %130 = vector.shape_cast %129 : vector<128xf32> to vector<1x1x128xf32>
    %131 = vector.broadcast %130 : vector<1x1x128xf32> to vector<12x16x128xf32>
    %132 = arith.mulf %127, %131 : vector<12x16x128xf32>
    %133 = vector.extract_strided_slice %118 {offsets = [0, 8, 0], sizes = [12, 16, 128], strides = [1, 1, 1]} : vector<12x32x128xf32> to vector<12x16x128xf32>
    %c12 = arith.constant 12 : index
    %c0_54 = arith.constant 0 : index
    %134 = vector.load %arg5[%c12, %c0_54] : memref<32x128xf32, #tpu.memory_space<vmem>>, vector<1x128xf32>
    %135 = vector.shape_cast %134 : vector<1x128xf32> to vector<128xf32>
    %136 = vector.shape_cast %135 : vector<128xf32> to vector<1x1x128xf32>
    %137 = vector.broadcast %136 : vector<1x1x128xf32> to vector<12x16x128xf32>
    %138 = arith.mulf %133, %137 : vector<12x16x128xf32>
    %c31_i32_55 = arith.constant 31 : i32
    %139 = tpu.dynamic_rotate %118 by %c31_i32_55 dim 1 : vector<12x32x128xf32>, i32 -> vector<12x32x128xf32>
    %140 = vector.extract_strided_slice %139 {offsets = [0, 8, 0], sizes = [12, 16, 128], strides = [1, 1, 1]} : vector<12x32x128xf32> to vector<12x16x128xf32>
    %c13 = arith.constant 13 : index
    %c0_56 = arith.constant 0 : index
    %141 = vector.load %arg5[%c13, %c0_56] : memref<32x128xf32, #tpu.memory_space<vmem>>, vector<1x128xf32>
    %142 = vector.shape_cast %141 : vector<1x128xf32> to vector<128xf32>
    %143 = vector.shape_cast %142 : vector<128xf32> to vector<1x1x128xf32>
    %144 = vector.broadcast %143 : vector<1x1x128xf32> to vector<12x16x128xf32>
    %145 = arith.mulf %140, %144 : vector<12x16x128xf32>
    %c30_i32_57 = arith.constant 30 : i32
    %146 = tpu.dynamic_rotate %118 by %c30_i32_57 dim 1 : vector<12x32x128xf32>, i32 -> vector<12x32x128xf32>
    %147 = vector.extract_strided_slice %146 {offsets = [0, 8, 0], sizes = [12, 16, 128], strides = [1, 1, 1]} : vector<12x32x128xf32> to vector<12x16x128xf32>
    %c14 = arith.constant 14 : index
    %c0_58 = arith.constant 0 : index
    %148 = vector.load %arg5[%c14, %c0_58] : memref<32x128xf32, #tpu.memory_space<vmem>>, vector<1x128xf32>
    %149 = vector.shape_cast %148 : vector<1x128xf32> to vector<128xf32>
    %150 = vector.shape_cast %149 : vector<128xf32> to vector<1x1x128xf32>
    %151 = vector.broadcast %150 : vector<1x1x128xf32> to vector<12x16x128xf32>
    %152 = arith.mulf %147, %151 : vector<12x16x128xf32>
    %153 = arith.addf %125, %132 : vector<12x16x128xf32>
    %154 = arith.addf %138, %145 : vector<12x16x128xf32>
    %155 = arith.addf %153, %154 : vector<12x16x128xf32>
    %156 = arith.addf %155, %152 : vector<12x16x128xf32>
    %c3_59 = arith.constant 3 : index
    %c0_60 = arith.constant 0 : index
    %c0_61 = arith.constant 0 : index
    %157 = vector.load %arg12[%c3_59, %c0_60, %c0_61] : memref<16x32x128xf32, #tpu.memory_space<vmem>>, vector<12x32x128xf32>
    %c2_i32_62 = arith.constant 2 : i32
    %158 = tpu.dynamic_rotate %157 by %c2_i32_62 dim 1 : vector<12x32x128xf32>, i32 -> vector<12x32x128xf32>
    %159 = vector.extract_strided_slice %158 {offsets = [0, 8, 0], sizes = [12, 16, 128], strides = [1, 1, 1]} : vector<12x32x128xf32> to vector<12x16x128xf32>
    %c15 = arith.constant 15 : index
    %c0_63 = arith.constant 0 : index
    %160 = vector.load %arg5[%c15, %c0_63] : memref<32x128xf32, #tpu.memory_space<vmem>>, vector<1x128xf32>
    %161 = vector.shape_cast %160 : vector<1x128xf32> to vector<128xf32>
    %162 = vector.shape_cast %161 : vector<128xf32> to vector<1x1x128xf32>
    %163 = vector.broadcast %162 : vector<1x1x128xf32> to vector<12x16x128xf32>
    %164 = arith.mulf %159, %163 : vector<12x16x128xf32>
    %c1_i32_64 = arith.constant 1 : i32
    %165 = tpu.dynamic_rotate %157 by %c1_i32_64 dim 1 : vector<12x32x128xf32>, i32 -> vector<12x32x128xf32>
    %166 = vector.extract_strided_slice %165 {offsets = [0, 8, 0], sizes = [12, 16, 128], strides = [1, 1, 1]} : vector<12x32x128xf32> to vector<12x16x128xf32>
    %c16 = arith.constant 16 : index
    %c0_65 = arith.constant 0 : index
    %167 = vector.load %arg5[%c16, %c0_65] : memref<32x128xf32, #tpu.memory_space<vmem>>, vector<1x128xf32>
    %168 = vector.shape_cast %167 : vector<1x128xf32> to vector<128xf32>
    %169 = vector.shape_cast %168 : vector<128xf32> to vector<1x1x128xf32>
    %170 = vector.broadcast %169 : vector<1x1x128xf32> to vector<12x16x128xf32>
    %171 = arith.mulf %166, %170 : vector<12x16x128xf32>
    %172 = vector.extract_strided_slice %157 {offsets = [0, 8, 0], sizes = [12, 16, 128], strides = [1, 1, 1]} : vector<12x32x128xf32> to vector<12x16x128xf32>
    %c17 = arith.constant 17 : index
    %c0_66 = arith.constant 0 : index
    %173 = vector.load %arg5[%c17, %c0_66] : memref<32x128xf32, #tpu.memory_space<vmem>>, vector<1x128xf32>
    %174 = vector.shape_cast %173 : vector<1x128xf32> to vector<128xf32>
    %175 = vector.shape_cast %174 : vector<128xf32> to vector<1x1x128xf32>
    %176 = vector.broadcast %175 : vector<1x1x128xf32> to vector<12x16x128xf32>
    %177 = arith.mulf %172, %176 : vector<12x16x128xf32>
    %c31_i32_67 = arith.constant 31 : i32
    %178 = tpu.dynamic_rotate %157 by %c31_i32_67 dim 1 : vector<12x32x128xf32>, i32 -> vector<12x32x128xf32>
    %179 = vector.extract_strided_slice %178 {offsets = [0, 8, 0], sizes = [12, 16, 128], strides = [1, 1, 1]} : vector<12x32x128xf32> to vector<12x16x128xf32>
    %c18 = arith.constant 18 : index
    %c0_68 = arith.constant 0 : index
    %180 = vector.load %arg5[%c18, %c0_68] : memref<32x128xf32, #tpu.memory_space<vmem>>, vector<1x128xf32>
    %181 = vector.shape_cast %180 : vector<1x128xf32> to vector<128xf32>
    %182 = vector.shape_cast %181 : vector<128xf32> to vector<1x1x128xf32>
    %183 = vector.broadcast %182 : vector<1x1x128xf32> to vector<12x16x128xf32>
    %184 = arith.mulf %179, %183 : vector<12x16x128xf32>
    %c30_i32_69 = arith.constant 30 : i32
    %185 = tpu.dynamic_rotate %157 by %c30_i32_69 dim 1 : vector<12x32x128xf32>, i32 -> vector<12x32x128xf32>
    %186 = vector.extract_strided_slice %185 {offsets = [0, 8, 0], sizes = [12, 16, 128], strides = [1, 1, 1]} : vector<12x32x128xf32> to vector<12x16x128xf32>
    %c19 = arith.constant 19 : index
    %c0_70 = arith.constant 0 : index
    %187 = vector.load %arg5[%c19, %c0_70] : memref<32x128xf32, #tpu.memory_space<vmem>>, vector<1x128xf32>
    %188 = vector.shape_cast %187 : vector<1x128xf32> to vector<128xf32>
    %189 = vector.shape_cast %188 : vector<128xf32> to vector<1x1x128xf32>
    %190 = vector.broadcast %189 : vector<1x1x128xf32> to vector<12x16x128xf32>
    %191 = arith.mulf %186, %190 : vector<12x16x128xf32>
    %192 = arith.addf %164, %171 : vector<12x16x128xf32>
    %193 = arith.addf %177, %184 : vector<12x16x128xf32>
    %194 = arith.addf %192, %193 : vector<12x16x128xf32>
    %195 = arith.addf %194, %191 : vector<12x16x128xf32>
    %c4_71 = arith.constant 4 : index
    %c0_72 = arith.constant 0 : index
    %c0_73 = arith.constant 0 : index
    %196 = vector.load %arg12[%c4_71, %c0_72, %c0_73] : memref<16x32x128xf32, #tpu.memory_space<vmem>>, vector<12x32x128xf32>
    %c2_i32_74 = arith.constant 2 : i32
    %197 = tpu.dynamic_rotate %196 by %c2_i32_74 dim 1 : vector<12x32x128xf32>, i32 -> vector<12x32x128xf32>
    %198 = vector.extract_strided_slice %197 {offsets = [0, 8, 0], sizes = [12, 16, 128], strides = [1, 1, 1]} : vector<12x32x128xf32> to vector<12x16x128xf32>
    %c20 = arith.constant 20 : index
    %c0_75 = arith.constant 0 : index
    %199 = vector.load %arg5[%c20, %c0_75] : memref<32x128xf32, #tpu.memory_space<vmem>>, vector<1x128xf32>
    %200 = vector.shape_cast %199 : vector<1x128xf32> to vector<128xf32>
    %201 = vector.shape_cast %200 : vector<128xf32> to vector<1x1x128xf32>
    %202 = vector.broadcast %201 : vector<1x1x128xf32> to vector<12x16x128xf32>
    %203 = arith.mulf %198, %202 : vector<12x16x128xf32>
    %c1_i32_76 = arith.constant 1 : i32
    %204 = tpu.dynamic_rotate %196 by %c1_i32_76 dim 1 : vector<12x32x128xf32>, i32 -> vector<12x32x128xf32>
    %205 = vector.extract_strided_slice %204 {offsets = [0, 8, 0], sizes = [12, 16, 128], strides = [1, 1, 1]} : vector<12x32x128xf32> to vector<12x16x128xf32>
    %c21 = arith.constant 21 : index
    %c0_77 = arith.constant 0 : index
    %206 = vector.load %arg5[%c21, %c0_77] : memref<32x128xf32, #tpu.memory_space<vmem>>, vector<1x128xf32>
    %207 = vector.shape_cast %206 : vector<1x128xf32> to vector<128xf32>
    %208 = vector.shape_cast %207 : vector<128xf32> to vector<1x1x128xf32>
    %209 = vector.broadcast %208 : vector<1x1x128xf32> to vector<12x16x128xf32>
    %210 = arith.mulf %205, %209 : vector<12x16x128xf32>
    %211 = vector.extract_strided_slice %196 {offsets = [0, 8, 0], sizes = [12, 16, 128], strides = [1, 1, 1]} : vector<12x32x128xf32> to vector<12x16x128xf32>
    %c22 = arith.constant 22 : index
    %c0_78 = arith.constant 0 : index
    %212 = vector.load %arg5[%c22, %c0_78] : memref<32x128xf32, #tpu.memory_space<vmem>>, vector<1x128xf32>
    %213 = vector.shape_cast %212 : vector<1x128xf32> to vector<128xf32>
    %214 = vector.shape_cast %213 : vector<128xf32> to vector<1x1x128xf32>
    %215 = vector.broadcast %214 : vector<1x1x128xf32> to vector<12x16x128xf32>
    %216 = arith.mulf %211, %215 : vector<12x16x128xf32>
    %c31_i32_79 = arith.constant 31 : i32
    %217 = tpu.dynamic_rotate %196 by %c31_i32_79 dim 1 : vector<12x32x128xf32>, i32 -> vector<12x32x128xf32>
    %218 = vector.extract_strided_slice %217 {offsets = [0, 8, 0], sizes = [12, 16, 128], strides = [1, 1, 1]} : vector<12x32x128xf32> to vector<12x16x128xf32>
    %c23 = arith.constant 23 : index
    %c0_80 = arith.constant 0 : index
    %219 = vector.load %arg5[%c23, %c0_80] : memref<32x128xf32, #tpu.memory_space<vmem>>, vector<1x128xf32>
    %220 = vector.shape_cast %219 : vector<1x128xf32> to vector<128xf32>
    %221 = vector.shape_cast %220 : vector<128xf32> to vector<1x1x128xf32>
    %222 = vector.broadcast %221 : vector<1x1x128xf32> to vector<12x16x128xf32>
    %223 = arith.mulf %218, %222 : vector<12x16x128xf32>
    %c30_i32_81 = arith.constant 30 : i32
    %224 = tpu.dynamic_rotate %196 by %c30_i32_81 dim 1 : vector<12x32x128xf32>, i32 -> vector<12x32x128xf32>
    %225 = vector.extract_strided_slice %224 {offsets = [0, 8, 0], sizes = [12, 16, 128], strides = [1, 1, 1]} : vector<12x32x128xf32> to vector<12x16x128xf32>
    %c24_82 = arith.constant 24 : index
    %c0_83 = arith.constant 0 : index
    %226 = vector.load %arg5[%c24_82, %c0_83] : memref<32x128xf32, #tpu.memory_space<vmem>>, vector<1x128xf32>
    %227 = vector.shape_cast %226 : vector<1x128xf32> to vector<128xf32>
    %228 = vector.shape_cast %227 : vector<128xf32> to vector<1x1x128xf32>
    %229 = vector.broadcast %228 : vector<1x1x128xf32> to vector<12x16x128xf32>
    %230 = arith.mulf %225, %229 : vector<12x16x128xf32>
    %231 = arith.addf %203, %210 : vector<12x16x128xf32>
    %232 = arith.addf %216, %223 : vector<12x16x128xf32>
    %233 = arith.addf %231, %232 : vector<12x16x128xf32>
    %234 = arith.addf %233, %230 : vector<12x16x128xf32>
    %235 = arith.addf %78, %117 : vector<12x16x128xf32>
    %236 = arith.addf %156, %195 : vector<12x16x128xf32>
    %237 = arith.addf %235, %236 : vector<12x16x128xf32>
    %238 = arith.addf %237, %234 : vector<12x16x128xf32>
    %c0_84 = arith.constant 0 : index
    %c0_85 = arith.constant 0 : index
    %239 = vector.load %arg6[%c0_84, %c0_85] : memref<1x128xf32, #tpu.memory_space<vmem>>, vector<1x128xf32>
    %240 = vector.shape_cast %239 : vector<1x128xf32> to vector<1x1x128xf32>
    %241 = vector.broadcast %240 : vector<1x1x128xf32> to vector<12x16x128xf32>
    %242 = arith.addf %238, %241 : vector<12x16x128xf32>
    %243 = arith.negf %242 : vector<12x16x128xf32>
    %244 = math.exp %243 : vector<12x16x128xf32>
    %cst_86 = arith.constant 1.000000e+00 : f32
    %245 = vector.broadcast %cst_86 : f32 to vector<12x16x128xf32>
    %246 = arith.addf %245, %244 : vector<12x16x128xf32>
    %247 = arith.divf %245, %246 : vector<12x16x128xf32>
    %248 = arith.mulf %242, %247 : vector<12x16x128xf32>
    %249 = vector.extract_strided_slice %38 {offsets = [2, 0, 0], sizes = [12, 16, 128], strides = [1, 1, 1]} : vector<16x16x128xf32> to vector<12x16x128xf32>
    %250 = vector.shape_cast %249 : vector<12x16x128xf32> to vector<192x128xf32>
    %251 = arith.truncf %250 : vector<192x128xf32> to vector<192x128xbf16>
    %c0_87 = arith.constant 0 : index
    %c0_88 = arith.constant 0 : index
    %252 = vector.load %arg14[%c0_87, %c0_88] : memref<192x256xbf16, #tpu.memory_space<vmem>>, vector<192x128xbf16>
    tpu.vector_store %arg14[%c0_87, %c0_88], %251 {strides = array<i32>} : memref<192x256xbf16, #tpu.memory_space<vmem>>, vector<192x128xbf16>,
    %253 = vector.shape_cast %248 : vector<12x16x128xf32> to vector<192x128xf32>
    %254 = arith.truncf %253 : vector<192x128xf32> to vector<192x128xbf16>
    %c0_89 = arith.constant 0 : index
    %c128 = arith.constant 128 : index
    %255 = vector.load %arg14[%c0_89, %c128] : memref<192x256xbf16, #tpu.memory_space<vmem>>, vector<192x128xbf16>
    tpu.vector_store %arg14[%c0_89, %c128], %254 {strides = array<i32>} : memref<192x256xbf16, #tpu.memory_space<vmem>>, vector<192x128xbf16>,
    %c0_90 = arith.constant 0 : index
    %c0_91 = arith.constant 0 : index
    %256 = vector.load %arg14[%c0_90, %c0_91] : memref<192x256xbf16, #tpu.memory_space<vmem>>, vector<192x256xbf16>
    %c0_92 = arith.constant 0 : index
    %c0_93 = arith.constant 0 : index
    %257 = vector.load %arg7[%c0_92, %c0_93] : memref<256x128xbf16, #tpu.memory_space<vmem>>, vector<256x128xbf16>
    %cst_94 = arith.constant dense<0.000000e+00> : vector<192x128xf32>
    %258 = tpu.matmul %256, %257, %cst_94 {dimension_numbers = #tpu.dot_dimension_numbers<[1], [0], [0], [1], [0, 0, 1, 1], [], []>} : vector<192x256xbf16>, vector<256x128xbf16>, vector<192x128xf32> -> vector<192x128xf32>
    %c0_95 = arith.constant 0 : index
    %c0_96 = arith.constant 0 : index
    %259 = vector.load %arg8[%c0_95, %c0_96] : memref<1x128xf32, #tpu.memory_space<vmem>>, vector<1x128xf32>
    %260 = vector.broadcast %259 : vector<1x128xf32> to vector<192x128xf32>
    %261 = arith.addf %258, %260 : vector<192x128xf32>
    %262 = vector.shape_cast %261 : vector<192x128xf32> to vector<12x16x128xf32>
    %c2_i32_97 = arith.constant 2 : i32
    %263 = arith.subi %1, %c2_i32_97 : i32
    %264 = tpu.iota {dimensions = array<i32: 0>} : vector<12x1x1xi32>
    %265 = vector.broadcast %263 : i32 to vector<12x1x1xi32>
    %266 = arith.addi %265, %264 : vector<12x1x1xi32>
    %c0_i32_98 = arith.constant 0 : i32
    %267 = vector.broadcast %c0_i32_98 : i32 to vector<12x1x1xi32>
    %268 = arith.cmpi sge, %266, %267 : vector<12x1x1xi32>
    %c16_i32_99 = arith.constant 16 : i32
    %269 = vector.broadcast %c16_i32_99 : i32 to vector<12x1x1xi32>
    %270 = arith.cmpi slt, %266, %269 : vector<12x1x1xi32>
    %271 = arith.andi %268, %270 : vector<12x1x1xi1>
    %cst_100 = arith.constant 0.000000e+00 : f32
    %272 = vector.shape_cast %271 : vector<12x1x1xi1> to vector<12x1x1xi1>
    %273 = vector.broadcast %272 : vector<12x1x1xi1> to vector<12x16x128xi1>
    %274 = vector.broadcast %cst_100 : f32 to vector<12x16x128xf32>
    %275 = arith.select %273, %262, %274 : vector<12x16x128xi1>, vector<12x16x128xf32>
    %c0_101 = arith.constant 0 : index
    %c8_102 = arith.constant 8 : index
    %c0_103 = arith.constant 0 : index
    %276 = vector.load %arg13[%c0_101, %c8_102, %c0_103] : memref<12x32x128xf32, #tpu.memory_space<vmem>>, vector<12x16x128xf32>
    tpu.vector_store %arg13[%c0_101, %c8_102, %c0_103], %275 {strides = array<i32>} : memref<12x32x128xf32, #tpu.memory_space<vmem>>, vector<12x16x128xf32>,
    %c0_104 = arith.constant 0 : index
    %c0_105 = arith.constant 0 : index
    %c0_106 = arith.constant 0 : index
    %277 = vector.load %arg13[%c0_104, %c0_105, %c0_106] : memref<12x32x128xf32, #tpu.memory_space<vmem>>, vector<8x32x128xf32>
    %c2_i32_107 = arith.constant 2 : i32
    %278 = tpu.dynamic_rotate %277 by %c2_i32_107 dim 1 : vector<8x32x128xf32>, i32 -> vector<8x32x128xf32>
    %279 = vector.extract_strided_slice %278 {offsets = [0, 8, 0], sizes = [8, 16, 128], strides = [1, 1, 1]} : vector<8x32x128xf32> to vector<8x16x128xf32>
    %c0_108 = arith.constant 0 : index
    %c0_109 = arith.constant 0 : index
    %280 = vector.load %arg9[%c0_108, %c0_109] : memref<32x128xf32, #tpu.memory_space<vmem>>, vector<1x128xf32>
    %281 = vector.shape_cast %280 : vector<1x128xf32> to vector<128xf32>
    %282 = vector.shape_cast %281 : vector<128xf32> to vector<1x1x128xf32>
    %283 = vector.broadcast %282 : vector<1x1x128xf32> to vector<8x16x128xf32>
    %284 = arith.mulf %279, %283 : vector<8x16x128xf32>
    %c1_i32_110 = arith.constant 1 : i32
    %285 = tpu.dynamic_rotate %277 by %c1_i32_110 dim 1 : vector<8x32x128xf32>, i32 -> vector<8x32x128xf32>
    %286 = vector.extract_strided_slice %285 {offsets = [0, 8, 0], sizes = [8, 16, 128], strides = [1, 1, 1]} : vector<8x32x128xf32> to vector<8x16x128xf32>
    %c1_111 = arith.constant 1 : index
    %c0_112 = arith.constant 0 : index
    %287 = vector.load %arg9[%c1_111, %c0_112] : memref<32x128xf32, #tpu.memory_space<vmem>>, vector<1x128xf32>
    %288 = vector.shape_cast %287 : vector<1x128xf32> to vector<128xf32>
    %289 = vector.shape_cast %288 : vector<128xf32> to vector<1x1x128xf32>
    %290 = vector.broadcast %289 : vector<1x1x128xf32> to vector<8x16x128xf32>
    %291 = arith.mulf %286, %290 : vector<8x16x128xf32>
    %292 = vector.extract_strided_slice %277 {offsets = [0, 8, 0], sizes = [8, 16, 128], strides = [1, 1, 1]} : vector<8x32x128xf32> to vector<8x16x128xf32>
    %c2_113 = arith.constant 2 : index
    %c0_114 = arith.constant 0 : index
    %293 = vector.load %arg9[%c2_113, %c0_114] : memref<32x128xf32, #tpu.memory_space<vmem>>, vector<1x128xf32>
    %294 = vector.shape_cast %293 : vector<1x128xf32> to vector<128xf32>
    %295 = vector.shape_cast %294 : vector<128xf32> to vector<1x1x128xf32>
    %296 = vector.broadcast %295 : vector<1x1x128xf32> to vector<8x16x128xf32>
    %297 = arith.mulf %292, %296 : vector<8x16x128xf32>
    %c31_i32_115 = arith.constant 31 : i32
    %298 = tpu.dynamic_rotate %277 by %c31_i32_115 dim 1 : vector<8x32x128xf32>, i32 -> vector<8x32x128xf32>
    %299 = vector.extract_strided_slice %298 {offsets = [0, 8, 0], sizes = [8, 16, 128], strides = [1, 1, 1]} : vector<8x32x128xf32> to vector<8x16x128xf32>
    %c3_116 = arith.constant 3 : index
    %c0_117 = arith.constant 0 : index
    %300 = vector.load %arg9[%c3_116, %c0_117] : memref<32x128xf32, #tpu.memory_space<vmem>>, vector<1x128xf32>
    %301 = vector.shape_cast %300 : vector<1x128xf32> to vector<128xf32>
    %302 = vector.shape_cast %301 : vector<128xf32> to vector<1x1x128xf32>
    %303 = vector.broadcast %302 : vector<1x1x128xf32> to vector<8x16x128xf32>
    %304 = arith.mulf %299, %303 : vector<8x16x128xf32>
    %c30_i32_118 = arith.constant 30 : i32
    %305 = tpu.dynamic_rotate %277 by %c30_i32_118 dim 1 : vector<8x32x128xf32>, i32 -> vector<8x32x128xf32>
    %306 = vector.extract_strided_slice %305 {offsets = [0, 8, 0], sizes = [8, 16, 128], strides = [1, 1, 1]} : vector<8x32x128xf32> to vector<8x16x128xf32>
    %c4_119 = arith.constant 4 : index
    %c0_120 = arith.constant 0 : index
    %307 = vector.load %arg9[%c4_119, %c0_120] : memref<32x128xf32, #tpu.memory_space<vmem>>, vector<1x128xf32>
    %308 = vector.shape_cast %307 : vector<1x128xf32> to vector<128xf32>
    %309 = vector.shape_cast %308 : vector<128xf32> to vector<1x1x128xf32>
    %310 = vector.broadcast %309 : vector<1x1x128xf32> to vector<8x16x128xf32>
    %311 = arith.mulf %306, %310 : vector<8x16x128xf32>
    %312 = arith.addf %284, %291 : vector<8x16x128xf32>
    %313 = arith.addf %297, %304 : vector<8x16x128xf32>
    %314 = arith.addf %312, %313 : vector<8x16x128xf32>
    %315 = arith.addf %314, %311 : vector<8x16x128xf32>
    %c1_121 = arith.constant 1 : index
    %c0_122 = arith.constant 0 : index
    %c0_123 = arith.constant 0 : index
    %316 = vector.load %arg13[%c1_121, %c0_122, %c0_123] : memref<12x32x128xf32, #tpu.memory_space<vmem>>, vector<8x32x128xf32>
    %c2_i32_124 = arith.constant 2 : i32
    %317 = tpu.dynamic_rotate %316 by %c2_i32_124 dim 1 : vector<8x32x128xf32>, i32 -> vector<8x32x128xf32>
    %318 = vector.extract_strided_slice %317 {offsets = [0, 8, 0], sizes = [8, 16, 128], strides = [1, 1, 1]} : vector<8x32x128xf32> to vector<8x16x128xf32>
    %c5_125 = arith.constant 5 : index
    %c0_126 = arith.constant 0 : index
    %319 = vector.load %arg9[%c5_125, %c0_126] : memref<32x128xf32, #tpu.memory_space<vmem>>, vector<1x128xf32>
    %320 = vector.shape_cast %319 : vector<1x128xf32> to vector<128xf32>
    %321 = vector.shape_cast %320 : vector<128xf32> to vector<1x1x128xf32>
    %322 = vector.broadcast %321 : vector<1x1x128xf32> to vector<8x16x128xf32>
    %323 = arith.mulf %318, %322 : vector<8x16x128xf32>
    %c1_i32_127 = arith.constant 1 : i32
    %324 = tpu.dynamic_rotate %316 by %c1_i32_127 dim 1 : vector<8x32x128xf32>, i32 -> vector<8x32x128xf32>
    %325 = vector.extract_strided_slice %324 {offsets = [0, 8, 0], sizes = [8, 16, 128], strides = [1, 1, 1]} : vector<8x32x128xf32> to vector<8x16x128xf32>
    %c6_128 = arith.constant 6 : index
    %c0_129 = arith.constant 0 : index
    %326 = vector.load %arg9[%c6_128, %c0_129] : memref<32x128xf32, #tpu.memory_space<vmem>>, vector<1x128xf32>
    %327 = vector.shape_cast %326 : vector<1x128xf32> to vector<128xf32>
    %328 = vector.shape_cast %327 : vector<128xf32> to vector<1x1x128xf32>
    %329 = vector.broadcast %328 : vector<1x1x128xf32> to vector<8x16x128xf32>
    %330 = arith.mulf %325, %329 : vector<8x16x128xf32>
    %331 = vector.extract_strided_slice %316 {offsets = [0, 8, 0], sizes = [8, 16, 128], strides = [1, 1, 1]} : vector<8x32x128xf32> to vector<8x16x128xf32>
    %c7_130 = arith.constant 7 : index
    %c0_131 = arith.constant 0 : index
    %332 = vector.load %arg9[%c7_130, %c0_131] : memref<32x128xf32, #tpu.memory_space<vmem>>, vector<1x128xf32>
    %333 = vector.shape_cast %332 : vector<1x128xf32> to vector<128xf32>
    %334 = vector.shape_cast %333 : vector<128xf32> to vector<1x1x128xf32>
    %335 = vector.broadcast %334 : vector<1x1x128xf32> to vector<8x16x128xf32>
    %336 = arith.mulf %331, %335 : vector<8x16x128xf32>
    %c31_i32_132 = arith.constant 31 : i32
    %337 = tpu.dynamic_rotate %316 by %c31_i32_132 dim 1 : vector<8x32x128xf32>, i32 -> vector<8x32x128xf32>
    %338 = vector.extract_strided_slice %337 {offsets = [0, 8, 0], sizes = [8, 16, 128], strides = [1, 1, 1]} : vector<8x32x128xf32> to vector<8x16x128xf32>
    %c8_133 = arith.constant 8 : index
    %c0_134 = arith.constant 0 : index
    %339 = vector.load %arg9[%c8_133, %c0_134] : memref<32x128xf32, #tpu.memory_space<vmem>>, vector<1x128xf32>
    %340 = vector.shape_cast %339 : vector<1x128xf32> to vector<128xf32>
    %341 = vector.shape_cast %340 : vector<128xf32> to vector<1x1x128xf32>
    %342 = vector.broadcast %341 : vector<1x1x128xf32> to vector<8x16x128xf32>
    %343 = arith.mulf %338, %342 : vector<8x16x128xf32>
    %c30_i32_135 = arith.constant 30 : i32
    %344 = tpu.dynamic_rotate %316 by %c30_i32_135 dim 1 : vector<8x32x128xf32>, i32 -> vector<8x32x128xf32>
    %345 = vector.extract_strided_slice %344 {offsets = [0, 8, 0], sizes = [8, 16, 128], strides = [1, 1, 1]} : vector<8x32x128xf32> to vector<8x16x128xf32>
    %c9_136 = arith.constant 9 : index
    %c0_137 = arith.constant 0 : index
    %346 = vector.load %arg9[%c9_136, %c0_137] : memref<32x128xf32, #tpu.memory_space<vmem>>, vector<1x128xf32>
    %347 = vector.shape_cast %346 : vector<1x128xf32> to vector<128xf32>
    %348 = vector.shape_cast %347 : vector<128xf32> to vector<1x1x128xf32>
    %349 = vector.broadcast %348 : vector<1x1x128xf32> to vector<8x16x128xf32>
    %350 = arith.mulf %345, %349 : vector<8x16x128xf32>
    %351 = arith.addf %323, %330 : vector<8x16x128xf32>
    %352 = arith.addf %336, %343 : vector<8x16x128xf32>
    %353 = arith.addf %351, %352 : vector<8x16x128xf32>
    %354 = arith.addf %353, %350 : vector<8x16x128xf32>
    %c2_138 = arith.constant 2 : index
    %c0_139 = arith.constant 0 : index
    %c0_140 = arith.constant 0 : index
    %355 = vector.load %arg13[%c2_138, %c0_139, %c0_140] : memref<12x32x128xf32, #tpu.memory_space<vmem>>, vector<8x32x128xf32>
    %c2_i32_141 = arith.constant 2 : i32
    %356 = tpu.dynamic_rotate %355 by %c2_i32_141 dim 1 : vector<8x32x128xf32>, i32 -> vector<8x32x128xf32>
    %357 = vector.extract_strided_slice %356 {offsets = [0, 8, 0], sizes = [8, 16, 128], strides = [1, 1, 1]} : vector<8x32x128xf32> to vector<8x16x128xf32>
    %c10_142 = arith.constant 10 : index
    %c0_143 = arith.constant 0 : index
    %358 = vector.load %arg9[%c10_142, %c0_143] : memref<32x128xf32, #tpu.memory_space<vmem>>, vector<1x128xf32>
    %359 = vector.shape_cast %358 : vector<1x128xf32> to vector<128xf32>
    %360 = vector.shape_cast %359 : vector<128xf32> to vector<1x1x128xf32>
    %361 = vector.broadcast %360 : vector<1x1x128xf32> to vector<8x16x128xf32>
    %362 = arith.mulf %357, %361 : vector<8x16x128xf32>
    %c1_i32_144 = arith.constant 1 : i32
    %363 = tpu.dynamic_rotate %355 by %c1_i32_144 dim 1 : vector<8x32x128xf32>, i32 -> vector<8x32x128xf32>
    %364 = vector.extract_strided_slice %363 {offsets = [0, 8, 0], sizes = [8, 16, 128], strides = [1, 1, 1]} : vector<8x32x128xf32> to vector<8x16x128xf32>
    %c11_145 = arith.constant 11 : index
    %c0_146 = arith.constant 0 : index
    %365 = vector.load %arg9[%c11_145, %c0_146] : memref<32x128xf32, #tpu.memory_space<vmem>>, vector<1x128xf32>
    %366 = vector.shape_cast %365 : vector<1x128xf32> to vector<128xf32>
    %367 = vector.shape_cast %366 : vector<128xf32> to vector<1x1x128xf32>
    %368 = vector.broadcast %367 : vector<1x1x128xf32> to vector<8x16x128xf32>
    %369 = arith.mulf %364, %368 : vector<8x16x128xf32>
    %370 = vector.extract_strided_slice %355 {offsets = [0, 8, 0], sizes = [8, 16, 128], strides = [1, 1, 1]} : vector<8x32x128xf32> to vector<8x16x128xf32>
    %c12_147 = arith.constant 12 : index
    %c0_148 = arith.constant 0 : index
    %371 = vector.load %arg9[%c12_147, %c0_148] : memref<32x128xf32, #tpu.memory_space<vmem>>, vector<1x128xf32>
    %372 = vector.shape_cast %371 : vector<1x128xf32> to vector<128xf32>
    %373 = vector.shape_cast %372 : vector<128xf32> to vector<1x1x128xf32>
    %374 = vector.broadcast %373 : vector<1x1x128xf32> to vector<8x16x128xf32>
    %375 = arith.mulf %370, %374 : vector<8x16x128xf32>
    %c31_i32_149 = arith.constant 31 : i32
    %376 = tpu.dynamic_rotate %355 by %c31_i32_149 dim 1 : vector<8x32x128xf32>, i32 -> vector<8x32x128xf32>
    %377 = vector.extract_strided_slice %376 {offsets = [0, 8, 0], sizes = [8, 16, 128], strides = [1, 1, 1]} : vector<8x32x128xf32> to vector<8x16x128xf32>
    %c13_150 = arith.constant 13 : index
    %c0_151 = arith.constant 0 : index
    %378 = vector.load %arg9[%c13_150, %c0_151] : memref<32x128xf32, #tpu.memory_space<vmem>>, vector<1x128xf32>
    %379 = vector.shape_cast %378 : vector<1x128xf32> to vector<128xf32>
    %380 = vector.shape_cast %379 : vector<128xf32> to vector<1x1x128xf32>
    %381 = vector.broadcast %380 : vector<1x1x128xf32> to vector<8x16x128xf32>
    %382 = arith.mulf %377, %381 : vector<8x16x128xf32>
    %c30_i32_152 = arith.constant 30 : i32
    %383 = tpu.dynamic_rotate %355 by %c30_i32_152 dim 1 : vector<8x32x128xf32>, i32 -> vector<8x32x128xf32>
    %384 = vector.extract_strided_slice %383 {offsets = [0, 8, 0], sizes = [8, 16, 128], strides = [1, 1, 1]} : vector<8x32x128xf32> to vector<8x16x128xf32>
    %c14_153 = arith.constant 14 : index
    %c0_154 = arith.constant 0 : index
    %385 = vector.load %arg9[%c14_153, %c0_154] : memref<32x128xf32, #tpu.memory_space<vmem>>, vector<1x128xf32>
    %386 = vector.shape_cast %385 : vector<1x128xf32> to vector<128xf32>
    %387 = vector.shape_cast %386 : vector<128xf32> to vector<1x1x128xf32>
    %388 = vector.broadcast %387 : vector<1x1x128xf32> to vector<8x16x128xf32>
    %389 = arith.mulf %384, %388 : vector<8x16x128xf32>
    %390 = arith.addf %362, %369 : vector<8x16x128xf32>
    %391 = arith.addf %375, %382 : vector<8x16x128xf32>
    %392 = arith.addf %390, %391 : vector<8x16x128xf32>
    %393 = arith.addf %392, %389 : vector<8x16x128xf32>
    %c3_155 = arith.constant 3 : index
    %c0_156 = arith.constant 0 : index
    %c0_157 = arith.constant 0 : index
    %394 = vector.load %arg13[%c3_155, %c0_156, %c0_157] : memref<12x32x128xf32, #tpu.memory_space<vmem>>, vector<8x32x128xf32>
    %c2_i32_158 = arith.constant 2 : i32
    %395 = tpu.dynamic_rotate %394 by %c2_i32_158 dim 1 : vector<8x32x128xf32>, i32 -> vector<8x32x128xf32>
    %396 = vector.extract_strided_slice %395 {offsets = [0, 8, 0], sizes = [8, 16, 128], strides = [1, 1, 1]} : vector<8x32x128xf32> to vector<8x16x128xf32>
    %c15_159 = arith.constant 15 : index
    %c0_160 = arith.constant 0 : index
    %397 = vector.load %arg9[%c15_159, %c0_160] : memref<32x128xf32, #tpu.memory_space<vmem>>, vector<1x128xf32>
    %398 = vector.shape_cast %397 : vector<1x128xf32> to vector<128xf32>
    %399 = vector.shape_cast %398 : vector<128xf32> to vector<1x1x128xf32>
    %400 = vector.broadcast %399 : vector<1x1x128xf32> to vector<8x16x128xf32>
    %401 = arith.mulf %396, %400 : vector<8x16x128xf32>
    %c1_i32_161 = arith.constant 1 : i32
    %402 = tpu.dynamic_rotate %394 by %c1_i32_161 dim 1 : vector<8x32x128xf32>, i32 -> vector<8x32x128xf32>
    %403 = vector.extract_strided_slice %402 {offsets = [0, 8, 0], sizes = [8, 16, 128], strides = [1, 1, 1]} : vector<8x32x128xf32> to vector<8x16x128xf32>
    %c16_162 = arith.constant 16 : index
    %c0_163 = arith.constant 0 : index
    %404 = vector.load %arg9[%c16_162, %c0_163] : memref<32x128xf32, #tpu.memory_space<vmem>>, vector<1x128xf32>
    %405 = vector.shape_cast %404 : vector<1x128xf32> to vector<128xf32>
    %406 = vector.shape_cast %405 : vector<128xf32> to vector<1x1x128xf32>
    %407 = vector.broadcast %406 : vector<1x1x128xf32> to vector<8x16x128xf32>
    %408 = arith.mulf %403, %407 : vector<8x16x128xf32>
    %409 = vector.extract_strided_slice %394 {offsets = [0, 8, 0], sizes = [8, 16, 128], strides = [1, 1, 1]} : vector<8x32x128xf32> to vector<8x16x128xf32>
    %c17_164 = arith.constant 17 : index
    %c0_165 = arith.constant 0 : index
    %410 = vector.load %arg9[%c17_164, %c0_165] : memref<32x128xf32, #tpu.memory_space<vmem>>, vector<1x128xf32>
    %411 = vector.shape_cast %410 : vector<1x128xf32> to vector<128xf32>
    %412 = vector.shape_cast %411 : vector<128xf32> to vector<1x1x128xf32>
    %413 = vector.broadcast %412 : vector<1x1x128xf32> to vector<8x16x128xf32>
    %414 = arith.mulf %409, %413 : vector<8x16x128xf32>
    %c31_i32_166 = arith.constant 31 : i32
    %415 = tpu.dynamic_rotate %394 by %c31_i32_166 dim 1 : vector<8x32x128xf32>, i32 -> vector<8x32x128xf32>
    %416 = vector.extract_strided_slice %415 {offsets = [0, 8, 0], sizes = [8, 16, 128], strides = [1, 1, 1]} : vector<8x32x128xf32> to vector<8x16x128xf32>
    %c18_167 = arith.constant 18 : index
    %c0_168 = arith.constant 0 : index
    %417 = vector.load %arg9[%c18_167, %c0_168] : memref<32x128xf32, #tpu.memory_space<vmem>>, vector<1x128xf32>
    %418 = vector.shape_cast %417 : vector<1x128xf32> to vector<128xf32>
    %419 = vector.shape_cast %418 : vector<128xf32> to vector<1x1x128xf32>
    %420 = vector.broadcast %419 : vector<1x1x128xf32> to vector<8x16x128xf32>
    %421 = arith.mulf %416, %420 : vector<8x16x128xf32>
    %c30_i32_169 = arith.constant 30 : i32
    %422 = tpu.dynamic_rotate %394 by %c30_i32_169 dim 1 : vector<8x32x128xf32>, i32 -> vector<8x32x128xf32>
    %423 = vector.extract_strided_slice %422 {offsets = [0, 8, 0], sizes = [8, 16, 128], strides = [1, 1, 1]} : vector<8x32x128xf32> to vector<8x16x128xf32>
    %c19_170 = arith.constant 19 : index
    %c0_171 = arith.constant 0 : index
    %424 = vector.load %arg9[%c19_170, %c0_171] : memref<32x128xf32, #tpu.memory_space<vmem>>, vector<1x128xf32>
    %425 = vector.shape_cast %424 : vector<1x128xf32> to vector<128xf32>
    %426 = vector.shape_cast %425 : vector<128xf32> to vector<1x1x128xf32>
    %427 = vector.broadcast %426 : vector<1x1x128xf32> to vector<8x16x128xf32>
    %428 = arith.mulf %423, %427 : vector<8x16x128xf32>
    %429 = arith.addf %401, %408 : vector<8x16x128xf32>
    %430 = arith.addf %414, %421 : vector<8x16x128xf32>
    %431 = arith.addf %429, %430 : vector<8x16x128xf32>
    %432 = arith.addf %431, %428 : vector<8x16x128xf32>
    %c4_172 = arith.constant 4 : index
    %c0_173 = arith.constant 0 : index
    %c0_174 = arith.constant 0 : index
    %433 = vector.load %arg13[%c4_172, %c0_173, %c0_174] : memref<12x32x128xf32, #tpu.memory_space<vmem>>, vector<8x32x128xf32>
    %c2_i32_175 = arith.constant 2 : i32
    %434 = tpu.dynamic_rotate %433 by %c2_i32_175 dim 1 : vector<8x32x128xf32>, i32 -> vector<8x32x128xf32>
    %435 = vector.extract_strided_slice %434 {offsets = [0, 8, 0], sizes = [8, 16, 128], strides = [1, 1, 1]} : vector<8x32x128xf32> to vector<8x16x128xf32>
    %c20_176 = arith.constant 20 : index
    %c0_177 = arith.constant 0 : index
    %436 = vector.load %arg9[%c20_176, %c0_177] : memref<32x128xf32, #tpu.memory_space<vmem>>, vector<1x128xf32>
    %437 = vector.shape_cast %436 : vector<1x128xf32> to vector<128xf32>
    %438 = vector.shape_cast %437 : vector<128xf32> to vector<1x1x128xf32>
    %439 = vector.broadcast %438 : vector<1x1x128xf32> to vector<8x16x128xf32>
    %440 = arith.mulf %435, %439 : vector<8x16x128xf32>
    %c1_i32_178 = arith.constant 1 : i32
    %441 = tpu.dynamic_rotate %433 by %c1_i32_178 dim 1 : vector<8x32x128xf32>, i32 -> vector<8x32x128xf32>
    %442 = vector.extract_strided_slice %441 {offsets = [0, 8, 0], sizes = [8, 16, 128], strides = [1, 1, 1]} : vector<8x32x128xf32> to vector<8x16x128xf32>
    %c21_179 = arith.constant 21 : index
    %c0_180 = arith.constant 0 : index
    %443 = vector.load %arg9[%c21_179, %c0_180] : memref<32x128xf32, #tpu.memory_space<vmem>>, vector<1x128xf32>
    %444 = vector.shape_cast %443 : vector<1x128xf32> to vector<128xf32>
    %445 = vector.shape_cast %444 : vector<128xf32> to vector<1x1x128xf32>
    %446 = vector.broadcast %445 : vector<1x1x128xf32> to vector<8x16x128xf32>
    %447 = arith.mulf %442, %446 : vector<8x16x128xf32>
    %448 = vector.extract_strided_slice %433 {offsets = [0, 8, 0], sizes = [8, 16, 128], strides = [1, 1, 1]} : vector<8x32x128xf32> to vector<8x16x128xf32>
    %c22_181 = arith.constant 22 : index
    %c0_182 = arith.constant 0 : index
    %449 = vector.load %arg9[%c22_181, %c0_182] : memref<32x128xf32, #tpu.memory_space<vmem>>, vector<1x128xf32>
    %450 = vector.shape_cast %449 : vector<1x128xf32> to vector<128xf32>
    %451 = vector.shape_cast %450 : vector<128xf32> to vector<1x1x128xf32>
    %452 = vector.broadcast %451 : vector<1x1x128xf32> to vector<8x16x128xf32>
    %453 = arith.mulf %448, %452 : vector<8x16x128xf32>
    %c31_i32_183 = arith.constant 31 : i32
    %454 = tpu.dynamic_rotate %433 by %c31_i32_183 dim 1 : vector<8x32x128xf32>, i32 -> vector<8x32x128xf32>
    %455 = vector.extract_strided_slice %454 {offsets = [0, 8, 0], sizes = [8, 16, 128], strides = [1, 1, 1]} : vector<8x32x128xf32> to vector<8x16x128xf32>
    %c23_184 = arith.constant 23 : index
    %c0_185 = arith.constant 0 : index
    %456 = vector.load %arg9[%c23_184, %c0_185] : memref<32x128xf32, #tpu.memory_space<vmem>>, vector<1x128xf32>
    %457 = vector.shape_cast %456 : vector<1x128xf32> to vector<128xf32>
    %458 = vector.shape_cast %457 : vector<128xf32> to vector<1x1x128xf32>
    %459 = vector.broadcast %458 : vector<1x1x128xf32> to vector<8x16x128xf32>
    %460 = arith.mulf %455, %459 : vector<8x16x128xf32>
    %c30_i32_186 = arith.constant 30 : i32
    %461 = tpu.dynamic_rotate %433 by %c30_i32_186 dim 1 : vector<8x32x128xf32>, i32 -> vector<8x32x128xf32>
    %462 = vector.extract_strided_slice %461 {offsets = [0, 8, 0], sizes = [8, 16, 128], strides = [1, 1, 1]} : vector<8x32x128xf32> to vector<8x16x128xf32>
    %c24_187 = arith.constant 24 : index
    %c0_188 = arith.constant 0 : index
    %463 = vector.load %arg9[%c24_187, %c0_188] : memref<32x128xf32, #tpu.memory_space<vmem>>, vector<1x128xf32>
    %464 = vector.shape_cast %463 : vector<1x128xf32> to vector<128xf32>
    %465 = vector.shape_cast %464 : vector<128xf32> to vector<1x1x128xf32>
    %466 = vector.broadcast %465 : vector<1x1x128xf32> to vector<8x16x128xf32>
    %467 = arith.mulf %462, %466 : vector<8x16x128xf32>
    %468 = arith.addf %440, %447 : vector<8x16x128xf32>
    %469 = arith.addf %453, %460 : vector<8x16x128xf32>
    %470 = arith.addf %468, %469 : vector<8x16x128xf32>
    %471 = arith.addf %470, %467 : vector<8x16x128xf32>
    %472 = arith.addf %315, %354 : vector<8x16x128xf32>
    %473 = arith.addf %393, %432 : vector<8x16x128xf32>
    %474 = arith.addf %472, %473 : vector<8x16x128xf32>
    %475 = arith.addf %474, %471 : vector<8x16x128xf32>
    %c0_189 = arith.constant 0 : index
    %c0_190 = arith.constant 0 : index
    %476 = vector.load %arg10[%c0_189, %c0_190] : memref<1x128xf32, #tpu.memory_space<vmem>>, vector<1x128xf32>
    %477 = vector.shape_cast %476 : vector<1x128xf32> to vector<1x1x128xf32>
    %478 = vector.broadcast %477 : vector<1x1x128xf32> to vector<8x16x128xf32>
    %479 = arith.addf %475, %478 : vector<8x16x128xf32>
    %c8_i32_191 = arith.constant 8 : i32
    %480 = tpu.dynamic_rotate %479 by %c8_i32_191 dim 2 : vector<8x16x128xf32>, i32 -> vector<8x16x128xf32>
    %481 = vector.extract_strided_slice %275 {offsets = [2, 0, 0], sizes = [8, 16, 128], strides = [1, 1, 1]} : vector<12x16x128xf32> to vector<8x16x128xf32>
    %482 = arith.addf %481, %480 : vector<8x16x128xf32>
    %c0_192 = arith.constant 0 : index
    %c0_193 = arith.constant 0 : index
    %c0_194 = arith.constant 0 : index
    %c0_195 = arith.constant 0 : index
    %483 = vector.load %arg11[%c0_192, %c0_193, %c0_194, %c0_195] : memref<1x8x16x128xf32, #tpu.memory_space<vmem>>, vector<1x8x16x128xf32>
    %484 = vector.shape_cast %483 : vector<1x8x16x128xf32> to vector<8x16x128xf32>
    %485 = vector.shape_cast %482 : vector<8x16x128xf32> to vector<1x8x16x128xf32>
    tpu.vector_store %arg11[%c0_192, %c0_193, %c0_194, %c0_195], %485 {strides = array<i32>} : memref<1x8x16x128xf32, #tpu.memory_space<vmem>>, vector<1x8x16x128xf32>,
    return
  }
  func.func @transform_0(%arg0: i32, %arg1: i32) -> (i32, i32, i32, i32) {
    %c0_i32 = arith.constant 0 : i32
    %c0_i32_0 = arith.constant 0 : i32
    %c0_i32_1 = arith.constant 0 : i32
    %c0_i32_2 = arith.constant 0 : i32
    return %arg0, %c0_i32, %c0_i32_0, %c0_i32_1 : i32, i32, i32, i32
  }
  func.func @transform_1(%arg0: i32, %arg1: i32) -> (i32, i32) {
    %c0_i32 = arith.constant 0 : i32
    %c0_i32_0 = arith.constant 0 : i32
    %c0_i32_1 = arith.constant 0 : i32
    return %c0_i32, %c0_i32_0 : i32, i32
  }
  func.func @transform_2(%arg0: i32, %arg1: i32) -> (i32, i32) {
    %c0_i32 = arith.constant 0 : i32
    %c0_i32_0 = arith.constant 0 : i32
    %c0_i32_1 = arith.constant 0 : i32
    return %c0_i32, %c0_i32_0 : i32, i32
  }
  func.func @transform_3(%arg0: i32, %arg1: i32) -> (i32, i32) {
    %c0_i32 = arith.constant 0 : i32
    %c0_i32_0 = arith.constant 0 : i32
    %c0_i32_1 = arith.constant 0 : i32
    return %c0_i32, %c0_i32_0 : i32, i32
  }
  func.func @transform_4(%arg0: i32, %arg1: i32) -> (i32, i32) {
    %c0_i32 = arith.constant 0 : i32
    %c0_i32_0 = arith.constant 0 : i32
    %c0_i32_1 = arith.constant 0 : i32
    return %c0_i32, %c0_i32_0 : i32, i32
  }
  func.func @transform_5(%arg0: i32, %arg1: i32) -> (i32, i32) {
    %c0_i32 = arith.constant 0 : i32
    %c0_i32_0 = arith.constant 0 : i32
    %c0_i32_1 = arith.constant 0 : i32
    return %c0_i32, %c0_i32_0 : i32, i32
  }
  func.func @transform_6(%arg0: i32, %arg1: i32) -> (i32, i32) {
    %c0_i32 = arith.constant 0 : i32
    %c0_i32_0 = arith.constant 0 : i32
    %c0_i32_1 = arith.constant 0 : i32
    return %c0_i32, %c0_i32_0 : i32, i32
  }
  func.func @transform_7(%arg0: i32, %arg1: i32) -> (i32, i32) {
    %c0_i32 = arith.constant 0 : i32
    %c0_i32_0 = arith.constant 0 : i32
    %c0_i32_1 = arith.constant 0 : i32
    return %c0_i32, %c0_i32_0 : i32, i32
  }
  func.func @transform_8(%arg0: i32, %arg1: i32) -> (i32, i32) {
    %c0_i32 = arith.constant 0 : i32
    %c0_i32_0 = arith.constant 0 : i32
    %c0_i32_1 = arith.constant 0 : i32
    return %c0_i32, %c0_i32_0 : i32, i32
  }
  func.func @transform_9(%arg0: i32, %arg1: i32) -> (i32, i32, i32, i32) {
    %c0_i32 = arith.constant 0 : i32
    %c0_i32_0 = arith.constant 0 : i32
    %c0_i32_1 = arith.constant 0 : i32
    return %arg0, %arg1, %c0_i32, %c0_i32_0 : i32, i32, i32, i32
  }
}

</mosaic_0001>

<llo_original>
// kernel: _forward_impl.1
$region0: #{_forward_impl.1}
  #allocation0 [shape = 'u32[]', space=smem, size = 0x4, offset = 0x4, fixed_abs, tag = 'smem constant byte address 0x4 - core index']
  #allocation1 [shape = 'u32[72,128]{1,0:T(1,128)}', space=vmem, size = 0x9000, scoped, tag = 'internal scratch']
  #allocation2 [shape = 'f32[16,32,128]{2,1,0:T(8,128)}', space=vmem, size = 0x40000, scoped, tag = 'scratch operand']
  #allocation3 [shape = 'f32[12,32,128]{2,1,0:T(8,128)}', space=vmem, size = 0x30000, scoped, tag = 'scratch operand']
  #allocation4 [shape = 'bf16[192,256]{1,0:T(8,128)(2,1)}', space=vmem, size = 0x18000, scoped, tag = 'scratch operand']
  %s0 = inlined_call_operand.vmem [shape: bf16[2,24,16,4], index: 0, kind: input, shape index: {}]
  %s1 = inlined_call_operand.vmem [shape: bf16[4,128], index: 1, kind: input, shape index: {}]
  %s2 = inlined_call_operand.vmem [shape: f32[1,128], index: 2, kind: input, shape index: {}]
  %s3 = inlined_call_operand.vmem [shape: f32[32,128], index: 3, kind: input, shape index: {}]
  %s4 = inlined_call_operand.vmem [shape: f32[1,128], index: 4, kind: input, shape index: {}]
  %s5 = inlined_call_operand.vmem [shape: bf16[256,128], index: 5, kind: input, shape index: {}]
  %s6 = inlined_call_operand.vmem [shape: f32[1,128], index: 6, kind: input, shape index: {}]
  %s7 = inlined_call_operand.vmem [shape: f32[32,128], index: 7, kind: input, shape index: {}]
  %s8 = inlined_call_operand.vmem [shape: f32[1,128], index: 8, kind: input, shape index: {}]
  %s9 = inlined_call_operand.vmem [shape: f32[2,16,16,128], index: 9, kind: output, shape index: {}]
  %s10 = sld [smem:[#allocation0]]
  $region69: #{_forward_impl.1} parent=0
    _
  %s12 = ssub.s32 1, %s10
  %s13 = scalar_select 0, %s12, %s10
  loop: start=0, step=1, limit=6
  $region2: #{_forward_impl.1} parent=0 // loop_pre_header
    _
  $region3: #{_forward_impl.1} parent=0 // loop_header
    %s15 = sphi 0, %s19
    %p16 = scmp.ge.s32.totalorder %s15, 6
    %s22 = sphi 0, %s34
    %s23 = sphi 0, %s30
    %s24 = sphi 0, %s22
    %s25 = sphi 0, %s23
    %s26 = sphi 0, %s24
    %s27 = sphi 0, %s25
    %s37 = sphi 0, %s39
    %s40 = sphi 0, %s37
    %s41 = sphi 0, %s40
    %s57 = sphi 0, %s41
    %s61 = sphi 0, %s61
    %s63 = sphi 0, %s61
    %s64 = sphi 0, %s63
    %s78 = sphi 0, %s64
    %s82 = sphi 0, %s82
    %s84 = sphi 0, %s82
    %s85 = sphi 0, %s84
    %s99 = sphi 0, %s85
    %s103 = sphi 0, %s103
    %s105 = sphi 0, %s103
    %s106 = sphi 0, %s105
    %s120 = sphi 0, %s106
    %s124 = sphi 0, %s124
    %s126 = sphi 0, %s124
    %s127 = sphi 0, %s126
    %s141 = sphi 0, %s127
    %s145 = sphi 0, %s145
    %s147 = sphi 0, %s145
    %s148 = sphi 0, %s147
    %s162 = sphi 0, %s148
    %s166 = sphi 0, %s166
    %s168 = sphi 0, %s166
    %s169 = sphi 0, %s168
    %s183 = sphi 0, %s169
    %s187 = sphi 0, %s187
    %s189 = sphi 0, %s187
    %s190 = sphi 0, %s189
    %s204 = sphi 0, %s190
    %s208 = sphi 0, %s208
    %s210 = sphi 0, %s208
    %s211 = sphi 0, %s210
    %s225 = sphi 0, %s211
    %s233 = sphi 0, %s235
    %s236 = sphi 0, %s233
    %s237 = sphi 0, %s236
    %s253 = sphi 0, %s237
  $region4: #{_forward_impl.1} parent=0 // loop_header_branch
    %18 = sbr.rel (%p16) target = $region8
  $region5: #{_forward_impl.1} parent=0 // loop_body
    %s20 = ssub.s32 %s15, 1
    %s21 = ssub.s32 %s15, 2
    %s28 = sadd.s32 1, %s23
    %p29 = scmp.ge.s32.totalorder %s28, 2
    %s30 = scalar_select %p29, 0, %s28
    %s31 = sadd.s32 1, %s22
    %s32 = scalar_select %p29, %s31, %s22
    %p33 = scmp.ge.s32.totalorder %s32, 2
    %s34 = scalar_select %p33, 0, %s32
    %s35 = ssub.s32 %s22, %s34
    %p36 = scmp.eq.s32.totalorder %s35, 0
    %s38 = sadd.s32 %s37, 1
    %s39 = scalar_select %p36, %s37, %s38
    %p42 = pneg %p36
    %p43 = scmp.eq.s32.totalorder %s15, 3
    %p44 = por %p42, %p43
    %p45 = scmp.ne.s32.totalorder %s37, %s40
    %p46 = scmp.eq.s32.totalorder %s15, 0
    %p47 = por %p45, %p46
    %p48 = scmp.ne.s32.totalorder %s37, %s40
    %p49 = scmp.eq.s32.totalorder %s20, 3
    %p50 = por %p48, %p49
    %p51 = scmp.ne.s32.totalorder %s40, %s41
    %p52 = scmp.eq.s32.totalorder %s20, 0
    %p53 = por %p51, %p52
    %p54 = scmp.ne.s32.totalorder %s40, %s41
    %p55 = scmp.eq.s32.totalorder %s21, 3
    %p56 = por %p54, %p55
    %p58 = scmp.ne.s32.totalorder %s41, %s57
    %p59 = scmp.eq.s32.totalorder %s21, 0
    %p60 = por %p58, %p59
    %s62 = sadd.s32 %s61, 1
    %p65 = scmp.eq.s32.totalorder %s15, 3
    %p66 = scmp.ne.s32.totalorder %s61, %s63
    %p67 = scmp.eq.s32.totalorder %s15, 0
    %p68 = por %p66, %p67
    %p69 = scmp.ne.s32.totalorder %s61, %s63
    %p70 = scmp.eq.s32.totalorder %s20, 3
    %p71 = por %p69, %p70
    %p72 = scmp.ne.s32.totalorder %s63, %s64
    %p73 = scmp.eq.s32.totalorder %s20, 0
    %p74 = por %p72, %p73
    %p75 = scmp.ne.s32.totalorder %s63, %s64
    %p76 = scmp.eq.s32.totalorder %s21, 3
    %p77 = por %p75, %p76
    %p79 = scmp.ne.s32.totalorder %s64, %s78
    %p80 = scmp.eq.s32.totalorder %s21, 0
    %p81 = por %p79, %p80
    %s83 = sadd.s32 %s82, 1
    %p86 = scmp.eq.s32.totalorder %s15, 3
    %p87 = scmp.ne.s32.totalorder %s82, %s84
    %p88 = scmp.eq.s32.totalorder %s15, 0
    %p89 = por %p87, %p88
    %p90 = scmp.ne.s32.totalorder %s82, %s84
    %p91 = scmp.eq.s32.totalorder %s20, 3
    %p92 = por %p90, %p91
    %p93 = scmp.ne.s32.totalorder %s84, %s85
    %p94 = scmp.eq.s32.totalorder %s20, 0
    %p95 = por %p93, %p94
    %p96 = scmp.ne.s32.totalorder %s84, %s85
    %p97 = scmp.eq.s32.totalorder %s21, 3
    %p98 = por %p96, %p97
    %p100 = scmp.ne.s32.totalorder %s85, %s99
    %p101 = scmp.eq.s32.totalorder %s21, 0
    %p102 = por %p100, %p101
    %s104 = sadd.s32 %s103, 1
    %p107 = scmp.eq.s32.totalorder %s15, 3
    %p108 = scmp.ne.s32.totalorder %s103, %s105
    %p109 = scmp.eq.s32.totalorder %s15, 0
    %p110 = por %p108, %p109
    %p111 = scmp.ne.s32.totalorder %s103, %s105
    %p112 = scmp.eq.s32.totalorder %s20, 3
    %p113 = por %p111, %p112
    %p114 = scmp.ne.s32.totalorder %s105, %s106
    %p115 = scmp.eq.s32.totalorder %s20, 0
    %p116 = por %p114, %p115
    %p117 = scmp.ne.s32.totalorder %s105, %s106
    %p118 = scmp.eq.s32.totalorder %s21, 3
    %p119 = por %p117, %p118
    %p121 = scmp.ne.s32.totalorder %s106, %s120
    %p122 = scmp.eq.s32.totalorder %s21, 0
    %p123 = por %p121, %p122
    %s125 = sadd.s32 %s124, 1
    %p128 = scmp.eq.s32.totalorder %s15, 3
    %p129 = scmp.ne.s32.totalorder %s124, %s126
    %p130 = scmp.eq.s32.totalorder %s15, 0
    %p131 = por %p129, %p130
    %p132 = scmp.ne.s32.totalorder %s124, %s126
    %p133 = scmp.eq.s32.totalorder %s20, 3
    %p134 = por %p132, %p133
    %p135 = scmp.ne.s32.totalorder %s126, %s127
    %p136 = scmp.eq.s32.totalorder %s20, 0
    %p137 = por %p135, %p136
    %p138 = scmp.ne.s32.totalorder %s126, %s127
    %p139 = scmp.eq.s32.totalorder %s21, 3
    %p140 = por %p138, %p139
    %p142 = scmp.ne.s32.totalorder %s127, %s141
    %p143 = scmp.eq.s32.totalorder %s21, 0
    %p144 = por %p142, %p143
    %s146 = sadd.s32 %s145, 1
    %p149 = scmp.eq.s32.totalorder %s15, 3
    %p150 = scmp.ne.s32.totalorder %s145, %s147
    %p151 = scmp.eq.s32.totalorder %s15, 0
    %p152 = por %p150, %p151
    %p153 = scmp.ne.s32.totalorder %s145, %s147
    %p154 = scmp.eq.s32.totalorder %s20, 3
    %p155 = por %p153, %p154
    %p156 = scmp.ne.s32.totalorder %s147, %s148
    %p157 = scmp.eq.s32.totalorder %s20, 0
    %p158 = por %p156, %p157
    %p159 = scmp.ne.s32.totalorder %s147, %s148
    %p160 = scmp.eq.s32.totalorder %s21, 3
    %p161 = por %p159, %p160
    %p163 = scmp.ne.s32.totalorder %s148, %s162
    %p164 = scmp.eq.s32.totalorder %s21, 0
    %p165 = por %p163, %p164
    %s167 = sadd.s32 %s166, 1
    %p170 = scmp.eq.s32.totalorder %s15, 3
    %p171 = scmp.ne.s32.totalorder %s166, %s168
    %p172 = scmp.eq.s32.totalorder %s15, 0
    %p173 = por %p171, %p172
    %p174 = scmp.ne.s32.totalorder %s166, %s168
    %p175 = scmp.eq.s32.totalorder %s20, 3
    %p176 = por %p174, %p175
    %p177 = scmp.ne.s32.totalorder %s168, %s169
    %p178 = scmp.eq.s32.totalorder %s20, 0
    %p179 = por %p177, %p178
    %p180 = scmp.ne.s32.totalorder %s168, %s169
    %p181 = scmp.eq.s32.totalorder %s21, 3
    %p182 = por %p180, %p181
    %p184 = scmp.ne.s32.totalorder %s169, %s183
    %p185 = scmp.eq.s32.totalorder %s21, 0
    %p186 = por %p184, %p185
    %s188 = sadd.s32 %s187, 1
    %p191 = scmp.eq.s32.totalorder %s15, 3
    %p192 = scmp.ne.s32.totalorder %s187, %s189
    %p193 = scmp.eq.s32.totalorder %s15, 0
    %p194 = por %p192, %p193
    %p195 = scmp.ne.s32.totalorder %s187, %s189
    %p196 = scmp.eq.s32.totalorder %s20, 3
    %p197 = por %p195, %p196
    %p198 = scmp.ne.s32.totalorder %s189, %s190
    %p199 = scmp.eq.s32.totalorder %s20, 0
    %p200 = por %p198, %p199
    %p201 = scmp.ne.s32.totalorder %s189, %s190
    %p202 = scmp.eq.s32.totalorder %s21, 3
    %p203 = por %p201, %p202
    %p205 = scmp.ne.s32.totalorder %s190, %s204
    %p206 = scmp.eq.s32.totalorder %s21, 0
    %p207 = por %p205, %p206
    %s209 = sadd.s32 %s208, 1
    %p212 = scmp.eq.s32.totalorder %s15, 3
    %p213 = scmp.ne.s32.totalorder %s208, %s210
    %p214 = scmp.eq.s32.totalorder %s15, 0
    %p215 = por %p213, %p214
    %p216 = scmp.ne.s32.totalorder %s208, %s210
    %p217 = scmp.eq.s32.totalorder %s20, 3
    %p218 = por %p216, %p217
    %p219 = scmp.ne.s32.totalorder %s210, %s211
    %p220 = scmp.eq.s32.totalorder %s20, 0
    %p221 = por %p219, %p220
    %p222 = scmp.ne.s32.totalorder %s210, %s211
    %p223 = scmp.eq.s32.totalorder %s21, 3
    %p224 = por %p222, %p223
    %p226 = scmp.ne.s32.totalorder %s211, %s225
    %p227 = scmp.eq.s32.totalorder %s21, 0
    %p228 = por %p226, %p227
    %s229 = ssub.s32 %s22, %s34
    %s230 = ssub.s32 %s23, %s30
    %s231 = sor.u32 %s229, %s230
    %p232 = scmp.eq.s32.totalorder %s231, 0
    %s234 = sadd.s32 %s233, 1
    %s235 = scalar_select %p232, %s233, %s234
    %p238 = pneg %p232
    %p239 = scmp.eq.s32.totalorder %s15, 3
    %p240 = por %p238, %p239
    %p241 = scmp.ne.s32.totalorder %s233, %s236
    %p242 = scmp.eq.s32.totalorder %s15, 0
    %p243 = por %p241, %p242
    %p244 = scmp.ne.s32.totalorder %s233, %s236
    %p245 = scmp.eq.s32.totalorder %s20, 3
    %p246 = por %p244, %p245
    %p247 = scmp.ne.s32.totalorder %s236, %s237
    %p248 = scmp.eq.s32.totalorder %s20, 0
    %p249 = por %p247, %p248
    %p250 = scmp.ne.s32.totalorder %s236, %s237
    %p251 = scmp.eq.s32.totalorder %s21, 3
    %p252 = por %p250, %p251
    %p254 = scmp.ne.s32.totalorder %s237, %s253
    %p255 = scmp.eq.s32.totalorder %s21, 0
    %p256 = por %p254, %p255
    %p257 = scmp.le.s32.totalorder 1, %s15
    %p258 = scmp.lt.s32.totalorder %s15, 5
    %p259 = pnand %p257, %p258
    %p260 = pneg %p259
    // Predicated region
    $region9: #{_forward_impl.1} parent=5 // pred_check
      _
    $region10: #{_forward_impl.1} parent=5 // pred_check_branch
      %262 = sbr.rel (%p259) target = $region12
    $region11: #{_forward_impl.1} parent=5 // pred_region
      %s263 = ssub.s32 %s15, 1
      // Predicated region
      $region13: #{_forward_impl.1} parent=11 // pred_check
        %p264 = pneg %p74
      $region14: #{_forward_impl.1} parent=11 // pred_check_branch
        %266 = sbr.rel (%p264) target = $region16
      $region15: #{_forward_impl.1} parent=11 // pred_region
        _
      $region16: #{_forward_impl.1} parent=11 // pred_fallthru
        _
      // Predicated region
      $region17: #{_forward_impl.1} parent=11 // pred_check
        %p267 = pneg %p95
      $region18: #{_forward_impl.1} parent=11 // pred_check_branch
        %269 = sbr.rel (%p267) target = $region20
      $region19: #{_forward_impl.1} parent=11 // pred_region
        _
      $region20: #{_forward_impl.1} parent=11 // pred_fallthru
        _
      // Predicated region
      $region21: #{_forward_impl.1} parent=11 // pred_check
        %p270 = pneg %p116
      $region22: #{_forward_impl.1} parent=11 // pred_check_branch
        %272 = sbr.rel (%p270) target = $region24
      $region23: #{_forward_impl.1} parent=11 // pred_region
        _
      $region24: #{_forward_impl.1} parent=11 // pred_fallthru
        _
      // Predicated region
      $region25: #{_forward_impl.1} parent=11 // pred_check
        %p273 = pneg %p137
      $region26: #{_forward_impl.1} parent=11 // pred_check_branch
        %275 = sbr.rel (%p273) target = $region28
      $region27: #{_forward_impl.1} parent=11 // pred_region
        _
      $region28: #{_forward_impl.1} parent=11 // pred_fallthru
        _
      // Predicated region
      $region29: #{_forward_impl.1} parent=11 // pred_check
        %p276 = pneg %p158
      $region30: #{_forward_impl.1} parent=11 // pred_check_branch
        %278 = sbr.rel (%p276) target = $region32
      $region31: #{_forward_impl.1} parent=11 // pred_region
        _
      $region32: #{_forward_impl.1} parent=11 // pred_fallthru
        _
      // Predicated region
      $region33: #{_forward_impl.1} parent=11 // pred_check
        %p279 = pneg %p179
      $region34: #{_forward_impl.1} parent=11 // pred_check_branch
        %281 = sbr.rel (%p279) target = $region36
      $region35: #{_forward_impl.1} parent=11 // pred_region
        _
      $region36: #{_forward_impl.1} parent=11 // pred_fallthru
        _
      // Predicated region
      $region37: #{_forward_impl.1} parent=11 // pred_check
        %p282 = pneg %p200
      $region38: #{_forward_impl.1} parent=11 // pred_check_branch
        %284 = sbr.rel (%p282) target = $region40
      $region39: #{_forward_impl.1} parent=11 // pred_region
        _
      $region40: #{_forward_impl.1} parent=11 // pred_fallthru
        _
      // Predicated region
      $region41: #{_forward_impl.1} parent=11 // pred_check
        %p285 = pneg %p221
      $region42: #{_forward_impl.1} parent=11 // pred_check_branch
        %287 = sbr.rel (%p285) target = $region44
      $region43: #{_forward_impl.1} parent=11 // pred_region
        _
      $region44: #{_forward_impl.1} parent=11 // pred_fallthru
        _
    $region12: #{_forward_impl.1} parent=5 // pred_fallthru
      _
    %p288 = scmp.lt.s32.totalorder %s15, 4
    // Predicated region
    $region45: #{_forward_impl.1} parent=5 // pred_check
      %p289 = pneg %p288
    $region46: #{_forward_impl.1} parent=5 // pred_check_branch
      %291 = sbr.rel (%p289) target = $region48
    $region47: #{_forward_impl.1} parent=5 // pred_region
      // Predicated region
      $region49: #{_forward_impl.1} parent=47 // pred_check
        %p292 = pneg %p47
      $region50: #{_forward_impl.1} parent=47 // pred_check_branch
        %294 = sbr.rel (%p292) target = $region52
      $region51: #{_forward_impl.1} parent=47 // pred_region
        %p295 = scmp.lt.s32.totalorder %s22, 1
        %s296 = scalar_select %p295, %s22, 1
        %s297 = smul.addr %s296, 48
        %s298 = smul.addr %s297, 4
        %s299 = scalar_lea.vmem %s0, %s298
      $region52: #{_forward_impl.1} parent=47 // pred_fallthru
        _
    $region48: #{_forward_impl.1} parent=5 // pred_fallthru
      _
    %p300 = scmp.le.s32.totalorder 1, %s15
    %p301 = scmp.lt.s32.totalorder %s15, 5
    %p302 = pnand %p300, %p301
    %p303 = pneg %p302
    // Predicated region
    $region53: #{_forward_impl.1} parent=5 // pred_check
      _
    $region54: #{_forward_impl.1} parent=5 // pred_check_branch
      %305 = sbr.rel (%p302) target = $region56
    $region55: #{_forward_impl.1} parent=5 // pred_region
      %s306 = ssub.s32 %s15, 1
      %p307 = scmp.lt.s32.totalorder %s24, 1
      %s308 = scalar_select %p307, %s24, 1
      %s309 = smul.addr %s308, 48
      %s310 = smul.addr %s309, 4
      %s311 = scalar_lea.vmem %s0, %s310
      %p312 = pneg %p53
      %p313 = pneg %p50
      %p314 = pneg %p74
      %p315 = pneg %p71
      %p316 = pneg %p95
      %p317 = pneg %p92
      %p318 = pneg %p116
      %p319 = pneg %p113
      %p320 = pneg %p137
      %p321 = pneg %p134
      %p322 = pneg %p158
      %p323 = pneg %p155
      %p324 = pneg %p179
      %p325 = pneg %p176
      %p326 = pneg %p200
      %p327 = pneg %p197
      %p328 = pneg %p221
      %p329 = pneg %p218
      %p330 = pneg %p249
      %p331 = pneg %p246
      %s332 = smul.u32 8, %s25
      %p333 = scmp.lt.s32.totalorder %s24, 1
      %s334 = scalar_select %p333, %s24, 1
      %p335 = scmp.lt.s32.totalorder %s332, 15
      %s336 = scalar_select %p335, %s332, 15
      %s337 = smul.addr %s336, 2
      %s338 = smul.addr %s334, 32
      %s339 = sadd.s32 %s337, %s338
      %s340 = smul.addr %s339, 8
      %s341 = scalar_lea.vmem %s9, %s340
      %p342 = scmp.lt.s32.totalorder %s24, 1
      %s343 = scalar_select %p342, %s24, 1
      %s344 = smul.addr %s343, 48
      %s345 = smul.addr %s344, 4
      %s346 = scalar_lea.vmem %s0, %s345
      %s347 = smul.u32 8, %s25
      %p348 = scmp.lt.s32.totalorder %s24, 1
      %s349 = scalar_select %p348, %s24, 1
      %p350 = scmp.lt.s32.totalorder %s347, 15
      %s351 = scalar_select %p350, %s347, 15
      %s352 = smul.addr %s351, 2
      %s353 = smul.addr %s349, 32
      %s354 = sadd.s32 %s352, %s353
      %s355 = smul.addr %s354, 8
      %s356 = scalar_lea.vmem %s9, %s355
      %s357 = smul.u32 8, %s25
      %s359 = smul.u32 %s25, 8
      %360 = vst [vmem:[#allocation2] sm:$0xff] 0.0
      %361 = vst [vmem:[#allocation2 + $0x20] sm:$0xff] 0.0
      %362 = vst [vmem:[#allocation2 + $0x40] sm:$0xff] 0.0
      %363 = vst [vmem:[#allocation2 + $0x60] sm:$0xff] 0.0
      %364 = vst [vmem:[#allocation2 + $0x80] sm:$0xff] 0.0
      %365 = vst [vmem:[#allocation2 + $0xa0] sm:$0xff] 0.0
      %366 = vst [vmem:[#allocation2 + $0xc0] sm:$0xff] 0.0
      %367 = vst [vmem:[#allocation2 + $0xe0] sm:$0xff] 0.0
      %368 = vst [vmem:[#allocation2 + $0x100] sm:$0xff] 0.0
      %369 = vst [vmem:[#allocation2 + $0x120] sm:$0xff] 0.0
      %370 = vst [vmem:[#allocation2 + $0x140] sm:$0xff] 0.0
      %371 = vst [vmem:[#allocation2 + $0x160] sm:$0xff] 0.0
      %372 = vst [vmem:[#allocation2 + $0x180] sm:$0xff] 0.0
      %373 = vst [vmem:[#allocation2 + $0x1a0] sm:$0xff] 0.0
      %374 = vst [vmem:[#allocation2 + $0x1c0] sm:$0xff] 0.0
      %375 = vst [vmem:[#allocation2 + $0x1e0] sm:$0xff] 0.0
      %376 = vst [vmem:[#allocation2 + $0x18] sm:$0xff] 0.0
      %377 = vst [vmem:[#allocation2 + $0x38] sm:$0xff] 0.0
      %378 = vst [vmem:[#allocation2 + $0x58] sm:$0xff] 0.0
      %379 = vst [vmem:[#allocation2 + $0x78] sm:$0xff] 0.0
      %380 = vst [vmem:[#allocation2 + $0x98] sm:$0xff] 0.0
      %381 = vst [vmem:[#allocation2 + $0xb8] sm:$0xff] 0.0
      %382 = vst [vmem:[#allocation2 + $0xd8] sm:$0xff] 0.0
      %383 = vst [vmem:[#allocation2 + $0xf8] sm:$0xff] 0.0
      %384 = vst [vmem:[#allocation2 + $0x118] sm:$0xff] 0.0
      %385 = vst [vmem:[#allocation2 + $0x138] sm:$0xff] 0.0
      %386 = vst [vmem:[#allocation2 + $0x158] sm:$0xff] 0.0
      %387 = vst [vmem:[#allocation2 + $0x178] sm:$0xff] 0.0
      %388 = vst [vmem:[#allocation2 + $0x198] sm:$0xff] 0.0
      %389 = vst [vmem:[#allocation2 + $0x1b8] sm:$0xff] 0.0
      %390 = vst [vmem:[#allocation2 + $0x1d8] sm:$0xff] 0.0
      %391 = vst [vmem:[#allocation2 + $0x1f8] sm:$0xff] 0.0
      %392 = vst [vmem:[#allocation3] sm:$0xff] 0.0
      %393 = vst [vmem:[#allocation3 + $0x20] sm:$0xff] 0.0
      %394 = vst [vmem:[#allocation3 + $0x40] sm:$0xff] 0.0
      %395 = vst [vmem:[#allocation3 + $0x60] sm:$0xff] 0.0
      %396 = vst [vmem:[#allocation3 + $0x80] sm:$0xff] 0.0
      %397 = vst [vmem:[#allocation3 + $0xa0] sm:$0xff] 0.0
      %398 = vst [vmem:[#allocation3 + $0xc0] sm:$0xff] 0.0
      %399 = vst [vmem:[#allocation3 + $0xe0] sm:$0xff] 0.0
      %400 = vst [vmem:[#allocation3 + $0x100] sm:$0xff] 0.0
      %401 = vst [vmem:[#allocation3 + $0x120] sm:$0xff] 0.0
      %402 = vst [vmem:[#allocation3 + $0x140] sm:$0xff] 0.0
      %403 = vst [vmem:[#allocation3 + $0x160] sm:$0xff] 0.0
      %404 = vst [vmem:[#allocation3 + $0x18] sm:$0xff] 0.0
      %405 = vst [vmem:[#allocation3 + $0x38] sm:$0xff] 0.0
      %406 = vst [vmem:[#allocation3 + $0x58] sm:$0xff] 0.0
      %407 = vst [vmem:[#allocation3 + $0x78] sm:$0xff] 0.0
      %408 = vst [vmem:[#allocation3 + $0x98] sm:$0xff] 0.0
      %409 = vst [vmem:[#allocation3 + $0xb8] sm:$0xff] 0.0
      %410 = vst [vmem:[#allocation3 + $0xd8] sm:$0xff] 0.0
      %411 = vst [vmem:[#allocation3 + $0xf8] sm:$0xff] 0.0
      %412 = vst [vmem:[#allocation3 + $0x118] sm:$0xff] 0.0
      %413 = vst [vmem:[#allocation3 + $0x138] sm:$0xff] 0.0
      %414 = vst [vmem:[#allocation3 + $0x158] sm:$0xff] 0.0
      %415 = vst [vmem:[#allocation3 + $0x178] sm:$0xff] 0.0
      %s416 = smul.u32 %s359, 2
      %s417 = smul.addr %s416, 4
      %s418 = scalar_lea.vmem %s346, %s417
      %v419 = vld [vmem:[%s418] sm:$0xf]
      %v420 = vld [vmem:[%s418 + $0x4] sm:$0xf]
      %v421 = vld [vmem:[%s418 + $0x8] sm:$0xf]
      %v422 = vld [vmem:[%s418 + $0xc] sm:$0xf]
      %v423 = vld [vmem:[%s418 + $0x10] sm:$0xf]
      %v424 = vld [vmem:[%s418 + $0x14] sm:$0xf]
      %v425 = vld [vmem:[%s418 + $0x18] sm:$0xf]
      %v426 = vld [vmem:[%s418 + $0x1c] sm:$0xf]
      %v427 = vld [vmem:[%s418 + $0x20] sm:$0xf]
      %v428 = vld [vmem:[%s418 + $0x24] sm:$0xf]
      %v429 = vld [vmem:[%s418 + $0x28] sm:$0xf]
      %v430 = vld [vmem:[%s418 + $0x2c] sm:$0xf]
      %v431 = vld [vmem:[%s418 + $0x30] sm:$0xf]
      %v432 = vld [vmem:[%s418 + $0x34] sm:$0xf]
      %v433 = vld [vmem:[%s418 + $0x38] sm:$0xf]
      %v434 = vld [vmem:[%s418 + $0x3c] sm:$0xf]
      %v435 = vld [vmem:[%s418 + $0x40] sm:$0xf]
      %v436 = vld [vmem:[%s418 + $0x44] sm:$0xf]
      %v437 = vld [vmem:[%s418 + $0x48] sm:$0xf]
      %v438 = vld [vmem:[%s418 + $0x4c] sm:$0xf]
      %v439 = vld [vmem:[%s418 + $0x50] sm:$0xf]
      %v440 = vld [vmem:[%s418 + $0x54] sm:$0xf]
      %v441 = vld [vmem:[%s418 + $0x58] sm:$0xf]
      %v442 = vld [vmem:[%s418 + $0x5c] sm:$0xf]
      %v443 = vld [vmem:[%s418 + $0x60] sm:$0xf]
      %v444 = vld [vmem:[%s418 + $0x64] sm:$0xf]
      %v445 = vld [vmem:[%s418 + $0x68] sm:$0xf]
      %v446 = vld [vmem:[%s418 + $0x6c] sm:$0xf]
      %v447 = vld [vmem:[%s418 + $0x70] sm:$0xf]
      %v448 = vld [vmem:[%s418 + $0x74] sm:$0xf]
      %v449 = vld [vmem:[%s418 + $0x78] sm:$0xf]
      %v450 = vld [vmem:[%s418 + $0x7c] sm:$0xf]
      %v451 = vld [vmem:[%s1] sm:$0x3]
      %v452 = vld [vmem:[%s2] sm:$0x1]
      %v454 = vperm.slane %v452, 0
      %v488 = vunpack.c.l.b16 %v419
      %v489 = vunpack.c.l.b16 %v420
      %v490 = vunpack.c.l.b16 %v421
      %v491 = vunpack.c.l.b16 %v422
      %v492 = vunpack.c.l.b16 %v423
      %v493 = vunpack.c.l.b16 %v424
      %v494 = vunpack.c.l.b16 %v425
      %v495 = vunpack.c.l.b16 %v426
      %v496 = vunpack.c.l.b16 %v427
      %v497 = vunpack.c.l.b16 %v428
      %v498 = vunpack.c.l.b16 %v429
      %v499 = vunpack.c.l.b16 %v430
      %v500 = vunpack.c.l.b16 %v431
      %v501 = vunpack.c.l.b16 %v432
      %v502 = vunpack.c.l.b16 %v433
      %v503 = vunpack.c.l.b16 %v434
      %v504 = vunpack.c.l.b16 %v435
      %v505 = vunpack.c.l.b16 %v436
      %v506 = vunpack.c.l.b16 %v437
      %v507 = vunpack.c.l.b16 %v438
      %v508 = vunpack.c.l.b16 %v439
      %v509 = vunpack.c.l.b16 %v440
      %v510 = vunpack.c.l.b16 %v441
      %v511 = vunpack.c.l.b16 %v442
      %v512 = vunpack.c.l.b16 %v443
      %v513 = vunpack.c.l.b16 %v444
      %v514 = vunpack.c.l.b16 %v445
      %v515 = vunpack.c.l.b16 %v446
      %v516 = vunpack.c.l.b16 %v447
      %v517 = vunpack.c.l.b16 %v448
      %v518 = vunpack.c.l.b16 %v449
      %v519 = vunpack.c.l.b16 %v450
      %v520 = vpack.c.b16 %v489, %v488
      %v521 = vpack.c.b16 %v491, %v490
      %v522 = vpack.c.b16 %v493, %v492
      %v523 = vpack.c.b16 %v495, %v494
      %v524 = vpack.c.b16 %v497, %v496
      %v525 = vpack.c.b16 %v499, %v498
      %v526 = vpack.c.b16 %v501, %v500
      %v527 = vpack.c.b16 %v503, %v502
      %v528 = vpack.c.b16 %v505, %v504
      %v529 = vpack.c.b16 %v507, %v506
      %v530 = vpack.c.b16 %v509, %v508
      %v531 = vpack.c.b16 %v511, %v510
      %v532 = vpack.c.b16 %v513, %v512
      %v533 = vpack.c.b16 %v515, %v514
      %v534 = vpack.c.b16 %v517, %v516
      %v535 = vpack.c.b16 %v519, %v518
      %vm536 = vcmask 31744
      %v538 = vsel %vm536, %v520, 0
      %v541 = vsel %vm536, %v521, 0
      %v544 = vsel %vm536, %v522, 0
      %v547 = vsel %vm536, %v523, 0
      %v550 = vsel %vm536, %v524, 0
      %v553 = vsel %vm536, %v525, 0
      %v556 = vsel %vm536, %v526, 0
      %v559 = vsel %vm536, %v527, 0
      %v562 = vsel %vm536, %v528, 0
      %v565 = vsel %vm536, %v529, 0
      %v568 = vsel %vm536, %v530, 0
      %v571 = vsel %vm536, %v531, 0
      %v574 = vsel %vm536, %v532, 0
      %v577 = vsel %vm536, %v533, 0
      %v580 = vsel %vm536, %v534, 0
      %v583 = vsel %vm536, %v535, 0
      %vm585 = vcmask 1041408
      %v587 = vsel %vm585, %v451, 0
      %589 = vmatpush.bf16.msra.mxu0 0
      %590 = vmatpush.bf16.msra.mxu0 0
      %591 = vmatpush.bf16.msra.mxu0 0
      %592 = vmatpush.bf16.msra.mxu0 0
      %593 = vmatpush.bf16.msra.mxu0 0
      %594 = vmatpush.bf16.msra.mxu0 0
      %595 = vmatpush.bf16.msra.mxu0 0
      %596 = vmatpush.bf16.msra.mxu0 %v587
      %597 = vmatmul.bf16.gmra.mxu0 %v538
      %v598 = vpop.f32.mrf.mxu0
      %v599 = vadd.f32 %v454, %v598
      %v600 = vpop.f32.mrf.mxu0
      %v601 = vadd.f32 %v454, %v600
      %602 = vmatmul.bf16.gmra.mxu0 %v541
      %v603 = vpop.f32.mrf.mxu0
      %v604 = vadd.f32 %v454, %v603
      %v605 = vpop.f32.mrf.mxu0
      %v606 = vadd.f32 %v454, %v605
      %607 = vmatmul.bf16.gmra.mxu0 %v544
      %v608 = vpop.f32.mrf.mxu0
      %v609 = vadd.f32 %v454, %v608
      %v610 = vpop.f32.mrf.mxu0
      %v611 = vadd.f32 %v454, %v610
      %612 = vmatmul.bf16.gmra.mxu0 %v547
      %v613 = vpop.f32.mrf.mxu0
      %v614 = vadd.f32 %v454, %v613
      %v615 = vpop.f32.mrf.mxu0
      %v616 = vadd.f32 %v454, %v615
      %617 = vmatmul.bf16.gmra.mxu0 %v550
      %v618 = vpop.f32.mrf.mxu0
      %v619 = vadd.f32 %v454, %v618
      %v620 = vpop.f32.mrf.mxu0
      %v621 = vadd.f32 %v454, %v620
      %622 = vmatmul.bf16.gmra.mxu0 %v553
      %v623 = vpop.f32.mrf.mxu0
      %v624 = vadd.f32 %v454, %v623
      %v625 = vpop.f32.mrf.mxu0
      %v626 = vadd.f32 %v454, %v625
      %627 = vmatmul.bf16.gmra.mxu0 %v556
      %v628 = vpop.f32.mrf.mxu0
      %v629 = vadd.f32 %v454, %v628
      %v630 = vpop.f32.mrf.mxu0
      %v631 = vadd.f32 %v454, %v630
      %632 = vmatmul.bf16.gmra.mxu0 %v559
      %v633 = vpop.f32.mrf.mxu0
      %v634 = vadd.f32 %v454, %v633
      %v635 = vpop.f32.mrf.mxu0
      %v636 = vadd.f32 %v454, %v635
      %637 = vmatmul.bf16.gmra.mxu0 %v562
      %v638 = vpop.f32.mrf.mxu0
      %v639 = vadd.f32 %v454, %v638
      %v640 = vpop.f32.mrf.mxu0
      %v641 = vadd.f32 %v454, %v640
      %642 = vmatmul.bf16.gmra.mxu0 %v565
      %v643 = vpop.f32.mrf.mxu0
      %v644 = vadd.f32 %v454, %v643
      %v645 = vpop.f32.mrf.mxu0
      %v646 = vadd.f32 %v454, %v645
      %647 = vmatmul.bf16.gmra.mxu0 %v568
      %v648 = vpop.f32.mrf.mxu0
      %v649 = vadd.f32 %v454, %v648
      %v650 = vpop.f32.mrf.mxu0
      %v651 = vadd.f32 %v454, %v650
      %652 = vmatmul.bf16.gmra.mxu0 %v571
      %v653 = vpop.f32.mrf.mxu0
      %v654 = vadd.f32 %v454, %v653
      %v655 = vpop.f32.mrf.mxu0
      %v656 = vadd.f32 %v454, %v655
      %657 = vmatmul.bf16.gmra.mxu0 %v574
      %v658 = vpop.f32.mrf.mxu0
      %v659 = vadd.f32 %v454, %v658
      %v660 = vpop.f32.mrf.mxu0
      %v661 = vadd.f32 %v454, %v660
      %662 = vmatmul.bf16.gmra.mxu0 %v577
      %v663 = vpop.f32.mrf.mxu0
      %v664 = vadd.f32 %v454, %v663
      %v665 = vpop.f32.mrf.mxu0
      %v666 = vadd.f32 %v454, %v665
      %667 = vmatmul.bf16.gmra.mxu0 %v580
      %v668 = vpop.f32.mrf.mxu0
      %v669 = vadd.f32 %v454, %v668
      %v670 = vpop.f32.mrf.mxu0
      %v671 = vadd.f32 %v454, %v670
      %672 = vmatmul.bf16.gmra.mxu0 %v583
      %v673 = vpop.f32.mrf.mxu0
      %v674 = vadd.f32 %v454, %v673
      %v675 = vpop.f32.mrf.mxu0
      %v676 = vadd.f32 %v454, %v675
      %677 = vdwg.mxu0
      %v678 = vxor.u32 %v599, 2147483648
      %v679 = vxor.u32 %v601, 2147483648
      %v680 = vxor.u32 %v604, 2147483648
      %v681 = vxor.u32 %v606, 2147483648
      %v682 = vxor.u32 %v609, 2147483648
      %v683 = vxor.u32 %v611, 2147483648
      %v684 = vxor.u32 %v614, 2147483648
      %v685 = vxor.u32 %v616, 2147483648
      %v686 = vxor.u32 %v619, 2147483648
      %v687 = vxor.u32 %v621, 2147483648
      %v688 = vxor.u32 %v624, 2147483648
      %v689 = vxor.u32 %v626, 2147483648
      %v690 = vxor.u32 %v629, 2147483648
      %v691 = vxor.u32 %v631, 2147483648
      %v692 = vxor.u32 %v634, 2147483648
      %v693 = vxor.u32 %v636, 2147483648
      %v694 = vxor.u32 %v639, 2147483648
      %v695 = vxor.u32 %v641, 2147483648
      %v696 = vxor.u32 %v644, 2147483648
      %v697 = vxor.u32 %v646, 2147483648
      %v698 = vxor.u32 %v649, 2147483648
      %v699 = vxor.u32 %v651, 2147483648
      %v700 = vxor.u32 %v654, 2147483648
      %v701 = vxor.u32 %v656, 2147483648
      %v702 = vxor.u32 %v659, 2147483648
      %v703 = vxor.u32 %v661, 2147483648
      %v704 = vxor.u32 %v664, 2147483648
      %v705 = vxor.u32 %v666, 2147483648
      %v706 = vxor.u32 %v669, 2147483648
      %v707 = vxor.u32 %v671, 2147483648
      %v708 = vxor.u32 %v674, 2147483648
      %v709 = vxor.u32 %v676, 2147483648
      %v710 = vmul.f32 %v678, 1.442695
      %v711 = vpow.pop %v710
      %v712 = vmul.f32 %v679, 1.442695
      %v713 = vpow.pop %v712
      %v714 = vmul.f32 %v680, 1.442695
      %v715 = vpow.pop %v714
      %v716 = vmul.f32 %v681, 1.442695
      %v717 = vpow.pop %v716
      %v718 = vmul.f32 %v682, 1.442695
      %v719 = vpow.pop %v718
      %v720 = vmul.f32 %v683, 1.442695
      %v721 = vpow.pop %v720
      %v722 = vmul.f32 %v684, 1.442695
      %v723 = vpow.pop %v722
      %v724 = vmul.f32 %v685, 1.442695
      %v725 = vpow.pop %v724
      %v726 = vmul.f32 %v686, 1.442695
      %v727 = vpow.pop %v726
      %v728 = vmul.f32 %v687, 1.442695
      %v729 = vpow.pop %v728
      %v730 = vmul.f32 %v688, 1.442695
      %v731 = vpow.pop %v730
      %v732 = vmul.f32 %v689, 1.442695
      %v733 = vpow.pop %v732
      %v734 = vmul.f32 %v690, 1.442695
      %v735 = vpow.pop %v734
      %v736 = vmul.f32 %v691, 1.442695
      %v737 = vpow.pop %v736
      %v738 = vmul.f32 %v692, 1.442695
      %v739 = vpow.pop %v738
      %v740 = vmul.f32 %v693, 1.442695
      %v741 = vpow.pop %v740
      %v742 = vmul.f32 %v694, 1.442695
      %v743 = vpow.pop %v742
      %v744 = vmul.f32 %v695, 1.442695
      %v745 = vpow.pop %v744
      %v746 = vmul.f32 %v696, 1.442695
      %v747 = vpow.pop %v746
      %v748 = vmul.f32 %v697, 1.442695
      %v749 = vpow.pop %v748
      %v750 = vmul.f32 %v698, 1.442695
      %v751 = vpow.pop %v750
      %v752 = vmul.f32 %v699, 1.442695
      %v753 = vpow.pop %v752
      %v754 = vmul.f32 %v700, 1.442695
      %v755 = vpow.pop %v754
      %v756 = vmul.f32 %v701, 1.442695
      %v757 = vpow.pop %v756
      %v758 = vmul.f32 %v702, 1.442695
      %v759 = vpow.pop %v758
      %v760 = vmul.f32 %v703, 1.442695
      %v761 = vpow.pop %v760
      %v762 = vmul.f32 %v704, 1.442695
      %v763 = vpow.pop %v762
      %v764 = vmul.f32 %v705, 1.442695
      %v765 = vpow.pop %v764
      %v766 = vmul.f32 %v706, 1.442695
      %v767 = vpow.pop %v766
      %v768 = vmul.f32 %v707, 1.442695
      %v769 = vpow.pop %v768
      %v770 = vmul.f32 %v708, 1.442695
      %v771 = vpow.pop %v770
      %v772 = vmul.f32 %v709, 1.442695
      %v773 = vpow.pop %v772
      %v774 = vadd.f32 %v711, 1.0
      %v775 = vadd.f32 %v713, 1.0
      %v776 = vadd.f32 %v715, 1.0
      %v777 = vadd.f32 %v717, 1.0
      %v778 = vadd.f32 %v719, 1.0
      %v779 = vadd.f32 %v721, 1.0
      %v780 = vadd.f32 %v723, 1.0
      %v781 = vadd.f32 %v725, 1.0
      %v782 = vadd.f32 %v727, 1.0
      %v783 = vadd.f32 %v729, 1.0
      %v784 = vadd.f32 %v731, 1.0
      %v785 = vadd.f32 %v733, 1.0
      %v786 = vadd.f32 %v735, 1.0
      %v787 = vadd.f32 %v737, 1.0
      %v788 = vadd.f32 %v739, 1.0
      %v789 = vadd.f32 %v741, 1.0
      %v790 = vadd.f32 %v743, 1.0
      %v791 = vadd.f32 %v745, 1.0
      %v792 = vadd.f32 %v747, 1.0
      %v793 = vadd.f32 %v749, 1.0
      %v794 = vadd.f32 %v751, 1.0
      %v795 = vadd.f32 %v753, 1.0
      %v796 = vadd.f32 %v755, 1.0
      %v797 = vadd.f32 %v757, 1.0
      %v798 = vadd.f32 %v759, 1.0
      %v799 = vadd.f32 %v761, 1.0
      %v800 = vadd.f32 %v763, 1.0
      %v801 = vadd.f32 %v765, 1.0
      %v802 = vadd.f32 %v767, 1.0
      %v803 = vadd.f32 %v769, 1.0
      %v804 = vadd.f32 %v771, 1.0
      %v805 = vadd.f32 %v773, 1.0
      %v806 = vrcp.pop %v774
      %v807 = vmul.f32 %v774, %v806
      %v808 = vsub.f32 1.0, %v807
      %v809 = vmul.f32 %v806, %v808
      %v810 = vadd.f32 %v806, %v809
      %vm811 = vweird.f32 %v774
      %vm812 = vweird.f32 %v806
      %vm813 = vmor %vm811, %vm812
      %v814 = vsel %vm813, %v806, %v810
      %v815 = vand.u32 2147483647, %v774
      %vm816 = vcmp.eq.f32.partialorder %v815, 8.507059e+37
      %v817 = vand.u32 %v774, 2147483648
      %v818 = vor.u32 1.1754944e-38, %v817
      %v819 = vsel %vm816, %v818, %v814
      %v820 = vmul.f32 1.0, %v819
      %v821 = vrcp.pop %v775
      %v822 = vmul.f32 %v775, %v821
      %v823 = vsub.f32 1.0, %v822
      %v824 = vmul.f32 %v821, %v823
      %v825 = vadd.f32 %v821, %v824
      %vm826 = vweird.f32 %v775
      %vm827 = vweird.f32 %v821
      %vm828 = vmor %vm826, %vm827
      %v829 = vsel %vm828, %v821, %v825
      %v830 = vand.u32 2147483647, %v775
      %vm831 = vcmp.eq.f32.partialorder %v830, 8.507059e+37
      %v832 = vand.u32 %v775, 2147483648
      %v833 = vor.u32 1.1754944e-38, %v832
      %v834 = vsel %vm831, %v833, %v829
      %v835 = vmul.f32 1.0, %v834
      %v836 = vrcp.pop %v776
      %v837 = vmul.f32 %v776, %v836
      %v838 = vsub.f32 1.0, %v837
      %v839 = vmul.f32 %v836, %v838
      %v840 = vadd.f32 %v836, %v839
      %vm841 = vweird.f32 %v776
      %vm842 = vweird.f32 %v836
      %vm843 = vmor %vm841, %vm842
      %v844 = vsel %vm843, %v836, %v840
      %v845 = vand.u32 2147483647, %v776
      %vm846 = vcmp.eq.f32.partialorder %v845, 8.507059e+37
      %v847 = vand.u32 %v776, 2147483648
      %v848 = vor.u32 1.1754944e-38, %v847
      %v849 = vsel %vm846, %v848, %v844
      %v850 = vmul.f32 1.0, %v849
      %v851 = vrcp.pop %v777
      %v852 = vmul.f32 %v777, %v851
      %v853 = vsub.f32 1.0, %v852
      %v854 = vmul.f32 %v851, %v853
      %v855 = vadd.f32 %v851, %v854
      %vm856 = vweird.f32 %v777
      %vm857 = vweird.f32 %v851
      %vm858 = vmor %vm856, %vm857
      %v859 = vsel %vm858, %v851, %v855
      %v860 = vand.u32 2147483647, %v777
      %vm861 = vcmp.eq.f32.partialorder %v860, 8.507059e+37
      %v862 = vand.u32 %v777, 2147483648
      %v863 = vor.u32 1.1754944e-38, %v862
      %v864 = vsel %vm861, %v863, %v859
      %v865 = vmul.f32 1.0, %v864
      %v866 = vrcp.pop %v778
      %v867 = vmul.f32 %v778, %v866
      %v868 = vsub.f32 1.0, %v867
      %v869 = vmul.f32 %v866, %v868
      %v870 = vadd.f32 %v866, %v869
      %vm871 = vweird.f32 %v778
      %vm872 = vweird.f32 %v866
      %vm873 = vmor %vm871, %vm872
      %v874 = vsel %vm873, %v866, %v870
      %v875 = vand.u32 2147483647, %v778
      %vm876 = vcmp.eq.f32.partialorder %v875, 8.507059e+37
      %v877 = vand.u32 %v778, 2147483648
      %v878 = vor.u32 1.1754944e-38, %v877
      %v879 = vsel %vm876, %v878, %v874
      %v880 = vmul.f32 1.0, %v879
      %v881 = vrcp.pop %v779
      %v882 = vmul.f32 %v779, %v881
      %v883 = vsub.f32 1.0, %v882
      %v884 = vmul.f32 %v881, %v883
      %v885 = vadd.f32 %v881, %v884
      %vm886 = vweird.f32 %v779
      %vm887 = vweird.f32 %v881
      %vm888 = vmor %vm886, %vm887
      %v889 = vsel %vm888, %v881, %v885
      %v890 = vand.u32 2147483647, %v779
      %vm891 = vcmp.eq.f32.partialorder %v890, 8.507059e+37
      %v892 = vand.u32 %v779, 2147483648
      %v893 = vor.u32 1.1754944e-38, %v892
      %v894 = vsel %vm891, %v893, %v889
      %v895 = vmul.f32 1.0, %v894
      %v896 = vrcp.pop %v780
      %v897 = vmul.f32 %v780, %v896
      %v898 = vsub.f32 1.0, %v897
      %v899 = vmul.f32 %v896, %v898
      %v900 = vadd.f32 %v896, %v899
      %vm901 = vweird.f32 %v780
      %vm902 = vweird.f32 %v896
      %vm903 = vmor %vm901, %vm902
      %v904 = vsel %vm903, %v896, %v900
      %v905 = vand.u32 2147483647, %v780
      %vm906 = vcmp.eq.f32.partialorder %v905, 8.507059e+37
      %v907 = vand.u32 %v780, 2147483648
      %v908 = vor.u32 1.1754944e-38, %v907
      %v909 = vsel %vm906, %v908, %v904
      %v910 = vmul.f32 1.0, %v909
      %v911 = vrcp.pop %v781
      %v912 = vmul.f32 %v781, %v911
      %v913 = vsub.f32 1.0, %v912
      %v914 = vmul.f32 %v911, %v913
      %v915 = vadd.f32 %v911, %v914
      %vm916 = vweird.f32 %v781
      %vm917 = vweird.f32 %v911
      %vm918 = vmor %vm916, %vm917
      %v919 = vsel %vm918, %v911, %v915
      %v920 = vand.u32 2147483647, %v781
      %vm921 = vcmp.eq.f32.partialorder %v920, 8.507059e+37
      %v922 = vand.u32 %v781, 2147483648
      %v923 = vor.u32 1.1754944e-38, %v922
      %v924 = vsel %vm921, %v923, %v919
      %v925 = vmul.f32 1.0, %v924
      %v926 = vrcp.pop %v782
      %v927 = vmul.f32 %v782, %v926
      %v928 = vsub.f32 1.0, %v927
      %v929 = vmul.f32 %v926, %v928
      %v930 = vadd.f32 %v926, %v929
      %vm931 = vweird.f32 %v782
      %vm932 = vweird.f32 %v926
      %vm933 = vmor %vm931, %vm932
      %v934 = vsel %vm933, %v926, %v930
      %v935 = vand.u32 2147483647, %v782
      %vm936 = vcmp.eq.f32.partialorder %v935, 8.507059e+37
      %v937 = vand.u32 %v782, 2147483648
      %v938 = vor.u32 1.1754944e-38, %v937
      %v939 = vsel %vm936, %v938, %v934
      %v940 = vmul.f32 1.0, %v939
      %v941 = vrcp.pop %v783
      %v942 = vmul.f32 %v783, %v941
      %v943 = vsub.f32 1.0, %v942
      %v944 = vmul.f32 %v941, %v943
      %v945 = vadd.f32 %v941, %v944
      %vm946 = vweird.f32 %v783
      %vm947 = vweird.f32 %v941
      %vm948 = vmor %vm946, %vm947
      %v949 = vsel %vm948, %v941, %v945
      %v950 = vand.u32 2147483647, %v783
      %vm951 = vcmp.eq.f32.partialorder %v950, 8.507059e+37
      %v952 = vand.u32 %v783, 2147483648
      %v953 = vor.u32 1.1754944e-38, %v952
      %v954 = vsel %vm951, %v953, %v949
      %v955 = vmul.f32 1.0, %v954
      %v956 = vrcp.pop %v784
      %v957 = vmul.f32 %v784, %v956
      %v958 = vsub.f32 1.0, %v957
      %v959 = vmul.f32 %v956, %v958
      %v960 = vadd.f32 %v956, %v959
      %vm961 = vweird.f32 %v784
      %vm962 = vweird.f32 %v956
      %vm963 = vmor %vm961, %vm962
      %v964 = vsel %vm963, %v956, %v960
      %v965 = vand.u32 2147483647, %v784
      %vm966 = vcmp.eq.f32.partialorder %v965, 8.507059e+37
      %v967 = vand.u32 %v784, 2147483648
      %v968 = vor.u32 1.1754944e-38, %v967
      %v969 = vsel %vm966, %v968, %v964
      %v970 = vmul.f32 1.0, %v969
      %v971 = vrcp.pop %v785
      %v972 = vmul.f32 %v785, %v971
      %v973 = vsub.f32 1.0, %v972
      %v974 = vmul.f32 %v971, %v973
      %v975 = vadd.f32 %v971, %v974
      %vm976 = vweird.f32 %v785
      %vm977 = vweird.f32 %v971
      %vm978 = vmor %vm976, %vm977
      %v979 = vsel %vm978, %v971, %v975
      %v980 = vand.u32 2147483647, %v785
      %vm981 = vcmp.eq.f32.partialorder %v980, 8.507059e+37
      %v982 = vand.u32 %v785, 2147483648
      %v983 = vor.u32 1.1754944e-38, %v982
      %v984 = vsel %vm981, %v983, %v979
      %v985 = vmul.f32 1.0, %v984
      %v986 = vrcp.pop %v786
      %v987 = vmul.f32 %v786, %v986
      %v988 = vsub.f32 1.0, %v987
      %v989 = vmul.f32 %v986, %v988
      %v990 = vadd.f32 %v986, %v989
      %vm991 = vweird.f32 %v786
      %vm992 = vweird.f32 %v986
      %vm993 = vmor %vm991, %vm992
      %v994 = vsel %vm993, %v986, %v990
      %v995 = vand.u32 2147483647, %v786
      %vm996 = vcmp.eq.f32.partialorder %v995, 8.507059e+37
      %v997 = vand.u32 %v786, 2147483648
      %v998 = vor.u32 1.1754944e-38, %v997
      %v999 = vsel %vm996, %v998, %v994
      %v1000 = vmul.f32 1.0, %v999
      %v1001 = vrcp.pop %v787
      %v1002 = vmul.f32 %v787, %v1001
      %v1003 = vsub.f32 1.0, %v1002
      %v1004 = vmul.f32 %v1001, %v1003
      %v1005 = vadd.f32 %v1001, %v1004
      %vm1006 = vweird.f32 %v787
      %vm1007 = vweird.f32 %v1001
      %vm1008 = vmor %vm1006, %vm1007
      %v1009 = vsel %vm1008, %v1001, %v1005
      %v1010 = vand.u32 2147483647, %v787
      %vm1011 = vcmp.eq.f32.partialorder %v1010, 8.507059e+37
      %v1012 = vand.u32 %v787, 2147483648
      %v1013 = vor.u32 1.1754944e-38, %v1012
      %v1014 = vsel %vm1011, %v1013, %v1009
      %v1015 = vmul.f32 1.0, %v1014
      %v1016 = vrcp.pop %v788
      %v1017 = vmul.f32 %v788, %v1016
      %v1018 = vsub.f32 1.0, %v1017
      %v1019 = vmul.f32 %v1016, %v1018
      %v1020 = vadd.f32 %v1016, %v1019
      %vm1021 = vweird.f32 %v788
      %vm1022 = vweird.f32 %v1016
      %vm1023 = vmor %vm1021, %vm1022
      %v1024 = vsel %vm1023, %v1016, %v1020
      %v1025 = vand.u32 2147483647, %v788
      %vm1026 = vcmp.eq.f32.partialorder %v1025, 8.507059e+37
      %v1027 = vand.u32 %v788, 2147483648
      %v1028 = vor.u32 1.1754944e-38, %v1027
      %v1029 = vsel %vm1026, %v1028, %v1024
      %v1030 = vmul.f32 1.0, %v1029
      %v1031 = vrcp.pop %v789
      %v1032 = vmul.f32 %v789, %v1031
      %v1033 = vsub.f32 1.0, %v1032
      %v1034 = vmul.f32 %v1031, %v1033
      %v1035 = vadd.f32 %v1031, %v1034
      %vm1036 = vweird.f32 %v789
      %vm1037 = vweird.f32 %v1031
      %vm1038 = vmor %vm1036, %vm1037
      %v1039 = vsel %vm1038, %v1031, %v1035
      %v1040 = vand.u32 2147483647, %v789
      %vm1041 = vcmp.eq.f32.partialorder %v1040, 8.507059e+37
      %v1042 = vand.u32 %v789, 2147483648
      %v1043 = vor.u32 1.1754944e-38, %v1042
      %v1044 = vsel %vm1041, %v1043, %v1039
      %v1045 = vmul.f32 1.0, %v1044
      %v1046 = vrcp.pop %v790
      %v1047 = vmul.f32 %v790, %v1046
      %v1048 = vsub.f32 1.0, %v1047
      %v1049 = vmul.f32 %v1046, %v1048
      %v1050 = vadd.f32 %v1046, %v1049
      %vm1051 = vweird.f32 %v790
      %vm1052 = vweird.f32 %v1046
      %vm1053 = vmor %vm1051, %vm1052
      %v1054 = vsel %vm1053, %v1046, %v1050
      %v1055 = vand.u32 2147483647, %v790
      %vm1056 = vcmp.eq.f32.partialorder %v1055, 8.507059e+37
      %v1057 = vand.u32 %v790, 2147483648
      %v1058 = vor.u32 1.1754944e-38, %v1057
      %v1059 = vsel %vm1056, %v1058, %v1054
      %v1060 = vmul.f32 1.0, %v1059
      %v1061 = vrcp.pop %v791
      %v1062 = vmul.f32 %v791, %v1061
      %v1063 = vsub.f32 1.0, %v1062
      %v1064 = vmul.f32 %v1061, %v1063
      %v1065 = vadd.f32 %v1061, %v1064
      %vm1066 = vweird.f32 %v791
      %vm1067 = vweird.f32 %v1061
      %vm1068 = vmor %vm1066, %vm1067
      %v1069 = vsel %vm1068, %v1061, %v1065
      %v1070 = vand.u32 2147483647, %v791
      %vm1071 = vcmp.eq.f32.partialorder %v1070, 8.507059e+37
      %v1072 = vand.u32 %v791, 2147483648
      %v1073 = vor.u32 1.1754944e-38, %v1072
      %v1074 = vsel %vm1071, %v1073, %v1069
      %v1075 = vmul.f32 1.0, %v1074
      %v1076 = vrcp.pop %v792
      %v1077 = vmul.f32 %v792, %v1076
      %v1078 = vsub.f32 1.0, %v1077
      %v1079 = vmul.f32 %v1076, %v1078
      %v1080 = vadd.f32 %v1076, %v1079
      %vm1081 = vweird.f32 %v792
      %vm1082 = vweird.f32 %v1076
      %vm1083 = vmor %vm1081, %vm1082
      %v1084 = vsel %vm1083, %v1076, %v1080
      %v1085 = vand.u32 2147483647, %v792
      %vm1086 = vcmp.eq.f32.partialorder %v1085, 8.507059e+37
      %v1087 = vand.u32 %v792, 2147483648
      %v1088 = vor.u32 1.1754944e-38, %v1087
      %v1089 = vsel %vm1086, %v1088, %v1084
      %v1090 = vmul.f32 1.0, %v1089
      %v1091 = vrcp.pop %v793
      %v1092 = vmul.f32 %v793, %v1091
      %v1093 = vsub.f32 1.0, %v1092
      %v1094 = vmul.f32 %v1091, %v1093
      %v1095 = vadd.f32 %v1091, %v1094
      %vm1096 = vweird.f32 %v793
      %vm1097 = vweird.f32 %v1091
      %vm1098 = vmor %vm1096, %vm1097
      %v1099 = vsel %vm1098, %v1091, %v1095
      %v1100 = vand.u32 2147483647, %v793
      %vm1101 = vcmp.eq.f32.partialorder %v1100, 8.507059e+37
      %v1102 = vand.u32 %v793, 2147483648
      %v1103 = vor.u32 1.1754944e-38, %v1102
      %v1104 = vsel %vm1101, %v1103, %v1099
      %v1105 = vmul.f32 1.0, %v1104
      %v1106 = vrcp.pop %v794
      %v1107 = vmul.f32 %v794, %v1106
      %v1108 = vsub.f32 1.0, %v1107
      %v1109 = vmul.f32 %v1106, %v1108
      %v1110 = vadd.f32 %v1106, %v1109
      %vm1111 = vweird.f32 %v794
      %vm1112 = vweird.f32 %v1106
      %vm1113 = vmor %vm1111, %vm1112
      %v1114 = vsel %vm1113, %v1106, %v1110
      %v1115 = vand.u32 2147483647, %v794
      %vm1116 = vcmp.eq.f32.partialorder %v1115, 8.507059e+37
      %v1117 = vand.u32 %v794, 2147483648
      %v1118 = vor.u32 1.1754944e-38, %v1117
      %v1119 = vsel %vm1116, %v1118, %v1114
      %v1120 = vmul.f32 1.0, %v1119
      %v1121 = vrcp.pop %v795
      %v1122 = vmul.f32 %v795, %v1121
      %v1123 = vsub.f32 1.0, %v1122
      %v1124 = vmul.f32 %v1121, %v1123
      %v1125 = vadd.f32 %v1121, %v1124
      %vm1126 = vweird.f32 %v795
      %vm1127 = vweird.f32 %v1121
      %vm1128 = vmor %vm1126, %vm1127
      %v1129 = vsel %vm1128, %v1121, %v1125
      %v1130 = vand.u32 2147483647, %v795
      %vm1131 = vcmp.eq.f32.partialorder %v1130, 8.507059e+37
      %v1132 = vand.u32 %v795, 2147483648
      %v1133 = vor.u32 1.1754944e-38, %v1132
      %v1134 = vsel %vm1131, %v1133, %v1129
      %v1135 = vmul.f32 1.0, %v1134
      %v1136 = vrcp.pop %v796
      %v1137 = vmul.f32 %v796, %v1136
      %v1138 = vsub.f32 1.0, %v1137
      %v1139 = vmul.f32 %v1136, %v1138
      %v1140 = vadd.f32 %v1136, %v1139
      %vm1141 = vweird.f32 %v796
      %vm1142 = vweird.f32 %v1136
      %vm1143 = vmor %vm1141, %vm1142
      %v1144 = vsel %vm1143, %v1136, %v1140
      %v1145 = vand.u32 2147483647, %v796
      %vm1146 = vcmp.eq.f32.partialorder %v1145, 8.507059e+37
      %v1147 = vand.u32 %v796, 2147483648
      %v1148 = vor.u32 1.1754944e-38, %v1147
      %v1149 = vsel %vm1146, %v1148, %v1144
      %v1150 = vmul.f32 1.0, %v1149
      %v1151 = vrcp.pop %v797
      %v1152 = vmul.f32 %v797, %v1151
      %v1153 = vsub.f32 1.0, %v1152
      %v1154 = vmul.f32 %v1151, %v1153
      %v1155 = vadd.f32 %v1151, %v1154
      %vm1156 = vweird.f32 %v797
      %vm1157 = vweird.f32 %v1151
      %vm1158 = vmor %vm1156, %vm1157
      %v1159 = vsel %vm1158, %v1151, %v1155
      %v1160 = vand.u32 2147483647, %v797
      %vm1161 = vcmp.eq.f32.partialorder %v1160, 8.507059e+37
      %v1162 = vand.u32 %v797, 2147483648
      %v1163 = vor.u32 1.1754944e-38, %v1162
      %v1164 = vsel %vm1161, %v1163, %v1159
      %v1165 = vmul.f32 1.0, %v1164
      %v1166 = vrcp.pop %v798
      %v1167 = vmul.f32 %v798, %v1166
      %v1168 = vsub.f32 1.0, %v1167
      %v1169 = vmul.f32 %v1166, %v1168
      %v1170 = vadd.f32 %v1166, %v1169
      %vm1171 = vweird.f32 %v798
      %vm1172 = vweird.f32 %v1166
      %vm1173 = vmor %vm1171, %vm1172
      %v1174 = vsel %vm1173, %v1166, %v1170
      %v1175 = vand.u32 2147483647, %v798
      %vm1176 = vcmp.eq.f32.partialorder %v1175, 8.507059e+37
      %v1177 = vand.u32 %v798, 2147483648
      %v1178 = vor.u32 1.1754944e-38, %v1177
      %v1179 = vsel %vm1176, %v1178, %v1174
      %v1180 = vmul.f32 1.0, %v1179
      %v1181 = vrcp.pop %v799
      %v1182 = vmul.f32 %v799, %v1181
      %v1183 = vsub.f32 1.0, %v1182
      %v1184 = vmul.f32 %v1181, %v1183
      %v1185 = vadd.f32 %v1181, %v1184
      %vm1186 = vweird.f32 %v799
      %vm1187 = vweird.f32 %v1181
      %vm1188 = vmor %vm1186, %vm1187
      %v1189 = vsel %vm1188, %v1181, %v1185
      %v1190 = vand.u32 2147483647, %v799
      %vm1191 = vcmp.eq.f32.partialorder %v1190, 8.507059e+37
      %v1192 = vand.u32 %v799, 2147483648
      %v1193 = vor.u32 1.1754944e-38, %v1192
      %v1194 = vsel %vm1191, %v1193, %v1189
      %v1195 = vmul.f32 1.0, %v1194
      %v1196 = vrcp.pop %v800
      %v1197 = vmul.f32 %v800, %v1196
      %v1198 = vsub.f32 1.0, %v1197
      %v1199 = vmul.f32 %v1196, %v1198
      %v1200 = vadd.f32 %v1196, %v1199
      %vm1201 = vweird.f32 %v800
      %vm1202 = vweird.f32 %v1196
      %vm1203 = vmor %vm1201, %vm1202
      %v1204 = vsel %vm1203, %v1196, %v1200
      %v1205 = vand.u32 2147483647, %v800
      %vm1206 = vcmp.eq.f32.partialorder %v1205, 8.507059e+37
      %v1207 = vand.u32 %v800, 2147483648
      %v1208 = vor.u32 1.1754944e-38, %v1207
      %v1209 = vsel %vm1206, %v1208, %v1204
      %v1210 = vmul.f32 1.0, %v1209
      %v1211 = vrcp.pop %v801
      %v1212 = vmul.f32 %v801, %v1211
      %v1213 = vsub.f32 1.0, %v1212
      %v1214 = vmul.f32 %v1211, %v1213
      %v1215 = vadd.f32 %v1211, %v1214
      %vm1216 = vweird.f32 %v801
      %vm1217 = vweird.f32 %v1211
      %vm1218 = vmor %vm1216, %vm1217
      %v1219 = vsel %vm1218, %v1211, %v1215
      %v1220 = vand.u32 2147483647, %v801
      %vm1221 = vcmp.eq.f32.partialorder %v1220, 8.507059e+37
      %v1222 = vand.u32 %v801, 2147483648
      %v1223 = vor.u32 1.1754944e-38, %v1222
      %v1224 = vsel %vm1221, %v1223, %v1219
      %v1225 = vmul.f32 1.0, %v1224
      %v1226 = vrcp.pop %v802
      %v1227 = vmul.f32 %v802, %v1226
      %v1228 = vsub.f32 1.0, %v1227
      %v1229 = vmul.f32 %v1226, %v1228
      %v1230 = vadd.f32 %v1226, %v1229
      %vm1231 = vweird.f32 %v802
      %vm1232 = vweird.f32 %v1226
      %vm1233 = vmor %vm1231, %vm1232
      %v1234 = vsel %vm1233, %v1226, %v1230
      %v1235 = vand.u32 2147483647, %v802
      %vm1236 = vcmp.eq.f32.partialorder %v1235, 8.507059e+37
      %v1237 = vand.u32 %v802, 2147483648
      %v1238 = vor.u32 1.1754944e-38, %v1237
      %v1239 = vsel %vm1236, %v1238, %v1234
      %v1240 = vmul.f32 1.0, %v1239
      %v1241 = vrcp.pop %v803
      %v1242 = vmul.f32 %v803, %v1241
      %v1243 = vsub.f32 1.0, %v1242
      %v1244 = vmul.f32 %v1241, %v1243
      %v1245 = vadd.f32 %v1241, %v1244
      %vm1246 = vweird.f32 %v803
      %vm1247 = vweird.f32 %v1241
      %vm1248 = vmor %vm1246, %vm1247
      %v1249 = vsel %vm1248, %v1241, %v1245
      %v1250 = vand.u32 2147483647, %v803
      %vm1251 = vcmp.eq.f32.partialorder %v1250, 8.507059e+37
      %v1252 = vand.u32 %v803, 2147483648
      %v1253 = vor.u32 1.1754944e-38, %v1252
      %v1254 = vsel %vm1251, %v1253, %v1249
      %v1255 = vmul.f32 1.0, %v1254
      %v1256 = vrcp.pop %v804
      %v1257 = vmul.f32 %v804, %v1256
      %v1258 = vsub.f32 1.0, %v1257
      %v1259 = vmul.f32 %v1256, %v1258
      %v1260 = vadd.f32 %v1256, %v1259
      %vm1261 = vweird.f32 %v804
      %vm1262 = vweird.f32 %v1256
      %vm1263 = vmor %vm1261, %vm1262
      %v1264 = vsel %vm1263, %v1256, %v1260
      %v1265 = vand.u32 2147483647, %v804
      %vm1266 = vcmp.eq.f32.partialorder %v1265, 8.507059e+37
      %v1267 = vand.u32 %v804, 2147483648
      %v1268 = vor.u32 1.1754944e-38, %v1267
      %v1269 = vsel %vm1266, %v1268, %v1264
      %v1270 = vmul.f32 1.0, %v1269
      %v1271 = vrcp.pop %v805
      %v1272 = vmul.f32 %v805, %v1271
      %v1273 = vsub.f32 1.0, %v1272
      %v1274 = vmul.f32 %v1271, %v1273
      %v1275 = vadd.f32 %v1271, %v1274
      %vm1276 = vweird.f32 %v805
      %vm1277 = vweird.f32 %v1271
      %vm1278 = vmor %vm1276, %vm1277
      %v1279 = vsel %vm1278, %v1271, %v1275
      %v1280 = vand.u32 2147483647, %v805
      %vm1281 = vcmp.eq.f32.partialorder %v1280, 8.507059e+37
      %v1282 = vand.u32 %v805, 2147483648
      %v1283 = vor.u32 1.1754944e-38, %v1282
      %v1284 = vsel %vm1281, %v1283, %v1279
      %v1285 = vmul.f32 1.0, %v1284
      %v1286 = vmul.f32 %v599, %v820
      %v1287 = vmul.f32 %v601, %v835
      %v1288 = vmul.f32 %v604, %v850
      %v1289 = vmul.f32 %v606, %v865
      %v1290 = vmul.f32 %v609, %v880
      %v1291 = vmul.f32 %v611, %v895
      %v1292 = vmul.f32 %v614, %v910
      %v1293 = vmul.f32 %v616, %v925
      %v1294 = vmul.f32 %v619, %v940
      %v1295 = vmul.f32 %v621, %v955
      %v1296 = vmul.f32 %v624, %v970
      %v1297 = vmul.f32 %v626, %v985
      %v1298 = vmul.f32 %v629, %v1000
      %v1299 = vmul.f32 %v631, %v1015
      %v1300 = vmul.f32 %v634, %v1030
      %v1301 = vmul.f32 %v636, %v1045
      %v1302 = vmul.f32 %v639, %v1060
      %v1303 = vmul.f32 %v641, %v1075
      %v1304 = vmul.f32 %v644, %v1090
      %v1305 = vmul.f32 %v646, %v1105
      %v1306 = vmul.f32 %v649, %v1120
      %v1307 = vmul.f32 %v651, %v1135
      %v1308 = vmul.f32 %v654, %v1150
      %v1309 = vmul.f32 %v656, %v1165
      %v1310 = vmul.f32 %v659, %v1180
      %v1311 = vmul.f32 %v661, %v1195
      %v1312 = vmul.f32 %v664, %v1210
      %v1313 = vmul.f32 %v666, %v1225
      %v1314 = vmul.f32 %v669, %v1240
      %v1315 = vmul.f32 %v671, %v1255
      %v1316 = vmul.f32 %v674, %v1270
      %v1317 = vmul.f32 %v676, %v1285
      %s1318 = ssub.s32 %s359, 4
      %v1319 = vstv %s1318
      %v1320 = vadd.s32 %v1319, 1
      %v1321 = vadd.s32 %v1319, 2
      %v1322 = vadd.s32 %v1319, 3
      %v1323 = vadd.s32 %v1319, 4
      %v1324 = vadd.s32 %v1319, 5
      %v1325 = vadd.s32 %v1319, 6
      %v1326 = vadd.s32 %v1319, 7
      %v1327 = vadd.s32 %v1319, 8
      %v1328 = vadd.s32 %v1319, 9
      %v1329 = vadd.s32 %v1319, 10
      %v1330 = vadd.s32 %v1319, 11
      %v1331 = vadd.s32 %v1319, 12
      %v1332 = vadd.s32 %v1319, 13
      %v1333 = vadd.s32 %v1319, 14
      %v1334 = vadd.s32 %v1319, 15
      %vm1335 = vcmp.ge.s32.totalorder %v1319, 0
      %vm1336 = vcmp.ge.s32.totalorder %v1320, 0
      %vm1337 = vcmp.ge.s32.totalorder %v1321, 0
      %vm1338 = vcmp.ge.s32.totalorder %v1322, 0
      %vm1339 = vcmp.ge.s32.totalorder %v1323, 0
      %vm1340 = vcmp.ge.s32.totalorder %v1324, 0
      %vm1341 = vcmp.ge.s32.totalorder %v1325, 0
      %vm1342 = vcmp.ge.s32.totalorder %v1326, 0
      %vm1343 = vcmp.ge.s32.totalorder %v1327, 0
      %vm1344 = vcmp.ge.s32.totalorder %v1328, 0
      %vm1345 = vcmp.ge.s32.totalorder %v1329, 0
      %vm1346 = vcmp.ge.s32.totalorder %v1330, 0
      %vm1347 = vcmp.ge.s32.totalorder %v1331, 0
      %vm1348 = vcmp.ge.s32.totalorder %v1332, 0
      %vm1349 = vcmp.ge.s32.totalorder %v1333, 0
      %vm1350 = vcmp.ge.s32.totalorder %v1334, 0
      %vm1351 = vcmp.lt.s32.totalorder %v1319, 16
      %vm1352 = vcmp.lt.s32.totalorder %v1320, 16
      %vm1353 = vcmp.lt.s32.totalorder %v1321, 16
      %vm1354 = vcmp.lt.s32.totalorder %v1322, 16
      %vm1355 = vcmp.lt.s32.totalorder %v1323, 16
      %vm1356 = vcmp.lt.s32.totalorder %v1324, 16
      %vm1357 = vcmp.lt.s32.totalorder %v1325, 16
      %vm1358 = vcmp.lt.s32.totalorder %v1326, 16
      %vm1359 = vcmp.lt.s32.totalorder %v1327, 16
      %vm1360 = vcmp.lt.s32.totalorder %v1328, 16
      %vm1361 = vcmp.lt.s32.totalorder %v1329, 16
      %vm1362 = vcmp.lt.s32.totalorder %v1330, 16
      %vm1363 = vcmp.lt.s32.totalorder %v1331, 16
      %vm1364 = vcmp.lt.s32.totalorder %v1332, 16
      %vm1365 = vcmp.lt.s32.totalorder %v1333, 16
      %vm1366 = vcmp.lt.s32.totalorder %v1334, 16
      %vm1367 = vmand %vm1335, %vm1351
      %vm1368 = vmand %vm1336, %vm1352
      %vm1369 = vmand %vm1337, %vm1353
      %vm1370 = vmand %vm1338, %vm1354
      %vm1371 = vmand %vm1339, %vm1355
      %vm1372 = vmand %vm1340, %vm1356
      %vm1373 = vmand %vm1341, %vm1357
      %vm1374 = vmand %vm1342, %vm1358
      %vm1375 = vmand %vm1343, %vm1359
      %vm1376 = vmand %vm1344, %vm1360
      %vm1377 = vmand %vm1345, %vm1361
      %vm1378 = vmand %vm1346, %vm1362
      %vm1379 = vmand %vm1347, %vm1363
      %vm1380 = vmand %vm1348, %vm1364
      %vm1381 = vmand %vm1349, %vm1365
      %vm1382 = vmand %vm1350, %vm1366
      %v1383 = vsel %vm1367, 1, 0
      %v1384 = vsel %vm1368, 1, 0
      %v1385 = vsel %vm1369, 1, 0
      %v1386 = vsel %vm1370, 1, 0
      %v1387 = vsel %vm1371, 1, 0
      %v1388 = vsel %vm1372, 1, 0
      %v1389 = vsel %vm1373, 1, 0
      %v1390 = vsel %vm1374, 1, 0
      %v1391 = vsel %vm1375, 1, 0
      %v1392 = vsel %vm1376, 1, 0
      %v1393 = vsel %vm1377, 1, 0
      %v1394 = vsel %vm1378, 1, 0
      %v1395 = vsel %vm1379, 1, 0
      %v1396 = vsel %vm1380, 1, 0
      %v1397 = vsel %vm1381, 1, 0
      %v1398 = vsel %vm1382, 1, 0
      %vm1399 = vcmp.eq.s32.totalorder %v1383, 1
      %vm1400 = vcmp.eq.s32.totalorder %v1384, 1
      %vm1401 = vcmp.eq.s32.totalorder %v1385, 1
      %vm1402 = vcmp.eq.s32.totalorder %v1386, 1
      %vm1403 = vcmp.eq.s32.totalorder %v1387, 1
      %vm1404 = vcmp.eq.s32.totalorder %v1388, 1
      %vm1405 = vcmp.eq.s32.totalorder %v1389, 1
      %vm1406 = vcmp.eq.s32.totalorder %v1390, 1
      %vm1407 = vcmp.eq.s32.totalorder %v1391, 1
      %vm1408 = vcmp.eq.s32.totalorder %v1392, 1
      %vm1409 = vcmp.eq.s32.totalorder %v1393, 1
      %vm1410 = vcmp.eq.s32.totalorder %v1394, 1
      %vm1411 = vcmp.eq.s32.totalorder %v1395, 1
      %vm1412 = vcmp.eq.s32.totalorder %v1396, 1
      %vm1413 = vcmp.eq.s32.totalorder %v1397, 1
      %vm1414 = vcmp.eq.s32.totalorder %v1398, 1
      %v1415 = vsel %vm1399, %v1286, 0.0
      %v1416 = vsel %vm1399, %v1287, 0.0
      %v1417 = vsel %vm1400, %v1288, 0.0
      %v1418 = vsel %vm1400, %v1289, 0.0
      %v1419 = vsel %vm1401, %v1290, 0.0
      %v1420 = vsel %vm1401, %v1291, 0.0
      %v1421 = vsel %vm1402, %v1292, 0.0
      %v1422 = vsel %vm1402, %v1293, 0.0
      %v1423 = vsel %vm1403, %v1294, 0.0
      %v1424 = vsel %vm1403, %v1295, 0.0
      %v1425 = vsel %vm1404, %v1296, 0.0
      %v1426 = vsel %vm1404, %v1297, 0.0
      %v1427 = vsel %vm1405, %v1298, 0.0
      %v1428 = vsel %vm1405, %v1299, 0.0
      %v1429 = vsel %vm1406, %v1300, 0.0
      %v1430 = vsel %vm1406, %v1301, 0.0
      %v1431 = vsel %vm1407, %v1302, 0.0
      %v1432 = vsel %vm1407, %v1303, 0.0
      %v1433 = vsel %vm1408, %v1304, 0.0
      %v1434 = vsel %vm1408, %v1305, 0.0
      %v1435 = vsel %vm1409, %v1306, 0.0
      %v1436 = vsel %vm1409, %v1307, 0.0
      %v1437 = vsel %vm1410, %v1308, 0.0
      %v1438 = vsel %vm1410, %v1309, 0.0
      %v1439 = vsel %vm1411, %v1310, 0.0
      %v1440 = vsel %vm1411, %v1311, 0.0
      %v1441 = vsel %vm1412, %v1312, 0.0
      %v1442 = vsel %vm1412, %v1313, 0.0
      %v1443 = vsel %vm1413, %v1314, 0.0
      %v1444 = vsel %vm1413, %v1315, 0.0
      %v1445 = vsel %vm1414, %v1316, 0.0
      %v1446 = vsel %vm1414, %v1317, 0.0
      %1447 = vst [vmem:[#allocation2 + $0x8] sm:$0xff] %v1415
      %1448 = vst [vmem:[#allocation2 + $0x10] sm:$0xff] %v1416
      %1449 = vst [vmem:[#allocation2 + $0x28] sm:$0xff] %v1417
      %1450 = vst [vmem:[#allocation2 + $0x30] sm:$0xff] %v1418
      %1451 = vst [vmem:[#allocation2 + $0x48] sm:$0xff] %v1419
      %1452 = vst [vmem:[#allocation2 + $0x50] sm:$0xff] %v1420
      %1453 = vst [vmem:[#allocation2 + $0x68] sm:$0xff] %v1421
      %1454 = vst [vmem:[#allocation2 + $0x70] sm:$0xff] %v1422
      %1455 = vst [vmem:[#allocation2 + $0x88] sm:$0xff] %v1423
      %1456 = vst [vmem:[#allocation2 + $0x90] sm:$0xff] %v1424
      %1457 = vst [vmem:[#allocation2 + $0xa8] sm:$0xff] %v1425
      %1458 = vst [vmem:[#allocation2 + $0xb0] sm:$0xff] %v1426
      %1459 = vst [vmem:[#allocation2 + $0xc8] sm:$0xff] %v1427
      %1460 = vst [vmem:[#allocation2 + $0xd0] sm:$0xff] %v1428
      %1461 = vst [vmem:[#allocation2 + $0xe8] sm:$0xff] %v1429
      %1462 = vst [vmem:[#allocation2 + $0xf0] sm:$0xff] %v1430
      %1463 = vst [vmem:[#allocation2 + $0x108] sm:$0xff] %v1431
      %1464 = vst [vmem:[#allocation2 + $0x110] sm:$0xff] %v1432
      %1465 = vst [vmem:[#allocation2 + $0x128] sm:$0xff] %v1433
      %1466 = vst [vmem:[#allocation2 + $0x130] sm:$0xff] %v1434
      %1467 = vst [vmem:[#allocation2 + $0x148] sm:$0xff] %v1435
      %1468 = vst [vmem:[#allocation2 + $0x150] sm:$0xff] %v1436
      %1469 = vst [vmem:[#allocation2 + $0x168] sm:$0xff] %v1437
      %1470 = vst [vmem:[#allocation2 + $0x170] sm:$0xff] %v1438
      %1471 = vst [vmem:[#allocation2 + $0x188] sm:$0xff] %v1439
      %1472 = vst [vmem:[#allocation2 + $0x190] sm:$0xff] %v1440
      %1473 = vst [vmem:[#allocation2 + $0x1a8] sm:$0xff] %v1441
      %1474 = vst [vmem:[#allocation2 + $0x1b0] sm:$0xff] %v1442
      %1475 = vst [vmem:[#allocation2 + $0x1c8] sm:$0xff] %v1443
      %1476 = vst [vmem:[#allocation2 + $0x1d0] sm:$0xff] %v1444
      %1477 = vst [vmem:[#allocation2 + $0x1e8] sm:$0xff] %v1445
      %1478 = vst [vmem:[#allocation2 + $0x1f0] sm:$0xff] %v1446
      %v1479 = vld [vmem:[#allocation2] sm:$0xff]
      %v1480 = vld [vmem:[#allocation2 + $0x8] sm:$0xff]
      %v1481 = vld [vmem:[#allocation2 + $0x10] sm:$0xff]
      %v1482 = vld [vmem:[#allocation2 + $0x18] sm:$0xff]
      %v1483 = vld [vmem:[#allocation2 + $0x20] sm:$0xff]
      %v1484 = vld [vmem:[#allocation2 + $0x28] sm:$0xff]
      %v1485 = vld [vmem:[#allocation2 + $0x30] sm:$0xff]
      %v1486 = vld [vmem:[#allocation2 + $0x38] sm:$0xff]
      %v1487 = vld [vmem:[#allocation2 + $0x40] sm:$0xff]
      %v1488 = vld [vmem:[#allocation2 + $0x48] sm:$0xff]
      %v1489 = vld [vmem:[#allocation2 + $0x50] sm:$0xff]
      %v1490 = vld [vmem:[#allocation2 + $0x58] sm:$0xff]
      %v1491 = vld [vmem:[#allocation2 + $0x60] sm:$0xff]
      %v1492 = vld [vmem:[#allocation2 + $0x68] sm:$0xff]
      %v1493 = vld [vmem:[#allocation2 + $0x70] sm:$0xff]
      %v1494 = vld [vmem:[#allocation2 + $0x78] sm:$0xff]
      %v1495 = vld [vmem:[#allocation2 + $0x80] sm:$0xff]
      %v1496 = vld [vmem:[#allocation2 + $0x88] sm:$0xff]
      %v1497 = vld [vmem:[#allocation2 + $0x90] sm:$0xff]
      %v1498 = vld [vmem:[#allocation2 + $0x98] sm:$0xff]
      %v1499 = vld [vmem:[#allocation2 + $0xa0] sm:$0xff]
      %v1500 = vld [vmem:[#allocation2 + $0xa8] sm:$0xff]
      %v1501 = vld [vmem:[#allocation2 + $0xb0] sm:$0xff]
      %v1502 = vld [vmem:[#allocation2 + $0xb8] sm:$0xff]
      %v1503 = vld [vmem:[#allocation2 + $0xc0] sm:$0xff]
      %v1504 = vld [vmem:[#allocation2 + $0xc8] sm:$0xff]
      %v1505 = vld [vmem:[#allocation2 + $0xd0] sm:$0xff]
      %v1506 = vld [vmem:[#allocation2 + $0xd8] sm:$0xff]
      %v1507 = vld [vmem:[#allocation2 + $0xe0] sm:$0xff]
      %v1508 = vld [vmem:[#allocation2 + $0xe8] sm:$0xff]
      %v1509 = vld [vmem:[#allocation2 + $0xf0] sm:$0xff]
      %v1510 = vld [vmem:[#allocation2 + $0xf8] sm:$0xff]
      %v1511 = vld [vmem:[#allocation2 + $0x100] sm:$0xff]
      %v1512 = vld [vmem:[#allocation2 + $0x108] sm:$0xff]
      %v1513 = vld [vmem:[#allocation2 + $0x110] sm:$0xff]
      %v1514 = vld [vmem:[#allocation2 + $0x118] sm:$0xff]
      %v1515 = vld [vmem:[#allocation2 + $0x120] sm:$0xff]
      %v1516 = vld [vmem:[#allocation2 + $0x128] sm:$0xff]
      %v1517 = vld [vmem:[#allocation2 + $0x130] sm:$0xff]
      %v1518 = vld [vmem:[#allocation2 + $0x138] sm:$0xff]
      %v1519 = vld [vmem:[#allocation2 + $0x140] sm:$0xff]
      %v1520 = vld [vmem:[#allocation2 + $0x148] sm:$0xff]
      %v1521 = vld [vmem:[#allocation2 + $0x150] sm:$0xff]
      %v1522 = vld [vmem:[#allocation2 + $0x158] sm:$0xff]
      %v1523 = vld [vmem:[#allocation2 + $0x160] sm:$0xff]
      %v1524 = vld [vmem:[#allocation2 + $0x168] sm:$0xff]
      %v1525 = vld [vmem:[#allocation2 + $0x170] sm:$0xff]
      %v1526 = vld [vmem:[#allocation2 + $0x178] sm:$0xff]
      %v1527 = vrot.slane %v1479, 6
      %v1528 = vrot.slane %v1483, 6
      %v1529 = vrot.slane %v1487, 6
      %v1530 = vrot.slane %v1491, 6
      %v1531 = vrot.slane %v1495, 6
      %v1532 = vrot.slane %v1499, 6
      %v1533 = vrot.slane %v1503, 6
      %v1534 = vrot.slane %v1507, 6
      %v1535 = vrot.slane %v1511, 6
      %v1536 = vrot.slane %v1515, 6
      %v1537 = vrot.slane %v1519, 6
      %v1538 = vrot.slane %v1523, 6
      %v1539 = vrot.slane %v1480, 6
      %v1540 = vrot.slane %v1484, 6
      %v1541 = vrot.slane %v1488, 6
      %v1542 = vrot.slane %v1492, 6
      %v1543 = vrot.slane %v1496, 6
      %v1544 = vrot.slane %v1500, 6
      %v1545 = vrot.slane %v1504, 6
      %v1546 = vrot.slane %v1508, 6
      %v1547 = vrot.slane %v1512, 6
      %v1548 = vrot.slane %v1516, 6
      %v1549 = vrot.slane %v1520, 6
      %v1550 = vrot.slane %v1524, 6
      %v1551 = vrot.slane %v1481, 6
      %v1552 = vrot.slane %v1485, 6
      %v1553 = vrot.slane %v1489, 6
      %v1554 = vrot.slane %v1493, 6
      %v1555 = vrot.slane %v1497, 6
      %v1556 = vrot.slane %v1501, 6
      %v1557 = vrot.slane %v1505, 6
      %v1558 = vrot.slane %v1509, 6
      %v1559 = vrot.slane %v1513, 6
      %v1560 = vrot.slane %v1517, 6
      %v1561 = vrot.slane %v1521, 6
      %v1562 = vrot.slane %v1525, 6
      %v1563 = vlaneseq
      %v1564 = vshrl.u32 %v1563, 7
      %vm1565 = vcmp.lt.s32.totalorder %v1564, 2
      %v1566 = vsel %vm1565, %v1539, %v1551
      %v1567 = vsel %vm1565, %v1540, %v1552
      %v1568 = vsel %vm1565, %v1541, %v1553
      %v1569 = vsel %vm1565, %v1542, %v1554
      %v1570 = vsel %vm1565, %v1543, %v1555
      %v1571 = vsel %vm1565, %v1544, %v1556
      %v1572 = vsel %vm1565, %v1545, %v1557
      %v1573 = vsel %vm1565, %v1546, %v1558
      %v1574 = vsel %vm1565, %v1547, %v1559
      %v1575 = vsel %vm1565, %v1548, %v1560
      %v1576 = vsel %vm1565, %v1549, %v1561
      %v1577 = vsel %vm1565, %v1550, %v1562
      %v1578 = vsel %vm1565, %v1527, %v1539
      %v1579 = vsel %vm1565, %v1528, %v1540
      %v1580 = vsel %vm1565, %v1529, %v1541
      %v1581 = vsel %vm1565, %v1530, %v1542
      %v1582 = vsel %vm1565, %v1531, %v1543
      %v1583 = vsel %vm1565, %v1532, %v1544
      %v1584 = vsel %vm1565, %v1533, %v1545
      %v1585 = vsel %vm1565, %v1534, %v1546
      %v1586 = vsel %vm1565, %v1535, %v1547
      %v1587 = vsel %vm1565, %v1536, %v1548
      %v1588 = vsel %vm1565, %v1537, %v1549
      %v1589 = vsel %vm1565, %v1538, %v1550
      %v1590 = vld [vmem:[%s3] sm:$0x1]
      %v1591 = vperm.slane %v1590, 0
      %v1592 = vmul.f32 %v1578, %v1591
      %v1593 = vmul.f32 %v1566, %v1591
      %v1594 = vmul.f32 %v1579, %v1591
      %v1595 = vmul.f32 %v1567, %v1591
      %v1596 = vmul.f32 %v1580, %v1591
      %v1597 = vmul.f32 %v1568, %v1591
      %v1598 = vmul.f32 %v1581, %v1591
      %v1599 = vmul.f32 %v1569, %v1591
      %v1600 = vmul.f32 %v1582, %v1591
      %v1601 = vmul.f32 %v1570, %v1591
      %v1602 = vmul.f32 %v1583, %v1591
      %v1603 = vmul.f32 %v1571, %v1591
      %v1604 = vmul.f32 %v1584, %v1591
      %v1605 = vmul.f32 %v1572, %v1591
      %v1606 = vmul.f32 %v1585, %v1591
      %v1607 = vmul.f32 %v1573, %v1591
      %v1608 = vmul.f32 %v1586, %v1591
      %v1609 = vmul.f32 %v1574, %v1591
      %v1610 = vmul.f32 %v1587, %v1591
      %v1611 = vmul.f32 %v1575, %v1591
      %v1612 = vmul.f32 %v1588, %v1591
      %v1613 = vmul.f32 %v1576, %v1591
      %v1614 = vmul.f32 %v1589, %v1591
      %v1615 = vmul.f32 %v1577, %v1591
      %v1616 = vrot.slane %v1479, 7
      %v1617 = vrot.slane %v1483, 7
      %v1618 = vrot.slane %v1487, 7
      %v1619 = vrot.slane %v1491, 7
      %v1620 = vrot.slane %v1495, 7
      %v1621 = vrot.slane %v1499, 7
      %v1622 = vrot.slane %v1503, 7
      %v1623 = vrot.slane %v1507, 7
      %v1624 = vrot.slane %v1511, 7
      %v1625 = vrot.slane %v1515, 7
      %v1626 = vrot.slane %v1519, 7
      %v1627 = vrot.slane %v1523, 7
      %v1628 = vrot.slane %v1480, 7
      %v1629 = vrot.slane %v1484, 7
      %v1630 = vrot.slane %v1488, 7
      %v1631 = vrot.slane %v1492, 7
      %v1632 = vrot.slane %v1496, 7
      %v1633 = vrot.slane %v1500, 7
      %v1634 = vrot.slane %v1504, 7
      %v1635 = vrot.slane %v1508, 7
      %v1636 = vrot.slane %v1512, 7
      %v1637 = vrot.slane %v1516, 7
      %v1638 = vrot.slane %v1520, 7
      %v1639 = vrot.slane %v1524, 7
      %v1640 = vrot.slane %v1481, 7
      %v1641 = vrot.slane %v1485, 7
      %v1642 = vrot.slane %v1489, 7
      %v1643 = vrot.slane %v1493, 7
      %v1644 = vrot.slane %v1497, 7
      %v1645 = vrot.slane %v1501, 7
      %v1646 = vrot.slane %v1505, 7
      %v1647 = vrot.slane %v1509, 7
      %v1648 = vrot.slane %v1513, 7
      %v1649 = vrot.slane %v1517, 7
      %v1650 = vrot.slane %v1521, 7
      %v1651 = vrot.slane %v1525, 7
      %vm1652 = vcmp.lt.s32.totalorder %v1564, 1
      %v1653 = vsel %vm1652, %v1628, %v1640
      %v1654 = vsel %vm1652, %v1629, %v1641
      %v1655 = vsel %vm1652, %v1630, %v1642
      %v1656 = vsel %vm1652, %v1631, %v1643
      %v1657 = vsel %vm1652, %v1632, %v1644
      %v1658 = vsel %vm1652, %v1633, %v1645
      %v1659 = vsel %vm1652, %v1634, %v1646
      %v1660 = vsel %vm1652, %v1635, %v1647
      %v1661 = vsel %vm1652, %v1636, %v1648
      %v1662 = vsel %vm1652, %v1637, %v1649
      %v1663 = vsel %vm1652, %v1638, %v1650
      %v1664 = vsel %vm1652, %v1639, %v1651
      %v1665 = vsel %vm1652, %v1616, %v1628
      %v1666 = vsel %vm1652, %v1617, %v1629
      %v1667 = vsel %vm1652, %v1618, %v1630
      %v1668 = vsel %vm1652, %v1619, %v1631
      %v1669 = vsel %vm1652, %v1620, %v1632
      %v1670 = vsel %vm1652, %v1621, %v1633
      %v1671 = vsel %vm1652, %v1622, %v1634
      %v1672 = vsel %vm1652, %v1623, %v1635
      %v1673 = vsel %vm1652, %v1624, %v1636
      %v1674 = vsel %vm1652, %v1625, %v1637
      %v1675 = vsel %vm1652, %v1626, %v1638
      %v1676 = vsel %vm1652, %v1627, %v1639
      %v1677 = vld [vmem:[%s3 + $0x1] sm:$0x1]
      %v1678 = vperm.slane %v1677, 0
      %v1679 = vmul.f32 %v1665, %v1678
      %v1680 = vmul.f32 %v1653, %v1678
      %v1681 = vmul.f32 %v1666, %v1678
      %v1682 = vmul.f32 %v1654, %v1678
      %v1683 = vmul.f32 %v1667, %v1678
      %v1684 = vmul.f32 %v1655, %v1678
      %v1685 = vmul.f32 %v1668, %v1678
      %v1686 = vmul.f32 %v1656, %v1678
      %v1687 = vmul.f32 %v1669, %v1678
      %v1688 = vmul.f32 %v1657, %v1678
      %v1689 = vmul.f32 %v1670, %v1678
      %v1690 = vmul.f32 %v1658, %v1678
      %v1691 = vmul.f32 %v1671, %v1678
      %v1692 = vmul.f32 %v1659, %v1678
      %v1693 = vmul.f32 %v1672, %v1678
      %v1694 = vmul.f32 %v1660, %v1678
      %v1695 = vmul.f32 %v1673, %v1678
      %v1696 = vmul.f32 %v1661, %v1678
      %v1697 = vmul.f32 %v1674, %v1678
      %v1698 = vmul.f32 %v1662, %v1678
      %v1699 = vmul.f32 %v1675, %v1678
      %v1700 = vmul.f32 %v1663, %v1678
      %v1701 = vmul.f32 %v1676, %v1678
      %v1702 = vmul.f32 %v1664, %v1678
      %v1703 = vld [vmem:[%s3 + $0x2] sm:$0x1]
      %v1704 = vperm.slane %v1703, 0
      %v1705 = vmul.f32 %v1480, %v1704
      %v1706 = vmul.f32 %v1481, %v1704
      %v1707 = vmul.f32 %v1484, %v1704
      %v1708 = vmul.f32 %v1485, %v1704
      %v1709 = vmul.f32 %v1488, %v1704
      %v1710 = vmul.f32 %v1489, %v1704
      %v1711 = vmul.f32 %v1492, %v1704
      %v1712 = vmul.f32 %v1493, %v1704
      %v1713 = vmul.f32 %v1496, %v1704
      %v1714 = vmul.f32 %v1497, %v1704
      %v1715 = vmul.f32 %v1500, %v1704
      %v1716 = vmul.f32 %v1501, %v1704
      %v1717 = vmul.f32 %v1504, %v1704
      %v1718 = vmul.f32 %v1505, %v1704
      %v1719 = vmul.f32 %v1508, %v1704
      %v1720 = vmul.f32 %v1509, %v1704
      %v1721 = vmul.f32 %v1512, %v1704
      %v1722 = vmul.f32 %v1513, %v1704
      %v1723 = vmul.f32 %v1516, %v1704
      %v1724 = vmul.f32 %v1517, %v1704
      %v1725 = vmul.f32 %v1520, %v1704
      %v1726 = vmul.f32 %v1521, %v1704
      %v1727 = vmul.f32 %v1524, %v1704
      %v1728 = vmul.f32 %v1525, %v1704
      %v1729 = vrot.slane %v1480, 1
      %v1730 = vrot.slane %v1484, 1
      %v1731 = vrot.slane %v1488, 1
      %v1732 = vrot.slane %v1492, 1
      %v1733 = vrot.slane %v1496, 1
      %v1734 = vrot.slane %v1500, 1
      %v1735 = vrot.slane %v1504, 1
      %v1736 = vrot.slane %v1508, 1
      %v1737 = vrot.slane %v1512, 1
      %v1738 = vrot.slane %v1516, 1
      %v1739 = vrot.slane %v1520, 1
      %v1740 = vrot.slane %v1524, 1
      %v1741 = vrot.slane %v1481, 1
      %v1742 = vrot.slane %v1485, 1
      %v1743 = vrot.slane %v1489, 1
      %v1744 = vrot.slane %v1493, 1
      %v1745 = vrot.slane %v1497, 1
      %v1746 = vrot.slane %v1501, 1
      %v1747 = vrot.slane %v1505, 1
      %v1748 = vrot.slane %v1509, 1
      %v1749 = vrot.slane %v1513, 1
      %v1750 = vrot.slane %v1517, 1
      %v1751 = vrot.slane %v1521, 1
      %v1752 = vrot.slane %v1525, 1
      %v1753 = vrot.slane %v1482, 1
      %v1754 = vrot.slane %v1486, 1
      %v1755 = vrot.slane %v1490, 1
      %v1756 = vrot.slane %v1494, 1
      %v1757 = vrot.slane %v1498, 1
      %v1758 = vrot.slane %v1502, 1
      %v1759 = vrot.slane %v1506, 1
      %v1760 = vrot.slane %v1510, 1
      %v1761 = vrot.slane %v1514, 1
      %v1762 = vrot.slane %v1518, 1
      %v1763 = vrot.slane %v1522, 1
      %v1764 = vrot.slane %v1526, 1
      %vm1765 = vcmp.lt.s32.totalorder %v1564, 7
      %v1766 = vsel %vm1765, %v1741, %v1753
      %v1767 = vsel %vm1765, %v1742, %v1754
      %v1768 = vsel %vm1765, %v1743, %v1755
      %v1769 = vsel %vm1765, %v1744, %v1756
      %v1770 = vsel %vm1765, %v1745, %v1757
      %v1771 = vsel %vm1765, %v1746, %v1758
      %v1772 = vsel %vm1765, %v1747, %v1759
      %v1773 = vsel %vm1765, %v1748, %v1760
      %v1774 = vsel %vm1765, %v1749, %v1761
      %v1775 = vsel %vm1765, %v1750, %v1762
      %v1776 = vsel %vm1765, %v1751, %v1763
      %v1777 = vsel %vm1765, %v1752, %v1764
      %v1778 = vsel %vm1765, %v1729, %v1741
      %v1779 = vsel %vm1765, %v1730, %v1742
      %v1780 = vsel %vm1765, %v1731, %v1743
      %v1781 = vsel %vm1765, %v1732, %v1744
      %v1782 = vsel %vm1765, %v1733, %v1745
      %v1783 = vsel %vm1765, %v1734, %v1746
      %v1784 = vsel %vm1765, %v1735, %v1747
      %v1785 = vsel %vm1765, %v1736, %v1748
      %v1786 = vsel %vm1765, %v1737, %v1749
      %v1787 = vsel %vm1765, %v1738, %v1750
      %v1788 = vsel %vm1765, %v1739, %v1751
      %v1789 = vsel %vm1765, %v1740, %v1752
      %v1790 = vld [vmem:[%s3 + $0x3] sm:$0x1]
      %v1791 = vperm.slane %v1790, 0
      %v1792 = vmul.f32 %v1778, %v1791
      %v1793 = vmul.f32 %v1766, %v1791
      %v1794 = vmul.f32 %v1779, %v1791
      %v1795 = vmul.f32 %v1767, %v1791
      %v1796 = vmul.f32 %v1780, %v1791
      %v1797 = vmul.f32 %v1768, %v1791
      %v1798 = vmul.f32 %v1781, %v1791
      %v1799 = vmul.f32 %v1769, %v1791
      %v1800 = vmul.f32 %v1782, %v1791
      %v1801 = vmul.f32 %v1770, %v1791
      %v1802 = vmul.f32 %v1783, %v1791
      %v1803 = vmul.f32 %v1771, %v1791
      %v1804 = vmul.f32 %v1784, %v1791
      %v1805 = vmul.f32 %v1772, %v1791
      %v1806 = vmul.f32 %v1785, %v1791
      %v1807 = vmul.f32 %v1773, %v1791
      %v1808 = vmul.f32 %v1786, %v1791
      %v1809 = vmul.f32 %v1774, %v1791
      %v1810 = vmul.f32 %v1787, %v1791
      %v1811 = vmul.f32 %v1775, %v1791
      %v1812 = vmul.f32 %v1788, %v1791
      %v1813 = vmul.f32 %v1776, %v1791
      %v1814 = vmul.f32 %v1789, %v1791
      %v1815 = vmul.f32 %v1777, %v1791
      %v1816 = vrot.slane %v1480, 2
      %v1817 = vrot.slane %v1484, 2
      %v1818 = vrot.slane %v1488, 2
      %v1819 = vrot.slane %v1492, 2
      %v1820 = vrot.slane %v1496, 2
      %v1821 = vrot.slane %v1500, 2
      %v1822 = vrot.slane %v1504, 2
      %v1823 = vrot.slane %v1508, 2
      %v1824 = vrot.slane %v1512, 2
      %v1825 = vrot.slane %v1516, 2
      %v1826 = vrot.slane %v1520, 2
      %v1827 = vrot.slane %v1524, 2
      %v1828 = vrot.slane %v1481, 2
      %v1829 = vrot.slane %v1485, 2
      %v1830 = vrot.slane %v1489, 2
      %v1831 = vrot.slane %v1493, 2
      %v1832 = vrot.slane %v1497, 2
      %v1833 = vrot.slane %v1501, 2
      %v1834 = vrot.slane %v1505, 2
      %v1835 = vrot.slane %v1509, 2
      %v1836 = vrot.slane %v1513, 2
      %v1837 = vrot.slane %v1517, 2
      %v1838 = vrot.slane %v1521, 2
      %v1839 = vrot.slane %v1525, 2
      %v1840 = vrot.slane %v1482, 2
      %v1841 = vrot.slane %v1486, 2
      %v1842 = vrot.slane %v1490, 2
      %v1843 = vrot.slane %v1494, 2
      %v1844 = vrot.slane %v1498, 2
      %v1845 = vrot.slane %v1502, 2
      %v1846 = vrot.slane %v1506, 2
      %v1847 = vrot.slane %v1510, 2
      %v1848 = vrot.slane %v1514, 2
      %v1849 = vrot.slane %v1518, 2
      %v1850 = vrot.slane %v1522, 2
      %v1851 = vrot.slane %v1526, 2
      %vm1852 = vcmp.lt.s32.totalorder %v1564, 6
      %v1853 = vsel %vm1852, %v1828, %v1840
      %v1854 = vsel %vm1852, %v1829, %v1841
      %v1855 = vsel %vm1852, %v1830, %v1842
      %v1856 = vsel %vm1852, %v1831, %v1843
      %v1857 = vsel %vm1852, %v1832, %v1844
      %v1858 = vsel %vm1852, %v1833, %v1845
      %v1859 = vsel %vm1852, %v1834, %v1846
      %v1860 = vsel %vm1852, %v1835, %v1847
      %v1861 = vsel %vm1852, %v1836, %v1848
      %v1862 = vsel %vm1852, %v1837, %v1849
      %v1863 = vsel %vm1852, %v1838, %v1850
      %v1864 = vsel %vm1852, %v1839, %v1851
      %v1865 = vsel %vm1852, %v1816, %v1828
      %v1866 = vsel %vm1852, %v1817, %v1829
      %v1867 = vsel %vm1852, %v1818, %v1830
      %v1868 = vsel %vm1852, %v1819, %v1831
      %v1869 = vsel %vm1852, %v1820, %v1832
      %v1870 = vsel %vm1852, %v1821, %v1833
      %v1871 = vsel %vm1852, %v1822, %v1834
      %v1872 = vsel %vm1852, %v1823, %v1835
      %v1873 = vsel %vm1852, %v1824, %v1836
      %v1874 = vsel %vm1852, %v1825, %v1837
      %v1875 = vsel %vm1852, %v1826, %v1838
      %v1876 = vsel %vm1852, %v1827, %v1839
      %v1877 = vld [vmem:[%s3 + $0x4] sm:$0x1]
      %v1878 = vperm.slane %v1877, 0
      %v1879 = vmul.f32 %v1865, %v1878
      %v1880 = vmul.f32 %v1853, %v1878
      %v1881 = vmul.f32 %v1866, %v1878
      %v1882 = vmul.f32 %v1854, %v1878
      %v1883 = vmul.f32 %v1867, %v1878
      %v1884 = vmul.f32 %v1855, %v1878
      %v1885 = vmul.f32 %v1868, %v1878
      %v1886 = vmul.f32 %v1856, %v1878
      %v1887 = vmul.f32 %v1869, %v1878
      %v1888 = vmul.f32 %v1857, %v1878
      %v1889 = vmul.f32 %v1870, %v1878
      %v1890 = vmul.f32 %v1858, %v1878
      %v1891 = vmul.f32 %v1871, %v1878
      %v1892 = vmul.f32 %v1859, %v1878
      %v1893 = vmul.f32 %v1872, %v1878
      %v1894 = vmul.f32 %v1860, %v1878
      %v1895 = vmul.f32 %v1873, %v1878
      %v1896 = vmul.f32 %v1861, %v1878
      %v1897 = vmul.f32 %v1874, %v1878
      %v1898 = vmul.f32 %v1862, %v1878
      %v1899 = vmul.f32 %v1875, %v1878
      %v1900 = vmul.f32 %v1863, %v1878
      %v1901 = vmul.f32 %v1876, %v1878
      %v1902 = vmul.f32 %v1864, %v1878
      %v1903 = vadd.f32 %v1592, %v1679
      %v1904 = vadd.f32 %v1593, %v1680
      %v1905 = vadd.f32 %v1594, %v1681
      %v1906 = vadd.f32 %v1595, %v1682
      %v1907 = vadd.f32 %v1596, %v1683
      %v1908 = vadd.f32 %v1597, %v1684
      %v1909 = vadd.f32 %v1598, %v1685
      %v1910 = vadd.f32 %v1599, %v1686
      %v1911 = vadd.f32 %v1600, %v1687
      %v1912 = vadd.f32 %v1601, %v1688
      %v1913 = vadd.f32 %v1602, %v1689
      %v1914 = vadd.f32 %v1603, %v1690
      %v1915 = vadd.f32 %v1604, %v1691
      %v1916 = vadd.f32 %v1605, %v1692
      %v1917 = vadd.f32 %v1606, %v1693
      %v1918 = vadd.f32 %v1607, %v1694
      %v1919 = vadd.f32 %v1608, %v1695
      %v1920 = vadd.f32 %v1609, %v1696
      %v1921 = vadd.f32 %v1610, %v1697
      %v1922 = vadd.f32 %v1611, %v1698
      %v1923 = vadd.f32 %v1612, %v1699
      %v1924 = vadd.f32 %v1613, %v1700
      %v1925 = vadd.f32 %v1614, %v1701
      %v1926 = vadd.f32 %v1615, %v1702
      %v1927 = vadd.f32 %v1705, %v1792
      %v1928 = vadd.f32 %v1706, %v1793
      %v1929 = vadd.f32 %v1707, %v1794
      %v1930 = vadd.f32 %v1708, %v1795
      %v1931 = vadd.f32 %v1709, %v1796
      %v1932 = vadd.f32 %v1710, %v1797
      %v1933 = vadd.f32 %v1711, %v1798
      %v1934 = vadd.f32 %v1712, %v1799
      %v1935 = vadd.f32 %v1713, %v1800
      %v1936 = vadd.f32 %v1714, %v1801
      %v1937 = vadd.f32 %v1715, %v1802
      %v1938 = vadd.f32 %v1716, %v1803
      %v1939 = vadd.f32 %v1717, %v1804
      %v1940 = vadd.f32 %v1718, %v1805
      %v1941 = vadd.f32 %v1719, %v1806
      %v1942 = vadd.f32 %v1720, %v1807
      %v1943 = vadd.f32 %v1721, %v1808
      %v1944 = vadd.f32 %v1722, %v1809
      %v1945 = vadd.f32 %v1723, %v1810
      %v1946 = vadd.f32 %v1724, %v1811
      %v1947 = vadd.f32 %v1725, %v1812
      %v1948 = vadd.f32 %v1726, %v1813
      %v1949 = vadd.f32 %v1727, %v1814
      %v1950 = vadd.f32 %v1728, %v1815
      %v1951 = vadd.f32 %v1903, %v1927
      %v1952 = vadd.f32 %v1904, %v1928
      %v1953 = vadd.f32 %v1905, %v1929
      %v1954 = vadd.f32 %v1906, %v1930
      %v1955 = vadd.f32 %v1907, %v1931
      %v1956 = vadd.f32 %v1908, %v1932
      %v1957 = vadd.f32 %v1909, %v1933
      %v1958 = vadd.f32 %v1910, %v1934
      %v1959 = vadd.f32 %v1911, %v1935
      %v1960 = vadd.f32 %v1912, %v1936
      %v1961 = vadd.f32 %v1913, %v1937
      %v1962 = vadd.f32 %v1914, %v1938
      %v1963 = vadd.f32 %v1915, %v1939
      %v1964 = vadd.f32 %v1916, %v1940
      %v1965 = vadd.f32 %v1917, %v1941
      %v1966 = vadd.f32 %v1918, %v1942
      %v1967 = vadd.f32 %v1919, %v1943
      %v1968 = vadd.f32 %v1920, %v1944
      %v1969 = vadd.f32 %v1921, %v1945
      %v1970 = vadd.f32 %v1922, %v1946
      %v1971 = vadd.f32 %v1923, %v1947
      %v1972 = vadd.f32 %v1924, %v1948
      %v1973 = vadd.f32 %v1925, %v1949
      %v1974 = vadd.f32 %v1926, %v1950
      %v1975 = vadd.f32 %v1951, %v1879
      %v1976 = vadd.f32 %v1952, %v1880
      %v1977 = vadd.f32 %v1953, %v1881
      %v1978 = vadd.f32 %v1954, %v1882
      %v1979 = vadd.f32 %v1955, %v1883
      %v1980 = vadd.f32 %v1956, %v1884
      %v1981 = vadd.f32 %v1957, %v1885
      %v1982 = vadd.f32 %v1958, %v1886
      %v1983 = vadd.f32 %v1959, %v1887
      %v1984 = vadd.f32 %v1960, %v1888
      %v1985 = vadd.f32 %v1961, %v1889
      %v1986 = vadd.f32 %v1962, %v1890
      %v1987 = vadd.f32 %v1963, %v1891
      %v1988 = vadd.f32 %v1964, %v1892
      %v1989 = vadd.f32 %v1965, %v1893
      %v1990 = vadd.f32 %v1966, %v1894
      %v1991 = vadd.f32 %v1967, %v1895
      %v1992 = vadd.f32 %v1968, %v1896
      %v1993 = vadd.f32 %v1969, %v1897
      %v1994 = vadd.f32 %v1970, %v1898
      %v1995 = vadd.f32 %v1971, %v1899
      %v1996 = vadd.f32 %v1972, %v1900
      %v1997 = vadd.f32 %v1973, %v1901
      %v1998 = vadd.f32 %v1974, %v1902
      %s1999 = scalar_lea.vmem [#allocation2], 32
      %v2000 = vld [vmem:[%s1999] sm:$0xff]
      %v2001 = vld [vmem:[%s1999 + $0x8] sm:$0xff]
      %v2002 = vld [vmem:[%s1999 + $0x10] sm:$0xff]
      %v2003 = vld [vmem:[%s1999 + $0x18] sm:$0xff]
      %v2004 = vld [vmem:[%s1999 + $0x20] sm:$0xff]
      %v2005 = vld [vmem:[%s1999 + $0x28] sm:$0xff]
      %v2006 = vld [vmem:[%s1999 + $0x30] sm:$0xff]
      %v2007 = vld [vmem:[%s1999 + $0x38] sm:$0xff]
      %v2008 = vld [vmem:[%s1999 + $0x40] sm:$0xff]
      %v2009 = vld [vmem:[%s1999 + $0x48] sm:$0xff]
      %v2010 = vld [vmem:[%s1999 + $0x50] sm:$0xff]
      %v2011 = vld [vmem:[%s1999 + $0x58] sm:$0xff]
      %v2012 = vld [vmem:[%s1999 + $0x60] sm:$0xff]
      %v2013 = vld [vmem:[%s1999 + $0x68] sm:$0xff]
      %v2014 = vld [vmem:[%s1999 + $0x70] sm:$0xff]
      %v2015 = vld [vmem:[%s1999 + $0x78] sm:$0xff]
      %v2016 = vld [vmem:[%s1999 + $0x80] sm:$0xff]
      %v2017 = vld [vmem:[%s1999 + $0x88] sm:$0xff]
      %v2018 = vld [vmem:[%s1999 + $0x90] sm:$0xff]
      %v2019 = vld [vmem:[%s1999 + $0x98] sm:$0xff]
      %v2020 = vld [vmem:[%s1999 + $0xa0] sm:$0xff]
      %v2021 = vld [vmem:[%s1999 + $0xa8] sm:$0xff]
      %v2022 = vld [vmem:[%s1999 + $0xb0] sm:$0xff]
      %v2023 = vld [vmem:[%s1999 + $0xb8] sm:$0xff]
      %v2024 = vld [vmem:[%s1999 + $0xc0] sm:$0xff]
      %v2025 = vld [vmem:[%s1999 + $0xc8] sm:$0xff]
      %v2026 = vld [vmem:[%s1999 + $0xd0] sm:$0xff]
      %v2027 = vld [vmem:[%s1999 + $0xd8] sm:$0xff]
      %v2028 = vld [vmem:[%s1999 + $0xe0] sm:$0xff]
      %v2029 = vld [vmem:[%s1999 + $0xe8] sm:$0xff]
      %v2030 = vld [vmem:[%s1999 + $0xf0] sm:$0xff]
      %v2031 = vld [vmem:[%s1999 + $0xf8] sm:$0xff]
      %v2032 = vld [vmem:[%s1999 + $0x100] sm:$0xff]
      %v2033 = vld [vmem:[%s1999 + $0x108] sm:$0xff]
      %v2034 = vld [vmem:[%s1999 + $0x110] sm:$0xff]
      %v2035 = vld [vmem:[%s1999 + $0x118] sm:$0xff]
      %v2036 = vld [vmem:[%s1999 + $0x120] sm:$0xff]
      %v2037 = vld [vmem:[%s1999 + $0x128] sm:$0xff]
      %v2038 = vld [vmem:[%s1999 + $0x130] sm:$0xff]
      %v2039 = vld [vmem:[%s1999 + $0x138] sm:$0xff]
      %v2040 = vld [vmem:[%s1999 + $0x140] sm:$0xff]
      %v2041 = vld [vmem:[%s1999 + $0x148] sm:$0xff]
      %v2042 = vld [vmem:[%s1999 + $0x150] sm:$0xff]
      %v2043 = vld [vmem:[%s1999 + $0x158] sm:$0xff]
      %v2044 = vld [vmem:[%s1999 + $0x160] sm:$0xff]
      %v2045 = vld [vmem:[%s1999 + $0x168] sm:$0xff]
      %v2046 = vld [vmem:[%s1999 + $0x170] sm:$0xff]
      %v2047 = vld [vmem:[%s1999 + $0x178] sm:$0xff]
      %v2048 = vrot.slane %v2000, 6
      %v2049 = vrot.slane %v2004, 6
      %v2050 = vrot.slane %v2008, 6
      %v2051 = vrot.slane %v2012, 6
      %v2052 = vrot.slane %v2016, 6
      %v2053 = vrot.slane %v2020, 6
      %v2054 = vrot.slane %v2024, 6
      %v2055 = vrot.slane %v2028, 6
      %v2056 = vrot.slane %v2032, 6
      %v2057 = vrot.slane %v2036, 6
      %v2058 = vrot.slane %v2040, 6
      %v2059 = vrot.slane %v2044, 6
      %v2060 = vrot.slane %v2001, 6
      %v2061 = vrot.slane %v2005, 6
      %v2062 = vrot.slane %v2009, 6
      %v2063 = vrot.slane %v2013, 6
      %v2064 = vrot.slane %v2017, 6
      %v2065 = vrot.slane %v2021, 6
      %v2066 = vrot.slane %v2025, 6
      %v2067 = vrot.slane %v2029, 6
      %v2068 = vrot.slane %v2033, 6
      %v2069 = vrot.slane %v2037, 6
      %v2070 = vrot.slane %v2041, 6
      %v2071 = vrot.slane %v2045, 6
      %v2072 = vrot.slane %v2002, 6
      %v2073 = vrot.slane %v2006, 6
      %v2074 = vrot.slane %v2010, 6
      %v2075 = vrot.slane %v2014, 6
      %v2076 = vrot.slane %v2018, 6
      %v2077 = vrot.slane %v2022, 6
      %v2078 = vrot.slane %v2026, 6
      %v2079 = vrot.slane %v2030, 6
      %v2080 = vrot.slane %v2034, 6
      %v2081 = vrot.slane %v2038, 6
      %v2082 = vrot.slane %v2042, 6
      %v2083 = vrot.slane %v2046, 6
      %v2084 = vsel %vm1565, %v2060, %v2072
      %v2085 = vsel %vm1565, %v2061, %v2073
      %v2086 = vsel %vm1565, %v2062, %v2074
      %v2087 = vsel %vm1565, %v2063, %v2075
      %v2088 = vsel %vm1565, %v2064, %v2076
      %v2089 = vsel %vm1565, %v2065, %v2077
      %v2090 = vsel %vm1565, %v2066, %v2078
      %v2091 = vsel %vm1565, %v2067, %v2079
      %v2092 = vsel %vm1565, %v2068, %v2080
      %v2093 = vsel %vm1565, %v2069, %v2081
      %v2094 = vsel %vm1565, %v2070, %v2082
      %v2095 = vsel %vm1565, %v2071, %v2083
      %v2096 = vsel %vm1565, %v2048, %v2060
      %v2097 = vsel %vm1565, %v2049, %v2061
      %v2098 = vsel %vm1565, %v2050, %v2062
      %v2099 = vsel %vm1565, %v2051, %v2063
      %v2100 = vsel %vm1565, %v2052, %v2064
      %v2101 = vsel %vm1565, %v2053, %v2065
      %v2102 = vsel %vm1565, %v2054, %v2066
      %v2103 = vsel %vm1565, %v2055, %v2067
      %v2104 = vsel %vm1565, %v2056, %v2068
      %v2105 = vsel %vm1565, %v2057, %v2069
      %v2106 = vsel %vm1565, %v2058, %v2070
      %v2107 = vsel %vm1565, %v2059, %v2071
      %v2108 = vld [vmem:[%s3 + $0x5] sm:$0x1]
      %v2109 = vperm.slane %v2108, 0
      %v2110 = vmul.f32 %v2096, %v2109
      %v2111 = vmul.f32 %v2084, %v2109
      %v2112 = vmul.f32 %v2097, %v2109
      %v2113 = vmul.f32 %v2085, %v2109
      %v2114 = vmul.f32 %v2098, %v2109
      %v2115 = vmul.f32 %v2086, %v2109
      %v2116 = vmul.f32 %v2099, %v2109
      %v2117 = vmul.f32 %v2087, %v2109
      %v2118 = vmul.f32 %v2100, %v2109
      %v2119 = vmul.f32 %v2088, %v2109
      %v2120 = vmul.f32 %v2101, %v2109
      %v2121 = vmul.f32 %v2089, %v2109
      %v2122 = vmul.f32 %v2102, %v2109
      %v2123 = vmul.f32 %v2090, %v2109
      %v2124 = vmul.f32 %v2103, %v2109
      %v2125 = vmul.f32 %v2091, %v2109
      %v2126 = vmul.f32 %v2104, %v2109
      %v2127 = vmul.f32 %v2092, %v2109
      %v2128 = vmul.f32 %v2105, %v2109
      %v2129 = vmul.f32 %v2093, %v2109
      %v2130 = vmul.f32 %v2106, %v2109
      %v2131 = vmul.f32 %v2094, %v2109
      %v2132 = vmul.f32 %v2107, %v2109
      %v2133 = vmul.f32 %v2095, %v2109
      %v2134 = vrot.slane %v2000, 7
      %v2135 = vrot.slane %v2004, 7
      %v2136 = vrot.slane %v2008, 7
      %v2137 = vrot.slane %v2012, 7
      %v2138 = vrot.slane %v2016, 7
      %v2139 = vrot.slane %v2020, 7
      %v2140 = vrot.slane %v2024, 7
      %v2141 = vrot.slane %v2028, 7
      %v2142 = vrot.slane %v2032, 7
      %v2143 = vrot.slane %v2036, 7
      %v2144 = vrot.slane %v2040, 7
      %v2145 = vrot.slane %v2044, 7
      %v2146 = vrot.slane %v2001, 7
      %v2147 = vrot.slane %v2005, 7
      %v2148 = vrot.slane %v2009, 7
      %v2149 = vrot.slane %v2013, 7
      %v2150 = vrot.slane %v2017, 7
      %v2151 = vrot.slane %v2021, 7
      %v2152 = vrot.slane %v2025, 7
      %v2153 = vrot.slane %v2029, 7
      %v2154 = vrot.slane %v2033, 7
      %v2155 = vrot.slane %v2037, 7
      %v2156 = vrot.slane %v2041, 7
      %v2157 = vrot.slane %v2045, 7
      %v2158 = vrot.slane %v2002, 7
      %v2159 = vrot.slane %v2006, 7
      %v2160 = vrot.slane %v2010, 7
      %v2161 = vrot.slane %v2014, 7
      %v2162 = vrot.slane %v2018, 7
      %v2163 = vrot.slane %v2022, 7
      %v2164 = vrot.slane %v2026, 7
      %v2165 = vrot.slane %v2030, 7
      %v2166 = vrot.slane %v2034, 7
      %v2167 = vrot.slane %v2038, 7
      %v2168 = vrot.slane %v2042, 7
      %v2169 = vrot.slane %v2046, 7
      %v2170 = vsel %vm1652, %v2146, %v2158
      %v2171 = vsel %vm1652, %v2147, %v2159
      %v2172 = vsel %vm1652, %v2148, %v2160
      %v2173 = vsel %vm1652, %v2149, %v2161
      %v2174 = vsel %vm1652, %v2150, %v2162
      %v2175 = vsel %vm1652, %v2151, %v2163
      %v2176 = vsel %vm1652, %v2152, %v2164
      %v2177 = vsel %vm1652, %v2153, %v2165
      %v2178 = vsel %vm1652, %v2154, %v2166
      %v2179 = vsel %vm1652, %v2155, %v2167
      %v2180 = vsel %vm1652, %v2156, %v2168
      %v2181 = vsel %vm1652, %v2157, %v2169
      %v2182 = vsel %vm1652, %v2134, %v2146
      %v2183 = vsel %vm1652, %v2135, %v2147
      %v2184 = vsel %vm1652, %v2136, %v2148
      %v2185 = vsel %vm1652, %v2137, %v2149
      %v2186 = vsel %vm1652, %v2138, %v2150
      %v2187 = vsel %vm1652, %v2139, %v2151
      %v2188 = vsel %vm1652, %v2140, %v2152
      %v2189 = vsel %vm1652, %v2141, %v2153
      %v2190 = vsel %vm1652, %v2142, %v2154
      %v2191 = vsel %vm1652, %v2143, %v2155
      %v2192 = vsel %vm1652, %v2144, %v2156
      %v2193 = vsel %vm1652, %v2145, %v2157
      %v2194 = vld [vmem:[%s3 + $0x6] sm:$0x1]
      %v2195 = vperm.slane %v2194, 0
      %v2196 = vmul.f32 %v2182, %v2195
      %v2197 = vmul.f32 %v2170, %v2195
      %v2198 = vmul.f32 %v2183, %v2195
      %v2199 = vmul.f32 %v2171, %v2195
      %v2200 = vmul.f32 %v2184, %v2195
      %v2201 = vmul.f32 %v2172, %v2195
      %v2202 = vmul.f32 %v2185, %v2195
      %v2203 = vmul.f32 %v2173, %v2195
      %v2204 = vmul.f32 %v2186, %v2195
      %v2205 = vmul.f32 %v2174, %v2195
      %v2206 = vmul.f32 %v2187, %v2195
      %v2207 = vmul.f32 %v2175, %v2195
      %v2208 = vmul.f32 %v2188, %v2195
      %v2209 = vmul.f32 %v2176, %v2195
      %v2210 = vmul.f32 %v2189, %v2195
      %v2211 = vmul.f32 %v2177, %v2195
      %v2212 = vmul.f32 %v2190, %v2195
      %v2213 = vmul.f32 %v2178, %v2195
      %v2214 = vmul.f32 %v2191, %v2195
      %v2215 = vmul.f32 %v2179, %v2195
      %v2216 = vmul.f32 %v2192, %v2195
      %v2217 = vmul.f32 %v2180, %v2195
      %v2218 = vmul.f32 %v2193, %v2195
      %v2219 = vmul.f32 %v2181, %v2195
      %v2220 = vld [vmem:[%s3 + $0x7] sm:$0x1]
      %v2221 = vperm.slane %v2220, 0
      %v2222 = vmul.f32 %v2001, %v2221
      %v2223 = vmul.f32 %v2002, %v2221
      %v2224 = vmul.f32 %v2005, %v2221
      %v2225 = vmul.f32 %v2006, %v2221
      %v2226 = vmul.f32 %v2009, %v2221
      %v2227 = vmul.f32 %v2010, %v2221
      %v2228 = vmul.f32 %v2013, %v2221
      %v2229 = vmul.f32 %v2014, %v2221
      %v2230 = vmul.f32 %v2017, %v2221
      %v2231 = vmul.f32 %v2018, %v2221
      %v2232 = vmul.f32 %v2021, %v2221
      %v2233 = vmul.f32 %v2022, %v2221
      %v2234 = vmul.f32 %v2025, %v2221
      %v2235 = vmul.f32 %v2026, %v2221
      %v2236 = vmul.f32 %v2029, %v2221
      %v2237 = vmul.f32 %v2030, %v2221
      %v2238 = vmul.f32 %v2033, %v2221
      %v2239 = vmul.f32 %v2034, %v2221
      %v2240 = vmul.f32 %v2037, %v2221
      %v2241 = vmul.f32 %v2038, %v2221
      %v2242 = vmul.f32 %v2041, %v2221
      %v2243 = vmul.f32 %v2042, %v2221
      %v2244 = vmul.f32 %v2045, %v2221
      %v2245 = vmul.f32 %v2046, %v2221
      %v2246 = vrot.slane %v2001, 1
      %v2247 = vrot.slane %v2005, 1
      %v2248 = vrot.slane %v2009, 1
      %v2249 = vrot.slane %v2013, 1
      %v2250 = vrot.slane %v2017, 1
      %v2251 = vrot.slane %v2021, 1
      %v2252 = vrot.slane %v2025, 1
      %v2253 = vrot.slane %v2029, 1
      %v2254 = vrot.slane %v2033, 1
      %v2255 = vrot.slane %v2037, 1
      %v2256 = vrot.slane %v2041, 1
      %v2257 = vrot.slane %v2045, 1
      %v2258 = vrot.slane %v2002, 1
      %v2259 = vrot.slane %v2006, 1
      %v2260 = vrot.slane %v2010, 1
      %v2261 = vrot.slane %v2014, 1
      %v2262 = vrot.slane %v2018, 1
      %v2263 = vrot.slane %v2022, 1
      %v2264 = vrot.slane %v2026, 1
      %v2265 = vrot.slane %v2030, 1
      %v2266 = vrot.slane %v2034, 1
      %v2267 = vrot.slane %v2038, 1
      %v2268 = vrot.slane %v2042, 1
      %v2269 = vrot.slane %v2046, 1
      %v2270 = vrot.slane %v2003, 1
      %v2271 = vrot.slane %v2007, 1
      %v2272 = vrot.slane %v2011, 1
      %v2273 = vrot.slane %v2015, 1
      %v2274 = vrot.slane %v2019, 1
      %v2275 = vrot.slane %v2023, 1
      %v2276 = vrot.slane %v2027, 1
      %v2277 = vrot.slane %v2031, 1
      %v2278 = vrot.slane %v2035, 1
      %v2279 = vrot.slane %v2039, 1
      %v2280 = vrot.slane %v2043, 1
      %v2281 = vrot.slane %v2047, 1
      %v2282 = vsel %vm1765, %v2258, %v2270
      %v2283 = vsel %vm1765, %v2259, %v2271
      %v2284 = vsel %vm1765, %v2260, %v2272
      %v2285 = vsel %vm1765, %v2261, %v2273
      %v2286 = vsel %vm1765, %v2262, %v2274
      %v2287 = vsel %vm1765, %v2263, %v2275
      %v2288 = vsel %vm1765, %v2264, %v2276
      %v2289 = vsel %vm1765, %v2265, %v2277
      %v2290 = vsel %vm1765, %v2266, %v2278
      %v2291 = vsel %vm1765, %v2267, %v2279
      %v2292 = vsel %vm1765, %v2268, %v2280
      %v2293 = vsel %vm1765, %v2269, %v2281
      %v2294 = vsel %vm1765, %v2246, %v2258
      %v2295 = vsel %vm1765, %v2247, %v2259
      %v2296 = vsel %vm1765, %v2248, %v2260
      %v2297 = vsel %vm1765, %v2249, %v2261
      %v2298 = vsel %vm1765, %v2250, %v2262
      %v2299 = vsel %vm1765, %v2251, %v2263
      %v2300 = vsel %vm1765, %v2252, %v2264
      %v2301 = vsel %vm1765, %v2253, %v2265
      %v2302 = vsel %vm1765, %v2254, %v2266
      %v2303 = vsel %vm1765, %v2255, %v2267
      %v2304 = vsel %vm1765, %v2256, %v2268
      %v2305 = vsel %vm1765, %v2257, %v2269
      %v2306 = vld [vmem:[%s3 + $0x8] sm:$0x1]
      %v2307 = vperm.slane %v2306, 0
      %v2308 = vmul.f32 %v2294, %v2307
      %v2309 = vmul.f32 %v2282, %v2307
      %v2310 = vmul.f32 %v2295, %v2307
      %v2311 = vmul.f32 %v2283, %v2307
      %v2312 = vmul.f32 %v2296, %v2307
      %v2313 = vmul.f32 %v2284, %v2307
      %v2314 = vmul.f32 %v2297, %v2307
      %v2315 = vmul.f32 %v2285, %v2307
      %v2316 = vmul.f32 %v2298, %v2307
      %v2317 = vmul.f32 %v2286, %v2307
      %v2318 = vmul.f32 %v2299, %v2307
      %v2319 = vmul.f32 %v2287, %v2307
      %v2320 = vmul.f32 %v2300, %v2307
      %v2321 = vmul.f32 %v2288, %v2307
      %v2322 = vmul.f32 %v2301, %v2307
      %v2323 = vmul.f32 %v2289, %v2307
      %v2324 = vmul.f32 %v2302, %v2307
      %v2325 = vmul.f32 %v2290, %v2307
      %v2326 = vmul.f32 %v2303, %v2307
      %v2327 = vmul.f32 %v2291, %v2307
      %v2328 = vmul.f32 %v2304, %v2307
      %v2329 = vmul.f32 %v2292, %v2307
      %v2330 = vmul.f32 %v2305, %v2307
      %v2331 = vmul.f32 %v2293, %v2307
      %v2332 = vrot.slane %v2001, 2
      %v2333 = vrot.slane %v2005, 2
      %v2334 = vrot.slane %v2009, 2
      %v2335 = vrot.slane %v2013, 2
      %v2336 = vrot.slane %v2017, 2
      %v2337 = vrot.slane %v2021, 2
      %v2338 = vrot.slane %v2025, 2
      %v2339 = vrot.slane %v2029, 2
      %v2340 = vrot.slane %v2033, 2
      %v2341 = vrot.slane %v2037, 2
      %v2342 = vrot.slane %v2041, 2
      %v2343 = vrot.slane %v2045, 2
      %v2344 = vrot.slane %v2002, 2
      %v2345 = vrot.slane %v2006, 2
      %v2346 = vrot.slane %v2010, 2
      %v2347 = vrot.slane %v2014, 2
      %v2348 = vrot.slane %v2018, 2
      %v2349 = vrot.slane %v2022, 2
      %v2350 = vrot.slane %v2026, 2
      %v2351 = vrot.slane %v2030, 2
      %v2352 = vrot.slane %v2034, 2
      %v2353 = vrot.slane %v2038, 2
      %v2354 = vrot.slane %v2042, 2
      %v2355 = vrot.slane %v2046, 2
      %v2356 = vrot.slane %v2003, 2
      %v2357 = vrot.slane %v2007, 2
      %v2358 = vrot.slane %v2011, 2
      %v2359 = vrot.slane %v2015, 2
      %v2360 = vrot.slane %v2019, 2
      %v2361 = vrot.slane %v2023, 2
      %v2362 = vrot.slane %v2027, 2
      %v2363 = vrot.slane %v2031, 2
      %v2364 = vrot.slane %v2035, 2
      %v2365 = vrot.slane %v2039, 2
      %v2366 = vrot.slane %v2043, 2
      %v2367 = vrot.slane %v2047, 2
      %v2368 = vsel %vm1852, %v2344, %v2356
      %v2369 = vsel %vm1852, %v2345, %v2357
      %v2370 = vsel %vm1852, %v2346, %v2358
      %v2371 = vsel %vm1852, %v2347, %v2359
      %v2372 = vsel %vm1852, %v2348, %v2360
      %v2373 = vsel %vm1852, %v2349, %v2361
      %v2374 = vsel %vm1852, %v2350, %v2362
      %v2375 = vsel %vm1852, %v2351, %v2363
      %v2376 = vsel %vm1852, %v2352, %v2364
      %v2377 = vsel %vm1852, %v2353, %v2365
      %v2378 = vsel %vm1852, %v2354, %v2366
      %v2379 = vsel %vm1852, %v2355, %v2367
      %v2380 = vsel %vm1852, %v2332, %v2344
      %v2381 = vsel %vm1852, %v2333, %v2345
      %v2382 = vsel %vm1852, %v2334, %v2346
      %v2383 = vsel %vm1852, %v2335, %v2347
      %v2384 = vsel %vm1852, %v2336, %v2348
      %v2385 = vsel %vm1852, %v2337, %v2349
      %v2386 = vsel %vm1852, %v2338, %v2350
      %v2387 = vsel %vm1852, %v2339, %v2351
      %v2388 = vsel %vm1852, %v2340, %v2352
      %v2389 = vsel %vm1852, %v2341, %v2353
      %v2390 = vsel %vm1852, %v2342, %v2354
      %v2391 = vsel %vm1852, %v2343, %v2355
      %v2392 = vld [vmem:[%s3 + $0x9] sm:$0x1]
      %v2393 = vperm.slane %v2392, 0
      %v2394 = vmul.f32 %v2380, %v2393
      %v2395 = vmul.f32 %v2368, %v2393
      %v2396 = vmul.f32 %v2381, %v2393
      %v2397 = vmul.f32 %v2369, %v2393
      %v2398 = vmul.f32 %v2382, %v2393
      %v2399 = vmul.f32 %v2370, %v2393
      %v2400 = vmul.f32 %v2383, %v2393
      %v2401 = vmul.f32 %v2371, %v2393
      %v2402 = vmul.f32 %v2384, %v2393
      %v2403 = vmul.f32 %v2372, %v2393
      %v2404 = vmul.f32 %v2385, %v2393
      %v2405 = vmul.f32 %v2373, %v2393
      %v2406 = vmul.f32 %v2386, %v2393
      %v2407 = vmul.f32 %v2374, %v2393
      %v2408 = vmul.f32 %v2387, %v2393
      %v2409 = vmul.f32 %v2375, %v2393
      %v2410 = vmul.f32 %v2388, %v2393
      %v2411 = vmul.f32 %v2376, %v2393
      %v2412 = vmul.f32 %v2389, %v2393
      %v2413 = vmul.f32 %v2377, %v2393
      %v2414 = vmul.f32 %v2390, %v2393
      %v2415 = vmul.f32 %v2378, %v2393
      %v2416 = vmul.f32 %v2391, %v2393
      %v2417 = vmul.f32 %v2379, %v2393
      %v2418 = vadd.f32 %v2110, %v2196
      %v2419 = vadd.f32 %v2111, %v2197
      %v2420 = vadd.f32 %v2112, %v2198
      %v2421 = vadd.f32 %v2113, %v2199
      %v2422 = vadd.f32 %v2114, %v2200
      %v2423 = vadd.f32 %v2115, %v2201
      %v2424 = vadd.f32 %v2116, %v2202
      %v2425 = vadd.f32 %v2117, %v2203
      %v2426 = vadd.f32 %v2118, %v2204
      %v2427 = vadd.f32 %v2119, %v2205
      %v2428 = vadd.f32 %v2120, %v2206
      %v2429 = vadd.f32 %v2121, %v2207
      %v2430 = vadd.f32 %v2122, %v2208
      %v2431 = vadd.f32 %v2123, %v2209
      %v2432 = vadd.f32 %v2124, %v2210
      %v2433 = vadd.f32 %v2125, %v2211
      %v2434 = vadd.f32 %v2126, %v2212
      %v2435 = vadd.f32 %v2127, %v2213
      %v2436 = vadd.f32 %v2128, %v2214
      %v2437 = vadd.f32 %v2129, %v2215
      %v2438 = vadd.f32 %v2130, %v2216
      %v2439 = vadd.f32 %v2131, %v2217
      %v2440 = vadd.f32 %v2132, %v2218
      %v2441 = vadd.f32 %v2133, %v2219
      %v2442 = vadd.f32 %v2222, %v2308
      %v2443 = vadd.f32 %v2223, %v2309
      %v2444 = vadd.f32 %v2224, %v2310
      %v2445 = vadd.f32 %v2225, %v2311
      %v2446 = vadd.f32 %v2226, %v2312
      %v2447 = vadd.f32 %v2227, %v2313
      %v2448 = vadd.f32 %v2228, %v2314
      %v2449 = vadd.f32 %v2229, %v2315
      %v2450 = vadd.f32 %v2230, %v2316
      %v2451 = vadd.f32 %v2231, %v2317
      %v2452 = vadd.f32 %v2232, %v2318
      %v2453 = vadd.f32 %v2233, %v2319
      %v2454 = vadd.f32 %v2234, %v2320
      %v2455 = vadd.f32 %v2235, %v2321
      %v2456 = vadd.f32 %v2236, %v2322
      %v2457 = vadd.f32 %v2237, %v2323
      %v2458 = vadd.f32 %v2238, %v2324
      %v2459 = vadd.f32 %v2239, %v2325
      %v2460 = vadd.f32 %v2240, %v2326
      %v2461 = vadd.f32 %v2241, %v2327
      %v2462 = vadd.f32 %v2242, %v2328
      %v2463 = vadd.f32 %v2243, %v2329
      %v2464 = vadd.f32 %v2244, %v2330
      %v2465 = vadd.f32 %v2245, %v2331
      %v2466 = vadd.f32 %v2418, %v2442
      %v2467 = vadd.f32 %v2419, %v2443
      %v2468 = vadd.f32 %v2420, %v2444
      %v2469 = vadd.f32 %v2421, %v2445
      %v2470 = vadd.f32 %v2422, %v2446
      %v2471 = vadd.f32 %v2423, %v2447
      %v2472 = vadd.f32 %v2424, %v2448
      %v2473 = vadd.f32 %v2425, %v2449
      %v2474 = vadd.f32 %v2426, %v2450
      %v2475 = vadd.f32 %v2427, %v2451
      %v2476 = vadd.f32 %v2428, %v2452
      %v2477 = vadd.f32 %v2429, %v2453
      %v2478 = vadd.f32 %v2430, %v2454
      %v2479 = vadd.f32 %v2431, %v2455
      %v2480 = vadd.f32 %v2432, %v2456
      %v2481 = vadd.f32 %v2433, %v2457
      %v2482 = vadd.f32 %v2434, %v2458
      %v2483 = vadd.f32 %v2435, %v2459
      %v2484 = vadd.f32 %v2436, %v2460
      %v2485 = vadd.f32 %v2437, %v2461
      %v2486 = vadd.f32 %v2438, %v2462
      %v2487 = vadd.f32 %v2439, %v2463
      %v2488 = vadd.f32 %v2440, %v2464
      %v2489 = vadd.f32 %v2441, %v2465
      %v2490 = vadd.f32 %v2466, %v2394
      %v2491 = vadd.f32 %v2467, %v2395
      %v2492 = vadd.f32 %v2468, %v2396
      %v2493 = vadd.f32 %v2469, %v2397
      %v2494 = vadd.f32 %v2470, %v2398
      %v2495 = vadd.f32 %v2471, %v2399
      %v2496 = vadd.f32 %v2472, %v2400
      %v2497 = vadd.f32 %v2473, %v2401
      %v2498 = vadd.f32 %v2474, %v2402
      %v2499 = vadd.f32 %v2475, %v2403
      %v2500 = vadd.f32 %v2476, %v2404
      %v2501 = vadd.f32 %v2477, %v2405
      %v2502 = vadd.f32 %v2478, %v2406
      %v2503 = vadd.f32 %v2479, %v2407
      %v2504 = vadd.f32 %v2480, %v2408
      %v2505 = vadd.f32 %v2481, %v2409
      %v2506 = vadd.f32 %v2482, %v2410
      %v2507 = vadd.f32 %v2483, %v2411
      %v2508 = vadd.f32 %v2484, %v2412
      %v2509 = vadd.f32 %v2485, %v2413
      %v2510 = vadd.f32 %v2486, %v2414
      %v2511 = vadd.f32 %v2487, %v2415
      %v2512 = vadd.f32 %v2488, %v2416
      %v2513 = vadd.f32 %v2489, %v2417
      %s2514 = scalar_lea.vmem [#allocation2], 64
      %v2515 = vld [vmem:[%s2514] sm:$0xff]
      %v2516 = vld [vmem:[%s2514 + $0x8] sm:$0xff]
      %v2517 = vld [vmem:[%s2514 + $0x10] sm:$0xff]
      %v2518 = vld [vmem:[%s2514 + $0x18] sm:$0xff]
      %v2519 = vld [vmem:[%s2514 + $0x20] sm:$0xff]
      %v2520 = vld [vmem:[%s2514 + $0x28] sm:$0xff]
      %v2521 = vld [vmem:[%s2514 + $0x30] sm:$0xff]
      %v2522 = vld [vmem:[%s2514 + $0x38] sm:$0xff]
      %v2523 = vld [vmem:[%s2514 + $0x40] sm:$0xff]
      %v2524 = vld [vmem:[%s2514 + $0x48] sm:$0xff]
      %v2525 = vld [vmem:[%s2514 + $0x50] sm:$0xff]
      %v2526 = vld [vmem:[%s2514 + $0x58] sm:$0xff]
      %v2527 = vld [vmem:[%s2514 + $0x60] sm:$0xff]
      %v2528 = vld [vmem:[%s2514 + $0x68] sm:$0xff]
      %v2529 = vld [vmem:[%s2514 + $0x70] sm:$0xff]
      %v2530 = vld [vmem:[%s2514 + $0x78] sm:$0xff]
      %v2531 = vld [vmem:[%s2514 + $0x80] sm:$0xff]
      %v2532 = vld [vmem:[%s2514 + $0x88] sm:$0xff]
      %v2533 = vld [vmem:[%s2514 + $0x90] sm:$0xff]
      %v2534 = vld [vmem:[%s2514 + $0x98] sm:$0xff]
      %v2535 = vld [vmem:[%s2514 + $0xa0] sm:$0xff]
      %v2536 = vld [vmem:[%s2514 + $0xa8] sm:$0xff]
      %v2537 = vld [vmem:[%s2514 + $0xb0] sm:$0xff]
      %v2538 = vld [vmem:[%s2514 + $0xb8] sm:$0xff]
      %v2539 = vld [vmem:[%s2514 + $0xc0] sm:$0xff]
      %v2540 = vld [vmem:[%s2514 + $0xc8] sm:$0xff]
      %v2541 = vld [vmem:[%s2514 + $0xd0] sm:$0xff]
      %v2542 = vld [vmem:[%s2514 + $0xd8] sm:$0xff]
      %v2543 = vld [vmem:[%s2514 + $0xe0] sm:$0xff]
      %v2544 = vld [vmem:[%s2514 + $0xe8] sm:$0xff]
      %v2545 = vld [vmem:[%s2514 + $0xf0] sm:$0xff]
      %v2546 = vld [vmem:[%s2514 + $0xf8] sm:$0xff]
      %v2547 = vld [vmem:[%s2514 + $0x100] sm:$0xff]
      %v2548 = vld [vmem:[%s2514 + $0x108] sm:$0xff]
      %v2549 = vld [vmem:[%s2514 + $0x110] sm:$0xff]
      %v2550 = vld [vmem:[%s2514 + $0x118] sm:$0xff]
      %v2551 = vld [vmem:[%s2514 + $0x120] sm:$0xff]
      %v2552 = vld [vmem:[%s2514 + $0x128] sm:$0xff]
      %v2553 = vld [vmem:[%s2514 + $0x130] sm:$0xff]
      %v2554 = vld [vmem:[%s2514 + $0x138] sm:$0xff]
      %v2555 = vld [vmem:[%s2514 + $0x140] sm:$0xff]
      %v2556 = vld [vmem:[%s2514 + $0x148] sm:$0xff]
      %v2557 = vld [vmem:[%s2514 + $0x150] sm:$0xff]
      %v2558 = vld [vmem:[%s2514 + $0x158] sm:$0xff]
      %v2559 = vld [vmem:[%s2514 + $0x160] sm:$0xff]
      %v2560 = vld [vmem:[%s2514 + $0x168] sm:$0xff]
      %v2561 = vld [vmem:[%s2514 + $0x170] sm:$0xff]
      %v2562 = vld [vmem:[%s2514 + $0x178] sm:$0xff]
      %v2563 = vrot.slane %v2515, 6
      %v2564 = vrot.slane %v2519, 6
      %v2565 = vrot.slane %v2523, 6
      %v2566 = vrot.slane %v2527, 6
      %v2567 = vrot.slane %v2531, 6
      %v2568 = vrot.slane %v2535, 6
      %v2569 = vrot.slane %v2539, 6
      %v2570 = vrot.slane %v2543, 6
      %v2571 = vrot.slane %v2547, 6
      %v2572 = vrot.slane %v2551, 6
      %v2573 = vrot.slane %v2555, 6
      %v2574 = vrot.slane %v2559, 6
      %v2575 = vrot.slane %v2516, 6
      %v2576 = vrot.slane %v2520, 6
      %v2577 = vrot.slane %v2524, 6
      %v2578 = vrot.slane %v2528, 6
      %v2579 = vrot.slane %v2532, 6
      %v2580 = vrot.slane %v2536, 6
      %v2581 = vrot.slane %v2540, 6
      %v2582 = vrot.slane %v2544, 6
      %v2583 = vrot.slane %v2548, 6
      %v2584 = vrot.slane %v2552, 6
      %v2585 = vrot.slane %v2556, 6
      %v2586 = vrot.slane %v2560, 6
      %v2587 = vrot.slane %v2517, 6
      %v2588 = vrot.slane %v2521, 6
      %v2589 = vrot.slane %v2525, 6
      %v2590 = vrot.slane %v2529, 6
      %v2591 = vrot.slane %v2533, 6
      %v2592 = vrot.slane %v2537, 6
      %v2593 = vrot.slane %v2541, 6
      %v2594 = vrot.slane %v2545, 6
      %v2595 = vrot.slane %v2549, 6
      %v2596 = vrot.slane %v2553, 6
      %v2597 = vrot.slane %v2557, 6
      %v2598 = vrot.slane %v2561, 6
      %v2599 = vsel %vm1565, %v2575, %v2587
      %v2600 = vsel %vm1565, %v2576, %v2588
      %v2601 = vsel %vm1565, %v2577, %v2589
      %v2602 = vsel %vm1565, %v2578, %v2590
      %v2603 = vsel %vm1565, %v2579, %v2591
      %v2604 = vsel %vm1565, %v2580, %v2592
      %v2605 = vsel %vm1565, %v2581, %v2593
      %v2606 = vsel %vm1565, %v2582, %v2594
      %v2607 = vsel %vm1565, %v2583, %v2595
      %v2608 = vsel %vm1565, %v2584, %v2596
      %v2609 = vsel %vm1565, %v2585, %v2597
      %v2610 = vsel %vm1565, %v2586, %v2598
      %v2611 = vsel %vm1565, %v2563, %v2575
      %v2612 = vsel %vm1565, %v2564, %v2576
      %v2613 = vsel %vm1565, %v2565, %v2577
      %v2614 = vsel %vm1565, %v2566, %v2578
      %v2615 = vsel %vm1565, %v2567, %v2579
      %v2616 = vsel %vm1565, %v2568, %v2580
      %v2617 = vsel %vm1565, %v2569, %v2581
      %v2618 = vsel %vm1565, %v2570, %v2582
      %v2619 = vsel %vm1565, %v2571, %v2583
      %v2620 = vsel %vm1565, %v2572, %v2584
      %v2621 = vsel %vm1565, %v2573, %v2585
      %v2622 = vsel %vm1565, %v2574, %v2586
      %v2623 = vld [vmem:[%s3 + $0xa] sm:$0x1]
      %v2624 = vperm.slane %v2623, 0
      %v2625 = vmul.f32 %v2611, %v2624
      %v2626 = vmul.f32 %v2599, %v2624
      %v2627 = vmul.f32 %v2612, %v2624
      %v2628 = vmul.f32 %v2600, %v2624
      %v2629 = vmul.f32 %v2613, %v2624
      %v2630 = vmul.f32 %v2601, %v2624
      %v2631 = vmul.f32 %v2614, %v2624
      %v2632 = vmul.f32 %v2602, %v2624
      %v2633 = vmul.f32 %v2615, %v2624
      %v2634 = vmul.f32 %v2603, %v2624
      %v2635 = vmul.f32 %v2616, %v2624
      %v2636 = vmul.f32 %v2604, %v2624
      %v2637 = vmul.f32 %v2617, %v2624
      %v2638 = vmul.f32 %v2605, %v2624
      %v2639 = vmul.f32 %v2618, %v2624
      %v2640 = vmul.f32 %v2606, %v2624
      %v2641 = vmul.f32 %v2619, %v2624
      %v2642 = vmul.f32 %v2607, %v2624
      %v2643 = vmul.f32 %v2620, %v2624
      %v2644 = vmul.f32 %v2608, %v2624
      %v2645 = vmul.f32 %v2621, %v2624
      %v2646 = vmul.f32 %v2609, %v2624
      %v2647 = vmul.f32 %v2622, %v2624
      %v2648 = vmul.f32 %v2610, %v2624
      %v2649 = vrot.slane %v2515, 7
      %v2650 = vrot.slane %v2519, 7
      %v2651 = vrot.slane %v2523, 7
      %v2652 = vrot.slane %v2527, 7
      %v2653 = vrot.slane %v2531, 7
      %v2654 = vrot.slane %v2535, 7
      %v2655 = vrot.slane %v2539, 7
      %v2656 = vrot.slane %v2543, 7
      %v2657 = vrot.slane %v2547, 7
      %v2658 = vrot.slane %v2551, 7
      %v2659 = vrot.slane %v2555, 7
      %v2660 = vrot.slane %v2559, 7
      %v2661 = vrot.slane %v2516, 7
      %v2662 = vrot.slane %v2520, 7
      %v2663 = vrot.slane %v2524, 7
      %v2664 = vrot.slane %v2528, 7
      %v2665 = vrot.slane %v2532, 7
      %v2666 = vrot.slane %v2536, 7
      %v2667 = vrot.slane %v2540, 7
      %v2668 = vrot.slane %v2544, 7
      %v2669 = vrot.slane %v2548, 7
      %v2670 = vrot.slane %v2552, 7
      %v2671 = vrot.slane %v2556, 7
      %v2672 = vrot.slane %v2560, 7
      %v2673 = vrot.slane %v2517, 7
      %v2674 = vrot.slane %v2521, 7
      %v2675 = vrot.slane %v2525, 7
      %v2676 = vrot.slane %v2529, 7
      %v2677 = vrot.slane %v2533, 7
      %v2678 = vrot.slane %v2537, 7
      %v2679 = vrot.slane %v2541, 7
      %v2680 = vrot.slane %v2545, 7
      %v2681 = vrot.slane %v2549, 7
      %v2682 = vrot.slane %v2553, 7
      %v2683 = vrot.slane %v2557, 7
      %v2684 = vrot.slane %v2561, 7
      %v2685 = vsel %vm1652, %v2661, %v2673
      %v2686 = vsel %vm1652, %v2662, %v2674
      %v2687 = vsel %vm1652, %v2663, %v2675
      %v2688 = vsel %vm1652, %v2664, %v2676
      %v2689 = vsel %vm1652, %v2665, %v2677
      %v2690 = vsel %vm1652, %v2666, %v2678
      %v2691 = vsel %vm1652, %v2667, %v2679
      %v2692 = vsel %vm1652, %v2668, %v2680
      %v2693 = vsel %vm1652, %v2669, %v2681
      %v2694 = vsel %vm1652, %v2670, %v2682
      %v2695 = vsel %vm1652, %v2671, %v2683
      %v2696 = vsel %vm1652, %v2672, %v2684
      %v2697 = vsel %vm1652, %v2649, %v2661
      %v2698 = vsel %vm1652, %v2650, %v2662
      %v2699 = vsel %vm1652, %v2651, %v2663
      %v2700 = vsel %vm1652, %v2652, %v2664
      %v2701 = vsel %vm1652, %v2653, %v2665
      %v2702 = vsel %vm1652, %v2654, %v2666
      %v2703 = vsel %vm1652, %v2655, %v2667
      %v2704 = vsel %vm1652, %v2656, %v2668
      %v2705 = vsel %vm1652, %v2657, %v2669
      %v2706 = vsel %vm1652, %v2658, %v2670
      %v2707 = vsel %vm1652, %v2659, %v2671
      %v2708 = vsel %vm1652, %v2660, %v2672
      %v2709 = vld [vmem:[%s3 + $0xb] sm:$0x1]
      %v2710 = vperm.slane %v2709, 0
      %v2711 = vmul.f32 %v2697, %v2710
      %v2712 = vmul.f32 %v2685, %v2710
      %v2713 = vmul.f32 %v2698, %v2710
      %v2714 = vmul.f32 %v2686, %v2710
      %v2715 = vmul.f32 %v2699, %v2710
      %v2716 = vmul.f32 %v2687, %v2710
      %v2717 = vmul.f32 %v2700, %v2710
      %v2718 = vmul.f32 %v2688, %v2710
      %v2719 = vmul.f32 %v2701, %v2710
      %v2720 = vmul.f32 %v2689, %v2710
      %v2721 = vmul.f32 %v2702, %v2710
      %v2722 = vmul.f32 %v2690, %v2710
      %v2723 = vmul.f32 %v2703, %v2710
      %v2724 = vmul.f32 %v2691, %v2710
      %v2725 = vmul.f32 %v2704, %v2710
      %v2726 = vmul.f32 %v2692, %v2710
      %v2727 = vmul.f32 %v2705, %v2710
      %v2728 = vmul.f32 %v2693, %v2710
      %v2729 = vmul.f32 %v2706, %v2710
      %v2730 = vmul.f32 %v2694, %v2710
      %v2731 = vmul.f32 %v2707, %v2710
      %v2732 = vmul.f32 %v2695, %v2710
      %v2733 = vmul.f32 %v2708, %v2710
      %v2734 = vmul.f32 %v2696, %v2710
      %v2735 = vld [vmem:[%s3 + $0xc] sm:$0x1]
      %v2736 = vperm.slane %v2735, 0
      %v2737 = vmul.f32 %v2516, %v2736
      %v2738 = vmul.f32 %v2517, %v2736
      %v2739 = vmul.f32 %v2520, %v2736
      %v2740 = vmul.f32 %v2521, %v2736
      %v2741 = vmul.f32 %v2524, %v2736
      %v2742 = vmul.f32 %v2525, %v2736
      %v2743 = vmul.f32 %v2528, %v2736
      %v2744 = vmul.f32 %v2529, %v2736
      %v2745 = vmul.f32 %v2532, %v2736
      %v2746 = vmul.f32 %v2533, %v2736
      %v2747 = vmul.f32 %v2536, %v2736
      %v2748 = vmul.f32 %v2537, %v2736
      %v2749 = vmul.f32 %v2540, %v2736
      %v2750 = vmul.f32 %v2541, %v2736
      %v2751 = vmul.f32 %v2544, %v2736
      %v2752 = vmul.f32 %v2545, %v2736
      %v2753 = vmul.f32 %v2548, %v2736
      %v2754 = vmul.f32 %v2549, %v2736
      %v2755 = vmul.f32 %v2552, %v2736
      %v2756 = vmul.f32 %v2553, %v2736
      %v2757 = vmul.f32 %v2556, %v2736
      %v2758 = vmul.f32 %v2557, %v2736
      %v2759 = vmul.f32 %v2560, %v2736
      %v2760 = vmul.f32 %v2561, %v2736
      %v2761 = vrot.slane %v2516, 1
      %v2762 = vrot.slane %v2520, 1
      %v2763 = vrot.slane %v2524, 1
      %v2764 = vrot.slane %v2528, 1
      %v2765 = vrot.slane %v2532, 1
      %v2766 = vrot.slane %v2536, 1
      %v2767 = vrot.slane %v2540, 1
      %v2768 = vrot.slane %v2544, 1
      %v2769 = vrot.slane %v2548, 1
      %v2770 = vrot.slane %v2552, 1
      %v2771 = vrot.slane %v2556, 1
      %v2772 = vrot.slane %v2560, 1
      %v2773 = vrot.slane %v2517, 1
      %v2774 = vrot.slane %v2521, 1
      %v2775 = vrot.slane %v2525, 1
      %v2776 = vrot.slane %v2529, 1
      %v2777 = vrot.slane %v2533, 1
      %v2778 = vrot.slane %v2537, 1
      %v2779 = vrot.slane %v2541, 1
      %v2780 = vrot.slane %v2545, 1
      %v2781 = vrot.slane %v2549, 1
      %v2782 = vrot.slane %v2553, 1
      %v2783 = vrot.slane %v2557, 1
      %v2784 = vrot.slane %v2561, 1
      %v2785 = vrot.slane %v2518, 1
      %v2786 = vrot.slane %v2522, 1
      %v2787 = vrot.slane %v2526, 1
      %v2788 = vrot.slane %v2530, 1
      %v2789 = vrot.slane %v2534, 1
      %v2790 = vrot.slane %v2538, 1
      %v2791 = vrot.slane %v2542, 1
      %v2792 = vrot.slane %v2546, 1
      %v2793 = vrot.slane %v2550, 1
      %v2794 = vrot.slane %v2554, 1
      %v2795 = vrot.slane %v2558, 1
      %v2796 = vrot.slane %v2562, 1
      %v2797 = vsel %vm1765, %v2773, %v2785
      %v2798 = vsel %vm1765, %v2774, %v2786
      %v2799 = vsel %vm1765, %v2775, %v2787
      %v2800 = vsel %vm1765, %v2776, %v2788
      %v2801 = vsel %vm1765, %v2777, %v2789
      %v2802 = vsel %vm1765, %v2778, %v2790
      %v2803 = vsel %vm1765, %v2779, %v2791
      %v2804 = vsel %vm1765, %v2780, %v2792
      %v2805 = vsel %vm1765, %v2781, %v2793
      %v2806 = vsel %vm1765, %v2782, %v2794
      %v2807 = vsel %vm1765, %v2783, %v2795
      %v2808 = vsel %vm1765, %v2784, %v2796
      %v2809 = vsel %vm1765, %v2761, %v2773
      %v2810 = vsel %vm1765, %v2762, %v2774
      %v2811 = vsel %vm1765, %v2763, %v2775
      %v2812 = vsel %vm1765, %v2764, %v2776
      %v2813 = vsel %vm1765, %v2765, %v2777
      %v2814 = vsel %vm1765, %v2766, %v2778
      %v2815 = vsel %vm1765, %v2767, %v2779
      %v2816 = vsel %vm1765, %v2768, %v2780
      %v2817 = vsel %vm1765, %v2769, %v2781
      %v2818 = vsel %vm1765, %v2770, %v2782
      %v2819 = vsel %vm1765, %v2771, %v2783
      %v2820 = vsel %vm1765, %v2772, %v2784
      %v2821 = vld [vmem:[%s3 + $0xd] sm:$0x1]
      %v2822 = vperm.slane %v2821, 0
      %v2823 = vmul.f32 %v2809, %v2822
      %v2824 = vmul.f32 %v2797, %v2822
      %v2825 = vmul.f32 %v2810, %v2822
      %v2826 = vmul.f32 %v2798, %v2822
      %v2827 = vmul.f32 %v2811, %v2822
      %v2828 = vmul.f32 %v2799, %v2822
      %v2829 = vmul.f32 %v2812, %v2822
      %v2830 = vmul.f32 %v2800, %v2822
      %v2831 = vmul.f32 %v2813, %v2822
      %v2832 = vmul.f32 %v2801, %v2822
      %v2833 = vmul.f32 %v2814, %v2822
      %v2834 = vmul.f32 %v2802, %v2822
      %v2835 = vmul.f32 %v2815, %v2822
      %v2836 = vmul.f32 %v2803, %v2822
      %v2837 = vmul.f32 %v2816, %v2822
      %v2838 = vmul.f32 %v2804, %v2822
      %v2839 = vmul.f32 %v2817, %v2822
      %v2840 = vmul.f32 %v2805, %v2822
      %v2841 = vmul.f32 %v2818, %v2822
      %v2842 = vmul.f32 %v2806, %v2822
      %v2843 = vmul.f32 %v2819, %v2822
      %v2844 = vmul.f32 %v2807, %v2822
      %v2845 = vmul.f32 %v2820, %v2822
      %v2846 = vmul.f32 %v2808, %v2822
      %v2847 = vrot.slane %v2516, 2
      %v2848 = vrot.slane %v2520, 2
      %v2849 = vrot.slane %v2524, 2
      %v2850 = vrot.slane %v2528, 2
      %v2851 = vrot.slane %v2532, 2
      %v2852 = vrot.slane %v2536, 2
      %v2853 = vrot.slane %v2540, 2
      %v2854 = vrot.slane %v2544, 2
      %v2855 = vrot.slane %v2548, 2
      %v2856 = vrot.slane %v2552, 2
      %v2857 = vrot.slane %v2556, 2
      %v2858 = vrot.slane %v2560, 2
      %v2859 = vrot.slane %v2517, 2
      %v2860 = vrot.slane %v2521, 2
      %v2861 = vrot.slane %v2525, 2
      %v2862 = vrot.slane %v2529, 2
      %v2863 = vrot.slane %v2533, 2
      %v2864 = vrot.slane %v2537, 2
      %v2865 = vrot.slane %v2541, 2
      %v2866 = vrot.slane %v2545, 2
      %v2867 = vrot.slane %v2549, 2
      %v2868 = vrot.slane %v2553, 2
      %v2869 = vrot.slane %v2557, 2
      %v2870 = vrot.slane %v2561, 2
      %v2871 = vrot.slane %v2518, 2
      %v2872 = vrot.slane %v2522, 2
      %v2873 = vrot.slane %v2526, 2
      %v2874 = vrot.slane %v2530, 2
      %v2875 = vrot.slane %v2534, 2
      %v2876 = vrot.slane %v2538, 2
      %v2877 = vrot.slane %v2542, 2
      %v2878 = vrot.slane %v2546, 2
      %v2879 = vrot.slane %v2550, 2
      %v2880 = vrot.slane %v2554, 2
      %v2881 = vrot.slane %v2558, 2
      %v2882 = vrot.slane %v2562, 2
      %v2883 = vsel %vm1852, %v2859, %v2871
      %v2884 = vsel %vm1852, %v2860, %v2872
      %v2885 = vsel %vm1852, %v2861, %v2873
      %v2886 = vsel %vm1852, %v2862, %v2874
      %v2887 = vsel %vm1852, %v2863, %v2875
      %v2888 = vsel %vm1852, %v2864, %v2876
      %v2889 = vsel %vm1852, %v2865, %v2877
      %v2890 = vsel %vm1852, %v2866, %v2878
      %v2891 = vsel %vm1852, %v2867, %v2879
      %v2892 = vsel %vm1852, %v2868, %v2880
      %v2893 = vsel %vm1852, %v2869, %v2881
      %v2894 = vsel %vm1852, %v2870, %v2882
      %v2895 = vsel %vm1852, %v2847, %v2859
      %v2896 = vsel %vm1852, %v2848, %v2860
      %v2897 = vsel %vm1852, %v2849, %v2861
      %v2898 = vsel %vm1852, %v2850, %v2862
      %v2899 = vsel %vm1852, %v2851, %v2863
      %v2900 = vsel %vm1852, %v2852, %v2864
      %v2901 = vsel %vm1852, %v2853, %v2865
      %v2902 = vsel %vm1852, %v2854, %v2866
      %v2903 = vsel %vm1852, %v2855, %v2867
      %v2904 = vsel %vm1852, %v2856, %v2868
      %v2905 = vsel %vm1852, %v2857, %v2869
      %v2906 = vsel %vm1852, %v2858, %v2870
      %v2907 = vld [vmem:[%s3 + $0xe] sm:$0x1]
      %v2908 = vperm.slane %v2907, 0
      %v2909 = vmul.f32 %v2895, %v2908
      %v2910 = vmul.f32 %v2883, %v2908
      %v2911 = vmul.f32 %v2896, %v2908
      %v2912 = vmul.f32 %v2884, %v2908
      %v2913 = vmul.f32 %v2897, %v2908
      %v2914 = vmul.f32 %v2885, %v2908
      %v2915 = vmul.f32 %v2898, %v2908
      %v2916 = vmul.f32 %v2886, %v2908
      %v2917 = vmul.f32 %v2899, %v2908
      %v2918 = vmul.f32 %v2887, %v2908
      %v2919 = vmul.f32 %v2900, %v2908
      %v2920 = vmul.f32 %v2888, %v2908
      %v2921 = vmul.f32 %v2901, %v2908
      %v2922 = vmul.f32 %v2889, %v2908
      %v2923 = vmul.f32 %v2902, %v2908
      %v2924 = vmul.f32 %v2890, %v2908
      %v2925 = vmul.f32 %v2903, %v2908
      %v2926 = vmul.f32 %v2891, %v2908
      %v2927 = vmul.f32 %v2904, %v2908
      %v2928 = vmul.f32 %v2892, %v2908
      %v2929 = vmul.f32 %v2905, %v2908
      %v2930 = vmul.f32 %v2893, %v2908
      %v2931 = vmul.f32 %v2906, %v2908
      %v2932 = vmul.f32 %v2894, %v2908
      %v2933 = vadd.f32 %v2625, %v2711
      %v2934 = vadd.f32 %v2626, %v2712
      %v2935 = vadd.f32 %v2627, %v2713
      %v2936 = vadd.f32 %v2628, %v2714
      %v2937 = vadd.f32 %v2629, %v2715
      %v2938 = vadd.f32 %v2630, %v2716
      %v2939 = vadd.f32 %v2631, %v2717
      %v2940 = vadd.f32 %v2632, %v2718
      %v2941 = vadd.f32 %v2633, %v2719
      %v2942 = vadd.f32 %v2634, %v2720
      %v2943 = vadd.f32 %v2635, %v2721
      %v2944 = vadd.f32 %v2636, %v2722
      %v2945 = vadd.f32 %v2637, %v2723
      %v2946 = vadd.f32 %v2638, %v2724
      %v2947 = vadd.f32 %v2639, %v2725
      %v2948 = vadd.f32 %v2640, %v2726
      %v2949 = vadd.f32 %v2641, %v2727
      %v2950 = vadd.f32 %v2642, %v2728
      %v2951 = vadd.f32 %v2643, %v2729
      %v2952 = vadd.f32 %v2644, %v2730
      %v2953 = vadd.f32 %v2645, %v2731
      %v2954 = vadd.f32 %v2646, %v2732
      %v2955 = vadd.f32 %v2647, %v2733
      %v2956 = vadd.f32 %v2648, %v2734
      %v2957 = vadd.f32 %v2737, %v2823
      %v2958 = vadd.f32 %v2738, %v2824
      %v2959 = vadd.f32 %v2739, %v2825
      %v2960 = vadd.f32 %v2740, %v2826
      %v2961 = vadd.f32 %v2741, %v2827
      %v2962 = vadd.f32 %v2742, %v2828
      %v2963 = vadd.f32 %v2743, %v2829
      %v2964 = vadd.f32 %v2744, %v2830
      %v2965 = vadd.f32 %v2745, %v2831
      %v2966 = vadd.f32 %v2746, %v2832
      %v2967 = vadd.f32 %v2747, %v2833
      %v2968 = vadd.f32 %v2748, %v2834
      %v2969 = vadd.f32 %v2749, %v2835
      %v2970 = vadd.f32 %v2750, %v2836
      %v2971 = vadd.f32 %v2751, %v2837
      %v2972 = vadd.f32 %v2752, %v2838
      %v2973 = vadd.f32 %v2753, %v2839
      %v2974 = vadd.f32 %v2754, %v2840
      %v2975 = vadd.f32 %v2755, %v2841
      %v2976 = vadd.f32 %v2756, %v2842
      %v2977 = vadd.f32 %v2757, %v2843
      %v2978 = vadd.f32 %v2758, %v2844
      %v2979 = vadd.f32 %v2759, %v2845
      %v2980 = vadd.f32 %v2760, %v2846
      %v2981 = vadd.f32 %v2933, %v2957
      %v2982 = vadd.f32 %v2934, %v2958
      %v2983 = vadd.f32 %v2935, %v2959
      %v2984 = vadd.f32 %v2936, %v2960
      %v2985 = vadd.f32 %v2937, %v2961
      %v2986 = vadd.f32 %v2938, %v2962
      %v2987 = vadd.f32 %v2939, %v2963
      %v2988 = vadd.f32 %v2940, %v2964
      %v2989 = vadd.f32 %v2941, %v2965
      %v2990 = vadd.f32 %v2942, %v2966
      %v2991 = vadd.f32 %v2943, %v2967
      %v2992 = vadd.f32 %v2944, %v2968
      %v2993 = vadd.f32 %v2945, %v2969
      %v2994 = vadd.f32 %v2946, %v2970
      %v2995 = vadd.f32 %v2947, %v2971
      %v2996 = vadd.f32 %v2948, %v2972
      %v2997 = vadd.f32 %v2949, %v2973
      %v2998 = vadd.f32 %v2950, %v2974
      %v2999 = vadd.f32 %v2951, %v2975
      %v3000 = vadd.f32 %v2952, %v2976
      %v3001 = vadd.f32 %v2953, %v2977
      %v3002 = vadd.f32 %v2954, %v2978
      %v3003 = vadd.f32 %v2955, %v2979
      %v3004 = vadd.f32 %v2956, %v2980
      %v3005 = vadd.f32 %v2981, %v2909
      %v3006 = vadd.f32 %v2982, %v2910
      %v3007 = vadd.f32 %v2983, %v2911
      %v3008 = vadd.f32 %v2984, %v2912
      %v3009 = vadd.f32 %v2985, %v2913
      %v3010 = vadd.f32 %v2986, %v2914
      %v3011 = vadd.f32 %v2987, %v2915
      %v3012 = vadd.f32 %v2988, %v2916
      %v3013 = vadd.f32 %v2989, %v2917
      %v3014 = vadd.f32 %v2990, %v2918
      %v3015 = vadd.f32 %v2991, %v2919
      %v3016 = vadd.f32 %v2992, %v2920
      %v3017 = vadd.f32 %v2993, %v2921
      %v3018 = vadd.f32 %v2994, %v2922
      %v3019 = vadd.f32 %v2995, %v2923
      %v3020 = vadd.f32 %v2996, %v2924
      %v3021 = vadd.f32 %v2997, %v2925
      %v3022 = vadd.f32 %v2998, %v2926
      %v3023 = vadd.f32 %v2999, %v2927
      %v3024 = vadd.f32 %v3000, %v2928
      %v3025 = vadd.f32 %v3001, %v2929
      %v3026 = vadd.f32 %v3002, %v2930
      %v3027 = vadd.f32 %v3003, %v2931
      %v3028 = vadd.f32 %v3004, %v2932
      %s3029 = scalar_lea.vmem [#allocation2], 96
      %v3030 = vld [vmem:[%s3029] sm:$0xff]
      %v3031 = vld [vmem:[%s3029 + $0x8] sm:$0xff]
      %v3032 = vld [vmem:[%s3029 + $0x10] sm:$0xff]
      %v3033 = vld [vmem:[%s3029 + $0x18] sm:$0xff]
      %v3034 = vld [vmem:[%s3029 + $0x20] sm:$0xff]
      %v3035 = vld [vmem:[%s3029 + $0x28] sm:$0xff]
      %v3036 = vld [vmem:[%s3029 + $0x30] sm:$0xff]
      %v3037 = vld [vmem:[%s3029 + $0x38] sm:$0xff]
      %v3038 = vld [vmem:[%s3029 + $0x40] sm:$0xff]
      %v3039 = vld [vmem:[%s3029 + $0x48] sm:$0xff]
      %v3040 = vld [vmem:[%s3029 + $0x50] sm:$0xff]
      %v3041 = vld [vmem:[%s3029 + $0x58] sm:$0xff]
      %v3042 = vld [vmem:[%s3029 + $0x60] sm:$0xff]
      %v3043 = vld [vmem:[%s3029 + $0x68] sm:$0xff]
      %v3044 = vld [vmem:[%s3029 + $0x70] sm:$0xff]
      %v3045 = vld [vmem:[%s3029 + $0x78] sm:$0xff]
      %v3046 = vld [vmem:[%s3029 + $0x80] sm:$0xff]
      %v3047 = vld [vmem:[%s3029 + $0x88] sm:$0xff]
      %v3048 = vld [vmem:[%s3029 + $0x90] sm:$0xff]
      %v3049 = vld [vmem:[%s3029 + $0x98] sm:$0xff]
      %v3050 = vld [vmem:[%s3029 + $0xa0] sm:$0xff]
      %v3051 = vld [vmem:[%s3029 + $0xa8] sm:$0xff]
      %v3052 = vld [vmem:[%s3029 + $0xb0] sm:$0xff]
      %v3053 = vld [vmem:[%s3029 + $0xb8] sm:$0xff]
      %v3054 = vld [vmem:[%s3029 + $0xc0] sm:$0xff]
      %v3055 = vld [vmem:[%s3029 + $0xc8] sm:$0xff]
      %v3056 = vld [vmem:[%s3029 + $0xd0] sm:$0xff]
      %v3057 = vld [vmem:[%s3029 + $0xd8] sm:$0xff]
      %v3058 = vld [vmem:[%s3029 + $0xe0] sm:$0xff]
      %v3059 = vld [vmem:[%s3029 + $0xe8] sm:$0xff]
      %v3060 = vld [vmem:[%s3029 + $0xf0] sm:$0xff]
      %v3061 = vld [vmem:[%s3029 + $0xf8] sm:$0xff]
      %v3062 = vld [vmem:[%s3029 + $0x100] sm:$0xff]
      %v3063 = vld [vmem:[%s3029 + $0x108] sm:$0xff]
      %v3064 = vld [vmem:[%s3029 + $0x110] sm:$0xff]
      %v3065 = vld [vmem:[%s3029 + $0x118] sm:$0xff]
      %v3066 = vld [vmem:[%s3029 + $0x120] sm:$0xff]
      %v3067 = vld [vmem:[%s3029 + $0x128] sm:$0xff]
      %v3068 = vld [vmem:[%s3029 + $0x130] sm:$0xff]
      %v3069 = vld [vmem:[%s3029 + $0x138] sm:$0xff]
      %v3070 = vld [vmem:[%s3029 + $0x140] sm:$0xff]
      %v3071 = vld [vmem:[%s3029 + $0x148] sm:$0xff]
      %v3072 = vld [vmem:[%s3029 + $0x150] sm:$0xff]
      %v3073 = vld [vmem:[%s3029 + $0x158] sm:$0xff]
      %v3074 = vld [vmem:[%s3029 + $0x160] sm:$0xff]
      %v3075 = vld [vmem:[%s3029 + $0x168] sm:$0xff]
      %v3076 = vld [vmem:[%s3029 + $0x170] sm:$0xff]
      %v3077 = vld [vmem:[%s3029 + $0x178] sm:$0xff]
      %v3078 = vrot.slane %v3030, 6
      %v3079 = vrot.slane %v3034, 6
      %v3080 = vrot.slane %v3038, 6
      %v3081 = vrot.slane %v3042, 6
      %v3082 = vrot.slane %v3046, 6
      %v3083 = vrot.slane %v3050, 6
      %v3084 = vrot.slane %v3054, 6
      %v3085 = vrot.slane %v3058, 6
      %v3086 = vrot.slane %v3062, 6
      %v3087 = vrot.slane %v3066, 6
      %v3088 = vrot.slane %v3070, 6
      %v3089 = vrot.slane %v3074, 6
      %v3090 = vrot.slane %v3031, 6
      %v3091 = vrot.slane %v3035, 6
      %v3092 = vrot.slane %v3039, 6
      %v3093 = vrot.slane %v3043, 6
      %v3094 = vrot.slane %v3047, 6
      %v3095 = vrot.slane %v3051, 6
      %v3096 = vrot.slane %v3055, 6
      %v3097 = vrot.slane %v3059, 6
      %v3098 = vrot.slane %v3063, 6
      %v3099 = vrot.slane %v3067, 6
      %v3100 = vrot.slane %v3071, 6
      %v3101 = vrot.slane %v3075, 6
      %v3102 = vrot.slane %v3032, 6
      %v3103 = vrot.slane %v3036, 6
      %v3104 = vrot.slane %v3040, 6
      %v3105 = vrot.slane %v3044, 6
      %v3106 = vrot.slane %v3048, 6
      %v3107 = vrot.slane %v3052, 6
      %v3108 = vrot.slane %v3056, 6
      %v3109 = vrot.slane %v3060, 6
      %v3110 = vrot.slane %v3064, 6
      %v3111 = vrot.slane %v3068, 6
      %v3112 = vrot.slane %v3072, 6
      %v3113 = vrot.slane %v3076, 6
      %v3114 = vsel %vm1565, %v3090, %v3102
      %v3115 = vsel %vm1565, %v3091, %v3103
      %v3116 = vsel %vm1565, %v3092, %v3104
      %v3117 = vsel %vm1565, %v3093, %v3105
      %v3118 = vsel %vm1565, %v3094, %v3106
      %v3119 = vsel %vm1565, %v3095, %v3107
      %v3120 = vsel %vm1565, %v3096, %v3108
      %v3121 = vsel %vm1565, %v3097, %v3109
      %v3122 = vsel %vm1565, %v3098, %v3110
      %v3123 = vsel %vm1565, %v3099, %v3111
      %v3124 = vsel %vm1565, %v3100, %v3112
      %v3125 = vsel %vm1565, %v3101, %v3113
      %v3126 = vsel %vm1565, %v3078, %v3090
      %v3127 = vsel %vm1565, %v3079, %v3091
      %v3128 = vsel %vm1565, %v3080, %v3092
      %v3129 = vsel %vm1565, %v3081, %v3093
      %v3130 = vsel %vm1565, %v3082, %v3094
      %v3131 = vsel %vm1565, %v3083, %v3095
      %v3132 = vsel %vm1565, %v3084, %v3096
      %v3133 = vsel %vm1565, %v3085, %v3097
      %v3134 = vsel %vm1565, %v3086, %v3098
      %v3135 = vsel %vm1565, %v3087, %v3099
      %v3136 = vsel %vm1565, %v3088, %v3100
      %v3137 = vsel %vm1565, %v3089, %v3101
      %v3138 = vld [vmem:[%s3 + $0xf] sm:$0x1]
      %v3139 = vperm.slane %v3138, 0
      %v3140 = vmul.f32 %v3126, %v3139
      %v3141 = vmul.f32 %v3114, %v3139
      %v3142 = vmul.f32 %v3127, %v3139
      %v3143 = vmul.f32 %v3115, %v3139
      %v3144 = vmul.f32 %v3128, %v3139
      %v3145 = vmul.f32 %v3116, %v3139
      %v3146 = vmul.f32 %v3129, %v3139
      %v3147 = vmul.f32 %v3117, %v3139
      %v3148 = vmul.f32 %v3130, %v3139
      %v3149 = vmul.f32 %v3118, %v3139
      %v3150 = vmul.f32 %v3131, %v3139
      %v3151 = vmul.f32 %v3119, %v3139
      %v3152 = vmul.f32 %v3132, %v3139
      %v3153 = vmul.f32 %v3120, %v3139
      %v3154 = vmul.f32 %v3133, %v3139
      %v3155 = vmul.f32 %v3121, %v3139
      %v3156 = vmul.f32 %v3134, %v3139
      %v3157 = vmul.f32 %v3122, %v3139
      %v3158 = vmul.f32 %v3135, %v3139
      %v3159 = vmul.f32 %v3123, %v3139
      %v3160 = vmul.f32 %v3136, %v3139
      %v3161 = vmul.f32 %v3124, %v3139
      %v3162 = vmul.f32 %v3137, %v3139
      %v3163 = vmul.f32 %v3125, %v3139
      %v3164 = vrot.slane %v3030, 7
      %v3165 = vrot.slane %v3034, 7
      %v3166 = vrot.slane %v3038, 7
      %v3167 = vrot.slane %v3042, 7
      %v3168 = vrot.slane %v3046, 7
      %v3169 = vrot.slane %v3050, 7
      %v3170 = vrot.slane %v3054, 7
      %v3171 = vrot.slane %v3058, 7
      %v3172 = vrot.slane %v3062, 7
      %v3173 = vrot.slane %v3066, 7
      %v3174 = vrot.slane %v3070, 7
      %v3175 = vrot.slane %v3074, 7
      %v3176 = vrot.slane %v3031, 7
      %v3177 = vrot.slane %v3035, 7
      %v3178 = vrot.slane %v3039, 7
      %v3179 = vrot.slane %v3043, 7
      %v3180 = vrot.slane %v3047, 7
      %v3181 = vrot.slane %v3051, 7
      %v3182 = vrot.slane %v3055, 7
      %v3183 = vrot.slane %v3059, 7
      %v3184 = vrot.slane %v3063, 7
      %v3185 = vrot.slane %v3067, 7
      %v3186 = vrot.slane %v3071, 7
      %v3187 = vrot.slane %v3075, 7
      %v3188 = vrot.slane %v3032, 7
      %v3189 = vrot.slane %v3036, 7
      %v3190 = vrot.slane %v3040, 7
      %v3191 = vrot.slane %v3044, 7
      %v3192 = vrot.slane %v3048, 7
      %v3193 = vrot.slane %v3052, 7
      %v3194 = vrot.slane %v3056, 7
      %v3195 = vrot.slane %v3060, 7
      %v3196 = vrot.slane %v3064, 7
      %v3197 = vrot.slane %v3068, 7
      %v3198 = vrot.slane %v3072, 7
      %v3199 = vrot.slane %v3076, 7
      %v3200 = vsel %vm1652, %v3176, %v3188
      %v3201 = vsel %vm1652, %v3177, %v3189
      %v3202 = vsel %vm1652, %v3178, %v3190
      %v3203 = vsel %vm1652, %v3179, %v3191
      %v3204 = vsel %vm1652, %v3180, %v3192
      %v3205 = vsel %vm1652, %v3181, %v3193
      %v3206 = vsel %vm1652, %v3182, %v3194
      %v3207 = vsel %vm1652, %v3183, %v3195
      %v3208 = vsel %vm1652, %v3184, %v3196
      %v3209 = vsel %vm1652, %v3185, %v3197
      %v3210 = vsel %vm1652, %v3186, %v3198
      %v3211 = vsel %vm1652, %v3187, %v3199
      %v3212 = vsel %vm1652, %v3164, %v3176
      %v3213 = vsel %vm1652, %v3165, %v3177
      %v3214 = vsel %vm1652, %v3166, %v3178
      %v3215 = vsel %vm1652, %v3167, %v3179
      %v3216 = vsel %vm1652, %v3168, %v3180
      %v3217 = vsel %vm1652, %v3169, %v3181
      %v3218 = vsel %vm1652, %v3170, %v3182
      %v3219 = vsel %vm1652, %v3171, %v3183
      %v3220 = vsel %vm1652, %v3172, %v3184
      %v3221 = vsel %vm1652, %v3173, %v3185
      %v3222 = vsel %vm1652, %v3174, %v3186
      %v3223 = vsel %vm1652, %v3175, %v3187
      %v3224 = vld [vmem:[%s3 + $0x10] sm:$0x1]
      %v3225 = vperm.slane %v3224, 0
      %v3226 = vmul.f32 %v3212, %v3225
      %v3227 = vmul.f32 %v3200, %v3225
      %v3228 = vmul.f32 %v3213, %v3225
      %v3229 = vmul.f32 %v3201, %v3225
      %v3230 = vmul.f32 %v3214, %v3225
      %v3231 = vmul.f32 %v3202, %v3225
      %v3232 = vmul.f32 %v3215, %v3225
      %v3233 = vmul.f32 %v3203, %v3225
      %v3234 = vmul.f32 %v3216, %v3225
      %v3235 = vmul.f32 %v3204, %v3225
      %v3236 = vmul.f32 %v3217, %v3225
      %v3237 = vmul.f32 %v3205, %v3225
      %v3238 = vmul.f32 %v3218, %v3225
      %v3239 = vmul.f32 %v3206, %v3225
      %v3240 = vmul.f32 %v3219, %v3225
      %v3241 = vmul.f32 %v3207, %v3225
      %v3242 = vmul.f32 %v3220, %v3225
      %v3243 = vmul.f32 %v3208, %v3225
      %v3244 = vmul.f32 %v3221, %v3225
      %v3245 = vmul.f32 %v3209, %v3225
      %v3246 = vmul.f32 %v3222, %v3225
      %v3247 = vmul.f32 %v3210, %v3225
      %v3248 = vmul.f32 %v3223, %v3225
      %v3249 = vmul.f32 %v3211, %v3225
      %v3250 = vld [vmem:[%s3 + $0x11] sm:$0x1]
      %v3251 = vperm.slane %v3250, 0
      %v3252 = vmul.f32 %v3031, %v3251
      %v3253 = vmul.f32 %v3032, %v3251
      %v3254 = vmul.f32 %v3035, %v3251
      %v3255 = vmul.f32 %v3036, %v3251
      %v3256 = vmul.f32 %v3039, %v3251
      %v3257 = vmul.f32 %v3040, %v3251
      %v3258 = vmul.f32 %v3043, %v3251
      %v3259 = vmul.f32 %v3044, %v3251
      %v3260 = vmul.f32 %v3047, %v3251
      %v3261 = vmul.f32 %v3048, %v3251
      %v3262 = vmul.f32 %v3051, %v3251
      %v3263 = vmul.f32 %v3052, %v3251
      %v3264 = vmul.f32 %v3055, %v3251
      %v3265 = vmul.f32 %v3056, %v3251
      %v3266 = vmul.f32 %v3059, %v3251
      %v3267 = vmul.f32 %v3060, %v3251
      %v3268 = vmul.f32 %v3063, %v3251
      %v3269 = vmul.f32 %v3064, %v3251
      %v3270 = vmul.f32 %v3067, %v3251
      %v3271 = vmul.f32 %v3068, %v3251
      %v3272 = vmul.f32 %v3071, %v3251
      %v3273 = vmul.f32 %v3072, %v3251
      %v3274 = vmul.f32 %v3075, %v3251
      %v3275 = vmul.f32 %v3076, %v3251
      %v3276 = vrot.slane %v3031, 1
      %v3277 = vrot.slane %v3035, 1
      %v3278 = vrot.slane %v3039, 1
      %v3279 = vrot.slane %v3043, 1
      %v3280 = vrot.slane %v3047, 1
      %v3281 = vrot.slane %v3051, 1
      %v3282 = vrot.slane %v3055, 1
      %v3283 = vrot.slane %v3059, 1
      %v3284 = vrot.slane %v3063, 1
      %v3285 = vrot.slane %v3067, 1
      %v3286 = vrot.slane %v3071, 1
      %v3287 = vrot.slane %v3075, 1
      %v3288 = vrot.slane %v3032, 1
      %v3289 = vrot.slane %v3036, 1
      %v3290 = vrot.slane %v3040, 1
      %v3291 = vrot.slane %v3044, 1
      %v3292 = vrot.slane %v3048, 1
      %v3293 = vrot.slane %v3052, 1
      %v3294 = vrot.slane %v3056, 1
      %v3295 = vrot.slane %v3060, 1
      %v3296 = vrot.slane %v3064, 1
      %v3297 = vrot.slane %v3068, 1
      %v3298 = vrot.slane %v3072, 1
      %v3299 = vrot.slane %v3076, 1
      %v3300 = vrot.slane %v3033, 1
      %v3301 = vrot.slane %v3037, 1
      %v3302 = vrot.slane %v3041, 1
      %v3303 = vrot.slane %v3045, 1
      %v3304 = vrot.slane %v3049, 1
      %v3305 = vrot.slane %v3053, 1
      %v3306 = vrot.slane %v3057, 1
      %v3307 = vrot.slane %v3061, 1
      %v3308 = vrot.slane %v3065, 1
      %v3309 = vrot.slane %v3069, 1
      %v3310 = vrot.slane %v3073, 1
      %v3311 = vrot.slane %v3077, 1
      %v3312 = vsel %vm1765, %v3288, %v3300
      %v3313 = vsel %vm1765, %v3289, %v3301
      %v3314 = vsel %vm1765, %v3290, %v3302
      %v3315 = vsel %vm1765, %v3291, %v3303
      %v3316 = vsel %vm1765, %v3292, %v3304
      %v3317 = vsel %vm1765, %v3293, %v3305
      %v3318 = vsel %vm1765, %v3294, %v3306
      %v3319 = vsel %vm1765, %v3295, %v3307
      %v3320 = vsel %vm1765, %v3296, %v3308
      %v3321 = vsel %vm1765, %v3297, %v3309
      %v3322 = vsel %vm1765, %v3298, %v3310
      %v3323 = vsel %vm1765, %v3299, %v3311
      %v3324 = vsel %vm1765, %v3276, %v3288
      %v3325 = vsel %vm1765, %v3277, %v3289
      %v3326 = vsel %vm1765, %v3278, %v3290
      %v3327 = vsel %vm1765, %v3279, %v3291
      %v3328 = vsel %vm1765, %v3280, %v3292
      %v3329 = vsel %vm1765, %v3281, %v3293
      %v3330 = vsel %vm1765, %v3282, %v3294
      %v3331 = vsel %vm1765, %v3283, %v3295
      %v3332 = vsel %vm1765, %v3284, %v3296
      %v3333 = vsel %vm1765, %v3285, %v3297
      %v3334 = vsel %vm1765, %v3286, %v3298
      %v3335 = vsel %vm1765, %v3287, %v3299
      %v3336 = vld [vmem:[%s3 + $0x12] sm:$0x1]
      %v3337 = vperm.slane %v3336, 0
      %v3338 = vmul.f32 %v3324, %v3337
      %v3339 = vmul.f32 %v3312, %v3337
      %v3340 = vmul.f32 %v3325, %v3337
      %v3341 = vmul.f32 %v3313, %v3337
      %v3342 = vmul.f32 %v3326, %v3337
      %v3343 = vmul.f32 %v3314, %v3337
      %v3344 = vmul.f32 %v3327, %v3337
      %v3345 = vmul.f32 %v3315, %v3337
      %v3346 = vmul.f32 %v3328, %v3337
      %v3347 = vmul.f32 %v3316, %v3337
      %v3348 = vmul.f32 %v3329, %v3337
      %v3349 = vmul.f32 %v3317, %v3337
      %v3350 = vmul.f32 %v3330, %v3337
      %v3351 = vmul.f32 %v3318, %v3337
      %v3352 = vmul.f32 %v3331, %v3337
      %v3353 = vmul.f32 %v3319, %v3337
      %v3354 = vmul.f32 %v3332, %v3337
      %v3355 = vmul.f32 %v3320, %v3337
      %v3356 = vmul.f32 %v3333, %v3337
      %v3357 = vmul.f32 %v3321, %v3337
      %v3358 = vmul.f32 %v3334, %v3337
      %v3359 = vmul.f32 %v3322, %v3337
      %v3360 = vmul.f32 %v3335, %v3337
      %v3361 = vmul.f32 %v3323, %v3337
      %v3362 = vrot.slane %v3031, 2
      %v3363 = vrot.slane %v3035, 2
      %v3364 = vrot.slane %v3039, 2
      %v3365 = vrot.slane %v3043, 2
      %v3366 = vrot.slane %v3047, 2
      %v3367 = vrot.slane %v3051, 2
      %v3368 = vrot.slane %v3055, 2
      %v3369 = vrot.slane %v3059, 2
      %v3370 = vrot.slane %v3063, 2
      %v3371 = vrot.slane %v3067, 2
      %v3372 = vrot.slane %v3071, 2
      %v3373 = vrot.slane %v3075, 2
      %v3374 = vrot.slane %v3032, 2
      %v3375 = vrot.slane %v3036, 2
      %v3376 = vrot.slane %v3040, 2
      %v3377 = vrot.slane %v3044, 2
      %v3378 = vrot.slane %v3048, 2
      %v3379 = vrot.slane %v3052, 2
      %v3380 = vrot.slane %v3056, 2
      %v3381 = vrot.slane %v3060, 2
      %v3382 = vrot.slane %v3064, 2
      %v3383 = vrot.slane %v3068, 2
      %v3384 = vrot.slane %v3072, 2
      %v3385 = vrot.slane %v3076, 2
      %v3386 = vrot.slane %v3033, 2
      %v3387 = vrot.slane %v3037, 2
      %v3388 = vrot.slane %v3041, 2
      %v3389 = vrot.slane %v3045, 2
      %v3390 = vrot.slane %v3049, 2
      %v3391 = vrot.slane %v3053, 2
      %v3392 = vrot.slane %v3057, 2
      %v3393 = vrot.slane %v3061, 2
      %v3394 = vrot.slane %v3065, 2
      %v3395 = vrot.slane %v3069, 2
      %v3396 = vrot.slane %v3073, 2
      %v3397 = vrot.slane %v3077, 2
      %v3398 = vsel %vm1852, %v3374, %v3386
      %v3399 = vsel %vm1852, %v3375, %v3387
      %v3400 = vsel %vm1852, %v3376, %v3388
      %v3401 = vsel %vm1852, %v3377, %v3389
      %v3402 = vsel %vm1852, %v3378, %v3390
      %v3403 = vsel %vm1852, %v3379, %v3391
      %v3404 = vsel %vm1852, %v3380, %v3392
      %v3405 = vsel %vm1852, %v3381, %v3393
      %v3406 = vsel %vm1852, %v3382, %v3394
      %v3407 = vsel %vm1852, %v3383, %v3395
      %v3408 = vsel %vm1852, %v3384, %v3396
      %v3409 = vsel %vm1852, %v3385, %v3397
      %v3410 = vsel %vm1852, %v3362, %v3374
      %v3411 = vsel %vm1852, %v3363, %v3375
      %v3412 = vsel %vm1852, %v3364, %v3376
      %v3413 = vsel %vm1852, %v3365, %v3377
      %v3414 = vsel %vm1852, %v3366, %v3378
      %v3415 = vsel %vm1852, %v3367, %v3379
      %v3416 = vsel %vm1852, %v3368, %v3380
      %v3417 = vsel %vm1852, %v3369, %v3381
      %v3418 = vsel %vm1852, %v3370, %v3382
      %v3419 = vsel %vm1852, %v3371, %v3383
      %v3420 = vsel %vm1852, %v3372, %v3384
      %v3421 = vsel %vm1852, %v3373, %v3385
      %v3422 = vld [vmem:[%s3 + $0x13] sm:$0x1]
      %v3423 = vperm.slane %v3422, 0
      %v3424 = vmul.f32 %v3410, %v3423
      %v3425 = vmul.f32 %v3398, %v3423
      %v3426 = vmul.f32 %v3411, %v3423
      %v3427 = vmul.f32 %v3399, %v3423
      %v3428 = vmul.f32 %v3412, %v3423
      %v3429 = vmul.f32 %v3400, %v3423
      %v3430 = vmul.f32 %v3413, %v3423
      %v3431 = vmul.f32 %v3401, %v3423
      %v3432 = vmul.f32 %v3414, %v3423
      %v3433 = vmul.f32 %v3402, %v3423
      %v3434 = vmul.f32 %v3415, %v3423
      %v3435 = vmul.f32 %v3403, %v3423
      %v3436 = vmul.f32 %v3416, %v3423
      %v3437 = vmul.f32 %v3404, %v3423
      %v3438 = vmul.f32 %v3417, %v3423
      %v3439 = vmul.f32 %v3405, %v3423
      %v3440 = vmul.f32 %v3418, %v3423
      %v3441 = vmul.f32 %v3406, %v3423
      %v3442 = vmul.f32 %v3419, %v3423
      %v3443 = vmul.f32 %v3407, %v3423
      %v3444 = vmul.f32 %v3420, %v3423
      %v3445 = vmul.f32 %v3408, %v3423
      %v3446 = vmul.f32 %v3421, %v3423
      %v3447 = vmul.f32 %v3409, %v3423
      %v3448 = vadd.f32 %v3140, %v3226
      %v3449 = vadd.f32 %v3141, %v3227
      %v3450 = vadd.f32 %v3142, %v3228
      %v3451 = vadd.f32 %v3143, %v3229
      %v3452 = vadd.f32 %v3144, %v3230
      %v3453 = vadd.f32 %v3145, %v3231
      %v3454 = vadd.f32 %v3146, %v3232
      %v3455 = vadd.f32 %v3147, %v3233
      %v3456 = vadd.f32 %v3148, %v3234
      %v3457 = vadd.f32 %v3149, %v3235
      %v3458 = vadd.f32 %v3150, %v3236
      %v3459 = vadd.f32 %v3151, %v3237
      %v3460 = vadd.f32 %v3152, %v3238
      %v3461 = vadd.f32 %v3153, %v3239
      %v3462 = vadd.f32 %v3154, %v3240
      %v3463 = vadd.f32 %v3155, %v3241
      %v3464 = vadd.f32 %v3156, %v3242
      %v3465 = vadd.f32 %v3157, %v3243
      %v3466 = vadd.f32 %v3158, %v3244
      %v3467 = vadd.f32 %v3159, %v3245
      %v3468 = vadd.f32 %v3160, %v3246
      %v3469 = vadd.f32 %v3161, %v3247
      %v3470 = vadd.f32 %v3162, %v3248
      %v3471 = vadd.f32 %v3163, %v3249
      %v3472 = vadd.f32 %v3252, %v3338
      %v3473 = vadd.f32 %v3253, %v3339
      %v3474 = vadd.f32 %v3254, %v3340
      %v3475 = vadd.f32 %v3255, %v3341
      %v3476 = vadd.f32 %v3256, %v3342
      %v3477 = vadd.f32 %v3257, %v3343
      %v3478 = vadd.f32 %v3258, %v3344
      %v3479 = vadd.f32 %v3259, %v3345
      %v3480 = vadd.f32 %v3260, %v3346
      %v3481 = vadd.f32 %v3261, %v3347
      %v3482 = vadd.f32 %v3262, %v3348
      %v3483 = vadd.f32 %v3263, %v3349
      %v3484 = vadd.f32 %v3264, %v3350
      %v3485 = vadd.f32 %v3265, %v3351
      %v3486 = vadd.f32 %v3266, %v3352
      %v3487 = vadd.f32 %v3267, %v3353
      %v3488 = vadd.f32 %v3268, %v3354
      %v3489 = vadd.f32 %v3269, %v3355
      %v3490 = vadd.f32 %v3270, %v3356
      %v3491 = vadd.f32 %v3271, %v3357
      %v3492 = vadd.f32 %v3272, %v3358
      %v3493 = vadd.f32 %v3273, %v3359
      %v3494 = vadd.f32 %v3274, %v3360
      %v3495 = vadd.f32 %v3275, %v3361
      %v3496 = vadd.f32 %v3448, %v3472
      %v3497 = vadd.f32 %v3449, %v3473
      %v3498 = vadd.f32 %v3450, %v3474
      %v3499 = vadd.f32 %v3451, %v3475
      %v3500 = vadd.f32 %v3452, %v3476
      %v3501 = vadd.f32 %v3453, %v3477
      %v3502 = vadd.f32 %v3454, %v3478
      %v3503 = vadd.f32 %v3455, %v3479
      %v3504 = vadd.f32 %v3456, %v3480
      %v3505 = vadd.f32 %v3457, %v3481
      %v3506 = vadd.f32 %v3458, %v3482
      %v3507 = vadd.f32 %v3459, %v3483
      %v3508 = vadd.f32 %v3460, %v3484
      %v3509 = vadd.f32 %v3461, %v3485
      %v3510 = vadd.f32 %v3462, %v3486
      %v3511 = vadd.f32 %v3463, %v3487
      %v3512 = vadd.f32 %v3464, %v3488
      %v3513 = vadd.f32 %v3465, %v3489
      %v3514 = vadd.f32 %v3466, %v3490
      %v3515 = vadd.f32 %v3467, %v3491
      %v3516 = vadd.f32 %v3468, %v3492
      %v3517 = vadd.f32 %v3469, %v3493
      %v3518 = vadd.f32 %v3470, %v3494
      %v3519 = vadd.f32 %v3471, %v3495
      %v3520 = vadd.f32 %v3496, %v3424
      %v3521 = vadd.f32 %v3497, %v3425
      %v3522 = vadd.f32 %v3498, %v3426
      %v3523 = vadd.f32 %v3499, %v3427
      %v3524 = vadd.f32 %v3500, %v3428
      %v3525 = vadd.f32 %v3501, %v3429
      %v3526 = vadd.f32 %v3502, %v3430
      %v3527 = vadd.f32 %v3503, %v3431
      %v3528 = vadd.f32 %v3504, %v3432
      %v3529 = vadd.f32 %v3505, %v3433
      %v3530 = vadd.f32 %v3506, %v3434
      %v3531 = vadd.f32 %v3507, %v3435
      %v3532 = vadd.f32 %v3508, %v3436
      %v3533 = vadd.f32 %v3509, %v3437
      %v3534 = vadd.f32 %v3510, %v3438
      %v3535 = vadd.f32 %v3511, %v3439
      %v3536 = vadd.f32 %v3512, %v3440
      %v3537 = vadd.f32 %v3513, %v3441
      %v3538 = vadd.f32 %v3514, %v3442
      %v3539 = vadd.f32 %v3515, %v3443
      %v3540 = vadd.f32 %v3516, %v3444
      %v3541 = vadd.f32 %v3517, %v3445
      %v3542 = vadd.f32 %v3518, %v3446
      %v3543 = vadd.f32 %v3519, %v3447
      %s3544 = scalar_lea.vmem [#allocation2], 128
      %v3545 = vld [vmem:[%s3544] sm:$0xff]
      %v3546 = vld [vmem:[%s3544 + $0x8] sm:$0xff]
      %v3547 = vld [vmem:[%s3544 + $0x10] sm:$0xff]
      %v3548 = vld [vmem:[%s3544 + $0x18] sm:$0xff]
      %v3549 = vld [vmem:[%s3544 + $0x20] sm:$0xff]
      %v3550 = vld [vmem:[%s3544 + $0x28] sm:$0xff]
      %v3551 = vld [vmem:[%s3544 + $0x30] sm:$0xff]
      %v3552 = vld [vmem:[%s3544 + $0x38] sm:$0xff]
      %v3553 = vld [vmem:[%s3544 + $0x40] sm:$0xff]
      %v3554 = vld [vmem:[%s3544 + $0x48] sm:$0xff]
      %v3555 = vld [vmem:[%s3544 + $0x50] sm:$0xff]
      %v3556 = vld [vmem:[%s3544 + $0x58] sm:$0xff]
      %v3557 = vld [vmem:[%s3544 + $0x60] sm:$0xff]
      %v3558 = vld [vmem:[%s3544 + $0x68] sm:$0xff]
      %v3559 = vld [vmem:[%s3544 + $0x70] sm:$0xff]
      %v3560 = vld [vmem:[%s3544 + $0x78] sm:$0xff]
      %v3561 = vld [vmem:[%s3544 + $0x80] sm:$0xff]
      %v3562 = vld [vmem:[%s3544 + $0x88] sm:$0xff]
      %v3563 = vld [vmem:[%s3544 + $0x90] sm:$0xff]
      %v3564 = vld [vmem:[%s3544 + $0x98] sm:$0xff]
      %v3565 = vld [vmem:[%s3544 + $0xa0] sm:$0xff]
      %v3566 = vld [vmem:[%s3544 + $0xa8] sm:$0xff]
      %v3567 = vld [vmem:[%s3544 + $0xb0] sm:$0xff]
      %v3568 = vld [vmem:[%s3544 + $0xb8] sm:$0xff]
      %v3569 = vld [vmem:[%s3544 + $0xc0] sm:$0xff]
      %v3570 = vld [vmem:[%s3544 + $0xc8] sm:$0xff]
      %v3571 = vld [vmem:[%s3544 + $0xd0] sm:$0xff]
      %v3572 = vld [vmem:[%s3544 + $0xd8] sm:$0xff]
      %v3573 = vld [vmem:[%s3544 + $0xe0] sm:$0xff]
      %v3574 = vld [vmem:[%s3544 + $0xe8] sm:$0xff]
      %v3575 = vld [vmem:[%s3544 + $0xf0] sm:$0xff]
      %v3576 = vld [vmem:[%s3544 + $0xf8] sm:$0xff]
      %v3577 = vld [vmem:[%s3544 + $0x100] sm:$0xff]
      %v3578 = vld [vmem:[%s3544 + $0x108] sm:$0xff]
      %v3579 = vld [vmem:[%s3544 + $0x110] sm:$0xff]
      %v3580 = vld [vmem:[%s3544 + $0x118] sm:$0xff]
      %v3581 = vld [vmem:[%s3544 + $0x120] sm:$0xff]
      %v3582 = vld [vmem:[%s3544 + $0x128] sm:$0xff]
      %v3583 = vld [vmem:[%s3544 + $0x130] sm:$0xff]
      %v3584 = vld [vmem:[%s3544 + $0x138] sm:$0xff]
      %v3585 = vld [vmem:[%s3544 + $0x140] sm:$0xff]
      %v3586 = vld [vmem:[%s3544 + $0x148] sm:$0xff]
      %v3587 = vld [vmem:[%s3544 + $0x150] sm:$0xff]
      %v3588 = vld [vmem:[%s3544 + $0x158] sm:$0xff]
      %v3589 = vld [vmem:[%s3544 + $0x160] sm:$0xff]
      %v3590 = vld [vmem:[%s3544 + $0x168] sm:$0xff]
      %v3591 = vld [vmem:[%s3544 + $0x170] sm:$0xff]
      %v3592 = vld [vmem:[%s3544 + $0x178] sm:$0xff]
      %v3593 = vrot.slane %v3545, 6
      %v3594 = vrot.slane %v3549, 6
      %v3595 = vrot.slane %v3553, 6
      %v3596 = vrot.slane %v3557, 6
      %v3597 = vrot.slane %v3561, 6
      %v3598 = vrot.slane %v3565, 6
      %v3599 = vrot.slane %v3569, 6
      %v3600 = vrot.slane %v3573, 6
      %v3601 = vrot.slane %v3577, 6
      %v3602 = vrot.slane %v3581, 6
      %v3603 = vrot.slane %v3585, 6
      %v3604 = vrot.slane %v3589, 6
      %v3605 = vrot.slane %v3546, 6
      %v3606 = vrot.slane %v3550, 6
      %v3607 = vrot.slane %v3554, 6
      %v3608 = vrot.slane %v3558, 6
      %v3609 = vrot.slane %v3562, 6
      %v3610 = vrot.slane %v3566, 6
      %v3611 = vrot.slane %v3570, 6
      %v3612 = vrot.slane %v3574, 6
      %v3613 = vrot.slane %v3578, 6
      %v3614 = vrot.slane %v3582, 6
      %v3615 = vrot.slane %v3586, 6
      %v3616 = vrot.slane %v3590, 6
      %v3617 = vrot.slane %v3547, 6
      %v3618 = vrot.slane %v3551, 6
      %v3619 = vrot.slane %v3555, 6
      %v3620 = vrot.slane %v3559, 6
      %v3621 = vrot.slane %v3563, 6
      %v3622 = vrot.slane %v3567, 6
      %v3623 = vrot.slane %v3571, 6
      %v3624 = vrot.slane %v3575, 6
      %v3625 = vrot.slane %v3579, 6
      %v3626 = vrot.slane %v3583, 6
      %v3627 = vrot.slane %v3587, 6
      %v3628 = vrot.slane %v3591, 6
      %v3629 = vsel %vm1565, %v3605, %v3617
      %v3630 = vsel %vm1565, %v3606, %v3618
      %v3631 = vsel %vm1565, %v3607, %v3619
      %v3632 = vsel %vm1565, %v3608, %v3620
      %v3633 = vsel %vm1565, %v3609, %v3621
      %v3634 = vsel %vm1565, %v3610, %v3622
      %v3635 = vsel %vm1565, %v3611, %v3623
      %v3636 = vsel %vm1565, %v3612, %v3624
      %v3637 = vsel %vm1565, %v3613, %v3625
      %v3638 = vsel %vm1565, %v3614, %v3626
      %v3639 = vsel %vm1565, %v3615, %v3627
      %v3640 = vsel %vm1565, %v3616, %v3628
      %v3641 = vsel %vm1565, %v3593, %v3605
      %v3642 = vsel %vm1565, %v3594, %v3606
      %v3643 = vsel %vm1565, %v3595, %v3607
      %v3644 = vsel %vm1565, %v3596, %v3608
      %v3645 = vsel %vm1565, %v3597, %v3609
      %v3646 = vsel %vm1565, %v3598, %v3610
      %v3647 = vsel %vm1565, %v3599, %v3611
      %v3648 = vsel %vm1565, %v3600, %v3612
      %v3649 = vsel %vm1565, %v3601, %v3613
      %v3650 = vsel %vm1565, %v3602, %v3614
      %v3651 = vsel %vm1565, %v3603, %v3615
      %v3652 = vsel %vm1565, %v3604, %v3616
      %v3653 = vld [vmem:[%s3 + $0x14] sm:$0x1]
      %v3654 = vperm.slane %v3653, 0
      %v3655 = vmul.f32 %v3641, %v3654
      %v3656 = vmul.f32 %v3629, %v3654
      %v3657 = vmul.f32 %v3642, %v3654
      %v3658 = vmul.f32 %v3630, %v3654
      %v3659 = vmul.f32 %v3643, %v3654
      %v3660 = vmul.f32 %v3631, %v3654
      %v3661 = vmul.f32 %v3644, %v3654
      %v3662 = vmul.f32 %v3632, %v3654
      %v3663 = vmul.f32 %v3645, %v3654
      %v3664 = vmul.f32 %v3633, %v3654
      %v3665 = vmul.f32 %v3646, %v3654
      %v3666 = vmul.f32 %v3634, %v3654
      %v3667 = vmul.f32 %v3647, %v3654
      %v3668 = vmul.f32 %v3635, %v3654
      %v3669 = vmul.f32 %v3648, %v3654
      %v3670 = vmul.f32 %v3636, %v3654
      %v3671 = vmul.f32 %v3649, %v3654
      %v3672 = vmul.f32 %v3637, %v3654
      %v3673 = vmul.f32 %v3650, %v3654
      %v3674 = vmul.f32 %v3638, %v3654
      %v3675 = vmul.f32 %v3651, %v3654
      %v3676 = vmul.f32 %v3639, %v3654
      %v3677 = vmul.f32 %v3652, %v3654
      %v3678 = vmul.f32 %v3640, %v3654
      %v3679 = vrot.slane %v3545, 7
      %v3680 = vrot.slane %v3549, 7
      %v3681 = vrot.slane %v3553, 7
      %v3682 = vrot.slane %v3557, 7
      %v3683 = vrot.slane %v3561, 7
      %v3684 = vrot.slane %v3565, 7
      %v3685 = vrot.slane %v3569, 7
      %v3686 = vrot.slane %v3573, 7
      %v3687 = vrot.slane %v3577, 7
      %v3688 = vrot.slane %v3581, 7
      %v3689 = vrot.slane %v3585, 7
      %v3690 = vrot.slane %v3589, 7
      %v3691 = vrot.slane %v3546, 7
      %v3692 = vrot.slane %v3550, 7
      %v3693 = vrot.slane %v3554, 7
      %v3694 = vrot.slane %v3558, 7
      %v3695 = vrot.slane %v3562, 7
      %v3696 = vrot.slane %v3566, 7
      %v3697 = vrot.slane %v3570, 7
      %v3698 = vrot.slane %v3574, 7
      %v3699 = vrot.slane %v3578, 7
      %v3700 = vrot.slane %v3582, 7
      %v3701 = vrot.slane %v3586, 7
      %v3702 = vrot.slane %v3590, 7
      %v3703 = vrot.slane %v3547, 7
      %v3704 = vrot.slane %v3551, 7
      %v3705 = vrot.slane %v3555, 7
      %v3706 = vrot.slane %v3559, 7
      %v3707 = vrot.slane %v3563, 7
      %v3708 = vrot.slane %v3567, 7
      %v3709 = vrot.slane %v3571, 7
      %v3710 = vrot.slane %v3575, 7
      %v3711 = vrot.slane %v3579, 7
      %v3712 = vrot.slane %v3583, 7
      %v3713 = vrot.slane %v3587, 7
      %v3714 = vrot.slane %v3591, 7
      %v3715 = vsel %vm1652, %v3691, %v3703
      %v3716 = vsel %vm1652, %v3692, %v3704
      %v3717 = vsel %vm1652, %v3693, %v3705
      %v3718 = vsel %vm1652, %v3694, %v3706
      %v3719 = vsel %vm1652, %v3695, %v3707
      %v3720 = vsel %vm1652, %v3696, %v3708
      %v3721 = vsel %vm1652, %v3697, %v3709
      %v3722 = vsel %vm1652, %v3698, %v3710
      %v3723 = vsel %vm1652, %v3699, %v3711
      %v3724 = vsel %vm1652, %v3700, %v3712
      %v3725 = vsel %vm1652, %v3701, %v3713
      %v3726 = vsel %vm1652, %v3702, %v3714
      %v3727 = vsel %vm1652, %v3679, %v3691
      %v3728 = vsel %vm1652, %v3680, %v3692
      %v3729 = vsel %vm1652, %v3681, %v3693
      %v3730 = vsel %vm1652, %v3682, %v3694
      %v3731 = vsel %vm1652, %v3683, %v3695
      %v3732 = vsel %vm1652, %v3684, %v3696
      %v3733 = vsel %vm1652, %v3685, %v3697
      %v3734 = vsel %vm1652, %v3686, %v3698
      %v3735 = vsel %vm1652, %v3687, %v3699
      %v3736 = vsel %vm1652, %v3688, %v3700
      %v3737 = vsel %vm1652, %v3689, %v3701
      %v3738 = vsel %vm1652, %v3690, %v3702
      %v3739 = vld [vmem:[%s3 + $0x15] sm:$0x1]
      %v3740 = vperm.slane %v3739, 0
      %v3741 = vmul.f32 %v3727, %v3740
      %v3742 = vmul.f32 %v3715, %v3740
      %v3743 = vmul.f32 %v3728, %v3740
      %v3744 = vmul.f32 %v3716, %v3740
      %v3745 = vmul.f32 %v3729, %v3740
      %v3746 = vmul.f32 %v3717, %v3740
      %v3747 = vmul.f32 %v3730, %v3740
      %v3748 = vmul.f32 %v3718, %v3740
      %v3749 = vmul.f32 %v3731, %v3740
      %v3750 = vmul.f32 %v3719, %v3740
      %v3751 = vmul.f32 %v3732, %v3740
      %v3752 = vmul.f32 %v3720, %v3740
      %v3753 = vmul.f32 %v3733, %v3740
      %v3754 = vmul.f32 %v3721, %v3740
      %v3755 = vmul.f32 %v3734, %v3740
      %v3756 = vmul.f32 %v3722, %v3740
      %v3757 = vmul.f32 %v3735, %v3740
      %v3758 = vmul.f32 %v3723, %v3740
      %v3759 = vmul.f32 %v3736, %v3740
      %v3760 = vmul.f32 %v3724, %v3740
      %v3761 = vmul.f32 %v3737, %v3740
      %v3762 = vmul.f32 %v3725, %v3740
      %v3763 = vmul.f32 %v3738, %v3740
      %v3764 = vmul.f32 %v3726, %v3740
      %v3765 = vld [vmem:[%s3 + $0x16] sm:$0x1]
      %v3766 = vperm.slane %v3765, 0
      %v3767 = vmul.f32 %v3546, %v3766
      %v3768 = vmul.f32 %v3547, %v3766
      %v3769 = vmul.f32 %v3550, %v3766
      %v3770 = vmul.f32 %v3551, %v3766
      %v3771 = vmul.f32 %v3554, %v3766
      %v3772 = vmul.f32 %v3555, %v3766
      %v3773 = vmul.f32 %v3558, %v3766
      %v3774 = vmul.f32 %v3559, %v3766
      %v3775 = vmul.f32 %v3562, %v3766
      %v3776 = vmul.f32 %v3563, %v3766
      %v3777 = vmul.f32 %v3566, %v3766
      %v3778 = vmul.f32 %v3567, %v3766
      %v3779 = vmul.f32 %v3570, %v3766
      %v3780 = vmul.f32 %v3571, %v3766
      %v3781 = vmul.f32 %v3574, %v3766
      %v3782 = vmul.f32 %v3575, %v3766
      %v3783 = vmul.f32 %v3578, %v3766
      %v3784 = vmul.f32 %v3579, %v3766
      %v3785 = vmul.f32 %v3582, %v3766
      %v3786 = vmul.f32 %v3583, %v3766
      %v3787 = vmul.f32 %v3586, %v3766
      %v3788 = vmul.f32 %v3587, %v3766
      %v3789 = vmul.f32 %v3590, %v3766
      %v3790 = vmul.f32 %v3591, %v3766
      %v3791 = vrot.slane %v3546, 1
      %v3792 = vrot.slane %v3550, 1
      %v3793 = vrot.slane %v3554, 1
      %v3794 = vrot.slane %v3558, 1
      %v3795 = vrot.slane %v3562, 1
      %v3796 = vrot.slane %v3566, 1
      %v3797 = vrot.slane %v3570, 1
      %v3798 = vrot.slane %v3574, 1
      %v3799 = vrot.slane %v3578, 1
      %v3800 = vrot.slane %v3582, 1
      %v3801 = vrot.slane %v3586, 1
      %v3802 = vrot.slane %v3590, 1
      %v3803 = vrot.slane %v3547, 1
      %v3804 = vrot.slane %v3551, 1
      %v3805 = vrot.slane %v3555, 1
      %v3806 = vrot.slane %v3559, 1
      %v3807 = vrot.slane %v3563, 1
      %v3808 = vrot.slane %v3567, 1
      %v3809 = vrot.slane %v3571, 1
      %v3810 = vrot.slane %v3575, 1
      %v3811 = vrot.slane %v3579, 1
      %v3812 = vrot.slane %v3583, 1
      %v3813 = vrot.slane %v3587, 1
      %v3814 = vrot.slane %v3591, 1
      %v3815 = vrot.slane %v3548, 1
      %v3816 = vrot.slane %v3552, 1
      %v3817 = vrot.slane %v3556, 1
      %v3818 = vrot.slane %v3560, 1
      %v3819 = vrot.slane %v3564, 1
      %v3820 = vrot.slane %v3568, 1
      %v3821 = vrot.slane %v3572, 1
      %v3822 = vrot.slane %v3576, 1
      %v3823 = vrot.slane %v3580, 1
      %v3824 = vrot.slane %v3584, 1
      %v3825 = vrot.slane %v3588, 1
      %v3826 = vrot.slane %v3592, 1
      %v3827 = vsel %vm1765, %v3803, %v3815
      %v3828 = vsel %vm1765, %v3804, %v3816
      %v3829 = vsel %vm1765, %v3805, %v3817
      %v3830 = vsel %vm1765, %v3806, %v3818
      %v3831 = vsel %vm1765, %v3807, %v3819
      %v3832 = vsel %vm1765, %v3808, %v3820
      %v3833 = vsel %vm1765, %v3809, %v3821
      %v3834 = vsel %vm1765, %v3810, %v3822
      %v3835 = vsel %vm1765, %v3811, %v3823
      %v3836 = vsel %vm1765, %v3812, %v3824
      %v3837 = vsel %vm1765, %v3813, %v3825
      %v3838 = vsel %vm1765, %v3814, %v3826
      %v3839 = vsel %vm1765, %v3791, %v3803
      %v3840 = vsel %vm1765, %v3792, %v3804
      %v3841 = vsel %vm1765, %v3793, %v3805
      %v3842 = vsel %vm1765, %v3794, %v3806
      %v3843 = vsel %vm1765, %v3795, %v3807
      %v3844 = vsel %vm1765, %v3796, %v3808
      %v3845 = vsel %vm1765, %v3797, %v3809
      %v3846 = vsel %vm1765, %v3798, %v3810
      %v3847 = vsel %vm1765, %v3799, %v3811
      %v3848 = vsel %vm1765, %v3800, %v3812
      %v3849 = vsel %vm1765, %v3801, %v3813
      %v3850 = vsel %vm1765, %v3802, %v3814
      %v3851 = vld [vmem:[%s3 + $0x17] sm:$0x1]
      %v3852 = vperm.slane %v3851, 0
      %v3853 = vmul.f32 %v3839, %v3852
      %v3854 = vmul.f32 %v3827, %v3852
      %v3855 = vmul.f32 %v3840, %v3852
      %v3856 = vmul.f32 %v3828, %v3852
      %v3857 = vmul.f32 %v3841, %v3852
      %v3858 = vmul.f32 %v3829, %v3852
      %v3859 = vmul.f32 %v3842, %v3852
      %v3860 = vmul.f32 %v3830, %v3852
      %v3861 = vmul.f32 %v3843, %v3852
      %v3862 = vmul.f32 %v3831, %v3852
      %v3863 = vmul.f32 %v3844, %v3852
      %v3864 = vmul.f32 %v3832, %v3852
      %v3865 = vmul.f32 %v3845, %v3852
      %v3866 = vmul.f32 %v3833, %v3852
      %v3867 = vmul.f32 %v3846, %v3852
      %v3868 = vmul.f32 %v3834, %v3852
      %v3869 = vmul.f32 %v3847, %v3852
      %v3870 = vmul.f32 %v3835, %v3852
      %v3871 = vmul.f32 %v3848, %v3852
      %v3872 = vmul.f32 %v3836, %v3852
      %v3873 = vmul.f32 %v3849, %v3852
      %v3874 = vmul.f32 %v3837, %v3852
      %v3875 = vmul.f32 %v3850, %v3852
      %v3876 = vmul.f32 %v3838, %v3852
      %v3877 = vrot.slane %v3546, 2
      %v3878 = vrot.slane %v3550, 2
      %v3879 = vrot.slane %v3554, 2
      %v3880 = vrot.slane %v3558, 2
      %v3881 = vrot.slane %v3562, 2
      %v3882 = vrot.slane %v3566, 2
      %v3883 = vrot.slane %v3570, 2
      %v3884 = vrot.slane %v3574, 2
      %v3885 = vrot.slane %v3578, 2
      %v3886 = vrot.slane %v3582, 2
      %v3887 = vrot.slane %v3586, 2
      %v3888 = vrot.slane %v3590, 2
      %v3889 = vrot.slane %v3547, 2
      %v3890 = vrot.slane %v3551, 2
      %v3891 = vrot.slane %v3555, 2
      %v3892 = vrot.slane %v3559, 2
      %v3893 = vrot.slane %v3563, 2
      %v3894 = vrot.slane %v3567, 2
      %v3895 = vrot.slane %v3571, 2
      %v3896 = vrot.slane %v3575, 2
      %v3897 = vrot.slane %v3579, 2
      %v3898 = vrot.slane %v3583, 2
      %v3899 = vrot.slane %v3587, 2
      %v3900 = vrot.slane %v3591, 2
      %v3901 = vrot.slane %v3548, 2
      %v3902 = vrot.slane %v3552, 2
      %v3903 = vrot.slane %v3556, 2
      %v3904 = vrot.slane %v3560, 2
      %v3905 = vrot.slane %v3564, 2
      %v3906 = vrot.slane %v3568, 2
      %v3907 = vrot.slane %v3572, 2
      %v3908 = vrot.slane %v3576, 2
      %v3909 = vrot.slane %v3580, 2
      %v3910 = vrot.slane %v3584, 2
      %v3911 = vrot.slane %v3588, 2
      %v3912 = vrot.slane %v3592, 2
      %v3913 = vsel %vm1852, %v3889, %v3901
      %v3914 = vsel %vm1852, %v3890, %v3902
      %v3915 = vsel %vm1852, %v3891, %v3903
      %v3916 = vsel %vm1852, %v3892, %v3904
      %v3917 = vsel %vm1852, %v3893, %v3905
      %v3918 = vsel %vm1852, %v3894, %v3906
      %v3919 = vsel %vm1852, %v3895, %v3907
      %v3920 = vsel %vm1852, %v3896, %v3908
      %v3921 = vsel %vm1852, %v3897, %v3909
      %v3922 = vsel %vm1852, %v3898, %v3910
      %v3923 = vsel %vm1852, %v3899, %v3911
      %v3924 = vsel %vm1852, %v3900, %v3912
      %v3925 = vsel %vm1852, %v3877, %v3889
      %v3926 = vsel %vm1852, %v3878, %v3890
      %v3927 = vsel %vm1852, %v3879, %v3891
      %v3928 = vsel %vm1852, %v3880, %v3892
      %v3929 = vsel %vm1852, %v3881, %v3893
      %v3930 = vsel %vm1852, %v3882, %v3894
      %v3931 = vsel %vm1852, %v3883, %v3895
      %v3932 = vsel %vm1852, %v3884, %v3896
      %v3933 = vsel %vm1852, %v3885, %v3897
      %v3934 = vsel %vm1852, %v3886, %v3898
      %v3935 = vsel %vm1852, %v3887, %v3899
      %v3936 = vsel %vm1852, %v3888, %v3900
      %v3937 = vld [vmem:[%s3 + $0x18] sm:$0x1]
      %v3938 = vperm.slane %v3937, 0
      %v3939 = vmul.f32 %v3925, %v3938
      %v3940 = vmul.f32 %v3913, %v3938
      %v3941 = vmul.f32 %v3926, %v3938
      %v3942 = vmul.f32 %v3914, %v3938
      %v3943 = vmul.f32 %v3927, %v3938
      %v3944 = vmul.f32 %v3915, %v3938
      %v3945 = vmul.f32 %v3928, %v3938
      %v3946 = vmul.f32 %v3916, %v3938
      %v3947 = vmul.f32 %v3929, %v3938
      %v3948 = vmul.f32 %v3917, %v3938
      %v3949 = vmul.f32 %v3930, %v3938
      %v3950 = vmul.f32 %v3918, %v3938
      %v3951 = vmul.f32 %v3931, %v3938
      %v3952 = vmul.f32 %v3919, %v3938
      %v3953 = vmul.f32 %v3932, %v3938
      %v3954 = vmul.f32 %v3920, %v3938
      %v3955 = vmul.f32 %v3933, %v3938
      %v3956 = vmul.f32 %v3921, %v3938
      %v3957 = vmul.f32 %v3934, %v3938
      %v3958 = vmul.f32 %v3922, %v3938
      %v3959 = vmul.f32 %v3935, %v3938
      %v3960 = vmul.f32 %v3923, %v3938
      %v3961 = vmul.f32 %v3936, %v3938
      %v3962 = vmul.f32 %v3924, %v3938
      %v3963 = vadd.f32 %v3655, %v3741
      %v3964 = vadd.f32 %v3656, %v3742
      %v3965 = vadd.f32 %v3657, %v3743
      %v3966 = vadd.f32 %v3658, %v3744
      %v3967 = vadd.f32 %v3659, %v3745
      %v3968 = vadd.f32 %v3660, %v3746
      %v3969 = vadd.f32 %v3661, %v3747
      %v3970 = vadd.f32 %v3662, %v3748
      %v3971 = vadd.f32 %v3663, %v3749
      %v3972 = vadd.f32 %v3664, %v3750
      %v3973 = vadd.f32 %v3665, %v3751
      %v3974 = vadd.f32 %v3666, %v3752
      %v3975 = vadd.f32 %v3667, %v3753
      %v3976 = vadd.f32 %v3668, %v3754
      %v3977 = vadd.f32 %v3669, %v3755
      %v3978 = vadd.f32 %v3670, %v3756
      %v3979 = vadd.f32 %v3671, %v3757
      %v3980 = vadd.f32 %v3672, %v3758
      %v3981 = vadd.f32 %v3673, %v3759
      %v3982 = vadd.f32 %v3674, %v3760
      %v3983 = vadd.f32 %v3675, %v3761
      %v3984 = vadd.f32 %v3676, %v3762
      %v3985 = vadd.f32 %v3677, %v3763
      %v3986 = vadd.f32 %v3678, %v3764
      %v3987 = vadd.f32 %v3767, %v3853
      %v3988 = vadd.f32 %v3768, %v3854
      %v3989 = vadd.f32 %v3769, %v3855
      %v3990 = vadd.f32 %v3770, %v3856
      %v3991 = vadd.f32 %v3771, %v3857
      %v3992 = vadd.f32 %v3772, %v3858
      %v3993 = vadd.f32 %v3773, %v3859
      %v3994 = vadd.f32 %v3774, %v3860
      %v3995 = vadd.f32 %v3775, %v3861
      %v3996 = vadd.f32 %v3776, %v3862
      %v3997 = vadd.f32 %v3777, %v3863
      %v3998 = vadd.f32 %v3778, %v3864
      %v3999 = vadd.f32 %v3779, %v3865
      %v4000 = vadd.f32 %v3780, %v3866
      %v4001 = vadd.f32 %v3781, %v3867
      %v4002 = vadd.f32 %v3782, %v3868
      %v4003 = vadd.f32 %v3783, %v3869
      %v4004 = vadd.f32 %v3784, %v3870
      %v4005 = vadd.f32 %v3785, %v3871
      %v4006 = vadd.f32 %v3786, %v3872
      %v4007 = vadd.f32 %v3787, %v3873
      %v4008 = vadd.f32 %v3788, %v3874
      %v4009 = vadd.f32 %v3789, %v3875
      %v4010 = vadd.f32 %v3790, %v3876
      %v4011 = vadd.f32 %v3963, %v3987
      %v4012 = vadd.f32 %v3964, %v3988
      %v4013 = vadd.f32 %v3965, %v3989
      %v4014 = vadd.f32 %v3966, %v3990
      %v4015 = vadd.f32 %v3967, %v3991
      %v4016 = vadd.f32 %v3968, %v3992
      %v4017 = vadd.f32 %v3969, %v3993
      %v4018 = vadd.f32 %v3970, %v3994
      %v4019 = vadd.f32 %v3971, %v3995
      %v4020 = vadd.f32 %v3972, %v3996
      %v4021 = vadd.f32 %v3973, %v3997
      %v4022 = vadd.f32 %v3974, %v3998
      %v4023 = vadd.f32 %v3975, %v3999
      %v4024 = vadd.f32 %v3976, %v4000
      %v4025 = vadd.f32 %v3977, %v4001
      %v4026 = vadd.f32 %v3978, %v4002
      %v4027 = vadd.f32 %v3979, %v4003
      %v4028 = vadd.f32 %v3980, %v4004
      %v4029 = vadd.f32 %v3981, %v4005
      %v4030 = vadd.f32 %v3982, %v4006
      %v4031 = vadd.f32 %v3983, %v4007
      %v4032 = vadd.f32 %v3984, %v4008
      %v4033 = vadd.f32 %v3985, %v4009
      %v4034 = vadd.f32 %v3986, %v4010
      %v4035 = vadd.f32 %v4011, %v3939
      %v4036 = vadd.f32 %v4012, %v3940
      %v4037 = vadd.f32 %v4013, %v3941
      %v4038 = vadd.f32 %v4014, %v3942
      %v4039 = vadd.f32 %v4015, %v3943
      %v4040 = vadd.f32 %v4016, %v3944
      %v4041 = vadd.f32 %v4017, %v3945
      %v4042 = vadd.f32 %v4018, %v3946
      %v4043 = vadd.f32 %v4019, %v3947
      %v4044 = vadd.f32 %v4020, %v3948
      %v4045 = vadd.f32 %v4021, %v3949
      %v4046 = vadd.f32 %v4022, %v3950
      %v4047 = vadd.f32 %v4023, %v3951
      %v4048 = vadd.f32 %v4024, %v3952
      %v4049 = vadd.f32 %v4025, %v3953
      %v4050 = vadd.f32 %v4026, %v3954
      %v4051 = vadd.f32 %v4027, %v3955
      %v4052 = vadd.f32 %v4028, %v3956
      %v4053 = vadd.f32 %v4029, %v3957
      %v4054 = vadd.f32 %v4030, %v3958
      %v4055 = vadd.f32 %v4031, %v3959
      %v4056 = vadd.f32 %v4032, %v3960
      %v4057 = vadd.f32 %v4033, %v3961
      %v4058 = vadd.f32 %v4034, %v3962
      %v4059 = vadd.f32 %v1975, %v2490
      %v4060 = vadd.f32 %v1976, %v2491
      %v4061 = vadd.f32 %v1977, %v2492
      %v4062 = vadd.f32 %v1978, %v2493
      %v4063 = vadd.f32 %v1979, %v2494
      %v4064 = vadd.f32 %v1980, %v2495
      %v4065 = vadd.f32 %v1981, %v2496
      %v4066 = vadd.f32 %v1982, %v2497
      %v4067 = vadd.f32 %v1983, %v2498
      %v4068 = vadd.f32 %v1984, %v2499
      %v4069 = vadd.f32 %v1985, %v2500
      %v4070 = vadd.f32 %v1986, %v2501
      %v4071 = vadd.f32 %v1987, %v2502
      %v4072 = vadd.f32 %v1988, %v2503
      %v4073 = vadd.f32 %v1989, %v2504
      %v4074 = vadd.f32 %v1990, %v2505
      %v4075 = vadd.f32 %v1991, %v2506
      %v4076 = vadd.f32 %v1992, %v2507
      %v4077 = vadd.f32 %v1993, %v2508
      %v4078 = vadd.f32 %v1994, %v2509
      %v4079 = vadd.f32 %v1995, %v2510
      %v4080 = vadd.f32 %v1996, %v2511
      %v4081 = vadd.f32 %v1997, %v2512
      %v4082 = vadd.f32 %v1998, %v2513
      %v4083 = vadd.f32 %v3005, %v3520
      %v4084 = vadd.f32 %v3006, %v3521
      %v4085 = vadd.f32 %v3007, %v3522
      %v4086 = vadd.f32 %v3008, %v3523
      %v4087 = vadd.f32 %v3009, %v3524
      %v4088 = vadd.f32 %v3010, %v3525
      %v4089 = vadd.f32 %v3011, %v3526
      %v4090 = vadd.f32 %v3012, %v3527
      %v4091 = vadd.f32 %v3013, %v3528
      %v4092 = vadd.f32 %v3014, %v3529
      %v4093 = vadd.f32 %v3015, %v3530
      %v4094 = vadd.f32 %v3016, %v3531
      %v4095 = vadd.f32 %v3017, %v3532
      %v4096 = vadd.f32 %v3018, %v3533
      %v4097 = vadd.f32 %v3019, %v3534
      %v4098 = vadd.f32 %v3020, %v3535
      %v4099 = vadd.f32 %v3021, %v3536
      %v4100 = vadd.f32 %v3022, %v3537
      %v4101 = vadd.f32 %v3023, %v3538
      %v4102 = vadd.f32 %v3024, %v3539
      %v4103 = vadd.f32 %v3025, %v3540
      %v4104 = vadd.f32 %v3026, %v3541
      %v4105 = vadd.f32 %v3027, %v3542
      %v4106 = vadd.f32 %v3028, %v3543
      %v4107 = vadd.f32 %v4059, %v4083
      %v4108 = vadd.f32 %v4060, %v4084
      %v4109 = vadd.f32 %v4061, %v4085
      %v4110 = vadd.f32 %v4062, %v4086
      %v4111 = vadd.f32 %v4063, %v4087
      %v4112 = vadd.f32 %v4064, %v4088
      %v4113 = vadd.f32 %v4065, %v4089
      %v4114 = vadd.f32 %v4066, %v4090
      %v4115 = vadd.f32 %v4067, %v4091
      %v4116 = vadd.f32 %v4068, %v4092
      %v4117 = vadd.f32 %v4069, %v4093
      %v4118 = vadd.f32 %v4070, %v4094
      %v4119 = vadd.f32 %v4071, %v4095
      %v4120 = vadd.f32 %v4072, %v4096
      %v4121 = vadd.f32 %v4073, %v4097
      %v4122 = vadd.f32 %v4074, %v4098
      %v4123 = vadd.f32 %v4075, %v4099
      %v4124 = vadd.f32 %v4076, %v4100
      %v4125 = vadd.f32 %v4077, %v4101
      %v4126 = vadd.f32 %v4078, %v4102
      %v4127 = vadd.f32 %v4079, %v4103
      %v4128 = vadd.f32 %v4080, %v4104
      %v4129 = vadd.f32 %v4081, %v4105
      %v4130 = vadd.f32 %v4082, %v4106
      %v4131 = vadd.f32 %v4107, %v4035
      %v4132 = vadd.f32 %v4108, %v4036
      %v4133 = vadd.f32 %v4109, %v4037
      %v4134 = vadd.f32 %v4110, %v4038
      %v4135 = vadd.f32 %v4111, %v4039
      %v4136 = vadd.f32 %v4112, %v4040
      %v4137 = vadd.f32 %v4113, %v4041
      %v4138 = vadd.f32 %v4114, %v4042
      %v4139 = vadd.f32 %v4115, %v4043
      %v4140 = vadd.f32 %v4116, %v4044
      %v4141 = vadd.f32 %v4117, %v4045
      %v4142 = vadd.f32 %v4118, %v4046
      %v4143 = vadd.f32 %v4119, %v4047
      %v4144 = vadd.f32 %v4120, %v4048
      %v4145 = vadd.f32 %v4121, %v4049
      %v4146 = vadd.f32 %v4122, %v4050
      %v4147 = vadd.f32 %v4123, %v4051
      %v4148 = vadd.f32 %v4124, %v4052
      %v4149 = vadd.f32 %v4125, %v4053
      %v4150 = vadd.f32 %v4126, %v4054
      %v4151 = vadd.f32 %v4127, %v4055
      %v4152 = vadd.f32 %v4128, %v4056
      %v4153 = vadd.f32 %v4129, %v4057
      %v4154 = vadd.f32 %v4130, %v4058
      %v4155 = vld [vmem:[%s4] sm:$0x1]
      %v4157 = vperm.slane %v4155, 0
      %v4159 = vadd.f32 %v4131, %v4157
      %v4160 = vadd.f32 %v4132, %v4157
      %v4161 = vadd.f32 %v4133, %v4157
      %v4162 = vadd.f32 %v4134, %v4157
      %v4163 = vadd.f32 %v4135, %v4157
      %v4164 = vadd.f32 %v4136, %v4157
      %v4165 = vadd.f32 %v4137, %v4157
      %v4166 = vadd.f32 %v4138, %v4157
      %v4167 = vadd.f32 %v4139, %v4157
      %v4168 = vadd.f32 %v4140, %v4157
      %v4169 = vadd.f32 %v4141, %v4157
      %v4170 = vadd.f32 %v4142, %v4157
      %v4171 = vadd.f32 %v4143, %v4157
      %v4172 = vadd.f32 %v4144, %v4157
      %v4173 = vadd.f32 %v4145, %v4157
      %v4174 = vadd.f32 %v4146, %v4157
      %v4175 = vadd.f32 %v4147, %v4157
      %v4176 = vadd.f32 %v4148, %v4157
      %v4177 = vadd.f32 %v4149, %v4157
      %v4178 = vadd.f32 %v4150, %v4157
      %v4179 = vadd.f32 %v4151, %v4157
      %v4180 = vadd.f32 %v4152, %v4157
      %v4181 = vadd.f32 %v4153, %v4157
      %v4182 = vadd.f32 %v4154, %v4157
      %v4183 = vxor.u32 %v4159, 2147483648
      %v4184 = vxor.u32 %v4160, 2147483648
      %v4185 = vxor.u32 %v4161, 2147483648
      %v4186 = vxor.u32 %v4162, 2147483648
      %v4187 = vxor.u32 %v4163, 2147483648
      %v4188 = vxor.u32 %v4164, 2147483648
      %v4189 = vxor.u32 %v4165, 2147483648
      %v4190 = vxor.u32 %v4166, 2147483648
      %v4191 = vxor.u32 %v4167, 2147483648
      %v4192 = vxor.u32 %v4168, 2147483648
      %v4193 = vxor.u32 %v4169, 2147483648
      %v4194 = vxor.u32 %v4170, 2147483648
      %v4195 = vxor.u32 %v4171, 2147483648
      %v4196 = vxor.u32 %v4172, 2147483648
      %v4197 = vxor.u32 %v4173, 2147483648
      %v4198 = vxor.u32 %v4174, 2147483648
      %v4199 = vxor.u32 %v4175, 2147483648
      %v4200 = vxor.u32 %v4176, 2147483648
      %v4201 = vxor.u32 %v4177, 2147483648
      %v4202 = vxor.u32 %v4178, 2147483648
      %v4203 = vxor.u32 %v4179, 2147483648
      %v4204 = vxor.u32 %v4180, 2147483648
      %v4205 = vxor.u32 %v4181, 2147483648
      %v4206 = vxor.u32 %v4182, 2147483648
      %v4207 = vmul.f32 %v4183, 1.442695
      %v4208 = vpow.pop %v4207
      %v4209 = vmul.f32 %v4184, 1.442695
      %v4210 = vpow.pop %v4209
      %v4211 = vmul.f32 %v4185, 1.442695
      %v4212 = vpow.pop %v4211
      %v4213 = vmul.f32 %v4186, 1.442695
      %v4214 = vpow.pop %v4213
      %v4215 = vmul.f32 %v4187, 1.442695
      %v4216 = vpow.pop %v4215
      %v4217 = vmul.f32 %v4188, 1.442695
      %v4218 = vpow.pop %v4217
      %v4219 = vmul.f32 %v4189, 1.442695
      %v4220 = vpow.pop %v4219
      %v4221 = vmul.f32 %v4190, 1.442695
      %v4222 = vpow.pop %v4221
      %v4223 = vmul.f32 %v4191, 1.442695
      %v4224 = vpow.pop %v4223
      %v4225 = vmul.f32 %v4192, 1.442695
      %v4226 = vpow.pop %v4225
      %v4227 = vmul.f32 %v4193, 1.442695
      %v4228 = vpow.pop %v4227
      %v4229 = vmul.f32 %v4194, 1.442695
      %v4230 = vpow.pop %v4229
      %v4231 = vmul.f32 %v4195, 1.442695
      %v4232 = vpow.pop %v4231
      %v4233 = vmul.f32 %v4196, 1.442695
      %v4234 = vpow.pop %v4233
      %v4235 = vmul.f32 %v4197, 1.442695
      %v4236 = vpow.pop %v4235
      %v4237 = vmul.f32 %v4198, 1.442695
      %v4238 = vpow.pop %v4237
      %v4239 = vmul.f32 %v4199, 1.442695
      %v4240 = vpow.pop %v4239
      %v4241 = vmul.f32 %v4200, 1.442695
      %v4242 = vpow.pop %v4241
      %v4243 = vmul.f32 %v4201, 1.442695
      %v4244 = vpow.pop %v4243
      %v4245 = vmul.f32 %v4202, 1.442695
      %v4246 = vpow.pop %v4245
      %v4247 = vmul.f32 %v4203, 1.442695
      %v4248 = vpow.pop %v4247
      %v4249 = vmul.f32 %v4204, 1.442695
      %v4250 = vpow.pop %v4249
      %v4251 = vmul.f32 %v4205, 1.442695
      %v4252 = vpow.pop %v4251
      %v4253 = vmul.f32 %v4206, 1.442695
      %v4254 = vpow.pop %v4253
      %v4255 = vadd.f32 %v4208, 1.0
      %v4256 = vadd.f32 %v4210, 1.0
      %v4257 = vadd.f32 %v4212, 1.0
      %v4258 = vadd.f32 %v4214, 1.0
      %v4259 = vadd.f32 %v4216, 1.0
      %v4260 = vadd.f32 %v4218, 1.0
      %v4261 = vadd.f32 %v4220, 1.0
      %v4262 = vadd.f32 %v4222, 1.0
      %v4263 = vadd.f32 %v4224, 1.0
      %v4264 = vadd.f32 %v4226, 1.0
      %v4265 = vadd.f32 %v4228, 1.0
      %v4266 = vadd.f32 %v4230, 1.0
      %v4267 = vadd.f32 %v4232, 1.0
      %v4268 = vadd.f32 %v4234, 1.0
      %v4269 = vadd.f32 %v4236, 1.0
      %v4270 = vadd.f32 %v4238, 1.0
      %v4271 = vadd.f32 %v4240, 1.0
      %v4272 = vadd.f32 %v4242, 1.0
      %v4273 = vadd.f32 %v4244, 1.0
      %v4274 = vadd.f32 %v4246, 1.0
      %v4275 = vadd.f32 %v4248, 1.0
      %v4276 = vadd.f32 %v4250, 1.0
      %v4277 = vadd.f32 %v4252, 1.0
      %v4278 = vadd.f32 %v4254, 1.0
      %v4279 = vrcp.pop %v4255
      %v4280 = vmul.f32 %v4255, %v4279
      %v4281 = vsub.f32 1.0, %v4280
      %v4282 = vmul.f32 %v4279, %v4281
      %v4283 = vadd.f32 %v4279, %v4282
      %vm4284 = vweird.f32 %v4255
      %vm4285 = vweird.f32 %v4279
      %vm4286 = vmor %vm4284, %vm4285
      %v4287 = vsel %vm4286, %v4279, %v4283
      %v4288 = vand.u32 2147483647, %v4255
      %vm4289 = vcmp.eq.f32.partialorder %v4288, 8.507059e+37
      %v4290 = vand.u32 %v4255, 2147483648
      %v4291 = vor.u32 1.1754944e-38, %v4290
      %v4292 = vsel %vm4289, %v4291, %v4287
      %v4293 = vmul.f32 1.0, %v4292
      %v4294 = vrcp.pop %v4256
      %v4295 = vmul.f32 %v4256, %v4294
      %v4296 = vsub.f32 1.0, %v4295
      %v4297 = vmul.f32 %v4294, %v4296
      %v4298 = vadd.f32 %v4294, %v4297
      %vm4299 = vweird.f32 %v4256
      %vm4300 = vweird.f32 %v4294
      %vm4301 = vmor %vm4299, %vm4300
      %v4302 = vsel %vm4301, %v4294, %v4298
      %v4303 = vand.u32 2147483647, %v4256
      %vm4304 = vcmp.eq.f32.partialorder %v4303, 8.507059e+37
      %v4305 = vand.u32 %v4256, 2147483648
      %v4306 = vor.u32 1.1754944e-38, %v4305
      %v4307 = vsel %vm4304, %v4306, %v4302
      %v4308 = vmul.f32 1.0, %v4307
      %v4309 = vrcp.pop %v4257
      %v4310 = vmul.f32 %v4257, %v4309
      %v4311 = vsub.f32 1.0, %v4310
      %v4312 = vmul.f32 %v4309, %v4311
      %v4313 = vadd.f32 %v4309, %v4312
      %vm4314 = vweird.f32 %v4257
      %vm4315 = vweird.f32 %v4309
      %vm4316 = vmor %vm4314, %vm4315
      %v4317 = vsel %vm4316, %v4309, %v4313
      %v4318 = vand.u32 2147483647, %v4257
      %vm4319 = vcmp.eq.f32.partialorder %v4318, 8.507059e+37
      %v4320 = vand.u32 %v4257, 2147483648
      %v4321 = vor.u32 1.1754944e-38, %v4320
      %v4322 = vsel %vm4319, %v4321, %v4317
      %v4323 = vmul.f32 1.0, %v4322
      %v4324 = vrcp.pop %v4258
      %v4325 = vmul.f32 %v4258, %v4324
      %v4326 = vsub.f32 1.0, %v4325
      %v4327 = vmul.f32 %v4324, %v4326
      %v4328 = vadd.f32 %v4324, %v4327
      %vm4329 = vweird.f32 %v4258
      %vm4330 = vweird.f32 %v4324
      %vm4331 = vmor %vm4329, %vm4330
      %v4332 = vsel %vm4331, %v4324, %v4328
      %v4333 = vand.u32 2147483647, %v4258
      %vm4334 = vcmp.eq.f32.partialorder %v4333, 8.507059e+37
      %v4335 = vand.u32 %v4258, 2147483648
      %v4336 = vor.u32 1.1754944e-38, %v4335
      %v4337 = vsel %vm4334, %v4336, %v4332
      %v4338 = vmul.f32 1.0, %v4337
      %v4339 = vrcp.pop %v4259
      %v4340 = vmul.f32 %v4259, %v4339
      %v4341 = vsub.f32 1.0, %v4340
      %v4342 = vmul.f32 %v4339, %v4341
      %v4343 = vadd.f32 %v4339, %v4342
      %vm4344 = vweird.f32 %v4259
      %vm4345 = vweird.f32 %v4339
      %vm4346 = vmor %vm4344, %vm4345
      %v4347 = vsel %vm4346, %v4339, %v4343
      %v4348 = vand.u32 2147483647, %v4259
      %vm4349 = vcmp.eq.f32.partialorder %v4348, 8.507059e+37
      %v4350 = vand.u32 %v4259, 2147483648
      %v4351 = vor.u32 1.1754944e-38, %v4350
      %v4352 = vsel %vm4349, %v4351, %v4347
      %v4353 = vmul.f32 1.0, %v4352
      %v4354 = vrcp.pop %v4260
      %v4355 = vmul.f32 %v4260, %v4354
      %v4356 = vsub.f32 1.0, %v4355
      %v4357 = vmul.f32 %v4354, %v4356
      %v4358 = vadd.f32 %v4354, %v4357
      %vm4359 = vweird.f32 %v4260
      %vm4360 = vweird.f32 %v4354
      %vm4361 = vmor %vm4359, %vm4360
      %v4362 = vsel %vm4361, %v4354, %v4358
      %v4363 = vand.u32 2147483647, %v4260
      %vm4364 = vcmp.eq.f32.partialorder %v4363, 8.507059e+37
      %v4365 = vand.u32 %v4260, 2147483648
      %v4366 = vor.u32 1.1754944e-38, %v4365
      %v4367 = vsel %vm4364, %v4366, %v4362
      %v4368 = vmul.f32 1.0, %v4367
      %v4369 = vrcp.pop %v4261
      %v4370 = vmul.f32 %v4261, %v4369
      %v4371 = vsub.f32 1.0, %v4370
      %v4372 = vmul.f32 %v4369, %v4371
      %v4373 = vadd.f32 %v4369, %v4372
      %vm4374 = vweird.f32 %v4261
      %vm4375 = vweird.f32 %v4369
      %vm4376 = vmor %vm4374, %vm4375
      %v4377 = vsel %vm4376, %v4369, %v4373
      %v4378 = vand.u32 2147483647, %v4261
      %vm4379 = vcmp.eq.f32.partialorder %v4378, 8.507059e+37
      %v4380 = vand.u32 %v4261, 2147483648
      %v4381 = vor.u32 1.1754944e-38, %v4380
      %v4382 = vsel %vm4379, %v4381, %v4377
      %v4383 = vmul.f32 1.0, %v4382
      %v4384 = vrcp.pop %v4262
      %v4385 = vmul.f32 %v4262, %v4384
      %v4386 = vsub.f32 1.0, %v4385
      %v4387 = vmul.f32 %v4384, %v4386
      %v4388 = vadd.f32 %v4384, %v4387
      %vm4389 = vweird.f32 %v4262
      %vm4390 = vweird.f32 %v4384
      %vm4391 = vmor %vm4389, %vm4390
      %v4392 = vsel %vm4391, %v4384, %v4388
      %v4393 = vand.u32 2147483647, %v4262
      %vm4394 = vcmp.eq.f32.partialorder %v4393, 8.507059e+37
      %v4395 = vand.u32 %v4262, 2147483648
      %v4396 = vor.u32 1.1754944e-38, %v4395
      %v4397 = vsel %vm4394, %v4396, %v4392
      %v4398 = vmul.f32 1.0, %v4397
      %v4399 = vrcp.pop %v4263
      %v4400 = vmul.f32 %v4263, %v4399
      %v4401 = vsub.f32 1.0, %v4400
      %v4402 = vmul.f32 %v4399, %v4401
      %v4403 = vadd.f32 %v4399, %v4402
      %vm4404 = vweird.f32 %v4263
      %vm4405 = vweird.f32 %v4399
      %vm4406 = vmor %vm4404, %vm4405
      %v4407 = vsel %vm4406, %v4399, %v4403
      %v4408 = vand.u32 2147483647, %v4263
      %vm4409 = vcmp.eq.f32.partialorder %v4408, 8.507059e+37
      %v4410 = vand.u32 %v4263, 2147483648
      %v4411 = vor.u32 1.1754944e-38, %v4410
      %v4412 = vsel %vm4409, %v4411, %v4407
      %v4413 = vmul.f32 1.0, %v4412
      %v4414 = vrcp.pop %v4264
      %v4415 = vmul.f32 %v4264, %v4414
      %v4416 = vsub.f32 1.0, %v4415
      %v4417 = vmul.f32 %v4414, %v4416
      %v4418 = vadd.f32 %v4414, %v4417
      %vm4419 = vweird.f32 %v4264
      %vm4420 = vweird.f32 %v4414
      %vm4421 = vmor %vm4419, %vm4420
      %v4422 = vsel %vm4421, %v4414, %v4418
      %v4423 = vand.u32 2147483647, %v4264
      %vm4424 = vcmp.eq.f32.partialorder %v4423, 8.507059e+37
      %v4425 = vand.u32 %v4264, 2147483648
      %v4426 = vor.u32 1.1754944e-38, %v4425
      %v4427 = vsel %vm4424, %v4426, %v4422
      %v4428 = vmul.f32 1.0, %v4427
      %v4429 = vrcp.pop %v4265
      %v4430 = vmul.f32 %v4265, %v4429
      %v4431 = vsub.f32 1.0, %v4430
      %v4432 = vmul.f32 %v4429, %v4431
      %v4433 = vadd.f32 %v4429, %v4432
      %vm4434 = vweird.f32 %v4265
      %vm4435 = vweird.f32 %v4429
      %vm4436 = vmor %vm4434, %vm4435
      %v4437 = vsel %vm4436, %v4429, %v4433
      %v4438 = vand.u32 2147483647, %v4265
      %vm4439 = vcmp.eq.f32.partialorder %v4438, 8.507059e+37
      %v4440 = vand.u32 %v4265, 2147483648
      %v4441 = vor.u32 1.1754944e-38, %v4440
      %v4442 = vsel %vm4439, %v4441, %v4437
      %v4443 = vmul.f32 1.0, %v4442
      %v4444 = vrcp.pop %v4266
      %v4445 = vmul.f32 %v4266, %v4444
      %v4446 = vsub.f32 1.0, %v4445
      %v4447 = vmul.f32 %v4444, %v4446
      %v4448 = vadd.f32 %v4444, %v4447
      %vm4449 = vweird.f32 %v4266
      %vm4450 = vweird.f32 %v4444
      %vm4451 = vmor %vm4449, %vm4450
      %v4452 = vsel %vm4451, %v4444, %v4448
      %v4453 = vand.u32 2147483647, %v4266
      %vm4454 = vcmp.eq.f32.partialorder %v4453, 8.507059e+37
      %v4455 = vand.u32 %v4266, 2147483648
      %v4456 = vor.u32 1.1754944e-38, %v4455
      %v4457 = vsel %vm4454, %v4456, %v4452
      %v4458 = vmul.f32 1.0, %v4457
      %v4459 = vrcp.pop %v4267
      %v4460 = vmul.f32 %v4267, %v4459
      %v4461 = vsub.f32 1.0, %v4460
      %v4462 = vmul.f32 %v4459, %v4461
      %v4463 = vadd.f32 %v4459, %v4462
      %vm4464 = vweird.f32 %v4267
      %vm4465 = vweird.f32 %v4459
      %vm4466 = vmor %vm4464, %vm4465
      %v4467 = vsel %vm4466, %v4459, %v4463
      %v4468 = vand.u32 2147483647, %v4267
      %vm4469 = vcmp.eq.f32.partialorder %v4468, 8.507059e+37
      %v4470 = vand.u32 %v4267, 2147483648
      %v4471 = vor.u32 1.1754944e-38, %v4470
      %v4472 = vsel %vm4469, %v4471, %v4467
      %v4473 = vmul.f32 1.0, %v4472
      %v4474 = vrcp.pop %v4268
      %v4475 = vmul.f32 %v4268, %v4474
      %v4476 = vsub.f32 1.0, %v4475
      %v4477 = vmul.f32 %v4474, %v4476
      %v4478 = vadd.f32 %v4474, %v4477
      %vm4479 = vweird.f32 %v4268
      %vm4480 = vweird.f32 %v4474
      %vm4481 = vmor %vm4479, %vm4480
      %v4482 = vsel %vm4481, %v4474, %v4478
      %v4483 = vand.u32 2147483647, %v4268
      %vm4484 = vcmp.eq.f32.partialorder %v4483, 8.507059e+37
      %v4485 = vand.u32 %v4268, 2147483648
      %v4486 = vor.u32 1.1754944e-38, %v4485
      %v4487 = vsel %vm4484, %v4486, %v4482
      %v4488 = vmul.f32 1.0, %v4487
      %v4489 = vrcp.pop %v4269
      %v4490 = vmul.f32 %v4269, %v4489
      %v4491 = vsub.f32 1.0, %v4490
      %v4492 = vmul.f32 %v4489, %v4491
      %v4493 = vadd.f32 %v4489, %v4492
      %vm4494 = vweird.f32 %v4269
      %vm4495 = vweird.f32 %v4489
      %vm4496 = vmor %vm4494, %vm4495
      %v4497 = vsel %vm4496, %v4489, %v4493
      %v4498 = vand.u32 2147483647, %v4269
      %vm4499 = vcmp.eq.f32.partialorder %v4498, 8.507059e+37
      %v4500 = vand.u32 %v4269, 2147483648
      %v4501 = vor.u32 1.1754944e-38, %v4500
      %v4502 = vsel %vm4499, %v4501, %v4497
      %v4503 = vmul.f32 1.0, %v4502
      %v4504 = vrcp.pop %v4270
      %v4505 = vmul.f32 %v4270, %v4504
      %v4506 = vsub.f32 1.0, %v4505
      %v4507 = vmul.f32 %v4504, %v4506
      %v4508 = vadd.f32 %v4504, %v4507
      %vm4509 = vweird.f32 %v4270
      %vm4510 = vweird.f32 %v4504
      %vm4511 = vmor %vm4509, %vm4510
      %v4512 = vsel %vm4511, %v4504, %v4508
      %v4513 = vand.u32 2147483647, %v4270
      %vm4514 = vcmp.eq.f32.partialorder %v4513, 8.507059e+37
      %v4515 = vand.u32 %v4270, 2147483648
      %v4516 = vor.u32 1.1754944e-38, %v4515
      %v4517 = vsel %vm4514, %v4516, %v4512
      %v4518 = vmul.f32 1.0, %v4517
      %v4519 = vrcp.pop %v4271
      %v4520 = vmul.f32 %v4271, %v4519
      %v4521 = vsub.f32 1.0, %v4520
      %v4522 = vmul.f32 %v4519, %v4521
      %v4523 = vadd.f32 %v4519, %v4522
      %vm4524 = vweird.f32 %v4271
      %vm4525 = vweird.f32 %v4519
      %vm4526 = vmor %vm4524, %vm4525
      %v4527 = vsel %vm4526, %v4519, %v4523
      %v4528 = vand.u32 2147483647, %v4271
      %vm4529 = vcmp.eq.f32.partialorder %v4528, 8.507059e+37
      %v4530 = vand.u32 %v4271, 2147483648
      %v4531 = vor.u32 1.1754944e-38, %v4530
      %v4532 = vsel %vm4529, %v4531, %v4527
      %v4533 = vmul.f32 1.0, %v4532
      %v4534 = vrcp.pop %v4272
      %v4535 = vmul.f32 %v4272, %v4534
      %v4536 = vsub.f32 1.0, %v4535
      %v4537 = vmul.f32 %v4534, %v4536
      %v4538 = vadd.f32 %v4534, %v4537
      %vm4539 = vweird.f32 %v4272
      %vm4540 = vweird.f32 %v4534
      %vm4541 = vmor %vm4539, %vm4540
      %v4542 = vsel %vm4541, %v4534, %v4538
      %v4543 = vand.u32 2147483647, %v4272
      %vm4544 = vcmp.eq.f32.partialorder %v4543, 8.507059e+37
      %v4545 = vand.u32 %v4272, 2147483648
      %v4546 = vor.u32 1.1754944e-38, %v4545
      %v4547 = vsel %vm4544, %v4546, %v4542
      %v4548 = vmul.f32 1.0, %v4547
      %v4549 = vrcp.pop %v4273
      %v4550 = vmul.f32 %v4273, %v4549
      %v4551 = vsub.f32 1.0, %v4550
      %v4552 = vmul.f32 %v4549, %v4551
      %v4553 = vadd.f32 %v4549, %v4552
      %vm4554 = vweird.f32 %v4273
      %vm4555 = vweird.f32 %v4549
      %vm4556 = vmor %vm4554, %vm4555
      %v4557 = vsel %vm4556, %v4549, %v4553
      %v4558 = vand.u32 2147483647, %v4273
      %vm4559 = vcmp.eq.f32.partialorder %v4558, 8.507059e+37
      %v4560 = vand.u32 %v4273, 2147483648
      %v4561 = vor.u32 1.1754944e-38, %v4560
      %v4562 = vsel %vm4559, %v4561, %v4557
      %v4563 = vmul.f32 1.0, %v4562
      %v4564 = vrcp.pop %v4274
      %v4565 = vmul.f32 %v4274, %v4564
      %v4566 = vsub.f32 1.0, %v4565
      %v4567 = vmul.f32 %v4564, %v4566
      %v4568 = vadd.f32 %v4564, %v4567
      %vm4569 = vweird.f32 %v4274
      %vm4570 = vweird.f32 %v4564
      %vm4571 = vmor %vm4569, %vm4570
      %v4572 = vsel %vm4571, %v4564, %v4568
      %v4573 = vand.u32 2147483647, %v4274
      %vm4574 = vcmp.eq.f32.partialorder %v4573, 8.507059e+37
      %v4575 = vand.u32 %v4274, 2147483648
      %v4576 = vor.u32 1.1754944e-38, %v4575
      %v4577 = vsel %vm4574, %v4576, %v4572
      %v4578 = vmul.f32 1.0, %v4577
      %v4579 = vrcp.pop %v4275
      %v4580 = vmul.f32 %v4275, %v4579
      %v4581 = vsub.f32 1.0, %v4580
      %v4582 = vmul.f32 %v4579, %v4581
      %v4583 = vadd.f32 %v4579, %v4582
      %vm4584 = vweird.f32 %v4275
      %vm4585 = vweird.f32 %v4579
      %vm4586 = vmor %vm4584, %vm4585
      %v4587 = vsel %vm4586, %v4579, %v4583
      %v4588 = vand.u32 2147483647, %v4275
      %vm4589 = vcmp.eq.f32.partialorder %v4588, 8.507059e+37
      %v4590 = vand.u32 %v4275, 2147483648
      %v4591 = vor.u32 1.1754944e-38, %v4590
      %v4592 = vsel %vm4589, %v4591, %v4587
      %v4593 = vmul.f32 1.0, %v4592
      %v4594 = vrcp.pop %v4276
      %v4595 = vmul.f32 %v4276, %v4594
      %v4596 = vsub.f32 1.0, %v4595
      %v4597 = vmul.f32 %v4594, %v4596
      %v4598 = vadd.f32 %v4594, %v4597
      %vm4599 = vweird.f32 %v4276
      %vm4600 = vweird.f32 %v4594
      %vm4601 = vmor %vm4599, %vm4600
      %v4602 = vsel %vm4601, %v4594, %v4598
      %v4603 = vand.u32 2147483647, %v4276
      %vm4604 = vcmp.eq.f32.partialorder %v4603, 8.507059e+37
      %v4605 = vand.u32 %v4276, 2147483648
      %v4606 = vor.u32 1.1754944e-38, %v4605
      %v4607 = vsel %vm4604, %v4606, %v4602
      %v4608 = vmul.f32 1.0, %v4607
      %v4609 = vrcp.pop %v4277
      %v4610 = vmul.f32 %v4277, %v4609
      %v4611 = vsub.f32 1.0, %v4610
      %v4612 = vmul.f32 %v4609, %v4611
      %v4613 = vadd.f32 %v4609, %v4612
      %vm4614 = vweird.f32 %v4277
      %vm4615 = vweird.f32 %v4609
      %vm4616 = vmor %vm4614, %vm4615
      %v4617 = vsel %vm4616, %v4609, %v4613
      %v4618 = vand.u32 2147483647, %v4277
      %vm4619 = vcmp.eq.f32.partialorder %v4618, 8.507059e+37
      %v4620 = vand.u32 %v4277, 2147483648
      %v4621 = vor.u32 1.1754944e-38, %v4620
      %v4622 = vsel %vm4619, %v4621, %v4617
      %v4623 = vmul.f32 1.0, %v4622
      %v4624 = vrcp.pop %v4278
      %v4625 = vmul.f32 %v4278, %v4624
      %v4626 = vsub.f32 1.0, %v4625
      %v4627 = vmul.f32 %v4624, %v4626
      %v4628 = vadd.f32 %v4624, %v4627
      %vm4629 = vweird.f32 %v4278
      %vm4630 = vweird.f32 %v4624
      %vm4631 = vmor %vm4629, %vm4630
      %v4632 = vsel %vm4631, %v4624, %v4628
      %v4633 = vand.u32 2147483647, %v4278
      %vm4634 = vcmp.eq.f32.partialorder %v4633, 8.507059e+37
      %v4635 = vand.u32 %v4278, 2147483648
      %v4636 = vor.u32 1.1754944e-38, %v4635
      %v4637 = vsel %vm4634, %v4636, %v4632
      %v4638 = vmul.f32 1.0, %v4637
      %v4639 = vmul.f32 %v4159, %v4293
      %v4640 = vmul.f32 %v4160, %v4308
      %v4641 = vmul.f32 %v4161, %v4323
      %v4642 = vmul.f32 %v4162, %v4338
      %v4643 = vmul.f32 %v4163, %v4353
      %v4644 = vmul.f32 %v4164, %v4368
      %v4645 = vmul.f32 %v4165, %v4383
      %v4646 = vmul.f32 %v4166, %v4398
      %v4647 = vmul.f32 %v4167, %v4413
      %v4648 = vmul.f32 %v4168, %v4428
      %v4649 = vmul.f32 %v4169, %v4443
      %v4650 = vmul.f32 %v4170, %v4458
      %v4651 = vmul.f32 %v4171, %v4473
      %v4652 = vmul.f32 %v4172, %v4488
      %v4653 = vmul.f32 %v4173, %v4503
      %v4654 = vmul.f32 %v4174, %v4518
      %v4655 = vmul.f32 %v4175, %v4533
      %v4656 = vmul.f32 %v4176, %v4548
      %v4657 = vmul.f32 %v4177, %v4563
      %v4658 = vmul.f32 %v4178, %v4578
      %v4659 = vmul.f32 %v4179, %v4593
      %v4660 = vmul.f32 %v4180, %v4608
      %v4661 = vmul.f32 %v4181, %v4623
      %v4662 = vmul.f32 %v4182, %v4638
      %v4663 = vpack.c.bf16 %v1419, %v1419
      %v4664 = vpack.c.bf16 %v1420, %v1420
      %v4665 = vpack.c.bf16 %v1421, %v1421
      %v4666 = vpack.c.bf16 %v1422, %v1422
      %v4667 = vpack.c.bf16 %v1423, %v1423
      %v4668 = vpack.c.bf16 %v1424, %v1424
      %v4669 = vpack.c.bf16 %v1425, %v1425
      %v4670 = vpack.c.bf16 %v1426, %v1426
      %v4671 = vpack.c.bf16 %v1427, %v1427
      %v4672 = vpack.c.bf16 %v1428, %v1428
      %v4673 = vpack.c.bf16 %v1429, %v1429
      %v4674 = vpack.c.bf16 %v1430, %v1430
      %v4675 = vpack.c.bf16 %v1431, %v1431
      %v4676 = vpack.c.bf16 %v1432, %v1432
      %v4677 = vpack.c.bf16 %v1433, %v1433
      %v4678 = vpack.c.bf16 %v1434, %v1434
      %v4679 = vpack.c.bf16 %v1435, %v1435
      %v4680 = vpack.c.bf16 %v1436, %v1436
      %v4681 = vpack.c.bf16 %v1437, %v1437
      %v4682 = vpack.c.bf16 %v1438, %v1438
      %v4683 = vpack.c.bf16 %v1439, %v1439
      %v4684 = vpack.c.bf16 %v1440, %v1440
      %v4685 = vpack.c.bf16 %v1441, %v1441
      %v4686 = vpack.c.bf16 %v1442, %v1442
      %4687 = vst [vmem:[#allocation4] sm:$0xf] %v4663
      %4688 = vst [vmem:[#allocation4 + $0x8] sm:$0xf] %v4664
      %4689 = vst [vmem:[#allocation4 + $0x10] sm:$0xf] %v4665
      %4690 = vst [vmem:[#allocation4 + $0x18] sm:$0xf] %v4666
      %4691 = vst [vmem:[#allocation4 + $0x20] sm:$0xf] %v4667
      %4692 = vst [vmem:[#allocation4 + $0x28] sm:$0xf] %v4668
      %4693 = vst [vmem:[#allocation4 + $0x30] sm:$0xf] %v4669
      %4694 = vst [vmem:[#allocation4 + $0x38] sm:$0xf] %v4670
      %4695 = vst [vmem:[#allocation4 + $0x40] sm:$0xf] %v4671
      %4696 = vst [vmem:[#allocation4 + $0x48] sm:$0xf] %v4672
      %4697 = vst [vmem:[#allocation4 + $0x50] sm:$0xf] %v4673
      %4698 = vst [vmem:[#allocation4 + $0x58] sm:$0xf] %v4674
      %4699 = vst [vmem:[#allocation4 + $0x60] sm:$0xf] %v4675
      %4700 = vst [vmem:[#allocation4 + $0x68] sm:$0xf] %v4676
      %4701 = vst [vmem:[#allocation4 + $0x70] sm:$0xf] %v4677
      %4702 = vst [vmem:[#allocation4 + $0x78] sm:$0xf] %v4678
      %4703 = vst [vmem:[#allocation4 + $0x80] sm:$0xf] %v4679
      %4704 = vst [vmem:[#allocation4 + $0x88] sm:$0xf] %v4680
      %4705 = vst [vmem:[#allocation4 + $0x90] sm:$0xf] %v4681
      %4706 = vst [vmem:[#allocation4 + $0x98] sm:$0xf] %v4682
      %4707 = vst [vmem:[#allocation4 + $0xa0] sm:$0xf] %v4683
      %4708 = vst [vmem:[#allocation4 + $0xa8] sm:$0xf] %v4684
      %4709 = vst [vmem:[#allocation4 + $0xb0] sm:$0xf] %v4685
      %4710 = vst [vmem:[#allocation4 + $0xb8] sm:$0xf] %v4686
      %v4711 = vpack.c.bf16 %v4639, %v4639
      %v4712 = vpack.c.bf16 %v4640, %v4640
      %v4713 = vpack.c.bf16 %v4641, %v4641
      %v4714 = vpack.c.bf16 %v4642, %v4642
      %v4715 = vpack.c.bf16 %v4643, %v4643
      %v4716 = vpack.c.bf16 %v4644, %v4644
      %v4717 = vpack.c.bf16 %v4645, %v4645
      %v4718 = vpack.c.bf16 %v4646, %v4646
      %v4719 = vpack.c.bf16 %v4647, %v4647
      %v4720 = vpack.c.bf16 %v4648, %v4648
      %v4721 = vpack.c.bf16 %v4649, %v4649
      %v4722 = vpack.c.bf16 %v4650, %v4650
      %v4723 = vpack.c.bf16 %v4651, %v4651
      %v4724 = vpack.c.bf16 %v4652, %v4652
      %v4725 = vpack.c.bf16 %v4653, %v4653
      %v4726 = vpack.c.bf16 %v4654, %v4654
      %v4727 = vpack.c.bf16 %v4655, %v4655
      %v4728 = vpack.c.bf16 %v4656, %v4656
      %v4729 = vpack.c.bf16 %v4657, %v4657
      %v4730 = vpack.c.bf16 %v4658, %v4658
      %v4731 = vpack.c.bf16 %v4659, %v4659
      %v4732 = vpack.c.bf16 %v4660, %v4660
      %v4733 = vpack.c.bf16 %v4661, %v4661
      %v4734 = vpack.c.bf16 %v4662, %v4662
      %4735 = vst [vmem:[#allocation4 + $0x4] sm:$0xf] %v4711
      %4736 = vst [vmem:[#allocation4 + $0xc] sm:$0xf] %v4712
      %4737 = vst [vmem:[#allocation4 + $0x14] sm:$0xf] %v4713
      %4738 = vst [vmem:[#allocation4 + $0x1c] sm:$0xf] %v4714
      %4739 = vst [vmem:[#allocation4 + $0x24] sm:$0xf] %v4715
      %4740 = vst [vmem:[#allocation4 + $0x2c] sm:$0xf] %v4716
      %4741 = vst [vmem:[#allocation4 + $0x34] sm:$0xf] %v4717
      %4742 = vst [vmem:[#allocation4 + $0x3c] sm:$0xf] %v4718
      %4743 = vst [vmem:[#allocation4 + $0x44] sm:$0xf] %v4719
      %4744 = vst [vmem:[#allocation4 + $0x4c] sm:$0xf] %v4720
      %4745 = vst [vmem:[#allocation4 + $0x54] sm:$0xf] %v4721
      %4746 = vst [vmem:[#allocation4 + $0x5c] sm:$0xf] %v4722
      %4747 = vst [vmem:[#allocation4 + $0x64] sm:$0xf] %v4723
      %4748 = vst [vmem:[#allocation4 + $0x6c] sm:$0xf] %v4724
      %4749 = vst [vmem:[#allocation4 + $0x74] sm:$0xf] %v4725
      %4750 = vst [vmem:[#allocation4 + $0x7c] sm:$0xf] %v4726
      %4751 = vst [vmem:[#allocation4 + $0x84] sm:$0xf] %v4727
      %4752 = vst [vmem:[#allocation4 + $0x8c] sm:$0xf] %v4728
      %4753 = vst [vmem:[#allocation4 + $0x94] sm:$0xf] %v4729
      %4754 = vst [vmem:[#allocation4 + $0x9c] sm:$0xf] %v4730
      %4755 = vst [vmem:[#allocation4 + $0xa4] sm:$0xf] %v4731
      %4756 = vst [vmem:[#allocation4 + $0xac] sm:$0xf] %v4732
      %4757 = vst [vmem:[#allocation4 + $0xb4] sm:$0xf] %v4733
      %4758 = vst [vmem:[#allocation4 + $0xbc] sm:$0xf] %v4734
      %v4759 = vld [vmem:[#allocation4] sm:$0xff]
      %v4760 = vld [vmem:[#allocation4 + $0x8] sm:$0xff]
      %v4761 = vld [vmem:[#allocation4 + $0x10] sm:$0xff]
      %v4762 = vld [vmem:[#allocation4 + $0x18] sm:$0xff]
      %v4763 = vld [vmem:[#allocation4 + $0x20] sm:$0xff]
      %v4764 = vld [vmem:[#allocation4 + $0x28] sm:$0xff]
      %v4765 = vld [vmem:[#allocation4 + $0x30] sm:$0xff]
      %v4766 = vld [vmem:[#allocation4 + $0x38] sm:$0xff]
      %v4767 = vld [vmem:[#allocation4 + $0x40] sm:$0xff]
      %v4768 = vld [vmem:[#allocation4 + $0x48] sm:$0xff]
      %v4769 = vld [vmem:[#allocation4 + $0x50] sm:$0xff]
      %v4770 = vld [vmem:[#allocation4 + $0x58] sm:$0xff]
      %v4771 = vld [vmem:[#allocation4 + $0x60] sm:$0xff]
      %v4772 = vld [vmem:[#allocation4 + $0x68] sm:$0xff]
      %v4773 = vld [vmem:[#allocation4 + $0x70] sm:$0xff]
      %v4774 = vld [vmem:[#allocation4 + $0x78] sm:$0xff]
      %v4775 = vld [vmem:[#allocation4 + $0x80] sm:$0xff]
      %v4776 = vld [vmem:[#allocation4 + $0x88] sm:$0xff]
      %v4777 = vld [vmem:[#allocation4 + $0x90] sm:$0xff]
      %v4778 = vld [vmem:[#allocation4 + $0x98] sm:$0xff]
      %v4779 = vld [vmem:[#allocation4 + $0xa0] sm:$0xff]
      %v4780 = vld [vmem:[#allocation4 + $0xa8] sm:$0xff]
      %v4781 = vld [vmem:[#allocation4 + $0xb0] sm:$0xff]
      %v4782 = vld [vmem:[#allocation4 + $0xb8] sm:$0xff]
      %v4783 = vld [vmem:[%s5] sm:$0xf]
      %v4784 = vld [vmem:[%s5 + $0x4] sm:$0xf]
      %v4785 = vld [vmem:[%s5 + $0x8] sm:$0xf]
      %v4786 = vld [vmem:[%s5 + $0xc] sm:$0xf]
      %v4787 = vld [vmem:[%s5 + $0x10] sm:$0xf]
      %v4788 = vld [vmem:[%s5 + $0x14] sm:$0xf]
      %v4789 = vld [vmem:[%s5 + $0x18] sm:$0xf]
      %v4790 = vld [vmem:[%s5 + $0x1c] sm:$0xf]
      %v4791 = vld [vmem:[%s5 + $0x20] sm:$0xf]
      %v4792 = vld [vmem:[%s5 + $0x24] sm:$0xf]
      %v4793 = vld [vmem:[%s5 + $0x28] sm:$0xf]
      %v4794 = vld [vmem:[%s5 + $0x2c] sm:$0xf]
      %v4795 = vld [vmem:[%s5 + $0x30] sm:$0xf]
      %v4796 = vld [vmem:[%s5 + $0x34] sm:$0xf]
      %v4797 = vld [vmem:[%s5 + $0x38] sm:$0xf]
      %v4798 = vld [vmem:[%s5 + $0x3c] sm:$0xf]
      %v4799 = vld [vmem:[%s5 + $0x40] sm:$0xf]
      %v4800 = vld [vmem:[%s5 + $0x44] sm:$0xf]
      %v4801 = vld [vmem:[%s5 + $0x48] sm:$0xf]
      %v4802 = vld [vmem:[%s5 + $0x4c] sm:$0xf]
      %v4803 = vld [vmem:[%s5 + $0x50] sm:$0xf]
      %v4804 = vld [vmem:[%s5 + $0x54] sm:$0xf]
      %v4805 = vld [vmem:[%s5 + $0x58] sm:$0xf]
      %v4806 = vld [vmem:[%s5 + $0x5c] sm:$0xf]
      %v4807 = vld [vmem:[%s5 + $0x60] sm:$0xf]
      %v4808 = vld [vmem:[%s5 + $0x64] sm:$0xf]
      %v4809 = vld [vmem:[%s5 + $0x68] sm:$0xf]
      %v4810 = vld [vmem:[%s5 + $0x6c] sm:$0xf]
      %v4811 = vld [vmem:[%s5 + $0x70] sm:$0xf]
      %v4812 = vld [vmem:[%s5 + $0x74] sm:$0xf]
      %v4813 = vld [vmem:[%s5 + $0x78] sm:$0xf]
      %v4814 = vld [vmem:[%s5 + $0x7c] sm:$0xf]
      %v4815 = vld [vmem:[%s6] sm:$0x1]
      %v4817 = vperm.slane %v4815, 0
      %v4843 = vunpack.c.l.b16 %v4759
      %v4844 = vunpack.c.h.b16 %v4759
      %v4845 = vunpack.c.l.b16 %v4760
      %v4846 = vunpack.c.h.b16 %v4760
      %v4847 = vunpack.c.l.b16 %v4761
      %v4848 = vunpack.c.h.b16 %v4761
      %v4849 = vunpack.c.l.b16 %v4762
      %v4850 = vunpack.c.h.b16 %v4762
      %v4851 = vunpack.c.l.b16 %v4763
      %v4852 = vunpack.c.h.b16 %v4763
      %v4853 = vunpack.c.l.b16 %v4764
      %v4854 = vunpack.c.h.b16 %v4764
      %v4855 = vunpack.c.l.b16 %v4765
      %v4856 = vunpack.c.h.b16 %v4765
      %v4857 = vunpack.c.l.b16 %v4766
      %v4858 = vunpack.c.h.b16 %v4766
      %v4859 = vunpack.c.l.b16 %v4767
      %v4860 = vunpack.c.h.b16 %v4767
      %v4861 = vunpack.c.l.b16 %v4768
      %v4862 = vunpack.c.h.b16 %v4768
      %v4863 = vunpack.c.l.b16 %v4769
      %v4864 = vunpack.c.h.b16 %v4769
      %v4865 = vunpack.c.l.b16 %v4770
      %v4866 = vunpack.c.h.b16 %v4770
      %v4867 = vunpack.c.l.b16 %v4771
      %v4868 = vunpack.c.h.b16 %v4771
      %v4869 = vunpack.c.l.b16 %v4772
      %v4870 = vunpack.c.h.b16 %v4772
      %v4871 = vunpack.c.l.b16 %v4773
      %v4872 = vunpack.c.h.b16 %v4773
      %v4873 = vunpack.c.l.b16 %v4774
      %v4874 = vunpack.c.h.b16 %v4774
      %v4875 = vunpack.c.l.b16 %v4775
      %v4876 = vunpack.c.h.b16 %v4775
      %v4877 = vunpack.c.l.b16 %v4776
      %v4878 = vunpack.c.h.b16 %v4776
      %v4879 = vunpack.c.l.b16 %v4777
      %v4880 = vunpack.c.h.b16 %v4777
      %v4881 = vunpack.c.l.b16 %v4778
      %v4882 = vunpack.c.h.b16 %v4778
      %v4883 = vunpack.c.l.b16 %v4779
      %v4884 = vunpack.c.h.b16 %v4779
      %v4885 = vunpack.c.l.b16 %v4780
      %v4886 = vunpack.c.h.b16 %v4780
      %v4887 = vunpack.c.l.b16 %v4781
      %v4888 = vunpack.c.h.b16 %v4781
      %v4889 = vunpack.c.l.b16 %v4782
      %v4890 = vunpack.c.h.b16 %v4782
      %v4891 = vpack.c.b16 %v4845, %v4843
      %v4892 = vpack.c.b16 %v4846, %v4844
      %v4893 = vpack.c.b16 %v4849, %v4847
      %v4894 = vpack.c.b16 %v4850, %v4848
      %v4895 = vpack.c.b16 %v4853, %v4851
      %v4896 = vpack.c.b16 %v4854, %v4852
      %v4897 = vpack.c.b16 %v4857, %v4855
      %v4898 = vpack.c.b16 %v4858, %v4856
      %v4899 = vpack.c.b16 %v4861, %v4859
      %v4900 = vpack.c.b16 %v4862, %v4860
      %v4901 = vpack.c.b16 %v4865, %v4863
      %v4902 = vpack.c.b16 %v4866, %v4864
      %v4903 = vpack.c.b16 %v4869, %v4867
      %v4904 = vpack.c.b16 %v4870, %v4868
      %v4905 = vpack.c.b16 %v4873, %v4871
      %v4906 = vpack.c.b16 %v4874, %v4872
      %v4907 = vpack.c.b16 %v4877, %v4875
      %v4908 = vpack.c.b16 %v4878, %v4876
      %v4909 = vpack.c.b16 %v4881, %v4879
      %v4910 = vpack.c.b16 %v4882, %v4880
      %v4911 = vpack.c.b16 %v4885, %v4883
      %v4912 = vpack.c.b16 %v4886, %v4884
      %v4913 = vpack.c.b16 %v4889, %v4887
      %v4914 = vpack.c.b16 %v4890, %v4888
      %v4971 = vunpack.c.l.b16 %v4783
      %v4972 = vunpack.c.l.b16 %v4784
      %v4973 = vunpack.c.l.b16 %v4785
      %v4974 = vunpack.c.l.b16 %v4786
      %v4975 = vunpack.c.l.b16 %v4787
      %v4976 = vunpack.c.l.b16 %v4788
      %v4977 = vunpack.c.l.b16 %v4789
      %v4978 = vunpack.c.l.b16 %v4790
      %v4979 = vunpack.c.l.b16 %v4791
      %v4980 = vunpack.c.l.b16 %v4792
      %v4981 = vunpack.c.l.b16 %v4793
      %v4982 = vunpack.c.l.b16 %v4794
      %v4983 = vunpack.c.l.b16 %v4795
      %v4984 = vunpack.c.l.b16 %v4796
      %v4985 = vunpack.c.l.b16 %v4797
      %v4986 = vunpack.c.l.b16 %v4798
      %v4987 = vunpack.c.l.b16 %v4799
      %v4988 = vunpack.c.l.b16 %v4800
      %v4989 = vunpack.c.l.b16 %v4801
      %v4990 = vunpack.c.l.b16 %v4802
      %v4991 = vunpack.c.l.b16 %v4803
      %v4992 = vunpack.c.l.b16 %v4804
      %v4993 = vunpack.c.l.b16 %v4805
      %v4994 = vunpack.c.l.b16 %v4806
      %v4995 = vunpack.c.l.b16 %v4807
      %v4996 = vunpack.c.l.b16 %v4808
      %v4997 = vunpack.c.l.b16 %v4809
      %v4998 = vunpack.c.l.b16 %v4810
      %v4999 = vunpack.c.l.b16 %v4811
      %v5000 = vunpack.c.l.b16 %v4812
      %v5001 = vunpack.c.l.b16 %v4813
      %v5002 = vunpack.c.l.b16 %v4814
      %v5003 = vpack.c.b16 %v4972, %v4971
      %v5004 = vpack.c.b16 %v4974, %v4973
      %v5005 = vpack.c.b16 %v4976, %v4975
      %v5006 = vpack.c.b16 %v4978, %v4977
      %v5007 = vpack.c.b16 %v4980, %v4979
      %v5008 = vpack.c.b16 %v4982, %v4981
      %v5009 = vpack.c.b16 %v4984, %v4983
      %v5010 = vpack.c.b16 %v4986, %v4985
      %v5011 = vpack.c.b16 %v4988, %v4987
      %v5012 = vpack.c.b16 %v4990, %v4989
      %v5013 = vpack.c.b16 %v4992, %v4991
      %v5014 = vpack.c.b16 %v4994, %v4993
      %v5015 = vpack.c.b16 %v4996, %v4995
      %v5016 = vpack.c.b16 %v4998, %v4997
      %v5017 = vpack.c.b16 %v5000, %v4999
      %v5018 = vpack.c.b16 %v5002, %v5001
      %5035 = vmatpush.bf16.msra.mxu0 %v5010
      %5036 = vmatpush.bf16.msra.mxu0 %v5009
      %5037 = vmatpush.bf16.msra.mxu0 %v5008
      %5038 = vmatpush.bf16.msra.mxu0 %v5007
      %5039 = vmatpush.bf16.msra.mxu0 %v5006
      %5040 = vmatpush.bf16.msra.mxu0 %v5005
      %5041 = vmatpush.bf16.msra.mxu0 %v5004
      %5042 = vmatpush.bf16.msra.mxu0 %v5003
      %5043 = vmatmul.bf16.gmra.mxu0 %v4891
      %v5044 = vpop.f32.mrf.mxu0
      %v5045 = vadd.f32 %v4817, %v5044
      %v5046 = vpop.f32.mrf.mxu0
      %v5047 = vadd.f32 %v4817, %v5046
      %5048 = vmatmul.bf16.gmra.mxu0 %v4893
      %v5049 = vpop.f32.mrf.mxu0
      %v5050 = vadd.f32 %v4817, %v5049
      %v5051 = vpop.f32.mrf.mxu0
      %v5052 = vadd.f32 %v4817, %v5051
      %5053 = vmatmul.bf16.gmra.mxu0 %v4895
      %v5054 = vpop.f32.mrf.mxu0
      %v5055 = vadd.f32 %v4817, %v5054
      %v5056 = vpop.f32.mrf.mxu0
      %v5057 = vadd.f32 %v4817, %v5056
      %5058 = vmatmul.bf16.gmra.mxu0 %v4897
      %v5059 = vpop.f32.mrf.mxu0
      %v5060 = vadd.f32 %v4817, %v5059
      %v5061 = vpop.f32.mrf.mxu0
      %v5062 = vadd.f32 %v4817, %v5061
      %5063 = vmatmul.bf16.gmra.mxu0 %v4899
      %v5064 = vpop.f32.mrf.mxu0
      %v5065 = vadd.f32 %v4817, %v5064
      %v5066 = vpop.f32.mrf.mxu0
      %v5067 = vadd.f32 %v4817, %v5066
      %5068 = vmatmul.bf16.gmra.mxu0 %v4901
      %v5069 = vpop.f32.mrf.mxu0
      %v5070 = vadd.f32 %v4817, %v5069
      %v5071 = vpop.f32.mrf.mxu0
      %v5072 = vadd.f32 %v4817, %v5071
      %5073 = vmatmul.bf16.gmra.mxu0 %v4903
      %v5074 = vpop.f32.mrf.mxu0
      %v5075 = vadd.f32 %v4817, %v5074
      %v5076 = vpop.f32.mrf.mxu0
      %v5077 = vadd.f32 %v4817, %v5076
      %5078 = vmatmul.bf16.gmra.mxu0 %v4905
      %v5079 = vpop.f32.mrf.mxu0
      %v5080 = vadd.f32 %v4817, %v5079
      %v5081 = vpop.f32.mrf.mxu0
      %v5082 = vadd.f32 %v4817, %v5081
      %5083 = vmatmul.bf16.gmra.mxu0 %v4907
      %v5084 = vpop.f32.mrf.mxu0
      %v5085 = vadd.f32 %v4817, %v5084
      %v5086 = vpop.f32.mrf.mxu0
      %v5087 = vadd.f32 %v4817, %v5086
      %5088 = vmatmul.bf16.gmra.mxu0 %v4909
      %v5089 = vpop.f32.mrf.mxu0
      %v5090 = vadd.f32 %v4817, %v5089
      %v5091 = vpop.f32.mrf.mxu0
      %v5092 = vadd.f32 %v4817, %v5091
      %5093 = vmatmul.bf16.gmra.mxu0 %v4911
      %v5094 = vpop.f32.mrf.mxu0
      %v5095 = vadd.f32 %v4817, %v5094
      %v5096 = vpop.f32.mrf.mxu0
      %v5097 = vadd.f32 %v4817, %v5096
      %5098 = vmatmul.bf16.gmra.mxu0 %v4913
      %v5099 = vpop.f32.mrf.mxu0
      %v5100 = vadd.f32 %v4817, %v5099
      %v5101 = vpop.f32.mrf.mxu0
      %v5102 = vadd.f32 %v4817, %v5101
      %5103 = vdwg.mxu0
      %5104 = vmatpush.bf16.msra.mxu0 %v5018
      %5105 = vmatpush.bf16.msra.mxu0 %v5017
      %5106 = vmatpush.bf16.msra.mxu0 %v5016
      %5107 = vmatpush.bf16.msra.mxu0 %v5015
      %5108 = vmatpush.bf16.msra.mxu0 %v5014
      %5109 = vmatpush.bf16.msra.mxu0 %v5013
      %5110 = vmatpush.bf16.msra.mxu0 %v5012
      %5111 = vmatpush.bf16.msra.mxu0 %v5011
      %5112 = vmatmul.bf16.gmra.mxu0 %v4892
      %v5113 = vpop.f32.mrf.mxu0
      %v5114 = vadd.f32 %v5045, %v5113
      %v5115 = vpop.f32.mrf.mxu0
      %v5116 = vadd.f32 %v5047, %v5115
      %5117 = vmatmul.bf16.gmra.mxu0 %v4894
      %v5118 = vpop.f32.mrf.mxu0
      %v5119 = vadd.f32 %v5050, %v5118
      %v5120 = vpop.f32.mrf.mxu0
      %v5121 = vadd.f32 %v5052, %v5120
      %5122 = vmatmul.bf16.gmra.mxu0 %v4896
      %v5123 = vpop.f32.mrf.mxu0
      %v5124 = vadd.f32 %v5055, %v5123
      %v5125 = vpop.f32.mrf.mxu0
      %v5126 = vadd.f32 %v5057, %v5125
      %5127 = vmatmul.bf16.gmra.mxu0 %v4898
      %v5128 = vpop.f32.mrf.mxu0
      %v5129 = vadd.f32 %v5060, %v5128
      %v5130 = vpop.f32.mrf.mxu0
      %v5131 = vadd.f32 %v5062, %v5130
      %5132 = vmatmul.bf16.gmra.mxu0 %v4900
      %v5133 = vpop.f32.mrf.mxu0
      %v5134 = vadd.f32 %v5065, %v5133
      %v5135 = vpop.f32.mrf.mxu0
      %v5136 = vadd.f32 %v5067, %v5135
      %5137 = vmatmul.bf16.gmra.mxu0 %v4902
      %v5138 = vpop.f32.mrf.mxu0
      %v5139 = vadd.f32 %v5070, %v5138
      %v5140 = vpop.f32.mrf.mxu0
      %v5141 = vadd.f32 %v5072, %v5140
      %5142 = vmatmul.bf16.gmra.mxu0 %v4904
      %v5143 = vpop.f32.mrf.mxu0
      %v5144 = vadd.f32 %v5075, %v5143
      %v5145 = vpop.f32.mrf.mxu0
      %v5146 = vadd.f32 %v5077, %v5145
      %5147 = vmatmul.bf16.gmra.mxu0 %v4906
      %v5148 = vpop.f32.mrf.mxu0
      %v5149 = vadd.f32 %v5080, %v5148
      %v5150 = vpop.f32.mrf.mxu0
      %v5151 = vadd.f32 %v5082, %v5150
      %5152 = vmatmul.bf16.gmra.mxu0 %v4908
      %v5153 = vpop.f32.mrf.mxu0
      %v5154 = vadd.f32 %v5085, %v5153
      %v5155 = vpop.f32.mrf.mxu0
      %v5156 = vadd.f32 %v5087, %v5155
      %5157 = vmatmul.bf16.gmra.mxu0 %v4910
      %v5158 = vpop.f32.mrf.mxu0
      %v5159 = vadd.f32 %v5090, %v5158
      %v5160 = vpop.f32.mrf.mxu0
      %v5161 = vadd.f32 %v5092, %v5160
      %5162 = vmatmul.bf16.gmra.mxu0 %v4912
      %v5163 = vpop.f32.mrf.mxu0
      %v5164 = vadd.f32 %v5095, %v5163
      %v5165 = vpop.f32.mrf.mxu0
      %v5166 = vadd.f32 %v5097, %v5165
      %5167 = vmatmul.bf16.gmra.mxu0 %v4914
      %v5168 = vpop.f32.mrf.mxu0
      %v5169 = vadd.f32 %v5100, %v5168
      %v5170 = vpop.f32.mrf.mxu0
      %v5171 = vadd.f32 %v5102, %v5170
      %5172 = vdwg.mxu0
      %s5173 = ssub.s32 %s359, 2
      %v5174 = vstv %s5173
      %v5175 = vadd.s32 %v5174, 1
      %v5176 = vadd.s32 %v5174, 2
      %v5177 = vadd.s32 %v5174, 3
      %v5178 = vadd.s32 %v5174, 4
      %v5179 = vadd.s32 %v5174, 5
      %v5180 = vadd.s32 %v5174, 6
      %v5181 = vadd.s32 %v5174, 7
      %v5182 = vadd.s32 %v5174, 8
      %v5183 = vadd.s32 %v5174, 9
      %v5184 = vadd.s32 %v5174, 10
      %v5185 = vadd.s32 %v5174, 11
      %vm5186 = vcmp.ge.s32.totalorder %v5174, 0
      %vm5187 = vcmp.ge.s32.totalorder %v5175, 0
      %vm5188 = vcmp.ge.s32.totalorder %v5176, 0
      %vm5189 = vcmp.ge.s32.totalorder %v5177, 0
      %vm5190 = vcmp.ge.s32.totalorder %v5178, 0
      %vm5191 = vcmp.ge.s32.totalorder %v5179, 0
      %vm5192 = vcmp.ge.s32.totalorder %v5180, 0
      %vm5193 = vcmp.ge.s32.totalorder %v5181, 0
      %vm5194 = vcmp.ge.s32.totalorder %v5182, 0
      %vm5195 = vcmp.ge.s32.totalorder %v5183, 0
      %vm5196 = vcmp.ge.s32.totalorder %v5184, 0
      %vm5197 = vcmp.ge.s32.totalorder %v5185, 0
      %vm5198 = vcmp.lt.s32.totalorder %v5174, 16
      %vm5199 = vcmp.lt.s32.totalorder %v5175, 16
      %vm5200 = vcmp.lt.s32.totalorder %v5176, 16
      %vm5201 = vcmp.lt.s32.totalorder %v5177, 16
      %vm5202 = vcmp.lt.s32.totalorder %v5178, 16
      %vm5203 = vcmp.lt.s32.totalorder %v5179, 16
      %vm5204 = vcmp.lt.s32.totalorder %v5180, 16
      %vm5205 = vcmp.lt.s32.totalorder %v5181, 16
      %vm5206 = vcmp.lt.s32.totalorder %v5182, 16
      %vm5207 = vcmp.lt.s32.totalorder %v5183, 16
      %vm5208 = vcmp.lt.s32.totalorder %v5184, 16
      %vm5209 = vcmp.lt.s32.totalorder %v5185, 16
      %vm5210 = vmand %vm5186, %vm5198
      %vm5211 = vmand %vm5187, %vm5199
      %vm5212 = vmand %vm5188, %vm5200
      %vm5213 = vmand %vm5189, %vm5201
      %vm5214 = vmand %vm5190, %vm5202
      %vm5215 = vmand %vm5191, %vm5203
      %vm5216 = vmand %vm5192, %vm5204
      %vm5217 = vmand %vm5193, %vm5205
      %vm5218 = vmand %vm5194, %vm5206
      %vm5219 = vmand %vm5195, %vm5207
      %vm5220 = vmand %vm5196, %vm5208
      %vm5221 = vmand %vm5197, %vm5209
      %v5222 = vsel %vm5210, 1, 0
      %v5223 = vsel %vm5211, 1, 0
      %v5224 = vsel %vm5212, 1, 0
      %v5225 = vsel %vm5213, 1, 0
      %v5226 = vsel %vm5214, 1, 0
      %v5227 = vsel %vm5215, 1, 0
      %v5228 = vsel %vm5216, 1, 0
      %v5229 = vsel %vm5217, 1, 0
      %v5230 = vsel %vm5218, 1, 0
      %v5231 = vsel %vm5219, 1, 0
      %v5232 = vsel %vm5220, 1, 0
      %v5233 = vsel %vm5221, 1, 0
      %vm5234 = vcmp.eq.s32.totalorder %v5222, 1
      %vm5235 = vcmp.eq.s32.totalorder %v5223, 1
      %vm5236 = vcmp.eq.s32.totalorder %v5224, 1
      %vm5237 = vcmp.eq.s32.totalorder %v5225, 1
      %vm5238 = vcmp.eq.s32.totalorder %v5226, 1
      %vm5239 = vcmp.eq.s32.totalorder %v5227, 1
      %vm5240 = vcmp.eq.s32.totalorder %v5228, 1
      %vm5241 = vcmp.eq.s32.totalorder %v5229, 1
      %vm5242 = vcmp.eq.s32.totalorder %v5230, 1
      %vm5243 = vcmp.eq.s32.totalorder %v5231, 1
      %vm5244 = vcmp.eq.s32.totalorder %v5232, 1
      %vm5245 = vcmp.eq.s32.totalorder %v5233, 1
      %v5246 = vsel %vm5234, %v5114, 0.0
      %v5247 = vsel %vm5234, %v5116, 0.0
      %v5248 = vsel %vm5235, %v5119, 0.0
      %v5249 = vsel %vm5235, %v5121, 0.0
      %v5250 = vsel %vm5236, %v5124, 0.0
      %v5251 = vsel %vm5236, %v5126, 0.0
      %v5252 = vsel %vm5237, %v5129, 0.0
      %v5253 = vsel %vm5237, %v5131, 0.0
      %v5254 = vsel %vm5238, %v5134, 0.0
      %v5255 = vsel %vm5238, %v5136, 0.0
      %v5256 = vsel %vm5239, %v5139, 0.0
      %v5257 = vsel %vm5239, %v5141, 0.0
      %v5258 = vsel %vm5240, %v5144, 0.0
      %v5259 = vsel %vm5240, %v5146, 0.0
      %v5260 = vsel %vm5241, %v5149, 0.0
      %v5261 = vsel %vm5241, %v5151, 0.0
      %v5262 = vsel %vm5242, %v5154, 0.0
      %v5263 = vsel %vm5242, %v5156, 0.0
      %v5264 = vsel %vm5243, %v5159, 0.0
      %v5265 = vsel %vm5243, %v5161, 0.0
      %v5266 = vsel %vm5244, %v5164, 0.0
      %v5267 = vsel %vm5244, %v5166, 0.0
      %v5268 = vsel %vm5245, %v5169, 0.0
      %v5269 = vsel %vm5245, %v5171, 0.0
      %5270 = vst [vmem:[#allocation3 + $0x8] sm:$0xff] %v5246
      %5271 = vst [vmem:[#allocation3 + $0x10] sm:$0xff] %v5247
      %5272 = vst [vmem:[#allocation3 + $0x28] sm:$0xff] %v5248
      %5273 = vst [vmem:[#allocation3 + $0x30] sm:$0xff] %v5249
      %5274 = vst [vmem:[#allocation3 + $0x48] sm:$0xff] %v5250
      %5275 = vst [vmem:[#allocation3 + $0x50] sm:$0xff] %v5251
      %5276 = vst [vmem:[#allocation3 + $0x68] sm:$0xff] %v5252
      %5277 = vst [vmem:[#allocation3 + $0x70] sm:$0xff] %v5253
      %5278 = vst [vmem:[#allocation3 + $0x88] sm:$0xff] %v5254
      %5279 = vst [vmem:[#allocation3 + $0x90] sm:$0xff] %v5255
      %5280 = vst [vmem:[#allocation3 + $0xa8] sm:$0xff] %v5256
      %5281 = vst [vmem:[#allocation3 + $0xb0] sm:$0xff] %v5257
      %5282 = vst [vmem:[#allocation3 + $0xc8] sm:$0xff] %v5258
      %5283 = vst [vmem:[#allocation3 + $0xd0] sm:$0xff] %v5259
      %5284 = vst [vmem:[#allocation3 + $0xe8] sm:$0xff] %v5260
      %5285 = vst [vmem:[#allocation3 + $0xf0] sm:$0xff] %v5261
      %5286 = vst [vmem:[#allocation3 + $0x108] sm:$0xff] %v5262
      %5287 = vst [vmem:[#allocation3 + $0x110] sm:$0xff] %v5263
      %5288 = vst [vmem:[#allocation3 + $0x128] sm:$0xff] %v5264
      %5289 = vst [vmem:[#allocation3 + $0x130] sm:$0xff] %v5265
      %5290 = vst [vmem:[#allocation3 + $0x148] sm:$0xff] %v5266
      %5291 = vst [vmem:[#allocation3 + $0x150] sm:$0xff] %v5267
      %5292 = vst [vmem:[#allocation3 + $0x168] sm:$0xff] %v5268
      %5293 = vst [vmem:[#allocation3 + $0x170] sm:$0xff] %v5269
      %v5294 = vld [vmem:[#allocation3] sm:$0xff]
      %v5295 = vld [vmem:[#allocation3 + $0x8] sm:$0xff]
      %v5296 = vld [vmem:[#allocation3 + $0x10] sm:$0xff]
      %v5297 = vld [vmem:[#allocation3 + $0x18] sm:$0xff]
      %v5298 = vld [vmem:[#allocation3 + $0x20] sm:$0xff]
      %v5299 = vld [vmem:[#allocation3 + $0x28] sm:$0xff]
      %v5300 = vld [vmem:[#allocation3 + $0x30] sm:$0xff]
      %v5301 = vld [vmem:[#allocation3 + $0x38] sm:$0xff]
      %v5302 = vld [vmem:[#allocation3 + $0x40] sm:$0xff]
      %v5303 = vld [vmem:[#allocation3 + $0x48] sm:$0xff]
      %v5304 = vld [vmem:[#allocation3 + $0x50] sm:$0xff]
      %v5305 = vld [vmem:[#allocation3 + $0x58] sm:$0xff]
      %v5306 = vld [vmem:[#allocation3 + $0x60] sm:$0xff]
      %v5307 = vld [vmem:[#allocation3 + $0x68] sm:$0xff]
      %v5308 = vld [vmem:[#allocation3 + $0x70] sm:$0xff]
      %v5309 = vld [vmem:[#allocation3 + $0x78] sm:$0xff]
      %v5310 = vld [vmem:[#allocation3 + $0x80] sm:$0xff]
      %v5311 = vld [vmem:[#allocation3 + $0x88] sm:$0xff]
      %v5312 = vld [vmem:[#allocation3 + $0x90] sm:$0xff]
      %v5313 = vld [vmem:[#allocation3 + $0x98] sm:$0xff]
      %v5314 = vld [vmem:[#allocation3 + $0xa0] sm:$0xff]
      %v5315 = vld [vmem:[#allocation3 + $0xa8] sm:$0xff]
      %v5316 = vld [vmem:[#allocation3 + $0xb0] sm:$0xff]
      %v5317 = vld [vmem:[#allocation3 + $0xb8] sm:$0xff]
      %v5318 = vld [vmem:[#allocation3 + $0xc0] sm:$0xff]
      %v5319 = vld [vmem:[#allocation3 + $0xc8] sm:$0xff]
      %v5320 = vld [vmem:[#allocation3 + $0xd0] sm:$0xff]
      %v5321 = vld [vmem:[#allocation3 + $0xd8] sm:$0xff]
      %v5322 = vld [vmem:[#allocation3 + $0xe0] sm:$0xff]
      %v5323 = vld [vmem:[#allocation3 + $0xe8] sm:$0xff]
      %v5324 = vld [vmem:[#allocation3 + $0xf0] sm:$0xff]
      %v5325 = vld [vmem:[#allocation3 + $0xf8] sm:$0xff]
      %v5326 = vrot.slane %v5294, 6
      %v5327 = vrot.slane %v5298, 6
      %v5328 = vrot.slane %v5302, 6
      %v5329 = vrot.slane %v5306, 6
      %v5330 = vrot.slane %v5310, 6
      %v5331 = vrot.slane %v5314, 6
      %v5332 = vrot.slane %v5318, 6
      %v5333 = vrot.slane %v5322, 6
      %v5334 = vrot.slane %v5295, 6
      %v5335 = vrot.slane %v5299, 6
      %v5336 = vrot.slane %v5303, 6
      %v5337 = vrot.slane %v5307, 6
      %v5338 = vrot.slane %v5311, 6
      %v5339 = vrot.slane %v5315, 6
      %v5340 = vrot.slane %v5319, 6
      %v5341 = vrot.slane %v5323, 6
      %v5342 = vrot.slane %v5296, 6
      %v5343 = vrot.slane %v5300, 6
      %v5344 = vrot.slane %v5304, 6
      %v5345 = vrot.slane %v5308, 6
      %v5346 = vrot.slane %v5312, 6
      %v5347 = vrot.slane %v5316, 6
      %v5348 = vrot.slane %v5320, 6
      %v5349 = vrot.slane %v5324, 6
      %v5350 = vsel %vm1565, %v5334, %v5342
      %v5351 = vsel %vm1565, %v5335, %v5343
      %v5352 = vsel %vm1565, %v5336, %v5344
      %v5353 = vsel %vm1565, %v5337, %v5345
      %v5354 = vsel %vm1565, %v5338, %v5346
      %v5355 = vsel %vm1565, %v5339, %v5347
      %v5356 = vsel %vm1565, %v5340, %v5348
      %v5357 = vsel %vm1565, %v5341, %v5349
      %v5358 = vsel %vm1565, %v5326, %v5334
      %v5359 = vsel %vm1565, %v5327, %v5335
      %v5360 = vsel %vm1565, %v5328, %v5336
      %v5361 = vsel %vm1565, %v5329, %v5337
      %v5362 = vsel %vm1565, %v5330, %v5338
      %v5363 = vsel %vm1565, %v5331, %v5339
      %v5364 = vsel %vm1565, %v5332, %v5340
      %v5365 = vsel %vm1565, %v5333, %v5341
      %v5366 = vld [vmem:[%s7] sm:$0x1]
      %v5367 = vperm.slane %v5366, 0
      %v5368 = vmul.f32 %v5358, %v5367
      %v5369 = vmul.f32 %v5350, %v5367
      %v5370 = vmul.f32 %v5359, %v5367
      %v5371 = vmul.f32 %v5351, %v5367
      %v5372 = vmul.f32 %v5360, %v5367
      %v5373 = vmul.f32 %v5352, %v5367
      %v5374 = vmul.f32 %v5361, %v5367
      %v5375 = vmul.f32 %v5353, %v5367
      %v5376 = vmul.f32 %v5362, %v5367
      %v5377 = vmul.f32 %v5354, %v5367
      %v5378 = vmul.f32 %v5363, %v5367
      %v5379 = vmul.f32 %v5355, %v5367
      %v5380 = vmul.f32 %v5364, %v5367
      %v5381 = vmul.f32 %v5356, %v5367
      %v5382 = vmul.f32 %v5365, %v5367
      %v5383 = vmul.f32 %v5357, %v5367
      %v5384 = vrot.slane %v5294, 7
      %v5385 = vrot.slane %v5298, 7
      %v5386 = vrot.slane %v5302, 7
      %v5387 = vrot.slane %v5306, 7
      %v5388 = vrot.slane %v5310, 7
      %v5389 = vrot.slane %v5314, 7
      %v5390 = vrot.slane %v5318, 7
      %v5391 = vrot.slane %v5322, 7
      %v5392 = vrot.slane %v5295, 7
      %v5393 = vrot.slane %v5299, 7
      %v5394 = vrot.slane %v5303, 7
      %v5395 = vrot.slane %v5307, 7
      %v5396 = vrot.slane %v5311, 7
      %v5397 = vrot.slane %v5315, 7
      %v5398 = vrot.slane %v5319, 7
      %v5399 = vrot.slane %v5323, 7
      %v5400 = vrot.slane %v5296, 7
      %v5401 = vrot.slane %v5300, 7
      %v5402 = vrot.slane %v5304, 7
      %v5403 = vrot.slane %v5308, 7
      %v5404 = vrot.slane %v5312, 7
      %v5405 = vrot.slane %v5316, 7
      %v5406 = vrot.slane %v5320, 7
      %v5407 = vrot.slane %v5324, 7
      %v5408 = vsel %vm1652, %v5392, %v5400
      %v5409 = vsel %vm1652, %v5393, %v5401
      %v5410 = vsel %vm1652, %v5394, %v5402
      %v5411 = vsel %vm1652, %v5395, %v5403
      %v5412 = vsel %vm1652, %v5396, %v5404
      %v5413 = vsel %vm1652, %v5397, %v5405
      %v5414 = vsel %vm1652, %v5398, %v5406
      %v5415 = vsel %vm1652, %v5399, %v5407
      %v5416 = vsel %vm1652, %v5384, %v5392
      %v5417 = vsel %vm1652, %v5385, %v5393
      %v5418 = vsel %vm1652, %v5386, %v5394
      %v5419 = vsel %vm1652, %v5387, %v5395
      %v5420 = vsel %vm1652, %v5388, %v5396
      %v5421 = vsel %vm1652, %v5389, %v5397
      %v5422 = vsel %vm1652, %v5390, %v5398
      %v5423 = vsel %vm1652, %v5391, %v5399
      %v5424 = vld [vmem:[%s7 + $0x1] sm:$0x1]
      %v5425 = vperm.slane %v5424, 0
      %v5426 = vmul.f32 %v5416, %v5425
      %v5427 = vmul.f32 %v5408, %v5425
      %v5428 = vmul.f32 %v5417, %v5425
      %v5429 = vmul.f32 %v5409, %v5425
      %v5430 = vmul.f32 %v5418, %v5425
      %v5431 = vmul.f32 %v5410, %v5425
      %v5432 = vmul.f32 %v5419, %v5425
      %v5433 = vmul.f32 %v5411, %v5425
      %v5434 = vmul.f32 %v5420, %v5425
      %v5435 = vmul.f32 %v5412, %v5425
      %v5436 = vmul.f32 %v5421, %v5425
      %v5437 = vmul.f32 %v5413, %v5425
      %v5438 = vmul.f32 %v5422, %v5425
      %v5439 = vmul.f32 %v5414, %v5425
      %v5440 = vmul.f32 %v5423, %v5425
      %v5441 = vmul.f32 %v5415, %v5425
      %v5442 = vld [vmem:[%s7 + $0x2] sm:$0x1]
      %v5443 = vperm.slane %v5442, 0
      %v5444 = vmul.f32 %v5295, %v5443
      %v5445 = vmul.f32 %v5296, %v5443
      %v5446 = vmul.f32 %v5299, %v5443
      %v5447 = vmul.f32 %v5300, %v5443
      %v5448 = vmul.f32 %v5303, %v5443
      %v5449 = vmul.f32 %v5304, %v5443
      %v5450 = vmul.f32 %v5307, %v5443
      %v5451 = vmul.f32 %v5308, %v5443
      %v5452 = vmul.f32 %v5311, %v5443
      %v5453 = vmul.f32 %v5312, %v5443
      %v5454 = vmul.f32 %v5315, %v5443
      %v5455 = vmul.f32 %v5316, %v5443
      %v5456 = vmul.f32 %v5319, %v5443
      %v5457 = vmul.f32 %v5320, %v5443
      %v5458 = vmul.f32 %v5323, %v5443
      %v5459 = vmul.f32 %v5324, %v5443
      %v5460 = vrot.slane %v5295, 1
      %v5461 = vrot.slane %v5299, 1
      %v5462 = vrot.slane %v5303, 1
      %v5463 = vrot.slane %v5307, 1
      %v5464 = vrot.slane %v5311, 1
      %v5465 = vrot.slane %v5315, 1
      %v5466 = vrot.slane %v5319, 1
      %v5467 = vrot.slane %v5323, 1
      %v5468 = vrot.slane %v5296, 1
      %v5469 = vrot.slane %v5300, 1
      %v5470 = vrot.slane %v5304, 1
      %v5471 = vrot.slane %v5308, 1
      %v5472 = vrot.slane %v5312, 1
      %v5473 = vrot.slane %v5316, 1
      %v5474 = vrot.slane %v5320, 1
      %v5475 = vrot.slane %v5324, 1
      %v5476 = vrot.slane %v5297, 1
      %v5477 = vrot.slane %v5301, 1
      %v5478 = vrot.slane %v5305, 1
      %v5479 = vrot.slane %v5309, 1
      %v5480 = vrot.slane %v5313, 1
      %v5481 = vrot.slane %v5317, 1
      %v5482 = vrot.slane %v5321, 1
      %v5483 = vrot.slane %v5325, 1
      %v5484 = vsel %vm1765, %v5468, %v5476
      %v5485 = vsel %vm1765, %v5469, %v5477
      %v5486 = vsel %vm1765, %v5470, %v5478
      %v5487 = vsel %vm1765, %v5471, %v5479
      %v5488 = vsel %vm1765, %v5472, %v5480
      %v5489 = vsel %vm1765, %v5473, %v5481
      %v5490 = vsel %vm1765, %v5474, %v5482
      %v5491 = vsel %vm1765, %v5475, %v5483
      %v5492 = vsel %vm1765, %v5460, %v5468
      %v5493 = vsel %vm1765, %v5461, %v5469
      %v5494 = vsel %vm1765, %v5462, %v5470
      %v5495 = vsel %vm1765, %v5463, %v5471
      %v5496 = vsel %vm1765, %v5464, %v5472
      %v5497 = vsel %vm1765, %v5465, %v5473
      %v5498 = vsel %vm1765, %v5466, %v5474
      %v5499 = vsel %vm1765, %v5467, %v5475
      %v5500 = vld [vmem:[%s7 + $0x3] sm:$0x1]
      %v5501 = vperm.slane %v5500, 0
      %v5502 = vmul.f32 %v5492, %v5501
      %v5503 = vmul.f32 %v5484, %v5501
      %v5504 = vmul.f32 %v5493, %v5501
      %v5505 = vmul.f32 %v5485, %v5501
      %v5506 = vmul.f32 %v5494, %v5501
      %v5507 = vmul.f32 %v5486, %v5501
      %v5508 = vmul.f32 %v5495, %v5501
      %v5509 = vmul.f32 %v5487, %v5501
      %v5510 = vmul.f32 %v5496, %v5501
      %v5511 = vmul.f32 %v5488, %v5501
      %v5512 = vmul.f32 %v5497, %v5501
      %v5513 = vmul.f32 %v5489, %v5501
      %v5514 = vmul.f32 %v5498, %v5501
      %v5515 = vmul.f32 %v5490, %v5501
      %v5516 = vmul.f32 %v5499, %v5501
      %v5517 = vmul.f32 %v5491, %v5501
      %v5518 = vrot.slane %v5295, 2
      %v5519 = vrot.slane %v5299, 2
      %v5520 = vrot.slane %v5303, 2
      %v5521 = vrot.slane %v5307, 2
      %v5522 = vrot.slane %v5311, 2
      %v5523 = vrot.slane %v5315, 2
      %v5524 = vrot.slane %v5319, 2
      %v5525 = vrot.slane %v5323, 2
      %v5526 = vrot.slane %v5296, 2
      %v5527 = vrot.slane %v5300, 2
      %v5528 = vrot.slane %v5304, 2
      %v5529 = vrot.slane %v5308, 2
      %v5530 = vrot.slane %v5312, 2
      %v5531 = vrot.slane %v5316, 2
      %v5532 = vrot.slane %v5320, 2
      %v5533 = vrot.slane %v5324, 2
      %v5534 = vrot.slane %v5297, 2
      %v5535 = vrot.slane %v5301, 2
      %v5536 = vrot.slane %v5305, 2
      %v5537 = vrot.slane %v5309, 2
      %v5538 = vrot.slane %v5313, 2
      %v5539 = vrot.slane %v5317, 2
      %v5540 = vrot.slane %v5321, 2
      %v5541 = vrot.slane %v5325, 2
      %v5542 = vsel %vm1852, %v5526, %v5534
      %v5543 = vsel %vm1852, %v5527, %v5535
      %v5544 = vsel %vm1852, %v5528, %v5536
      %v5545 = vsel %vm1852, %v5529, %v5537
      %v5546 = vsel %vm1852, %v5530, %v5538
      %v5547 = vsel %vm1852, %v5531, %v5539
      %v5548 = vsel %vm1852, %v5532, %v5540
      %v5549 = vsel %vm1852, %v5533, %v5541
      %v5550 = vsel %vm1852, %v5518, %v5526
      %v5551 = vsel %vm1852, %v5519, %v5527
      %v5552 = vsel %vm1852, %v5520, %v5528
      %v5553 = vsel %vm1852, %v5521, %v5529
      %v5554 = vsel %vm1852, %v5522, %v5530
      %v5555 = vsel %vm1852, %v5523, %v5531
      %v5556 = vsel %vm1852, %v5524, %v5532
      %v5557 = vsel %vm1852, %v5525, %v5533
      %v5558 = vld [vmem:[%s7 + $0x4] sm:$0x1]
      %v5559 = vperm.slane %v5558, 0
      %v5560 = vmul.f32 %v5550, %v5559
      %v5561 = vmul.f32 %v5542, %v5559
      %v5562 = vmul.f32 %v5551, %v5559
      %v5563 = vmul.f32 %v5543, %v5559
      %v5564 = vmul.f32 %v5552, %v5559
      %v5565 = vmul.f32 %v5544, %v5559
      %v5566 = vmul.f32 %v5553, %v5559
      %v5567 = vmul.f32 %v5545, %v5559
      %v5568 = vmul.f32 %v5554, %v5559
      %v5569 = vmul.f32 %v5546, %v5559
      %v5570 = vmul.f32 %v5555, %v5559
      %v5571 = vmul.f32 %v5547, %v5559
      %v5572 = vmul.f32 %v5556, %v5559
      %v5573 = vmul.f32 %v5548, %v5559
      %v5574 = vmul.f32 %v5557, %v5559
      %v5575 = vmul.f32 %v5549, %v5559
      %v5576 = vadd.f32 %v5368, %v5426
      %v5577 = vadd.f32 %v5369, %v5427
      %v5578 = vadd.f32 %v5370, %v5428
      %v5579 = vadd.f32 %v5371, %v5429
      %v5580 = vadd.f32 %v5372, %v5430
      %v5581 = vadd.f32 %v5373, %v5431
      %v5582 = vadd.f32 %v5374, %v5432
      %v5583 = vadd.f32 %v5375, %v5433
      %v5584 = vadd.f32 %v5376, %v5434
      %v5585 = vadd.f32 %v5377, %v5435
      %v5586 = vadd.f32 %v5378, %v5436
      %v5587 = vadd.f32 %v5379, %v5437
      %v5588 = vadd.f32 %v5380, %v5438
      %v5589 = vadd.f32 %v5381, %v5439
      %v5590 = vadd.f32 %v5382, %v5440
      %v5591 = vadd.f32 %v5383, %v5441
      %v5592 = vadd.f32 %v5444, %v5502
      %v5593 = vadd.f32 %v5445, %v5503
      %v5594 = vadd.f32 %v5446, %v5504
      %v5595 = vadd.f32 %v5447, %v5505
      %v5596 = vadd.f32 %v5448, %v5506
      %v5597 = vadd.f32 %v5449, %v5507
      %v5598 = vadd.f32 %v5450, %v5508
      %v5599 = vadd.f32 %v5451, %v5509
      %v5600 = vadd.f32 %v5452, %v5510
      %v5601 = vadd.f32 %v5453, %v5511
      %v5602 = vadd.f32 %v5454, %v5512
      %v5603 = vadd.f32 %v5455, %v5513
      %v5604 = vadd.f32 %v5456, %v5514
      %v5605 = vadd.f32 %v5457, %v5515
      %v5606 = vadd.f32 %v5458, %v5516
      %v5607 = vadd.f32 %v5459, %v5517
      %v5608 = vadd.f32 %v5576, %v5592
      %v5609 = vadd.f32 %v5577, %v5593
      %v5610 = vadd.f32 %v5578, %v5594
      %v5611 = vadd.f32 %v5579, %v5595
      %v5612 = vadd.f32 %v5580, %v5596
      %v5613 = vadd.f32 %v5581, %v5597
      %v5614 = vadd.f32 %v5582, %v5598
      %v5615 = vadd.f32 %v5583, %v5599
      %v5616 = vadd.f32 %v5584, %v5600
      %v5617 = vadd.f32 %v5585, %v5601
      %v5618 = vadd.f32 %v5586, %v5602
      %v5619 = vadd.f32 %v5587, %v5603
      %v5620 = vadd.f32 %v5588, %v5604
      %v5621 = vadd.f32 %v5589, %v5605
      %v5622 = vadd.f32 %v5590, %v5606
      %v5623 = vadd.f32 %v5591, %v5607
      %v5624 = vadd.f32 %v5608, %v5560
      %v5625 = vadd.f32 %v5609, %v5561
      %v5626 = vadd.f32 %v5610, %v5562
      %v5627 = vadd.f32 %v5611, %v5563
      %v5628 = vadd.f32 %v5612, %v5564
      %v5629 = vadd.f32 %v5613, %v5565
      %v5630 = vadd.f32 %v5614, %v5566
      %v5631 = vadd.f32 %v5615, %v5567
      %v5632 = vadd.f32 %v5616, %v5568
      %v5633 = vadd.f32 %v5617, %v5569
      %v5634 = vadd.f32 %v5618, %v5570
      %v5635 = vadd.f32 %v5619, %v5571
      %v5636 = vadd.f32 %v5620, %v5572
      %v5637 = vadd.f32 %v5621, %v5573
      %v5638 = vadd.f32 %v5622, %v5574
      %v5639 = vadd.f32 %v5623, %v5575
      %s5640 = scalar_lea.vmem [#allocation3], 32
      %v5641 = vld [vmem:[%s5640] sm:$0xff]
      %v5642 = vld [vmem:[%s5640 + $0x8] sm:$0xff]
      %v5643 = vld [vmem:[%s5640 + $0x10] sm:$0xff]
      %v5644 = vld [vmem:[%s5640 + $0x18] sm:$0xff]
      %v5645 = vld [vmem:[%s5640 + $0x20] sm:$0xff]
      %v5646 = vld [vmem:[%s5640 + $0x28] sm:$0xff]
      %v5647 = vld [vmem:[%s5640 + $0x30] sm:$0xff]
      %v5648 = vld [vmem:[%s5640 + $0x38] sm:$0xff]
      %v5649 = vld [vmem:[%s5640 + $0x40] sm:$0xff]
      %v5650 = vld [vmem:[%s5640 + $0x48] sm:$0xff]
      %v5651 = vld [vmem:[%s5640 + $0x50] sm:$0xff]
      %v5652 = vld [vmem:[%s5640 + $0x58] sm:$0xff]
      %v5653 = vld [vmem:[%s5640 + $0x60] sm:$0xff]
      %v5654 = vld [vmem:[%s5640 + $0x68] sm:$0xff]
      %v5655 = vld [vmem:[%s5640 + $0x70] sm:$0xff]
      %v5656 = vld [vmem:[%s5640 + $0x78] sm:$0xff]
      %v5657 = vld [vmem:[%s5640 + $0x80] sm:$0xff]
      %v5658 = vld [vmem:[%s5640 + $0x88] sm:$0xff]
      %v5659 = vld [vmem:[%s5640 + $0x90] sm:$0xff]
      %v5660 = vld [vmem:[%s5640 + $0x98] sm:$0xff]
      %v5661 = vld [vmem:[%s5640 + $0xa0] sm:$0xff]
      %v5662 = vld [vmem:[%s5640 + $0xa8] sm:$0xff]
      %v5663 = vld [vmem:[%s5640 + $0xb0] sm:$0xff]
      %v5664 = vld [vmem:[%s5640 + $0xb8] sm:$0xff]
      %v5665 = vld [vmem:[%s5640 + $0xc0] sm:$0xff]
      %v5666 = vld [vmem:[%s5640 + $0xc8] sm:$0xff]
      %v5667 = vld [vmem:[%s5640 + $0xd0] sm:$0xff]
      %v5668 = vld [vmem:[%s5640 + $0xd8] sm:$0xff]
      %v5669 = vld [vmem:[%s5640 + $0xe0] sm:$0xff]
      %v5670 = vld [vmem:[%s5640 + $0xe8] sm:$0xff]
      %v5671 = vld [vmem:[%s5640 + $0xf0] sm:$0xff]
      %v5672 = vld [vmem:[%s5640 + $0xf8] sm:$0xff]
      %v5673 = vrot.slane %v5641, 6
      %v5674 = vrot.slane %v5645, 6
      %v5675 = vrot.slane %v5649, 6
      %v5676 = vrot.slane %v5653, 6
      %v5677 = vrot.slane %v5657, 6
      %v5678 = vrot.slane %v5661, 6
      %v5679 = vrot.slane %v5665, 6
      %v5680 = vrot.slane %v5669, 6
      %v5681 = vrot.slane %v5642, 6
      %v5682 = vrot.slane %v5646, 6
      %v5683 = vrot.slane %v5650, 6
      %v5684 = vrot.slane %v5654, 6
      %v5685 = vrot.slane %v5658, 6
      %v5686 = vrot.slane %v5662, 6
      %v5687 = vrot.slane %v5666, 6
      %v5688 = vrot.slane %v5670, 6
      %v5689 = vrot.slane %v5643, 6
      %v5690 = vrot.slane %v5647, 6
      %v5691 = vrot.slane %v5651, 6
      %v5692 = vrot.slane %v5655, 6
      %v5693 = vrot.slane %v5659, 6
      %v5694 = vrot.slane %v5663, 6
      %v5695 = vrot.slane %v5667, 6
      %v5696 = vrot.slane %v5671, 6
      %v5697 = vsel %vm1565, %v5681, %v5689
      %v5698 = vsel %vm1565, %v5682, %v5690
      %v5699 = vsel %vm1565, %v5683, %v5691
      %v5700 = vsel %vm1565, %v5684, %v5692
      %v5701 = vsel %vm1565, %v5685, %v5693
      %v5702 = vsel %vm1565, %v5686, %v5694
      %v5703 = vsel %vm1565, %v5687, %v5695
      %v5704 = vsel %vm1565, %v5688, %v5696
      %v5705 = vsel %vm1565, %v5673, %v5681
      %v5706 = vsel %vm1565, %v5674, %v5682
      %v5707 = vsel %vm1565, %v5675, %v5683
      %v5708 = vsel %vm1565, %v5676, %v5684
      %v5709 = vsel %vm1565, %v5677, %v5685
      %v5710 = vsel %vm1565, %v5678, %v5686
      %v5711 = vsel %vm1565, %v5679, %v5687
      %v5712 = vsel %vm1565, %v5680, %v5688
      %v5713 = vld [vmem:[%s7 + $0x5] sm:$0x1]
      %v5714 = vperm.slane %v5713, 0
      %v5715 = vmul.f32 %v5705, %v5714
      %v5716 = vmul.f32 %v5697, %v5714
      %v5717 = vmul.f32 %v5706, %v5714
      %v5718 = vmul.f32 %v5698, %v5714
      %v5719 = vmul.f32 %v5707, %v5714
      %v5720 = vmul.f32 %v5699, %v5714
      %v5721 = vmul.f32 %v5708, %v5714
      %v5722 = vmul.f32 %v5700, %v5714
      %v5723 = vmul.f32 %v5709, %v5714
      %v5724 = vmul.f32 %v5701, %v5714
      %v5725 = vmul.f32 %v5710, %v5714
      %v5726 = vmul.f32 %v5702, %v5714
      %v5727 = vmul.f32 %v5711, %v5714
      %v5728 = vmul.f32 %v5703, %v5714
      %v5729 = vmul.f32 %v5712, %v5714
      %v5730 = vmul.f32 %v5704, %v5714
      %v5731 = vrot.slane %v5641, 7
      %v5732 = vrot.slane %v5645, 7
      %v5733 = vrot.slane %v5649, 7
      %v5734 = vrot.slane %v5653, 7
      %v5735 = vrot.slane %v5657, 7
      %v5736 = vrot.slane %v5661, 7
      %v5737 = vrot.slane %v5665, 7
      %v5738 = vrot.slane %v5669, 7
      %v5739 = vrot.slane %v5642, 7
      %v5740 = vrot.slane %v5646, 7
      %v5741 = vrot.slane %v5650, 7
      %v5742 = vrot.slane %v5654, 7
      %v5743 = vrot.slane %v5658, 7
      %v5744 = vrot.slane %v5662, 7
      %v5745 = vrot.slane %v5666, 7
      %v5746 = vrot.slane %v5670, 7
      %v5747 = vrot.slane %v5643, 7
      %v5748 = vrot.slane %v5647, 7
      %v5749 = vrot.slane %v5651, 7
      %v5750 = vrot.slane %v5655, 7
      %v5751 = vrot.slane %v5659, 7
      %v5752 = vrot.slane %v5663, 7
      %v5753 = vrot.slane %v5667, 7
      %v5754 = vrot.slane %v5671, 7
      %v5755 = vsel %vm1652, %v5739, %v5747
      %v5756 = vsel %vm1652, %v5740, %v5748
      %v5757 = vsel %vm1652, %v5741, %v5749
      %v5758 = vsel %vm1652, %v5742, %v5750
      %v5759 = vsel %vm1652, %v5743, %v5751
      %v5760 = vsel %vm1652, %v5744, %v5752
      %v5761 = vsel %vm1652, %v5745, %v5753
      %v5762 = vsel %vm1652, %v5746, %v5754
      %v5763 = vsel %vm1652, %v5731, %v5739
      %v5764 = vsel %vm1652, %v5732, %v5740
      %v5765 = vsel %vm1652, %v5733, %v5741
      %v5766 = vsel %vm1652, %v5734, %v5742
      %v5767 = vsel %vm1652, %v5735, %v5743
      %v5768 = vsel %vm1652, %v5736, %v5744
      %v5769 = vsel %vm1652, %v5737, %v5745
      %v5770 = vsel %vm1652, %v5738, %v5746
      %v5771 = vld [vmem:[%s7 + $0x6] sm:$0x1]
      %v5772 = vperm.slane %v5771, 0
      %v5773 = vmul.f32 %v5763, %v5772
      %v5774 = vmul.f32 %v5755, %v5772
      %v5775 = vmul.f32 %v5764, %v5772
      %v5776 = vmul.f32 %v5756, %v5772
      %v5777 = vmul.f32 %v5765, %v5772
      %v5778 = vmul.f32 %v5757, %v5772
      %v5779 = vmul.f32 %v5766, %v5772
      %v5780 = vmul.f32 %v5758, %v5772
      %v5781 = vmul.f32 %v5767, %v5772
      %v5782 = vmul.f32 %v5759, %v5772
      %v5783 = vmul.f32 %v5768, %v5772
      %v5784 = vmul.f32 %v5760, %v5772
      %v5785 = vmul.f32 %v5769, %v5772
      %v5786 = vmul.f32 %v5761, %v5772
      %v5787 = vmul.f32 %v5770, %v5772
      %v5788 = vmul.f32 %v5762, %v5772
      %v5789 = vld [vmem:[%s7 + $0x7] sm:$0x1]
      %v5790 = vperm.slane %v5789, 0
      %v5791 = vmul.f32 %v5642, %v5790
      %v5792 = vmul.f32 %v5643, %v5790
      %v5793 = vmul.f32 %v5646, %v5790
      %v5794 = vmul.f32 %v5647, %v5790
      %v5795 = vmul.f32 %v5650, %v5790
      %v5796 = vmul.f32 %v5651, %v5790
      %v5797 = vmul.f32 %v5654, %v5790
      %v5798 = vmul.f32 %v5655, %v5790
      %v5799 = vmul.f32 %v5658, %v5790
      %v5800 = vmul.f32 %v5659, %v5790
      %v5801 = vmul.f32 %v5662, %v5790
      %v5802 = vmul.f32 %v5663, %v5790
      %v5803 = vmul.f32 %v5666, %v5790
      %v5804 = vmul.f32 %v5667, %v5790
      %v5805 = vmul.f32 %v5670, %v5790
      %v5806 = vmul.f32 %v5671, %v5790
      %v5807 = vrot.slane %v5642, 1
      %v5808 = vrot.slane %v5646, 1
      %v5809 = vrot.slane %v5650, 1
      %v5810 = vrot.slane %v5654, 1
      %v5811 = vrot.slane %v5658, 1
      %v5812 = vrot.slane %v5662, 1
      %v5813 = vrot.slane %v5666, 1
      %v5814 = vrot.slane %v5670, 1
      %v5815 = vrot.slane %v5643, 1
      %v5816 = vrot.slane %v5647, 1
      %v5817 = vrot.slane %v5651, 1
      %v5818 = vrot.slane %v5655, 1
      %v5819 = vrot.slane %v5659, 1
      %v5820 = vrot.slane %v5663, 1
      %v5821 = vrot.slane %v5667, 1
      %v5822 = vrot.slane %v5671, 1
      %v5823 = vrot.slane %v5644, 1
      %v5824 = vrot.slane %v5648, 1
      %v5825 = vrot.slane %v5652, 1
      %v5826 = vrot.slane %v5656, 1
      %v5827 = vrot.slane %v5660, 1
      %v5828 = vrot.slane %v5664, 1
      %v5829 = vrot.slane %v5668, 1
      %v5830 = vrot.slane %v5672, 1
      %v5831 = vsel %vm1765, %v5815, %v5823
      %v5832 = vsel %vm1765, %v5816, %v5824
      %v5833 = vsel %vm1765, %v5817, %v5825
      %v5834 = vsel %vm1765, %v5818, %v5826
      %v5835 = vsel %vm1765, %v5819, %v5827
      %v5836 = vsel %vm1765, %v5820, %v5828
      %v5837 = vsel %vm1765, %v5821, %v5829
      %v5838 = vsel %vm1765, %v5822, %v5830
      %v5839 = vsel %vm1765, %v5807, %v5815
      %v5840 = vsel %vm1765, %v5808, %v5816
      %v5841 = vsel %vm1765, %v5809, %v5817
      %v5842 = vsel %vm1765, %v5810, %v5818
      %v5843 = vsel %vm1765, %v5811, %v5819
      %v5844 = vsel %vm1765, %v5812, %v5820
      %v5845 = vsel %vm1765, %v5813, %v5821
      %v5846 = vsel %vm1765, %v5814, %v5822
      %v5847 = vld [vmem:[%s7 + $0x8] sm:$0x1]
      %v5848 = vperm.slane %v5847, 0
      %v5849 = vmul.f32 %v5839, %v5848
      %v5850 = vmul.f32 %v5831, %v5848
      %v5851 = vmul.f32 %v5840, %v5848
      %v5852 = vmul.f32 %v5832, %v5848
      %v5853 = vmul.f32 %v5841, %v5848
      %v5854 = vmul.f32 %v5833, %v5848
      %v5855 = vmul.f32 %v5842, %v5848
      %v5856 = vmul.f32 %v5834, %v5848
      %v5857 = vmul.f32 %v5843, %v5848
      %v5858 = vmul.f32 %v5835, %v5848
      %v5859 = vmul.f32 %v5844, %v5848
      %v5860 = vmul.f32 %v5836, %v5848
      %v5861 = vmul.f32 %v5845, %v5848
      %v5862 = vmul.f32 %v5837, %v5848
      %v5863 = vmul.f32 %v5846, %v5848
      %v5864 = vmul.f32 %v5838, %v5848
      %v5865 = vrot.slane %v5642, 2
      %v5866 = vrot.slane %v5646, 2
      %v5867 = vrot.slane %v5650, 2
      %v5868 = vrot.slane %v5654, 2
      %v5869 = vrot.slane %v5658, 2
      %v5870 = vrot.slane %v5662, 2
      %v5871 = vrot.slane %v5666, 2
      %v5872 = vrot.slane %v5670, 2
      %v5873 = vrot.slane %v5643, 2
      %v5874 = vrot.slane %v5647, 2
      %v5875 = vrot.slane %v5651, 2
      %v5876 = vrot.slane %v5655, 2
      %v5877 = vrot.slane %v5659, 2
      %v5878 = vrot.slane %v5663, 2
      %v5879 = vrot.slane %v5667, 2
      %v5880 = vrot.slane %v5671, 2
      %v5881 = vrot.slane %v5644, 2
      %v5882 = vrot.slane %v5648, 2
      %v5883 = vrot.slane %v5652, 2
      %v5884 = vrot.slane %v5656, 2
      %v5885 = vrot.slane %v5660, 2
      %v5886 = vrot.slane %v5664, 2
      %v5887 = vrot.slane %v5668, 2
      %v5888 = vrot.slane %v5672, 2
      %v5889 = vsel %vm1852, %v5873, %v5881
      %v5890 = vsel %vm1852, %v5874, %v5882
      %v5891 = vsel %vm1852, %v5875, %v5883
      %v5892 = vsel %vm1852, %v5876, %v5884
      %v5893 = vsel %vm1852, %v5877, %v5885
      %v5894 = vsel %vm1852, %v5878, %v5886
      %v5895 = vsel %vm1852, %v5879, %v5887
      %v5896 = vsel %vm1852, %v5880, %v5888
      %v5897 = vsel %vm1852, %v5865, %v5873
      %v5898 = vsel %vm1852, %v5866, %v5874
      %v5899 = vsel %vm1852, %v5867, %v5875
      %v5900 = vsel %vm1852, %v5868, %v5876
      %v5901 = vsel %vm1852, %v5869, %v5877
      %v5902 = vsel %vm1852, %v5870, %v5878
      %v5903 = vsel %vm1852, %v5871, %v5879
      %v5904 = vsel %vm1852, %v5872, %v5880
      %v5905 = vld [vmem:[%s7 + $0x9] sm:$0x1]
      %v5906 = vperm.slane %v5905, 0
      %v5907 = vmul.f32 %v5897, %v5906
      %v5908 = vmul.f32 %v5889, %v5906
      %v5909 = vmul.f32 %v5898, %v5906
      %v5910 = vmul.f32 %v5890, %v5906
      %v5911 = vmul.f32 %v5899, %v5906
      %v5912 = vmul.f32 %v5891, %v5906
      %v5913 = vmul.f32 %v5900, %v5906
      %v5914 = vmul.f32 %v5892, %v5906
      %v5915 = vmul.f32 %v5901, %v5906
      %v5916 = vmul.f32 %v5893, %v5906
      %v5917 = vmul.f32 %v5902, %v5906
      %v5918 = vmul.f32 %v5894, %v5906
      %v5919 = vmul.f32 %v5903, %v5906
      %v5920 = vmul.f32 %v5895, %v5906
      %v5921 = vmul.f32 %v5904, %v5906
      %v5922 = vmul.f32 %v5896, %v5906
      %v5923 = vadd.f32 %v5715, %v5773
      %v5924 = vadd.f32 %v5716, %v5774
      %v5925 = vadd.f32 %v5717, %v5775
      %v5926 = vadd.f32 %v5718, %v5776
      %v5927 = vadd.f32 %v5719, %v5777
      %v5928 = vadd.f32 %v5720, %v5778
      %v5929 = vadd.f32 %v5721, %v5779
      %v5930 = vadd.f32 %v5722, %v5780
      %v5931 = vadd.f32 %v5723, %v5781
      %v5932 = vadd.f32 %v5724, %v5782
      %v5933 = vadd.f32 %v5725, %v5783
      %v5934 = vadd.f32 %v5726, %v5784
      %v5935 = vadd.f32 %v5727, %v5785
      %v5936 = vadd.f32 %v5728, %v5786
      %v5937 = vadd.f32 %v5729, %v5787
      %v5938 = vadd.f32 %v5730, %v5788
      %v5939 = vadd.f32 %v5791, %v5849
      %v5940 = vadd.f32 %v5792, %v5850
      %v5941 = vadd.f32 %v5793, %v5851
      %v5942 = vadd.f32 %v5794, %v5852
      %v5943 = vadd.f32 %v5795, %v5853
      %v5944 = vadd.f32 %v5796, %v5854
      %v5945 = vadd.f32 %v5797, %v5855
      %v5946 = vadd.f32 %v5798, %v5856
      %v5947 = vadd.f32 %v5799, %v5857
      %v5948 = vadd.f32 %v5800, %v5858
      %v5949 = vadd.f32 %v5801, %v5859
      %v5950 = vadd.f32 %v5802, %v5860
      %v5951 = vadd.f32 %v5803, %v5861
      %v5952 = vadd.f32 %v5804, %v5862
      %v5953 = vadd.f32 %v5805, %v5863
      %v5954 = vadd.f32 %v5806, %v5864
      %v5955 = vadd.f32 %v5923, %v5939
      %v5956 = vadd.f32 %v5924, %v5940
      %v5957 = vadd.f32 %v5925, %v5941
      %v5958 = vadd.f32 %v5926, %v5942
      %v5959 = vadd.f32 %v5927, %v5943
      %v5960 = vadd.f32 %v5928, %v5944
      %v5961 = vadd.f32 %v5929, %v5945
      %v5962 = vadd.f32 %v5930, %v5946
      %v5963 = vadd.f32 %v5931, %v5947
      %v5964 = vadd.f32 %v5932, %v5948
      %v5965 = vadd.f32 %v5933, %v5949
      %v5966 = vadd.f32 %v5934, %v5950
      %v5967 = vadd.f32 %v5935, %v5951
      %v5968 = vadd.f32 %v5936, %v5952
      %v5969 = vadd.f32 %v5937, %v5953
      %v5970 = vadd.f32 %v5938, %v5954
      %v5971 = vadd.f32 %v5955, %v5907
      %v5972 = vadd.f32 %v5956, %v5908
      %v5973 = vadd.f32 %v5957, %v5909
      %v5974 = vadd.f32 %v5958, %v5910
      %v5975 = vadd.f32 %v5959, %v5911
      %v5976 = vadd.f32 %v5960, %v5912
      %v5977 = vadd.f32 %v5961, %v5913
      %v5978 = vadd.f32 %v5962, %v5914
      %v5979 = vadd.f32 %v5963, %v5915
      %v5980 = vadd.f32 %v5964, %v5916
      %v5981 = vadd.f32 %v5965, %v5917
      %v5982 = vadd.f32 %v5966, %v5918
      %v5983 = vadd.f32 %v5967, %v5919
      %v5984 = vadd.f32 %v5968, %v5920
      %v5985 = vadd.f32 %v5969, %v5921
      %v5986 = vadd.f32 %v5970, %v5922
      %s5987 = scalar_lea.vmem [#allocation3], 64
      %v5988 = vld [vmem:[%s5987] sm:$0xff]
      %v5989 = vld [vmem:[%s5987 + $0x8] sm:$0xff]
      %v5990 = vld [vmem:[%s5987 + $0x10] sm:$0xff]
      %v5991 = vld [vmem:[%s5987 + $0x18] sm:$0xff]
      %v5992 = vld [vmem:[%s5987 + $0x20] sm:$0xff]
      %v5993 = vld [vmem:[%s5987 + $0x28] sm:$0xff]
      %v5994 = vld [vmem:[%s5987 + $0x30] sm:$0xff]
      %v5995 = vld [vmem:[%s5987 + $0x38] sm:$0xff]
      %v5996 = vld [vmem:[%s5987 + $0x40] sm:$0xff]
      %v5997 = vld [vmem:[%s5987 + $0x48] sm:$0xff]
      %v5998 = vld [vmem:[%s5987 + $0x50] sm:$0xff]
      %v5999 = vld [vmem:[%s5987 + $0x58] sm:$0xff]
      %v6000 = vld [vmem:[%s5987 + $0x60] sm:$0xff]
      %v6001 = vld [vmem:[%s5987 + $0x68] sm:$0xff]
      %v6002 = vld [vmem:[%s5987 + $0x70] sm:$0xff]
      %v6003 = vld [vmem:[%s5987 + $0x78] sm:$0xff]
      %v6004 = vld [vmem:[%s5987 + $0x80] sm:$0xff]
      %v6005 = vld [vmem:[%s5987 + $0x88] sm:$0xff]
      %v6006 = vld [vmem:[%s5987 + $0x90] sm:$0xff]
      %v6007 = vld [vmem:[%s5987 + $0x98] sm:$0xff]
      %v6008 = vld [vmem:[%s5987 + $0xa0] sm:$0xff]
      %v6009 = vld [vmem:[%s5987 + $0xa8] sm:$0xff]
      %v6010 = vld [vmem:[%s5987 + $0xb0] sm:$0xff]
      %v6011 = vld [vmem:[%s5987 + $0xb8] sm:$0xff]
      %v6012 = vld [vmem:[%s5987 + $0xc0] sm:$0xff]
      %v6013 = vld [vmem:[%s5987 + $0xc8] sm:$0xff]
      %v6014 = vld [vmem:[%s5987 + $0xd0] sm:$0xff]
      %v6015 = vld [vmem:[%s5987 + $0xd8] sm:$0xff]
      %v6016 = vld [vmem:[%s5987 + $0xe0] sm:$0xff]
      %v6017 = vld [vmem:[%s5987 + $0xe8] sm:$0xff]
      %v6018 = vld [vmem:[%s5987 + $0xf0] sm:$0xff]
      %v6019 = vld [vmem:[%s5987 + $0xf8] sm:$0xff]
      %v6020 = vrot.slane %v5988, 6
      %v6021 = vrot.slane %v5992, 6
      %v6022 = vrot.slane %v5996, 6
      %v6023 = vrot.slane %v6000, 6
      %v6024 = vrot.slane %v6004, 6
      %v6025 = vrot.slane %v6008, 6
      %v6026 = vrot.slane %v6012, 6
      %v6027 = vrot.slane %v6016, 6
      %v6028 = vrot.slane %v5989, 6
      %v6029 = vrot.slane %v5993, 6
      %v6030 = vrot.slane %v5997, 6
      %v6031 = vrot.slane %v6001, 6
      %v6032 = vrot.slane %v6005, 6
      %v6033 = vrot.slane %v6009, 6
      %v6034 = vrot.slane %v6013, 6
      %v6035 = vrot.slane %v6017, 6
      %v6036 = vrot.slane %v5990, 6
      %v6037 = vrot.slane %v5994, 6
      %v6038 = vrot.slane %v5998, 6
      %v6039 = vrot.slane %v6002, 6
      %v6040 = vrot.slane %v6006, 6
      %v6041 = vrot.slane %v6010, 6
      %v6042 = vrot.slane %v6014, 6
      %v6043 = vrot.slane %v6018, 6
      %v6044 = vsel %vm1565, %v6028, %v6036
      %v6045 = vsel %vm1565, %v6029, %v6037
      %v6046 = vsel %vm1565, %v6030, %v6038
      %v6047 = vsel %vm1565, %v6031, %v6039
      %v6048 = vsel %vm1565, %v6032, %v6040
      %v6049 = vsel %vm1565, %v6033, %v6041
      %v6050 = vsel %vm1565, %v6034, %v6042
      %v6051 = vsel %vm1565, %v6035, %v6043
      %v6052 = vsel %vm1565, %v6020, %v6028
      %v6053 = vsel %vm1565, %v6021, %v6029
      %v6054 = vsel %vm1565, %v6022, %v6030
      %v6055 = vsel %vm1565, %v6023, %v6031
      %v6056 = vsel %vm1565, %v6024, %v6032
      %v6057 = vsel %vm1565, %v6025, %v6033
      %v6058 = vsel %vm1565, %v6026, %v6034
      %v6059 = vsel %vm1565, %v6027, %v6035
      %v6060 = vld [vmem:[%s7 + $0xa] sm:$0x1]
      %v6061 = vperm.slane %v6060, 0
      %v6062 = vmul.f32 %v6052, %v6061
      %v6063 = vmul.f32 %v6044, %v6061
      %v6064 = vmul.f32 %v6053, %v6061
      %v6065 = vmul.f32 %v6045, %v6061
      %v6066 = vmul.f32 %v6054, %v6061
      %v6067 = vmul.f32 %v6046, %v6061
      %v6068 = vmul.f32 %v6055, %v6061
      %v6069 = vmul.f32 %v6047, %v6061
      %v6070 = vmul.f32 %v6056, %v6061
      %v6071 = vmul.f32 %v6048, %v6061
      %v6072 = vmul.f32 %v6057, %v6061
      %v6073 = vmul.f32 %v6049, %v6061
      %v6074 = vmul.f32 %v6058, %v6061
      %v6075 = vmul.f32 %v6050, %v6061
      %v6076 = vmul.f32 %v6059, %v6061
      %v6077 = vmul.f32 %v6051, %v6061
      %v6078 = vrot.slane %v5988, 7
      %v6079 = vrot.slane %v5992, 7
      %v6080 = vrot.slane %v5996, 7
      %v6081 = vrot.slane %v6000, 7
      %v6082 = vrot.slane %v6004, 7
      %v6083 = vrot.slane %v6008, 7
      %v6084 = vrot.slane %v6012, 7
      %v6085 = vrot.slane %v6016, 7
      %v6086 = vrot.slane %v5989, 7
      %v6087 = vrot.slane %v5993, 7
      %v6088 = vrot.slane %v5997, 7
      %v6089 = vrot.slane %v6001, 7
      %v6090 = vrot.slane %v6005, 7
      %v6091 = vrot.slane %v6009, 7
      %v6092 = vrot.slane %v6013, 7
      %v6093 = vrot.slane %v6017, 7
      %v6094 = vrot.slane %v5990, 7
      %v6095 = vrot.slane %v5994, 7
      %v6096 = vrot.slane %v5998, 7
      %v6097 = vrot.slane %v6002, 7
      %v6098 = vrot.slane %v6006, 7
      %v6099 = vrot.slane %v6010, 7
      %v6100 = vrot.slane %v6014, 7
      %v6101 = vrot.slane %v6018, 7
      %v6102 = vsel %vm1652, %v6086, %v6094
      %v6103 = vsel %vm1652, %v6087, %v6095
      %v6104 = vsel %vm1652, %v6088, %v6096
      %v6105 = vsel %vm1652, %v6089, %v6097
      %v6106 = vsel %vm1652, %v6090, %v6098
      %v6107 = vsel %vm1652, %v6091, %v6099
      %v6108 = vsel %vm1652, %v6092, %v6100
      %v6109 = vsel %vm1652, %v6093, %v6101
      %v6110 = vsel %vm1652, %v6078, %v6086
      %v6111 = vsel %vm1652, %v6079, %v6087
      %v6112 = vsel %vm1652, %v6080, %v6088
      %v6113 = vsel %vm1652, %v6081, %v6089
      %v6114 = vsel %vm1652, %v6082, %v6090
      %v6115 = vsel %vm1652, %v6083, %v6091
      %v6116 = vsel %vm1652, %v6084, %v6092
      %v6117 = vsel %vm1652, %v6085, %v6093
      %v6118 = vld [vmem:[%s7 + $0xb] sm:$0x1]
      %v6119 = vperm.slane %v6118, 0
      %v6120 = vmul.f32 %v6110, %v6119
      %v6121 = vmul.f32 %v6102, %v6119
      %v6122 = vmul.f32 %v6111, %v6119
      %v6123 = vmul.f32 %v6103, %v6119
      %v6124 = vmul.f32 %v6112, %v6119
      %v6125 = vmul.f32 %v6104, %v6119
      %v6126 = vmul.f32 %v6113, %v6119
      %v6127 = vmul.f32 %v6105, %v6119
      %v6128 = vmul.f32 %v6114, %v6119
      %v6129 = vmul.f32 %v6106, %v6119
      %v6130 = vmul.f32 %v6115, %v6119
      %v6131 = vmul.f32 %v6107, %v6119
      %v6132 = vmul.f32 %v6116, %v6119
      %v6133 = vmul.f32 %v6108, %v6119
      %v6134 = vmul.f32 %v6117, %v6119
      %v6135 = vmul.f32 %v6109, %v6119
      %v6136 = vld [vmem:[%s7 + $0xc] sm:$0x1]
      %v6137 = vperm.slane %v6136, 0
      %v6138 = vmul.f32 %v5989, %v6137
      %v6139 = vmul.f32 %v5990, %v6137
      %v6140 = vmul.f32 %v5993, %v6137
      %v6141 = vmul.f32 %v5994, %v6137
      %v6142 = vmul.f32 %v5997, %v6137
      %v6143 = vmul.f32 %v5998, %v6137
      %v6144 = vmul.f32 %v6001, %v6137
      %v6145 = vmul.f32 %v6002, %v6137
      %v6146 = vmul.f32 %v6005, %v6137
      %v6147 = vmul.f32 %v6006, %v6137
      %v6148 = vmul.f32 %v6009, %v6137
      %v6149 = vmul.f32 %v6010, %v6137
      %v6150 = vmul.f32 %v6013, %v6137
      %v6151 = vmul.f32 %v6014, %v6137
      %v6152 = vmul.f32 %v6017, %v6137
      %v6153 = vmul.f32 %v6018, %v6137
      %v6154 = vrot.slane %v5989, 1
      %v6155 = vrot.slane %v5993, 1
      %v6156 = vrot.slane %v5997, 1
      %v6157 = vrot.slane %v6001, 1
      %v6158 = vrot.slane %v6005, 1
      %v6159 = vrot.slane %v6009, 1
      %v6160 = vrot.slane %v6013, 1
      %v6161 = vrot.slane %v6017, 1
      %v6162 = vrot.slane %v5990, 1
      %v6163 = vrot.slane %v5994, 1
      %v6164 = vrot.slane %v5998, 1
      %v6165 = vrot.slane %v6002, 1
      %v6166 = vrot.slane %v6006, 1
      %v6167 = vrot.slane %v6010, 1
      %v6168 = vrot.slane %v6014, 1
      %v6169 = vrot.slane %v6018, 1
      %v6170 = vrot.slane %v5991, 1
      %v6171 = vrot.slane %v5995, 1
      %v6172 = vrot.slane %v5999, 1
      %v6173 = vrot.slane %v6003, 1
      %v6174 = vrot.slane %v6007, 1
      %v6175 = vrot.slane %v6011, 1
      %v6176 = vrot.slane %v6015, 1
      %v6177 = vrot.slane %v6019, 1
      %v6178 = vsel %vm1765, %v6162, %v6170
      %v6179 = vsel %vm1765, %v6163, %v6171
      %v6180 = vsel %vm1765, %v6164, %v6172
      %v6181 = vsel %vm1765, %v6165, %v6173
      %v6182 = vsel %vm1765, %v6166, %v6174
      %v6183 = vsel %vm1765, %v6167, %v6175
      %v6184 = vsel %vm1765, %v6168, %v6176
      %v6185 = vsel %vm1765, %v6169, %v6177
      %v6186 = vsel %vm1765, %v6154, %v6162
      %v6187 = vsel %vm1765, %v6155, %v6163
      %v6188 = vsel %vm1765, %v6156, %v6164
      %v6189 = vsel %vm1765, %v6157, %v6165
      %v6190 = vsel %vm1765, %v6158, %v6166
      %v6191 = vsel %vm1765, %v6159, %v6167
      %v6192 = vsel %vm1765, %v6160, %v6168
      %v6193 = vsel %vm1765, %v6161, %v6169
      %v6194 = vld [vmem:[%s7 + $0xd] sm:$0x1]
      %v6195 = vperm.slane %v6194, 0
      %v6196 = vmul.f32 %v6186, %v6195
      %v6197 = vmul.f32 %v6178, %v6195
      %v6198 = vmul.f32 %v6187, %v6195
      %v6199 = vmul.f32 %v6179, %v6195
      %v6200 = vmul.f32 %v6188, %v6195
      %v6201 = vmul.f32 %v6180, %v6195
      %v6202 = vmul.f32 %v6189, %v6195
      %v6203 = vmul.f32 %v6181, %v6195
      %v6204 = vmul.f32 %v6190, %v6195
      %v6205 = vmul.f32 %v6182, %v6195
      %v6206 = vmul.f32 %v6191, %v6195
      %v6207 = vmul.f32 %v6183, %v6195
      %v6208 = vmul.f32 %v6192, %v6195
      %v6209 = vmul.f32 %v6184, %v6195
      %v6210 = vmul.f32 %v6193, %v6195
      %v6211 = vmul.f32 %v6185, %v6195
      %v6212 = vrot.slane %v5989, 2
      %v6213 = vrot.slane %v5993, 2
      %v6214 = vrot.slane %v5997, 2
      %v6215 = vrot.slane %v6001, 2
      %v6216 = vrot.slane %v6005, 2
      %v6217 = vrot.slane %v6009, 2
      %v6218 = vrot.slane %v6013, 2
      %v6219 = vrot.slane %v6017, 2
      %v6220 = vrot.slane %v5990, 2
      %v6221 = vrot.slane %v5994, 2
      %v6222 = vrot.slane %v5998, 2
      %v6223 = vrot.slane %v6002, 2
      %v6224 = vrot.slane %v6006, 2
      %v6225 = vrot.slane %v6010, 2
      %v6226 = vrot.slane %v6014, 2
      %v6227 = vrot.slane %v6018, 2
      %v6228 = vrot.slane %v5991, 2
      %v6229 = vrot.slane %v5995, 2
      %v6230 = vrot.slane %v5999, 2
      %v6231 = vrot.slane %v6003, 2
      %v6232 = vrot.slane %v6007, 2
      %v6233 = vrot.slane %v6011, 2
      %v6234 = vrot.slane %v6015, 2
      %v6235 = vrot.slane %v6019, 2
      %v6236 = vsel %vm1852, %v6220, %v6228
      %v6237 = vsel %vm1852, %v6221, %v6229
      %v6238 = vsel %vm1852, %v6222, %v6230
      %v6239 = vsel %vm1852, %v6223, %v6231
      %v6240 = vsel %vm1852, %v6224, %v6232
      %v6241 = vsel %vm1852, %v6225, %v6233
      %v6242 = vsel %vm1852, %v6226, %v6234
      %v6243 = vsel %vm1852, %v6227, %v6235
      %v6244 = vsel %vm1852, %v6212, %v6220
      %v6245 = vsel %vm1852, %v6213, %v6221
      %v6246 = vsel %vm1852, %v6214, %v6222
      %v6247 = vsel %vm1852, %v6215, %v6223
      %v6248 = vsel %vm1852, %v6216, %v6224
      %v6249 = vsel %vm1852, %v6217, %v6225
      %v6250 = vsel %vm1852, %v6218, %v6226
      %v6251 = vsel %vm1852, %v6219, %v6227
      %v6252 = vld [vmem:[%s7 + $0xe] sm:$0x1]
      %v6253 = vperm.slane %v6252, 0
      %v6254 = vmul.f32 %v6244, %v6253
      %v6255 = vmul.f32 %v6236, %v6253
      %v6256 = vmul.f32 %v6245, %v6253
      %v6257 = vmul.f32 %v6237, %v6253
      %v6258 = vmul.f32 %v6246, %v6253
      %v6259 = vmul.f32 %v6238, %v6253
      %v6260 = vmul.f32 %v6247, %v6253
      %v6261 = vmul.f32 %v6239, %v6253
      %v6262 = vmul.f32 %v6248, %v6253
      %v6263 = vmul.f32 %v6240, %v6253
      %v6264 = vmul.f32 %v6249, %v6253
      %v6265 = vmul.f32 %v6241, %v6253
      %v6266 = vmul.f32 %v6250, %v6253
      %v6267 = vmul.f32 %v6242, %v6253
      %v6268 = vmul.f32 %v6251, %v6253
      %v6269 = vmul.f32 %v6243, %v6253
      %v6270 = vadd.f32 %v6062, %v6120
      %v6271 = vadd.f32 %v6063, %v6121
      %v6272 = vadd.f32 %v6064, %v6122
      %v6273 = vadd.f32 %v6065, %v6123
      %v6274 = vadd.f32 %v6066, %v6124
      %v6275 = vadd.f32 %v6067, %v6125
      %v6276 = vadd.f32 %v6068, %v6126
      %v6277 = vadd.f32 %v6069, %v6127
      %v6278 = vadd.f32 %v6070, %v6128
      %v6279 = vadd.f32 %v6071, %v6129
      %v6280 = vadd.f32 %v6072, %v6130
      %v6281 = vadd.f32 %v6073, %v6131
      %v6282 = vadd.f32 %v6074, %v6132
      %v6283 = vadd.f32 %v6075, %v6133
      %v6284 = vadd.f32 %v6076, %v6134
      %v6285 = vadd.f32 %v6077, %v6135
      %v6286 = vadd.f32 %v6138, %v6196
      %v6287 = vadd.f32 %v6139, %v6197
      %v6288 = vadd.f32 %v6140, %v6198
      %v6289 = vadd.f32 %v6141, %v6199
      %v6290 = vadd.f32 %v6142, %v6200
      %v6291 = vadd.f32 %v6143, %v6201
      %v6292 = vadd.f32 %v6144, %v6202
      %v6293 = vadd.f32 %v6145, %v6203
      %v6294 = vadd.f32 %v6146, %v6204
      %v6295 = vadd.f32 %v6147, %v6205
      %v6296 = vadd.f32 %v6148, %v6206
      %v6297 = vadd.f32 %v6149, %v6207
      %v6298 = vadd.f32 %v6150, %v6208
      %v6299 = vadd.f32 %v6151, %v6209
      %v6300 = vadd.f32 %v6152, %v6210
      %v6301 = vadd.f32 %v6153, %v6211
      %v6302 = vadd.f32 %v6270, %v6286
      %v6303 = vadd.f32 %v6271, %v6287
      %v6304 = vadd.f32 %v6272, %v6288
      %v6305 = vadd.f32 %v6273, %v6289
      %v6306 = vadd.f32 %v6274, %v6290
      %v6307 = vadd.f32 %v6275, %v6291
      %v6308 = vadd.f32 %v6276, %v6292
      %v6309 = vadd.f32 %v6277, %v6293
      %v6310 = vadd.f32 %v6278, %v6294
      %v6311 = vadd.f32 %v6279, %v6295
      %v6312 = vadd.f32 %v6280, %v6296
      %v6313 = vadd.f32 %v6281, %v6297
      %v6314 = vadd.f32 %v6282, %v6298
      %v6315 = vadd.f32 %v6283, %v6299
      %v6316 = vadd.f32 %v6284, %v6300
      %v6317 = vadd.f32 %v6285, %v6301
      %v6318 = vadd.f32 %v6302, %v6254
      %v6319 = vadd.f32 %v6303, %v6255
      %v6320 = vadd.f32 %v6304, %v6256
      %v6321 = vadd.f32 %v6305, %v6257
      %v6322 = vadd.f32 %v6306, %v6258
      %v6323 = vadd.f32 %v6307, %v6259
      %v6324 = vadd.f32 %v6308, %v6260
      %v6325 = vadd.f32 %v6309, %v6261
      %v6326 = vadd.f32 %v6310, %v6262
      %v6327 = vadd.f32 %v6311, %v6263
      %v6328 = vadd.f32 %v6312, %v6264
      %v6329 = vadd.f32 %v6313, %v6265
      %v6330 = vadd.f32 %v6314, %v6266
      %v6331 = vadd.f32 %v6315, %v6267
      %v6332 = vadd.f32 %v6316, %v6268
      %v6333 = vadd.f32 %v6317, %v6269
      %s6334 = scalar_lea.vmem [#allocation3], 96
      %v6335 = vld [vmem:[%s6334] sm:$0xff]
      %v6336 = vld [vmem:[%s6334 + $0x8] sm:$0xff]
      %v6337 = vld [vmem:[%s6334 + $0x10] sm:$0xff]
      %v6338 = vld [vmem:[%s6334 + $0x18] sm:$0xff]
      %v6339 = vld [vmem:[%s6334 + $0x20] sm:$0xff]
      %v6340 = vld [vmem:[%s6334 + $0x28] sm:$0xff]
      %v6341 = vld [vmem:[%s6334 + $0x30] sm:$0xff]
      %v6342 = vld [vmem:[%s6334 + $0x38] sm:$0xff]
      %v6343 = vld [vmem:[%s6334 + $0x40] sm:$0xff]
      %v6344 = vld [vmem:[%s6334 + $0x48] sm:$0xff]
      %v6345 = vld [vmem:[%s6334 + $0x50] sm:$0xff]
      %v6346 = vld [vmem:[%s6334 + $0x58] sm:$0xff]
      %v6347 = vld [vmem:[%s6334 + $0x60] sm:$0xff]
      %v6348 = vld [vmem:[%s6334 + $0x68] sm:$0xff]
      %v6349 = vld [vmem:[%s6334 + $0x70] sm:$0xff]
      %v6350 = vld [vmem:[%s6334 + $0x78] sm:$0xff]
      %v6351 = vld [vmem:[%s6334 + $0x80] sm:$0xff]
      %v6352 = vld [vmem:[%s6334 + $0x88] sm:$0xff]
      %v6353 = vld [vmem:[%s6334 + $0x90] sm:$0xff]
      %v6354 = vld [vmem:[%s6334 + $0x98] sm:$0xff]
      %v6355 = vld [vmem:[%s6334 + $0xa0] sm:$0xff]
      %v6356 = vld [vmem:[%s6334 + $0xa8] sm:$0xff]
      %v6357 = vld [vmem:[%s6334 + $0xb0] sm:$0xff]
      %v6358 = vld [vmem:[%s6334 + $0xb8] sm:$0xff]
      %v6359 = vld [vmem:[%s6334 + $0xc0] sm:$0xff]
      %v6360 = vld [vmem:[%s6334 + $0xc8] sm:$0xff]
      %v6361 = vld [vmem:[%s6334 + $0xd0] sm:$0xff]
      %v6362 = vld [vmem:[%s6334 + $0xd8] sm:$0xff]
      %v6363 = vld [vmem:[%s6334 + $0xe0] sm:$0xff]
      %v6364 = vld [vmem:[%s6334 + $0xe8] sm:$0xff]
      %v6365 = vld [vmem:[%s6334 + $0xf0] sm:$0xff]
      %v6366 = vld [vmem:[%s6334 + $0xf8] sm:$0xff]
      %v6367 = vrot.slane %v6335, 6
      %v6368 = vrot.slane %v6339, 6
      %v6369 = vrot.slane %v6343, 6
      %v6370 = vrot.slane %v6347, 6
      %v6371 = vrot.slane %v6351, 6
      %v6372 = vrot.slane %v6355, 6
      %v6373 = vrot.slane %v6359, 6
      %v6374 = vrot.slane %v6363, 6
      %v6375 = vrot.slane %v6336, 6
      %v6376 = vrot.slane %v6340, 6
      %v6377 = vrot.slane %v6344, 6
      %v6378 = vrot.slane %v6348, 6
      %v6379 = vrot.slane %v6352, 6
      %v6380 = vrot.slane %v6356, 6
      %v6381 = vrot.slane %v6360, 6
      %v6382 = vrot.slane %v6364, 6
      %v6383 = vrot.slane %v6337, 6
      %v6384 = vrot.slane %v6341, 6
      %v6385 = vrot.slane %v6345, 6
      %v6386 = vrot.slane %v6349, 6
      %v6387 = vrot.slane %v6353, 6
      %v6388 = vrot.slane %v6357, 6
      %v6389 = vrot.slane %v6361, 6
      %v6390 = vrot.slane %v6365, 6
      %v6391 = vsel %vm1565, %v6375, %v6383
      %v6392 = vsel %vm1565, %v6376, %v6384
      %v6393 = vsel %vm1565, %v6377, %v6385
      %v6394 = vsel %vm1565, %v6378, %v6386
      %v6395 = vsel %vm1565, %v6379, %v6387
      %v6396 = vsel %vm1565, %v6380, %v6388
      %v6397 = vsel %vm1565, %v6381, %v6389
      %v6398 = vsel %vm1565, %v6382, %v6390
      %v6399 = vsel %vm1565, %v6367, %v6375
      %v6400 = vsel %vm1565, %v6368, %v6376
      %v6401 = vsel %vm1565, %v6369, %v6377
      %v6402 = vsel %vm1565, %v6370, %v6378
      %v6403 = vsel %vm1565, %v6371, %v6379
      %v6404 = vsel %vm1565, %v6372, %v6380
      %v6405 = vsel %vm1565, %v6373, %v6381
      %v6406 = vsel %vm1565, %v6374, %v6382
      %v6407 = vld [vmem:[%s7 + $0xf] sm:$0x1]
      %v6408 = vperm.slane %v6407, 0
      %v6409 = vmul.f32 %v6399, %v6408
      %v6410 = vmul.f32 %v6391, %v6408
      %v6411 = vmul.f32 %v6400, %v6408
      %v6412 = vmul.f32 %v6392, %v6408
      %v6413 = vmul.f32 %v6401, %v6408
      %v6414 = vmul.f32 %v6393, %v6408
      %v6415 = vmul.f32 %v6402, %v6408
      %v6416 = vmul.f32 %v6394, %v6408
      %v6417 = vmul.f32 %v6403, %v6408
      %v6418 = vmul.f32 %v6395, %v6408
      %v6419 = vmul.f32 %v6404, %v6408
      %v6420 = vmul.f32 %v6396, %v6408
      %v6421 = vmul.f32 %v6405, %v6408
      %v6422 = vmul.f32 %v6397, %v6408
      %v6423 = vmul.f32 %v6406, %v6408
      %v6424 = vmul.f32 %v6398, %v6408
      %v6425 = vrot.slane %v6335, 7
      %v6426 = vrot.slane %v6339, 7
      %v6427 = vrot.slane %v6343, 7
      %v6428 = vrot.slane %v6347, 7
      %v6429 = vrot.slane %v6351, 7
      %v6430 = vrot.slane %v6355, 7
      %v6431 = vrot.slane %v6359, 7
      %v6432 = vrot.slane %v6363, 7
      %v6433 = vrot.slane %v6336, 7
      %v6434 = vrot.slane %v6340, 7
      %v6435 = vrot.slane %v6344, 7
      %v6436 = vrot.slane %v6348, 7
      %v6437 = vrot.slane %v6352, 7
      %v6438 = vrot.slane %v6356, 7
      %v6439 = vrot.slane %v6360, 7
      %v6440 = vrot.slane %v6364, 7
      %v6441 = vrot.slane %v6337, 7
      %v6442 = vrot.slane %v6341, 7
      %v6443 = vrot.slane %v6345, 7
      %v6444 = vrot.slane %v6349, 7
      %v6445 = vrot.slane %v6353, 7
      %v6446 = vrot.slane %v6357, 7
      %v6447 = vrot.slane %v6361, 7
      %v6448 = vrot.slane %v6365, 7
      %v6449 = vsel %vm1652, %v6433, %v6441
      %v6450 = vsel %vm1652, %v6434, %v6442
      %v6451 = vsel %vm1652, %v6435, %v6443
      %v6452 = vsel %vm1652, %v6436, %v6444
      %v6453 = vsel %vm1652, %v6437, %v6445
      %v6454 = vsel %vm1652, %v6438, %v6446
      %v6455 = vsel %vm1652, %v6439, %v6447
      %v6456 = vsel %vm1652, %v6440, %v6448
      %v6457 = vsel %vm1652, %v6425, %v6433
      %v6458 = vsel %vm1652, %v6426, %v6434
      %v6459 = vsel %vm1652, %v6427, %v6435
      %v6460 = vsel %vm1652, %v6428, %v6436
      %v6461 = vsel %vm1652, %v6429, %v6437
      %v6462 = vsel %vm1652, %v6430, %v6438
      %v6463 = vsel %vm1652, %v6431, %v6439
      %v6464 = vsel %vm1652, %v6432, %v6440
      %v6465 = vld [vmem:[%s7 + $0x10] sm:$0x1]
      %v6466 = vperm.slane %v6465, 0
      %v6467 = vmul.f32 %v6457, %v6466
      %v6468 = vmul.f32 %v6449, %v6466
      %v6469 = vmul.f32 %v6458, %v6466
      %v6470 = vmul.f32 %v6450, %v6466
      %v6471 = vmul.f32 %v6459, %v6466
      %v6472 = vmul.f32 %v6451, %v6466
      %v6473 = vmul.f32 %v6460, %v6466
      %v6474 = vmul.f32 %v6452, %v6466
      %v6475 = vmul.f32 %v6461, %v6466
      %v6476 = vmul.f32 %v6453, %v6466
      %v6477 = vmul.f32 %v6462, %v6466
      %v6478 = vmul.f32 %v6454, %v6466
      %v6479 = vmul.f32 %v6463, %v6466
      %v6480 = vmul.f32 %v6455, %v6466
      %v6481 = vmul.f32 %v6464, %v6466
      %v6482 = vmul.f32 %v6456, %v6466
      %v6483 = vld [vmem:[%s7 + $0x11] sm:$0x1]
      %v6484 = vperm.slane %v6483, 0
      %v6485 = vmul.f32 %v6336, %v6484
      %v6486 = vmul.f32 %v6337, %v6484
      %v6487 = vmul.f32 %v6340, %v6484
      %v6488 = vmul.f32 %v6341, %v6484
      %v6489 = vmul.f32 %v6344, %v6484
      %v6490 = vmul.f32 %v6345, %v6484
      %v6491 = vmul.f32 %v6348, %v6484
      %v6492 = vmul.f32 %v6349, %v6484
      %v6493 = vmul.f32 %v6352, %v6484
      %v6494 = vmul.f32 %v6353, %v6484
      %v6495 = vmul.f32 %v6356, %v6484
      %v6496 = vmul.f32 %v6357, %v6484
      %v6497 = vmul.f32 %v6360, %v6484
      %v6498 = vmul.f32 %v6361, %v6484
      %v6499 = vmul.f32 %v6364, %v6484
      %v6500 = vmul.f32 %v6365, %v6484
      %v6501 = vrot.slane %v6336, 1
      %v6502 = vrot.slane %v6340, 1
      %v6503 = vrot.slane %v6344, 1
      %v6504 = vrot.slane %v6348, 1
      %v6505 = vrot.slane %v6352, 1
      %v6506 = vrot.slane %v6356, 1
      %v6507 = vrot.slane %v6360, 1
      %v6508 = vrot.slane %v6364, 1
      %v6509 = vrot.slane %v6337, 1
      %v6510 = vrot.slane %v6341, 1
      %v6511 = vrot.slane %v6345, 1
      %v6512 = vrot.slane %v6349, 1
      %v6513 = vrot.slane %v6353, 1
      %v6514 = vrot.slane %v6357, 1
      %v6515 = vrot.slane %v6361, 1
      %v6516 = vrot.slane %v6365, 1
      %v6517 = vrot.slane %v6338, 1
      %v6518 = vrot.slane %v6342, 1
      %v6519 = vrot.slane %v6346, 1
      %v6520 = vrot.slane %v6350, 1
      %v6521 = vrot.slane %v6354, 1
      %v6522 = vrot.slane %v6358, 1
      %v6523 = vrot.slane %v6362, 1
      %v6524 = vrot.slane %v6366, 1
      %v6525 = vsel %vm1765, %v6509, %v6517
      %v6526 = vsel %vm1765, %v6510, %v6518
      %v6527 = vsel %vm1765, %v6511, %v6519
      %v6528 = vsel %vm1765, %v6512, %v6520
      %v6529 = vsel %vm1765, %v6513, %v6521
      %v6530 = vsel %vm1765, %v6514, %v6522
      %v6531 = vsel %vm1765, %v6515, %v6523
      %v6532 = vsel %vm1765, %v6516, %v6524
      %v6533 = vsel %vm1765, %v6501, %v6509
      %v6534 = vsel %vm1765, %v6502, %v6510
      %v6535 = vsel %vm1765, %v6503, %v6511
      %v6536 = vsel %vm1765, %v6504, %v6512
      %v6537 = vsel %vm1765, %v6505, %v6513
      %v6538 = vsel %vm1765, %v6506, %v6514
      %v6539 = vsel %vm1765, %v6507, %v6515
      %v6540 = vsel %vm1765, %v6508, %v6516
      %v6541 = vld [vmem:[%s7 + $0x12] sm:$0x1]
      %v6542 = vperm.slane %v6541, 0
      %v6543 = vmul.f32 %v6533, %v6542
      %v6544 = vmul.f32 %v6525, %v6542
      %v6545 = vmul.f32 %v6534, %v6542
      %v6546 = vmul.f32 %v6526, %v6542
      %v6547 = vmul.f32 %v6535, %v6542
      %v6548 = vmul.f32 %v6527, %v6542
      %v6549 = vmul.f32 %v6536, %v6542
      %v6550 = vmul.f32 %v6528, %v6542
      %v6551 = vmul.f32 %v6537, %v6542
      %v6552 = vmul.f32 %v6529, %v6542
      %v6553 = vmul.f32 %v6538, %v6542
      %v6554 = vmul.f32 %v6530, %v6542
      %v6555 = vmul.f32 %v6539, %v6542
      %v6556 = vmul.f32 %v6531, %v6542
      %v6557 = vmul.f32 %v6540, %v6542
      %v6558 = vmul.f32 %v6532, %v6542
      %v6559 = vrot.slane %v6336, 2
      %v6560 = vrot.slane %v6340, 2
      %v6561 = vrot.slane %v6344, 2
      %v6562 = vrot.slane %v6348, 2
      %v6563 = vrot.slane %v6352, 2
      %v6564 = vrot.slane %v6356, 2
      %v6565 = vrot.slane %v6360, 2
      %v6566 = vrot.slane %v6364, 2
      %v6567 = vrot.slane %v6337, 2
      %v6568 = vrot.slane %v6341, 2
      %v6569 = vrot.slane %v6345, 2
      %v6570 = vrot.slane %v6349, 2
      %v6571 = vrot.slane %v6353, 2
      %v6572 = vrot.slane %v6357, 2
      %v6573 = vrot.slane %v6361, 2
      %v6574 = vrot.slane %v6365, 2
      %v6575 = vrot.slane %v6338, 2
      %v6576 = vrot.slane %v6342, 2
      %v6577 = vrot.slane %v6346, 2
      %v6578 = vrot.slane %v6350, 2
      %v6579 = vrot.slane %v6354, 2
      %v6580 = vrot.slane %v6358, 2
      %v6581 = vrot.slane %v6362, 2
      %v6582 = vrot.slane %v6366, 2
      %v6583 = vsel %vm1852, %v6567, %v6575
      %v6584 = vsel %vm1852, %v6568, %v6576
      %v6585 = vsel %vm1852, %v6569, %v6577
      %v6586 = vsel %vm1852, %v6570, %v6578
      %v6587 = vsel %vm1852, %v6571, %v6579
      %v6588 = vsel %vm1852, %v6572, %v6580
      %v6589 = vsel %vm1852, %v6573, %v6581
      %v6590 = vsel %vm1852, %v6574, %v6582
      %v6591 = vsel %vm1852, %v6559, %v6567
      %v6592 = vsel %vm1852, %v6560, %v6568
      %v6593 = vsel %vm1852, %v6561, %v6569
      %v6594 = vsel %vm1852, %v6562, %v6570
      %v6595 = vsel %vm1852, %v6563, %v6571
      %v6596 = vsel %vm1852, %v6564, %v6572
      %v6597 = vsel %vm1852, %v6565, %v6573
      %v6598 = vsel %vm1852, %v6566, %v6574
      %v6599 = vld [vmem:[%s7 + $0x13] sm:$0x1]
      %v6600 = vperm.slane %v6599, 0
      %v6601 = vmul.f32 %v6591, %v6600
      %v6602 = vmul.f32 %v6583, %v6600
      %v6603 = vmul.f32 %v6592, %v6600
      %v6604 = vmul.f32 %v6584, %v6600
      %v6605 = vmul.f32 %v6593, %v6600
      %v6606 = vmul.f32 %v6585, %v6600
      %v6607 = vmul.f32 %v6594, %v6600
      %v6608 = vmul.f32 %v6586, %v6600
      %v6609 = vmul.f32 %v6595, %v6600
      %v6610 = vmul.f32 %v6587, %v6600
      %v6611 = vmul.f32 %v6596, %v6600
      %v6612 = vmul.f32 %v6588, %v6600
      %v6613 = vmul.f32 %v6597, %v6600
      %v6614 = vmul.f32 %v6589, %v6600
      %v6615 = vmul.f32 %v6598, %v6600
      %v6616 = vmul.f32 %v6590, %v6600
      %v6617 = vadd.f32 %v6409, %v6467
      %v6618 = vadd.f32 %v6410, %v6468
      %v6619 = vadd.f32 %v6411, %v6469
      %v6620 = vadd.f32 %v6412, %v6470
      %v6621 = vadd.f32 %v6413, %v6471
      %v6622 = vadd.f32 %v6414, %v6472
      %v6623 = vadd.f32 %v6415, %v6473
      %v6624 = vadd.f32 %v6416, %v6474
      %v6625 = vadd.f32 %v6417, %v6475
      %v6626 = vadd.f32 %v6418, %v6476
      %v6627 = vadd.f32 %v6419, %v6477
      %v6628 = vadd.f32 %v6420, %v6478
      %v6629 = vadd.f32 %v6421, %v6479
      %v6630 = vadd.f32 %v6422, %v6480
      %v6631 = vadd.f32 %v6423, %v6481
      %v6632 = vadd.f32 %v6424, %v6482
      %v6633 = vadd.f32 %v6485, %v6543
      %v6634 = vadd.f32 %v6486, %v6544
      %v6635 = vadd.f32 %v6487, %v6545
      %v6636 = vadd.f32 %v6488, %v6546
      %v6637 = vadd.f32 %v6489, %v6547
      %v6638 = vadd.f32 %v6490, %v6548
      %v6639 = vadd.f32 %v6491, %v6549
      %v6640 = vadd.f32 %v6492, %v6550
      %v6641 = vadd.f32 %v6493, %v6551
      %v6642 = vadd.f32 %v6494, %v6552
      %v6643 = vadd.f32 %v6495, %v6553
      %v6644 = vadd.f32 %v6496, %v6554
      %v6645 = vadd.f32 %v6497, %v6555
      %v6646 = vadd.f32 %v6498, %v6556
      %v6647 = vadd.f32 %v6499, %v6557
      %v6648 = vadd.f32 %v6500, %v6558
      %v6649 = vadd.f32 %v6617, %v6633
      %v6650 = vadd.f32 %v6618, %v6634
      %v6651 = vadd.f32 %v6619, %v6635
      %v6652 = vadd.f32 %v6620, %v6636
      %v6653 = vadd.f32 %v6621, %v6637
      %v6654 = vadd.f32 %v6622, %v6638
      %v6655 = vadd.f32 %v6623, %v6639
      %v6656 = vadd.f32 %v6624, %v6640
      %v6657 = vadd.f32 %v6625, %v6641
      %v6658 = vadd.f32 %v6626, %v6642
      %v6659 = vadd.f32 %v6627, %v6643
      %v6660 = vadd.f32 %v6628, %v6644
      %v6661 = vadd.f32 %v6629, %v6645
      %v6662 = vadd.f32 %v6630, %v6646
      %v6663 = vadd.f32 %v6631, %v6647
      %v6664 = vadd.f32 %v6632, %v6648
      %v6665 = vadd.f32 %v6649, %v6601
      %v6666 = vadd.f32 %v6650, %v6602
      %v6667 = vadd.f32 %v6651, %v6603
      %v6668 = vadd.f32 %v6652, %v6604
      %v6669 = vadd.f32 %v6653, %v6605
      %v6670 = vadd.f32 %v6654, %v6606
      %v6671 = vadd.f32 %v6655, %v6607
      %v6672 = vadd.f32 %v6656, %v6608
      %v6673 = vadd.f32 %v6657, %v6609
      %v6674 = vadd.f32 %v6658, %v6610
      %v6675 = vadd.f32 %v6659, %v6611
      %v6676 = vadd.f32 %v6660, %v6612
      %v6677 = vadd.f32 %v6661, %v6613
      %v6678 = vadd.f32 %v6662, %v6614
      %v6679 = vadd.f32 %v6663, %v6615
      %v6680 = vadd.f32 %v6664, %v6616
      %s6681 = scalar_lea.vmem [#allocation3], 128
      %v6682 = vld [vmem:[%s6681] sm:$0xff]
      %v6683 = vld [vmem:[%s6681 + $0x8] sm:$0xff]
      %v6684 = vld [vmem:[%s6681 + $0x10] sm:$0xff]
      %v6685 = vld [vmem:[%s6681 + $0x18] sm:$0xff]
      %v6686 = vld [vmem:[%s6681 + $0x20] sm:$0xff]
      %v6687 = vld [vmem:[%s6681 + $0x28] sm:$0xff]
      %v6688 = vld [vmem:[%s6681 + $0x30] sm:$0xff]
      %v6689 = vld [vmem:[%s6681 + $0x38] sm:$0xff]
      %v6690 = vld [vmem:[%s6681 + $0x40] sm:$0xff]
      %v6691 = vld [vmem:[%s6681 + $0x48] sm:$0xff]
      %v6692 = vld [vmem:[%s6681 + $0x50] sm:$0xff]
      %v6693 = vld [vmem:[%s6681 + $0x58] sm:$0xff]
      %v6694 = vld [vmem:[%s6681 + $0x60] sm:$0xff]
      %v6695 = vld [vmem:[%s6681 + $0x68] sm:$0xff]
      %v6696 = vld [vmem:[%s6681 + $0x70] sm:$0xff]
      %v6697 = vld [vmem:[%s6681 + $0x78] sm:$0xff]
      %v6698 = vld [vmem:[%s6681 + $0x80] sm:$0xff]
      %v6699 = vld [vmem:[%s6681 + $0x88] sm:$0xff]
      %v6700 = vld [vmem:[%s6681 + $0x90] sm:$0xff]
      %v6701 = vld [vmem:[%s6681 + $0x98] sm:$0xff]
      %v6702 = vld [vmem:[%s6681 + $0xa0] sm:$0xff]
      %v6703 = vld [vmem:[%s6681 + $0xa8] sm:$0xff]
      %v6704 = vld [vmem:[%s6681 + $0xb0] sm:$0xff]
      %v6705 = vld [vmem:[%s6681 + $0xb8] sm:$0xff]
      %v6706 = vld [vmem:[%s6681 + $0xc0] sm:$0xff]
      %v6707 = vld [vmem:[%s6681 + $0xc8] sm:$0xff]
      %v6708 = vld [vmem:[%s6681 + $0xd0] sm:$0xff]
      %v6709 = vld [vmem:[%s6681 + $0xd8] sm:$0xff]
      %v6710 = vld [vmem:[%s6681 + $0xe0] sm:$0xff]
      %v6711 = vld [vmem:[%s6681 + $0xe8] sm:$0xff]
      %v6712 = vld [vmem:[%s6681 + $0xf0] sm:$0xff]
      %v6713 = vld [vmem:[%s6681 + $0xf8] sm:$0xff]
      %v6714 = vrot.slane %v6682, 6
      %v6715 = vrot.slane %v6686, 6
      %v6716 = vrot.slane %v6690, 6
      %v6717 = vrot.slane %v6694, 6
      %v6718 = vrot.slane %v6698, 6
      %v6719 = vrot.slane %v6702, 6
      %v6720 = vrot.slane %v6706, 6
      %v6721 = vrot.slane %v6710, 6
      %v6722 = vrot.slane %v6683, 6
      %v6723 = vrot.slane %v6687, 6
      %v6724 = vrot.slane %v6691, 6
      %v6725 = vrot.slane %v6695, 6
      %v6726 = vrot.slane %v6699, 6
      %v6727 = vrot.slane %v6703, 6
      %v6728 = vrot.slane %v6707, 6
      %v6729 = vrot.slane %v6711, 6
      %v6730 = vrot.slane %v6684, 6
      %v6731 = vrot.slane %v6688, 6
      %v6732 = vrot.slane %v6692, 6
      %v6733 = vrot.slane %v6696, 6
      %v6734 = vrot.slane %v6700, 6
      %v6735 = vrot.slane %v6704, 6
      %v6736 = vrot.slane %v6708, 6
      %v6737 = vrot.slane %v6712, 6
      %v6738 = vsel %vm1565, %v6722, %v6730
      %v6739 = vsel %vm1565, %v6723, %v6731
      %v6740 = vsel %vm1565, %v6724, %v6732
      %v6741 = vsel %vm1565, %v6725, %v6733
      %v6742 = vsel %vm1565, %v6726, %v6734
      %v6743 = vsel %vm1565, %v6727, %v6735
      %v6744 = vsel %vm1565, %v6728, %v6736
      %v6745 = vsel %vm1565, %v6729, %v6737
      %v6746 = vsel %vm1565, %v6714, %v6722
      %v6747 = vsel %vm1565, %v6715, %v6723
      %v6748 = vsel %vm1565, %v6716, %v6724
      %v6749 = vsel %vm1565, %v6717, %v6725
      %v6750 = vsel %vm1565, %v6718, %v6726
      %v6751 = vsel %vm1565, %v6719, %v6727
      %v6752 = vsel %vm1565, %v6720, %v6728
      %v6753 = vsel %vm1565, %v6721, %v6729
      %v6754 = vld [vmem:[%s7 + $0x14] sm:$0x1]
      %v6755 = vperm.slane %v6754, 0
      %v6756 = vmul.f32 %v6746, %v6755
      %v6757 = vmul.f32 %v6738, %v6755
      %v6758 = vmul.f32 %v6747, %v6755
      %v6759 = vmul.f32 %v6739, %v6755
      %v6760 = vmul.f32 %v6748, %v6755
      %v6761 = vmul.f32 %v6740, %v6755
      %v6762 = vmul.f32 %v6749, %v6755
      %v6763 = vmul.f32 %v6741, %v6755
      %v6764 = vmul.f32 %v6750, %v6755
      %v6765 = vmul.f32 %v6742, %v6755
      %v6766 = vmul.f32 %v6751, %v6755
      %v6767 = vmul.f32 %v6743, %v6755
      %v6768 = vmul.f32 %v6752, %v6755
      %v6769 = vmul.f32 %v6744, %v6755
      %v6770 = vmul.f32 %v6753, %v6755
      %v6771 = vmul.f32 %v6745, %v6755
      %v6772 = vrot.slane %v6682, 7
      %v6773 = vrot.slane %v6686, 7
      %v6774 = vrot.slane %v6690, 7
      %v6775 = vrot.slane %v6694, 7
      %v6776 = vrot.slane %v6698, 7
      %v6777 = vrot.slane %v6702, 7
      %v6778 = vrot.slane %v6706, 7
      %v6779 = vrot.slane %v6710, 7
      %v6780 = vrot.slane %v6683, 7
      %v6781 = vrot.slane %v6687, 7
      %v6782 = vrot.slane %v6691, 7
      %v6783 = vrot.slane %v6695, 7
      %v6784 = vrot.slane %v6699, 7
      %v6785 = vrot.slane %v6703, 7
      %v6786 = vrot.slane %v6707, 7
      %v6787 = vrot.slane %v6711, 7
      %v6788 = vrot.slane %v6684, 7
      %v6789 = vrot.slane %v6688, 7
      %v6790 = vrot.slane %v6692, 7
      %v6791 = vrot.slane %v6696, 7
      %v6792 = vrot.slane %v6700, 7
      %v6793 = vrot.slane %v6704, 7
      %v6794 = vrot.slane %v6708, 7
      %v6795 = vrot.slane %v6712, 7
      %v6796 = vsel %vm1652, %v6780, %v6788
      %v6797 = vsel %vm1652, %v6781, %v6789
      %v6798 = vsel %vm1652, %v6782, %v6790
      %v6799 = vsel %vm1652, %v6783, %v6791
      %v6800 = vsel %vm1652, %v6784, %v6792
      %v6801 = vsel %vm1652, %v6785, %v6793
      %v6802 = vsel %vm1652, %v6786, %v6794
      %v6803 = vsel %vm1652, %v6787, %v6795
      %v6804 = vsel %vm1652, %v6772, %v6780
      %v6805 = vsel %vm1652, %v6773, %v6781
      %v6806 = vsel %vm1652, %v6774, %v6782
      %v6807 = vsel %vm1652, %v6775, %v6783
      %v6808 = vsel %vm1652, %v6776, %v6784
      %v6809 = vsel %vm1652, %v6777, %v6785
      %v6810 = vsel %vm1652, %v6778, %v6786
      %v6811 = vsel %vm1652, %v6779, %v6787
      %v6812 = vld [vmem:[%s7 + $0x15] sm:$0x1]
      %v6813 = vperm.slane %v6812, 0
      %v6814 = vmul.f32 %v6804, %v6813
      %v6815 = vmul.f32 %v6796, %v6813
      %v6816 = vmul.f32 %v6805, %v6813
      %v6817 = vmul.f32 %v6797, %v6813
      %v6818 = vmul.f32 %v6806, %v6813
      %v6819 = vmul.f32 %v6798, %v6813
      %v6820 = vmul.f32 %v6807, %v6813
      %v6821 = vmul.f32 %v6799, %v6813
      %v6822 = vmul.f32 %v6808, %v6813
      %v6823 = vmul.f32 %v6800, %v6813
      %v6824 = vmul.f32 %v6809, %v6813
      %v6825 = vmul.f32 %v6801, %v6813
      %v6826 = vmul.f32 %v6810, %v6813
      %v6827 = vmul.f32 %v6802, %v6813
      %v6828 = vmul.f32 %v6811, %v6813
      %v6829 = vmul.f32 %v6803, %v6813
      %v6830 = vld [vmem:[%s7 + $0x16] sm:$0x1]
      %v6831 = vperm.slane %v6830, 0
      %v6832 = vmul.f32 %v6683, %v6831
      %v6833 = vmul.f32 %v6684, %v6831
      %v6834 = vmul.f32 %v6687, %v6831
      %v6835 = vmul.f32 %v6688, %v6831
      %v6836 = vmul.f32 %v6691, %v6831
      %v6837 = vmul.f32 %v6692, %v6831
      %v6838 = vmul.f32 %v6695, %v6831
      %v6839 = vmul.f32 %v6696, %v6831
      %v6840 = vmul.f32 %v6699, %v6831
      %v6841 = vmul.f32 %v6700, %v6831
      %v6842 = vmul.f32 %v6703, %v6831
      %v6843 = vmul.f32 %v6704, %v6831
      %v6844 = vmul.f32 %v6707, %v6831
      %v6845 = vmul.f32 %v6708, %v6831
      %v6846 = vmul.f32 %v6711, %v6831
      %v6847 = vmul.f32 %v6712, %v6831
      %v6848 = vrot.slane %v6683, 1
      %v6849 = vrot.slane %v6687, 1
      %v6850 = vrot.slane %v6691, 1
      %v6851 = vrot.slane %v6695, 1
      %v6852 = vrot.slane %v6699, 1
      %v6853 = vrot.slane %v6703, 1
      %v6854 = vrot.slane %v6707, 1
      %v6855 = vrot.slane %v6711, 1
      %v6856 = vrot.slane %v6684, 1
      %v6857 = vrot.slane %v6688, 1
      %v6858 = vrot.slane %v6692, 1
      %v6859 = vrot.slane %v6696, 1
      %v6860 = vrot.slane %v6700, 1
      %v6861 = vrot.slane %v6704, 1
      %v6862 = vrot.slane %v6708, 1
      %v6863 = vrot.slane %v6712, 1
      %v6864 = vrot.slane %v6685, 1
      %v6865 = vrot.slane %v6689, 1
      %v6866 = vrot.slane %v6693, 1
      %v6867 = vrot.slane %v6697, 1
      %v6868 = vrot.slane %v6701, 1
      %v6869 = vrot.slane %v6705, 1
      %v6870 = vrot.slane %v6709, 1
      %v6871 = vrot.slane %v6713, 1
      %v6872 = vsel %vm1765, %v6856, %v6864
      %v6873 = vsel %vm1765, %v6857, %v6865
      %v6874 = vsel %vm1765, %v6858, %v6866
      %v6875 = vsel %vm1765, %v6859, %v6867
      %v6876 = vsel %vm1765, %v6860, %v6868
      %v6877 = vsel %vm1765, %v6861, %v6869
      %v6878 = vsel %vm1765, %v6862, %v6870
      %v6879 = vsel %vm1765, %v6863, %v6871
      %v6880 = vsel %vm1765, %v6848, %v6856
      %v6881 = vsel %vm1765, %v6849, %v6857
      %v6882 = vsel %vm1765, %v6850, %v6858
      %v6883 = vsel %vm1765, %v6851, %v6859
      %v6884 = vsel %vm1765, %v6852, %v6860
      %v6885 = vsel %vm1765, %v6853, %v6861
      %v6886 = vsel %vm1765, %v6854, %v6862
      %v6887 = vsel %vm1765, %v6855, %v6863
      %v6888 = vld [vmem:[%s7 + $0x17] sm:$0x1]
      %v6889 = vperm.slane %v6888, 0
      %v6890 = vmul.f32 %v6880, %v6889
      %v6891 = vmul.f32 %v6872, %v6889
      %v6892 = vmul.f32 %v6881, %v6889
      %v6893 = vmul.f32 %v6873, %v6889
      %v6894 = vmul.f32 %v6882, %v6889
      %v6895 = vmul.f32 %v6874, %v6889
      %v6896 = vmul.f32 %v6883, %v6889
      %v6897 = vmul.f32 %v6875, %v6889
      %v6898 = vmul.f32 %v6884, %v6889
      %v6899 = vmul.f32 %v6876, %v6889
      %v6900 = vmul.f32 %v6885, %v6889
      %v6901 = vmul.f32 %v6877, %v6889
      %v6902 = vmul.f32 %v6886, %v6889
      %v6903 = vmul.f32 %v6878, %v6889
      %v6904 = vmul.f32 %v6887, %v6889
      %v6905 = vmul.f32 %v6879, %v6889
      %v6906 = vrot.slane %v6683, 2
      %v6907 = vrot.slane %v6687, 2
      %v6908 = vrot.slane %v6691, 2
      %v6909 = vrot.slane %v6695, 2
      %v6910 = vrot.slane %v6699, 2
      %v6911 = vrot.slane %v6703, 2
      %v6912 = vrot.slane %v6707, 2
      %v6913 = vrot.slane %v6711, 2
      %v6914 = vrot.slane %v6684, 2
      %v6915 = vrot.slane %v6688, 2
      %v6916 = vrot.slane %v6692, 2
      %v6917 = vrot.slane %v6696, 2
      %v6918 = vrot.slane %v6700, 2
      %v6919 = vrot.slane %v6704, 2
      %v6920 = vrot.slane %v6708, 2
      %v6921 = vrot.slane %v6712, 2
      %v6922 = vrot.slane %v6685, 2
      %v6923 = vrot.slane %v6689, 2
      %v6924 = vrot.slane %v6693, 2
      %v6925 = vrot.slane %v6697, 2
      %v6926 = vrot.slane %v6701, 2
      %v6927 = vrot.slane %v6705, 2
      %v6928 = vrot.slane %v6709, 2
      %v6929 = vrot.slane %v6713, 2
      %v6930 = vsel %vm1852, %v6914, %v6922
      %v6931 = vsel %vm1852, %v6915, %v6923
      %v6932 = vsel %vm1852, %v6916, %v6924
      %v6933 = vsel %vm1852, %v6917, %v6925
      %v6934 = vsel %vm1852, %v6918, %v6926
      %v6935 = vsel %vm1852, %v6919, %v6927
      %v6936 = vsel %vm1852, %v6920, %v6928
      %v6937 = vsel %vm1852, %v6921, %v6929
      %v6938 = vsel %vm1852, %v6906, %v6914
      %v6939 = vsel %vm1852, %v6907, %v6915
      %v6940 = vsel %vm1852, %v6908, %v6916
      %v6941 = vsel %vm1852, %v6909, %v6917
      %v6942 = vsel %vm1852, %v6910, %v6918
      %v6943 = vsel %vm1852, %v6911, %v6919
      %v6944 = vsel %vm1852, %v6912, %v6920
      %v6945 = vsel %vm1852, %v6913, %v6921
      %v6946 = vld [vmem:[%s7 + $0x18] sm:$0x1]
      %v6947 = vperm.slane %v6946, 0
      %v6948 = vmul.f32 %v6938, %v6947
      %v6949 = vmul.f32 %v6930, %v6947
      %v6950 = vmul.f32 %v6939, %v6947
      %v6951 = vmul.f32 %v6931, %v6947
      %v6952 = vmul.f32 %v6940, %v6947
      %v6953 = vmul.f32 %v6932, %v6947
      %v6954 = vmul.f32 %v6941, %v6947
      %v6955 = vmul.f32 %v6933, %v6947
      %v6956 = vmul.f32 %v6942, %v6947
      %v6957 = vmul.f32 %v6934, %v6947
      %v6958 = vmul.f32 %v6943, %v6947
      %v6959 = vmul.f32 %v6935, %v6947
      %v6960 = vmul.f32 %v6944, %v6947
      %v6961 = vmul.f32 %v6936, %v6947
      %v6962 = vmul.f32 %v6945, %v6947
      %v6963 = vmul.f32 %v6937, %v6947
      %v6964 = vadd.f32 %v6756, %v6814
      %v6965 = vadd.f32 %v6757, %v6815
      %v6966 = vadd.f32 %v6758, %v6816
      %v6967 = vadd.f32 %v6759, %v6817
      %v6968 = vadd.f32 %v6760, %v6818
      %v6969 = vadd.f32 %v6761, %v6819
      %v6970 = vadd.f32 %v6762, %v6820
      %v6971 = vadd.f32 %v6763, %v6821
      %v6972 = vadd.f32 %v6764, %v6822
      %v6973 = vadd.f32 %v6765, %v6823
      %v6974 = vadd.f32 %v6766, %v6824
      %v6975 = vadd.f32 %v6767, %v6825
      %v6976 = vadd.f32 %v6768, %v6826
      %v6977 = vadd.f32 %v6769, %v6827
      %v6978 = vadd.f32 %v6770, %v6828
      %v6979 = vadd.f32 %v6771, %v6829
      %v6980 = vadd.f32 %v6832, %v6890
      %v6981 = vadd.f32 %v6833, %v6891
      %v6982 = vadd.f32 %v6834, %v6892
      %v6983 = vadd.f32 %v6835, %v6893
      %v6984 = vadd.f32 %v6836, %v6894
      %v6985 = vadd.f32 %v6837, %v6895
      %v6986 = vadd.f32 %v6838, %v6896
      %v6987 = vadd.f32 %v6839, %v6897
      %v6988 = vadd.f32 %v6840, %v6898
      %v6989 = vadd.f32 %v6841, %v6899
      %v6990 = vadd.f32 %v6842, %v6900
      %v6991 = vadd.f32 %v6843, %v6901
      %v6992 = vadd.f32 %v6844, %v6902
      %v6993 = vadd.f32 %v6845, %v6903
      %v6994 = vadd.f32 %v6846, %v6904
      %v6995 = vadd.f32 %v6847, %v6905
      %v6996 = vadd.f32 %v6964, %v6980
      %v6997 = vadd.f32 %v6965, %v6981
      %v6998 = vadd.f32 %v6966, %v6982
      %v6999 = vadd.f32 %v6967, %v6983
      %v7000 = vadd.f32 %v6968, %v6984
      %v7001 = vadd.f32 %v6969, %v6985
      %v7002 = vadd.f32 %v6970, %v6986
      %v7003 = vadd.f32 %v6971, %v6987
      %v7004 = vadd.f32 %v6972, %v6988
      %v7005 = vadd.f32 %v6973, %v6989
      %v7006 = vadd.f32 %v6974, %v6990
      %v7007 = vadd.f32 %v6975, %v6991
      %v7008 = vadd.f32 %v6976, %v6992
      %v7009 = vadd.f32 %v6977, %v6993
      %v7010 = vadd.f32 %v6978, %v6994
      %v7011 = vadd.f32 %v6979, %v6995
      %v7012 = vadd.f32 %v6996, %v6948
      %v7013 = vadd.f32 %v6997, %v6949
      %v7014 = vadd.f32 %v6998, %v6950
      %v7015 = vadd.f32 %v6999, %v6951
      %v7016 = vadd.f32 %v7000, %v6952
      %v7017 = vadd.f32 %v7001, %v6953
      %v7018 = vadd.f32 %v7002, %v6954
      %v7019 = vadd.f32 %v7003, %v6955
      %v7020 = vadd.f32 %v7004, %v6956
      %v7021 = vadd.f32 %v7005, %v6957
      %v7022 = vadd.f32 %v7006, %v6958
      %v7023 = vadd.f32 %v7007, %v6959
      %v7024 = vadd.f32 %v7008, %v6960
      %v7025 = vadd.f32 %v7009, %v6961
      %v7026 = vadd.f32 %v7010, %v6962
      %v7027 = vadd.f32 %v7011, %v6963
      %v7028 = vadd.f32 %v5624, %v5971
      %v7029 = vadd.f32 %v5625, %v5972
      %v7030 = vadd.f32 %v5626, %v5973
      %v7031 = vadd.f32 %v5627, %v5974
      %v7032 = vadd.f32 %v5628, %v5975
      %v7033 = vadd.f32 %v5629, %v5976
      %v7034 = vadd.f32 %v5630, %v5977
      %v7035 = vadd.f32 %v5631, %v5978
      %v7036 = vadd.f32 %v5632, %v5979
      %v7037 = vadd.f32 %v5633, %v5980
      %v7038 = vadd.f32 %v5634, %v5981
      %v7039 = vadd.f32 %v5635, %v5982
      %v7040 = vadd.f32 %v5636, %v5983
      %v7041 = vadd.f32 %v5637, %v5984
      %v7042 = vadd.f32 %v5638, %v5985
      %v7043 = vadd.f32 %v5639, %v5986
      %v7044 = vadd.f32 %v6318, %v6665
      %v7045 = vadd.f32 %v6319, %v6666
      %v7046 = vadd.f32 %v6320, %v6667
      %v7047 = vadd.f32 %v6321, %v6668
      %v7048 = vadd.f32 %v6322, %v6669
      %v7049 = vadd.f32 %v6323, %v6670
      %v7050 = vadd.f32 %v6324, %v6671
      %v7051 = vadd.f32 %v6325, %v6672
      %v7052 = vadd.f32 %v6326, %v6673
      %v7053 = vadd.f32 %v6327, %v6674
      %v7054 = vadd.f32 %v6328, %v6675
      %v7055 = vadd.f32 %v6329, %v6676
      %v7056 = vadd.f32 %v6330, %v6677
      %v7057 = vadd.f32 %v6331, %v6678
      %v7058 = vadd.f32 %v6332, %v6679
      %v7059 = vadd.f32 %v6333, %v6680
      %v7060 = vadd.f32 %v7028, %v7044
      %v7061 = vadd.f32 %v7029, %v7045
      %v7062 = vadd.f32 %v7030, %v7046
      %v7063 = vadd.f32 %v7031, %v7047
      %v7064 = vadd.f32 %v7032, %v7048
      %v7065 = vadd.f32 %v7033, %v7049
      %v7066 = vadd.f32 %v7034, %v7050
      %v7067 = vadd.f32 %v7035, %v7051
      %v7068 = vadd.f32 %v7036, %v7052
      %v7069 = vadd.f32 %v7037, %v7053
      %v7070 = vadd.f32 %v7038, %v7054
      %v7071 = vadd.f32 %v7039, %v7055
      %v7072 = vadd.f32 %v7040, %v7056
      %v7073 = vadd.f32 %v7041, %v7057
      %v7074 = vadd.f32 %v7042, %v7058
      %v7075 = vadd.f32 %v7043, %v7059
      %v7076 = vadd.f32 %v7060, %v7012
      %v7077 = vadd.f32 %v7061, %v7013
      %v7078 = vadd.f32 %v7062, %v7014
      %v7079 = vadd.f32 %v7063, %v7015
      %v7080 = vadd.f32 %v7064, %v7016
      %v7081 = vadd.f32 %v7065, %v7017
      %v7082 = vadd.f32 %v7066, %v7018
      %v7083 = vadd.f32 %v7067, %v7019
      %v7084 = vadd.f32 %v7068, %v7020
      %v7085 = vadd.f32 %v7069, %v7021
      %v7086 = vadd.f32 %v7070, %v7022
      %v7087 = vadd.f32 %v7071, %v7023
      %v7088 = vadd.f32 %v7072, %v7024
      %v7089 = vadd.f32 %v7073, %v7025
      %v7090 = vadd.f32 %v7074, %v7026
      %v7091 = vadd.f32 %v7075, %v7027
      %v7092 = vld [vmem:[%s8] sm:$0x1]
      %v7094 = vperm.slane %v7092, 0
      %v7096 = vadd.f32 %v7076, %v7094
      %v7097 = vadd.f32 %v7077, %v7094
      %v7098 = vadd.f32 %v7078, %v7094
      %v7099 = vadd.f32 %v7079, %v7094
      %v7100 = vadd.f32 %v7080, %v7094
      %v7101 = vadd.f32 %v7081, %v7094
      %v7102 = vadd.f32 %v7082, %v7094
      %v7103 = vadd.f32 %v7083, %v7094
      %v7104 = vadd.f32 %v7084, %v7094
      %v7105 = vadd.f32 %v7085, %v7094
      %v7106 = vadd.f32 %v7086, %v7094
      %v7107 = vadd.f32 %v7087, %v7094
      %v7108 = vadd.f32 %v7088, %v7094
      %v7109 = vadd.f32 %v7089, %v7094
      %v7110 = vadd.f32 %v7090, %v7094
      %v7111 = vadd.f32 %v7091, %v7094
      %7112 = vrot.lane.b32.xlu0 %v7096, 8
      %v7113 = vpop.permute.xlu0 %7112
      %7114 = vrot.lane.b32.xlu0 %v7097, 8
      %v7115 = vpop.permute.xlu0 %7114
      %7116 = vrot.lane.b32.xlu0 %v7098, 8
      %v7117 = vpop.permute.xlu0 %7116
      %7118 = vrot.lane.b32.xlu0 %v7099, 8
      %v7119 = vpop.permute.xlu0 %7118
      %7120 = vrot.lane.b32.xlu0 %v7100, 8
      %v7121 = vpop.permute.xlu0 %7120
      %7122 = vrot.lane.b32.xlu0 %v7101, 8
      %v7123 = vpop.permute.xlu0 %7122
      %7124 = vrot.lane.b32.xlu0 %v7102, 8
      %v7125 = vpop.permute.xlu0 %7124
      %7126 = vrot.lane.b32.xlu0 %v7103, 8
      %v7127 = vpop.permute.xlu0 %7126
      %7128 = vrot.lane.b32.xlu0 %v7104, 8
      %v7129 = vpop.permute.xlu0 %7128
      %7130 = vrot.lane.b32.xlu0 %v7105, 8
      %v7131 = vpop.permute.xlu0 %7130
      %7132 = vrot.lane.b32.xlu0 %v7106, 8
      %v7133 = vpop.permute.xlu0 %7132
      %7134 = vrot.lane.b32.xlu0 %v7107, 8
      %v7135 = vpop.permute.xlu0 %7134
      %7136 = vrot.lane.b32.xlu0 %v7108, 8
      %v7137 = vpop.permute.xlu0 %7136
      %7138 = vrot.lane.b32.xlu0 %v7109, 8
      %v7139 = vpop.permute.xlu0 %7138
      %7140 = vrot.lane.b32.xlu0 %v7110, 8
      %v7141 = vpop.permute.xlu0 %7140
      %7142 = vrot.lane.b32.xlu0 %v7111, 8
      %v7143 = vpop.permute.xlu0 %7142
      %v7144 = vadd.f32 %v5250, %v7113
      %v7145 = vadd.f32 %v5251, %v7115
      %v7146 = vadd.f32 %v5252, %v7117
      %v7147 = vadd.f32 %v5253, %v7119
      %v7148 = vadd.f32 %v5254, %v7121
      %v7149 = vadd.f32 %v5255, %v7123
      %v7150 = vadd.f32 %v5256, %v7125
      %v7151 = vadd.f32 %v5257, %v7127
      %v7152 = vadd.f32 %v5258, %v7129
      %v7153 = vadd.f32 %v5259, %v7131
      %v7154 = vadd.f32 %v5260, %v7133
      %v7155 = vadd.f32 %v5261, %v7135
      %v7156 = vadd.f32 %v5262, %v7137
      %v7157 = vadd.f32 %v5263, %v7139
      %v7158 = vadd.f32 %v5264, %v7141
      %v7159 = vadd.f32 %v5265, %v7143
      %7160 = vst [vmem:[%s356] sm:$0xff] %v7144
      %7161 = vst [vmem:[%s356 + $0x8] sm:$0xff] %v7145
      %7162 = vst [vmem:[%s356 + $0x10] sm:$0xff] %v7146
      %7163 = vst [vmem:[%s356 + $0x18] sm:$0xff] %v7147
      %7164 = vst [vmem:[%s356 + $0x20] sm:$0xff] %v7148
      %7165 = vst [vmem:[%s356 + $0x28] sm:$0xff] %v7149
      %7166 = vst [vmem:[%s356 + $0x30] sm:$0xff] %v7150
      %7167 = vst [vmem:[%s356 + $0x38] sm:$0xff] %v7151
      %7168 = vst [vmem:[%s356 + $0x40] sm:$0xff] %v7152
      %7169 = vst [vmem:[%s356 + $0x48] sm:$0xff] %v7153
      %7170 = vst [vmem:[%s356 + $0x50] sm:$0xff] %v7154
      %7171 = vst [vmem:[%s356 + $0x58] sm:$0xff] %v7155
      %7172 = vst [vmem:[%s356 + $0x60] sm:$0xff] %v7156
      %7173 = vst [vmem:[%s356 + $0x68] sm:$0xff] %v7157
      %7174 = vst [vmem:[%s356 + $0x70] sm:$0xff] %v7158
      %7175 = vst [vmem:[%s356 + $0x78] sm:$0xff] %v7159
      %s7176 = smul.u32 8, %s25
      %p7177 = scmp.lt.s32.totalorder %s24, 1
      %s7178 = scalar_select %p7177, %s24, 1
      %p7179 = scmp.lt.s32.totalorder %s7176, 15
      %s7180 = scalar_select %p7179, %s7176, 15
      %s7181 = smul.addr %s7180, 2
      %s7182 = smul.addr %s7178, 32
      %s7183 = sadd.s32 %s7181, %s7182
      %s7184 = smul.addr %s7183, 8
      %s7185 = scalar_lea.vmem %s9, %s7184
      // Predicated region
      $region57: #{_forward_impl.1} parent=55 // pred_check
        %p7186 = pneg %p246
      $region58: #{_forward_impl.1} parent=55 // pred_check_branch
        %7188 = sbr.rel (%p7186) target = $region60
      $region59: #{_forward_impl.1} parent=55 // pred_region
        %s7189 = smul.u32 8, %s25
      $region60: #{_forward_impl.1} parent=55 // pred_fallthru
        _
    $region56: #{_forward_impl.1} parent=5 // pred_fallthru
      _
    %p7190 = scmp.le.s32.totalorder 2, %s15
    // Predicated region
    $region61: #{_forward_impl.1} parent=5 // pred_check
      %p7191 = pneg %p7190
    $region62: #{_forward_impl.1} parent=5 // pred_check_branch
      %7193 = sbr.rel (%p7191) target = $region64
    $region63: #{_forward_impl.1} parent=5 // pred_region
      %s7194 = ssub.s32 %s15, 2
      // Predicated region
      $region65: #{_forward_impl.1} parent=63 // pred_check
        %p7195 = pneg %p252
      $region66: #{_forward_impl.1} parent=63 // pred_check_branch
        %7197 = sbr.rel (%p7195) target = $region68
      $region67: #{_forward_impl.1} parent=63 // pred_region
        %s7198 = smul.u32 8, %s27
        %p7199 = scmp.lt.s32.totalorder %s26, 1
        %s7200 = scalar_select %p7199, %s26, 1
        %p7201 = scmp.lt.s32.totalorder %s7198, 15
        %s7202 = scalar_select %p7201, %s7198, 15
        %s7203 = smul.addr %s7202, 2
        %s7204 = smul.addr %s7200, 32
        %s7205 = sadd.s32 %s7203, %s7204
        %s7206 = smul.addr %s7205, 8
        %s7207 = scalar_lea.vmem %s9, %s7206
      $region68: #{_forward_impl.1} parent=63 // pred_fallthru
        _
    $region64: #{_forward_impl.1} parent=5 // pred_fallthru
      _
  $region6: #{_forward_impl.1} parent=0 // loop_footer
    %s19 = sadd.s32 1, %s15
  $region7: #{_forward_impl.1} parent=0 // loop_footer_branch
    %14 = sbr.rel target = $region3
  $region8: #{_forward_impl.1} parent=0 // loop_exit
    _

</llo_original>
